<compile_context>
chip_gen: v7x
topology: tpu7x:2x2x1
jax: 0.10.0
libtpu: 0.0.40
codegen_flags: <defaults>
</compile_context>

<pallas_src>
import numpy as np
import jax
import jax.numpy as jnp
from jax import lax
from jax.experimental import pallas as pl
from jax.experimental.pallas import tpu as pltpu


# ----------------------------- Pallas kernel -------------------------------

def yournet_kernel(x_ref, m1_ref, b1_ref, m2_ref, b2_ref,
                   wf1_ref, bf1_ref, wf2_ref, bf2_ref, wf3_ref, bf3_ref,
                   o_ref):
    """YourNet forward for one batch block of B images (grid = batch blocks).

    Every matmul puts the batch on the MXU M axis; bf16 operands, f32 accumulate.
    NOTE: pooling is applied to pre-bias / pre-ReLU branch values.  This is valid
    only because the bias is identical across the 4 pool branches and ReLU is
    monotone -- keep it that way if editing (e.g. no per-branch scaling).
    """
    # ---- conv1 (+2x2 maxpool): dense gather-matmul on the flat padded image ----
    # column = branch*640 + channel*176 + (ph*13 + pw)  -> 128-aligned branch groups
    h1 = jnp.dot(x_ref[...], m1_ref[...],
                 preferred_element_type=jnp.float32)                    # (B, 2560) f32
    p1 = jnp.maximum(jnp.maximum(h1[:, 0:640], h1[:, 640:1280]),
                     jnp.maximum(h1[:, 1280:1920], h1[:, 1920:2560]))   # (B, 640)
    a1 = jnp.maximum(p1 + b1_ref[...], 0.0).astype(jnp.bfloat16)        # (B, 640) bf16

    # ---- conv2 (+2x2 maxpool): one gather-matmul, channels folded into K ------
    # column = branch*128 + (co*25 + i*5 + j) -> post-max row is already the
    # PyTorch (C,H,W) flatten order that fc1 expects.
    h2 = jnp.dot(a1, m2_ref[...], preferred_element_type=jnp.float32)   # (B, 512) f32
    p2 = jnp.maximum(jnp.maximum(h2[:, 0:128], h2[:, 128:256]),
                     jnp.maximum(h2[:, 256:384], h2[:, 384:512]))       # (B, 128)
    a2 = jnp.maximum(p2 + b2_ref[...], 0.0).astype(jnp.bfloat16)        # (B, 128) bf16

    # ---- FC head, all layers padded to 128 lanes (unmasked vregs) --------------
    f = jnp.maximum(jnp.dot(a2, wf1_ref[...], preferred_element_type=jnp.float32)
                    + bf1_ref[...], 0.0).astype(jnp.bfloat16)
    f = jnp.maximum(jnp.dot(f, wf2_ref[...], preferred_element_type=jnp.float32)
                    + bf2_ref[...], 0.0).astype(jnp.bfloat16)
    o_ref[...] = (jnp.dot(f, wf3_ref[...], preferred_element_type=jnp.float32)
                  + bf3_ref[...])                                       # (B, 128) f32


# ------------------------------- JAX glue -----------------------------------

def yournet_forward(x_nchw, prep, block_b=128):
    """Run YourNet on (N,1,28,28) f32 input; returns (N,10) f32 logits.

    block_b: images per grid step (multiple of 8).  Suggested: 256 (v7x),
    512-1024 (v5e/v6e, raise vmem_limit_bytes accordingly); keep >=2 grid steps
    on v7x for its two TensorCores.
    """
    (m1, b1row, m2, b2row, wf1p, bf1row, wf2p, bf2row, wf3p, bf3row) = prep
    n = x_nchw.shape[0]
    nb = -(-n // block_b)                      # ceil(n / block_b)
    n_pad = nb * block_b

    # Flat padded image slab, bf16: 784 pixels -> 896 lanes (multiple of 128).
    ximg = x_nchw.reshape(n, 784).astype(jnp.bfloat16)
    ximg = jnp.pad(ximg, ((0, n_pad - n), (0, 112)))          # (n_pad, 896)

    weights = (m1, b1row, m2, b2row, wf1p, bf1row, wf2p, bf2row, wf3p, bf3row)
    in_specs = ([pl.BlockSpec((block_b, 896), lambda i: (i, 0))]
                + [pl.BlockSpec(w.shape, lambda i: (0, 0)) for w in weights])

    out = pl.pallas_call(
        yournet_kernel,
        out_shape=jax.ShapeDtypeStruct((n_pad, 128), jnp.float32),
        grid=(nb,),
        in_specs=in_specs,
        out_specs=pl.BlockSpec((block_b, 128), lambda i: (i, 0)),
        compiler_params=pltpu.CompilerParams(
            dimension_semantics=("parallel",),
            vmem_limit_bytes=32 * 1024 * 1024),
    )(ximg, *weights)
    return out[:n, :10]


# ---------------------- one-time parameter repacking ------------------------

def prepare_params(params):
    """Repack PyTorch-layout params into padded, lane-aligned bf16 kernel matrices.

    Done once, outside jit.  Gather-matrix entries are individual weight values,
    so casting the assembled matrices to bf16 == quantizing the weights to bf16.
    """
    w1, b1, w2, b2, wf1, bf1, wf2, bf2, wf3, bf3 = [np.asarray(p, np.float32) for p in params]

    # conv1 + 2x2 pool as a dense gather-matmul on the flat 28x28 image.
    # row  = pixel index (y*28 + x), padded 784 -> 896
    # col  = br*640 + c*176 + (ph*13 + pw),  br = dy*2 + dx  (pool branch)
    m1 = np.zeros((896, 2560), np.float32)
    for dy in range(2):
        for dx in range(2):
            br = dy * 2 + dx
            for c in range(3):
                for ph in range(13):
                    for pw in range(13):
                        col = br * 640 + c * 176 + ph * 13 + pw
                        for ky in range(3):
                            for kx in range(3):
                                row = (2 * ph + dy + ky) * 28 + (2 * pw + dx + kx)
                                m1[row, col] += w1[c, 0, ky, kx]
    b1row = np.zeros((1, 640), np.float32)
    for c in range(3):
        b1row[0, c * 176: c * 176 + 169] = b1[c]

    # conv2 + 2x2 pool as one gather-matmul on a1 (lanes = c*176 + p*13 + q).
    # col = br2*128 + (co*25 + i*5 + j)  -> lane-aligned pool groups; post-max row
    # is PyTorch's (C,H,W) flatten order.
    m2 = np.zeros((640, 512), np.float32)
    for ey in range(2):
        for ex in range(2):
            br2 = ey * 2 + ex
            for co in range(5):
                for i in range(5):
                    for j in range(5):
                        col = br2 * 128 + co * 25 + i * 5 + j
                        for ci in range(3):
                            for ky in range(3):
                                for kx in range(3):
                                    row = ci * 176 + (2 * i + ey + ky) * 13 + (2 * j + ex + kx)
                                    m2[row, col] += w2[co, ci, ky, kx]
    b2row = np.zeros((1, 128), np.float32)
    for co in range(5):
        b2row[0, co * 25:(co + 1) * 25] = b2[co]

    # FC weights transposed to (in, out) and zero-padded to full 128-lane tiles.
    wf1p = np.zeros((128, 128), np.float32); wf1p[:125, :75] = wf1.T
    bf1row = np.zeros((1, 128), np.float32); bf1row[0, :75] = bf1
    wf2p = np.zeros((128, 128), np.float32); wf2p[:75, :50] = wf2.T
    bf2row = np.zeros((1, 128), np.float32); bf2row[0, :50] = bf2
    wf3p = np.zeros((128, 128), np.float32); wf3p[:50, :10] = wf3.T
    bf3row = np.zeros((1, 128), np.float32); bf3row[0, :10] = bf3

    bf16 = lambda a: jnp.asarray(a, jnp.bfloat16)
    f32 = lambda a: jnp.asarray(a, jnp.float32)
    return (bf16(m1), f32(b1row), bf16(m2), f32(b2row),
            bf16(wf1p), f32(bf1row), bf16(wf2p), f32(bf2row),
            bf16(wf3p), f32(bf3row))


# --------------------------- deterministic params ---------------------------

def init_params(key):
    ks = jax.random.split(key, 10)

    def u(k, shape, fan_in):
        bound = 1.0 / np.sqrt(fan_in)
        return jax.random.uniform(k, shape, jnp.float32, -bound, bound)

    w1 = u(ks[0], (3, 1, 3, 3), 1 * 9);    b1 = u(ks[1], (3,), 1 * 9)
    w2 = u(ks[2], (5, 3, 3, 3), 3 * 9);    b2 = u(ks[3], (5,), 3 * 9)
    wf1 = u(ks[4], (75, 125), 125);        bf1 = u(ks[5], (75,), 125)
    wf2 = u(ks[6], (50, 75), 75);          bf2 = u(ks[7], (50,), 75)
    wf3 = u(ks[8], (10, 50), 50);          bf3 = u(ks[9], (10,), 50)
    return (w1, b1, w2, b2, wf1, bf1, wf2, bf2, wf3, bf3)


# --------------------------- pure-JAX reference ------------------------------

def yournet_reference(x, params, quantize=False):
    """PyTorch-semantics reference.  With quantize=True it rounds inputs, weights
    and inter-layer activations to bf16 (same quantization points as the kernel)
    so the comparison isolates kernel correctness from bf16 quantization."""
    q = (lambda t: t.astype(jnp.bfloat16).astype(jnp.float32)) if quantize else (lambda t: t)
    (w1, b1, w2, b2, wf1, bf1, wf2, bf2, wf3, bf3) = params
    dn = ('NCHW', 'OIHW', 'NCHW')
    hi = lax.Precision.HIGHEST

    a = lax.conv_general_dilated(q(x), q(w1), (1, 1), 'VALID',
                                 dimension_numbers=dn, precision=hi)
    a = jnp.maximum(a + b1[None, :, None, None], 0.0)
    a = lax.reduce_window(a, -jnp.inf, lax.max, (1, 1, 2, 2), (1, 1, 2, 2), 'VALID')
    a = q(a)
    a = lax.conv_general_dilated(a, q(w2), (1, 1), 'VALID',
                                 dimension_numbers=dn, precision=hi)
    a = jnp.maximum(a + b2[None, :, None, None], 0.0)
    a = lax.reduce_window(a, -jnp.inf, lax.max, (1, 1, 2, 2), (1, 1, 2, 2), 'VALID')
    a = q(a.reshape(a.shape[0], -1))
    a = q(jnp.maximum(jnp.dot(a, q(wf1).T, precision=hi) + bf1, 0.0))
    a = q(jnp.maximum(jnp.dot(a, q(wf2).T, precision=hi) + bf2, 0.0))
    return jnp.dot(a, q(wf3).T, precision=hi) + bf3


# ---------------------------------- main -------------------------------------

if __name__ == "__main__":
    n = 16
    x = jax.random.normal(jax.random.PRNGKey(0), (n, 1, 28, 28), jnp.float32)   # NCHW, MNIST-sized
    params = init_params(jax.random.PRNGKey(42))
    prep = prepare_params(params)                 # done once, outside jit

    block_b = 8                                   # 2 grid steps at n=16 (keeps both v7x TCs busy)
    fwd = jax.jit(lambda xx, pp: yournet_forward(xx, pp, block_b=block_b))

    out = jax.block_until_ready(fwd(x, prep))
    ref = yournet_reference(x, params, quantize=True)
    np.testing.assert_allclose(np.asarray(out), np.asarray(ref), rtol=2e-3, atol=2e-3)
    assert out.shape == (n, 10) and out.dtype == jnp.float32

    # Also exercise the N % block_b != 0 padding path.
    out5 = jax.block_until_ready(fwd(x[:5], prep))
    np.testing.assert_allclose(np.asarray(out5), np.asarray(ref)[:5], rtol=2e-3, atol=2e-3)
    assert out5.shape == (5, 10)

    print("KERNEL_OK")
</pallas_src>

<mosaic_0001>
module attributes {stable_mosaic.version = 11 : i64} {
  func.func @yournet_kernel(%arg0: i32, %arg1: memref<8x896xbf16, #tpu.memory_space<vmem>>, %arg2: memref<896x2560xbf16, #tpu.memory_space<vmem>>, %arg3: memref<1x640xf32, #tpu.memory_space<vmem>>, %arg4: memref<640x512xbf16, #tpu.memory_space<vmem>>, %arg5: memref<1x128xf32, #tpu.memory_space<vmem>>, %arg6: memref<128x128xbf16, #tpu.memory_space<vmem>>, %arg7: memref<1x128xf32, #tpu.memory_space<vmem>>, %arg8: memref<128x128xbf16, #tpu.memory_space<vmem>>, %arg9: memref<1x128xf32, #tpu.memory_space<vmem>>, %arg10: memref<128x128xbf16, #tpu.memory_space<vmem>>, %arg11: memref<1x128xf32, #tpu.memory_space<vmem>>, %arg12: memref<8x128xf32, #tpu.memory_space<vmem>>) attributes {dimension_semantics = [#tpu.dimension_semantics<parallel>], iteration_bounds = array<i64: 2>, scalar_prefetch = 0 : i64, scratch_operands = 0 : i64, tpu.core_type = #tpu.core_type<tc>, window_params = [{transform_indices = @transform_0, window_bounds = array<i64: 8, 896>}, {pipeline_mode = #tpu.pipeline_mode<synchronous>, transform_indices = @transform_1, window_bounds = array<i64: 896, 2560>}, {pipeline_mode = #tpu.pipeline_mode<synchronous>, transform_indices = @transform_2, window_bounds = array<i64: 1, 640>}, {pipeline_mode = #tpu.pipeline_mode<synchronous>, transform_indices = @transform_3, window_bounds = array<i64: 640, 512>}, {pipeline_mode = #tpu.pipeline_mode<synchronous>, transform_indices = @transform_4, window_bounds = array<i64: 1, 128>}, {pipeline_mode = #tpu.pipeline_mode<synchronous>, transform_indices = @transform_5, window_bounds = array<i64: 128, 128>}, {pipeline_mode = #tpu.pipeline_mode<synchronous>, transform_indices = @transform_6, window_bounds = array<i64: 1, 128>}, {pipeline_mode = #tpu.pipeline_mode<synchronous>, transform_indices = @transform_7, window_bounds = array<i64: 128, 128>}, {pipeline_mode = #tpu.pipeline_mode<synchronous>, transform_indices = @transform_8, window_bounds = array<i64: 1, 128>}, {pipeline_mode = #tpu.pipeline_mode<synchronous>, transform_indices = @transform_9, window_bounds = array<i64: 128, 128>}, {pipeline_mode = #tpu.pipeline_mode<synchronous>, transform_indices = @transform_10, window_bounds = array<i64: 1, 128>}, {transform_indices = @transform_11, window_bounds = array<i64: 8, 128>}]} {
    %c0 = arith.constant 0 : index
    %c0_0 = arith.constant 0 : index
    %0 = vector.load %arg1[%c0, %c0_0] : memref<8x896xbf16, #tpu.memory_space<vmem>>, vector<8x896xbf16>
    %c0_1 = arith.constant 0 : index
    %c0_2 = arith.constant 0 : index
    %1 = vector.load %arg2[%c0_1, %c0_2] : memref<896x2560xbf16, #tpu.memory_space<vmem>>, vector<896x2560xbf16>
    %cst = arith.constant dense<0.000000e+00> : vector<8x2560xf32>
    %2 = tpu.matmul %0, %1, %cst {dimension_numbers = #tpu.dot_dimension_numbers<[1], [0], [0], [1], [0, 0, 1, 1], [], []>} : vector<8x896xbf16>, vector<896x2560xbf16>, vector<8x2560xf32> -> vector<8x2560xf32>
    %3 = vector.extract_strided_slice %2 {offsets = [0, 0], sizes = [8, 640], strides = [1, 1]} : vector<8x2560xf32> to vector<8x640xf32>
    %4 = vector.extract_strided_slice %2 {offsets = [0, 640], sizes = [8, 640], strides = [1, 1]} : vector<8x2560xf32> to vector<8x640xf32>
    %5 = arith.maximumf %3, %4 : vector<8x640xf32>
    %6 = vector.extract_strided_slice %2 {offsets = [0, 1280], sizes = [8, 640], strides = [1, 1]} : vector<8x2560xf32> to vector<8x640xf32>
    %7 = vector.extract_strided_slice %2 {offsets = [0, 1920], sizes = [8, 640], strides = [1, 1]} : vector<8x2560xf32> to vector<8x640xf32>
    %8 = arith.maximumf %6, %7 : vector<8x640xf32>
    %9 = arith.maximumf %5, %8 : vector<8x640xf32>
    %c0_3 = arith.constant 0 : index
    %c0_4 = arith.constant 0 : index
    %10 = vector.load %arg3[%c0_3, %c0_4] : memref<1x640xf32, #tpu.memory_space<vmem>>, vector<1x640xf32>
    %11 = vector.broadcast %10 : vector<1x640xf32> to vector<8x640xf32>
    %12 = arith.addf %9, %11 : vector<8x640xf32>
    %cst_5 = arith.constant 0.000000e+00 : f32
    %13 = vector.broadcast %cst_5 : f32 to vector<8x640xf32>
    %14 = arith.maximumf %12, %13 : vector<8x640xf32>
    %15 = arith.truncf %14 : vector<8x640xf32> to vector<8x640xbf16>
    %c0_6 = arith.constant 0 : index
    %c0_7 = arith.constant 0 : index
    %16 = vector.load %arg4[%c0_6, %c0_7] : memref<640x512xbf16, #tpu.memory_space<vmem>>, vector<640x512xbf16>
    %cst_8 = arith.constant dense<0.000000e+00> : vector<8x512xf32>
    %17 = tpu.matmul %15, %16, %cst_8 {dimension_numbers = #tpu.dot_dimension_numbers<[1], [0], [0], [1], [0, 0, 1, 1], [], []>} : vector<8x640xbf16>, vector<640x512xbf16>, vector<8x512xf32> -> vector<8x512xf32>
    %18 = vector.extract_strided_slice %17 {offsets = [0, 0], sizes = [8, 128], strides = [1, 1]} : vector<8x512xf32> to vector<8x128xf32>
    %19 = vector.extract_strided_slice %17 {offsets = [0, 128], sizes = [8, 128], strides = [1, 1]} : vector<8x512xf32> to vector<8x128xf32>
    %20 = arith.maximumf %18, %19 : vector<8x128xf32>
    %21 = vector.extract_strided_slice %17 {offsets = [0, 256], sizes = [8, 128], strides = [1, 1]} : vector<8x512xf32> to vector<8x128xf32>
    %22 = vector.extract_strided_slice %17 {offsets = [0, 384], sizes = [8, 128], strides = [1, 1]} : vector<8x512xf32> to vector<8x128xf32>
    %23 = arith.maximumf %21, %22 : vector<8x128xf32>
    %24 = arith.maximumf %20, %23 : vector<8x128xf32>
    %c0_9 = arith.constant 0 : index
    %c0_10 = arith.constant 0 : index
    %25 = vector.load %arg5[%c0_9, %c0_10] : memref<1x128xf32, #tpu.memory_space<vmem>>, vector<1x128xf32>
    %26 = vector.broadcast %25 : vector<1x128xf32> to vector<8x128xf32>
    %27 = arith.addf %24, %26 : vector<8x128xf32>
    %cst_11 = arith.constant 0.000000e+00 : f32
    %28 = vector.broadcast %cst_11 : f32 to vector<8x128xf32>
    %29 = arith.maximumf %27, %28 : vector<8x128xf32>
    %30 = arith.truncf %29 : vector<8x128xf32> to vector<8x128xbf16>
    %c0_12 = arith.constant 0 : index
    %c0_13 = arith.constant 0 : index
    %31 = vector.load %arg6[%c0_12, %c0_13] : memref<128x128xbf16, #tpu.memory_space<vmem>>, vector<128x128xbf16>
    %cst_14 = arith.constant dense<0.000000e+00> : vector<8x128xf32>
    %32 = tpu.matmul %30, %31, %cst_14 {dimension_numbers = #tpu.dot_dimension_numbers<[1], [0], [0], [1], [0, 0, 1, 1], [], []>} : vector<8x128xbf16>, vector<128x128xbf16>, vector<8x128xf32> -> vector<8x128xf32>
    %c0_15 = arith.constant 0 : index
    %c0_16 = arith.constant 0 : index
    %33 = vector.load %arg7[%c0_15, %c0_16] : memref<1x128xf32, #tpu.memory_space<vmem>>, vector<1x128xf32>
    %34 = vector.broadcast %33 : vector<1x128xf32> to vector<8x128xf32>
    %35 = arith.addf %32, %34 : vector<8x128xf32>
    %cst_17 = arith.constant 0.000000e+00 : f32
    %36 = vector.broadcast %cst_17 : f32 to vector<8x128xf32>
    %37 = arith.maximumf %35, %36 : vector<8x128xf32>
    %38 = arith.truncf %37 : vector<8x128xf32> to vector<8x128xbf16>
    %c0_18 = arith.constant 0 : index
    %c0_19 = arith.constant 0 : index
    %39 = vector.load %arg8[%c0_18, %c0_19] : memref<128x128xbf16, #tpu.memory_space<vmem>>, vector<128x128xbf16>
    %cst_20 = arith.constant dense<0.000000e+00> : vector<8x128xf32>
    %40 = tpu.matmul %38, %39, %cst_20 {dimension_numbers = #tpu.dot_dimension_numbers<[1], [0], [0], [1], [0, 0, 1, 1], [], []>} : vector<8x128xbf16>, vector<128x128xbf16>, vector<8x128xf32> -> vector<8x128xf32>
    %c0_21 = arith.constant 0 : index
    %c0_22 = arith.constant 0 : index
    %41 = vector.load %arg9[%c0_21, %c0_22] : memref<1x128xf32, #tpu.memory_space<vmem>>, vector<1x128xf32>
    %42 = vector.broadcast %41 : vector<1x128xf32> to vector<8x128xf32>
    %43 = arith.addf %40, %42 : vector<8x128xf32>
    %cst_23 = arith.constant 0.000000e+00 : f32
    %44 = vector.broadcast %cst_23 : f32 to vector<8x128xf32>
    %45 = arith.maximumf %43, %44 : vector<8x128xf32>
    %46 = arith.truncf %45 : vector<8x128xf32> to vector<8x128xbf16>
    %c0_24 = arith.constant 0 : index
    %c0_25 = arith.constant 0 : index
    %47 = vector.load %arg10[%c0_24, %c0_25] : memref<128x128xbf16, #tpu.memory_space<vmem>>, vector<128x128xbf16>
    %cst_26 = arith.constant dense<0.000000e+00> : vector<8x128xf32>
    %48 = tpu.matmul %46, %47, %cst_26 {dimension_numbers = #tpu.dot_dimension_numbers<[1], [0], [0], [1], [0, 0, 1, 1], [], []>} : vector<8x128xbf16>, vector<128x128xbf16>, vector<8x128xf32> -> vector<8x128xf32>
    %c0_27 = arith.constant 0 : index
    %c0_28 = arith.constant 0 : index
    %49 = vector.load %arg11[%c0_27, %c0_28] : memref<1x128xf32, #tpu.memory_space<vmem>>, vector<1x128xf32>
    %50 = vector.broadcast %49 : vector<1x128xf32> to vector<8x128xf32>
    %51 = arith.addf %48, %50 : vector<8x128xf32>
    %c0_29 = arith.constant 0 : index
    %c0_30 = arith.constant 0 : index
    %52 = vector.load %arg12[%c0_29, %c0_30] : memref<8x128xf32, #tpu.memory_space<vmem>>, vector<8x128xf32>
    tpu.vector_store %arg12[%c0_29, %c0_30], %51 {strides = array<i32>} : memref<8x128xf32, #tpu.memory_space<vmem>>, vector<8x128xf32>,
    return
  }
  func.func @transform_0(%arg0: i32) -> (i32, i32) {
    %c0_i32 = arith.constant 0 : i32
    %c0_i32_0 = arith.constant 0 : i32
    return %arg0, %c0_i32 : i32, i32
  }
  func.func @transform_1(%arg0: i32) -> (i32, i32) {
    %c0_i32 = arith.constant 0 : i32
    %c0_i32_0 = arith.constant 0 : i32
    %c0_i32_1 = arith.constant 0 : i32
    return %c0_i32, %c0_i32_0 : i32, i32
  }
  func.func @transform_2(%arg0: i32) -> (i32, i32) {
    %c0_i32 = arith.constant 0 : i32
    %c0_i32_0 = arith.constant 0 : i32
    %c0_i32_1 = arith.constant 0 : i32
    return %c0_i32, %c0_i32_0 : i32, i32
  }
  func.func @transform_3(%arg0: i32) -> (i32, i32) {
    %c0_i32 = arith.constant 0 : i32
    %c0_i32_0 = arith.constant 0 : i32
    %c0_i32_1 = arith.constant 0 : i32
    return %c0_i32, %c0_i32_0 : i32, i32
  }
  func.func @transform_4(%arg0: i32) -> (i32, i32) {
    %c0_i32 = arith.constant 0 : i32
    %c0_i32_0 = arith.constant 0 : i32
    %c0_i32_1 = arith.constant 0 : i32
    return %c0_i32, %c0_i32_0 : i32, i32
  }
  func.func @transform_5(%arg0: i32) -> (i32, i32) {
    %c0_i32 = arith.constant 0 : i32
    %c0_i32_0 = arith.constant 0 : i32
    %c0_i32_1 = arith.constant 0 : i32
    return %c0_i32, %c0_i32_0 : i32, i32
  }
  func.func @transform_6(%arg0: i32) -> (i32, i32) {
    %c0_i32 = arith.constant 0 : i32
    %c0_i32_0 = arith.constant 0 : i32
    %c0_i32_1 = arith.constant 0 : i32
    return %c0_i32, %c0_i32_0 : i32, i32
  }
  func.func @transform_7(%arg0: i32) -> (i32, i32) {
    %c0_i32 = arith.constant 0 : i32
    %c0_i32_0 = arith.constant 0 : i32
    %c0_i32_1 = arith.constant 0 : i32
    return %c0_i32, %c0_i32_0 : i32, i32
  }
  func.func @transform_8(%arg0: i32) -> (i32, i32) {
    %c0_i32 = arith.constant 0 : i32
    %c0_i32_0 = arith.constant 0 : i32
    %c0_i32_1 = arith.constant 0 : i32
    return %c0_i32, %c0_i32_0 : i32, i32
  }
  func.func @transform_9(%arg0: i32) -> (i32, i32) {
    %c0_i32 = arith.constant 0 : i32
    %c0_i32_0 = arith.constant 0 : i32
    %c0_i32_1 = arith.constant 0 : i32
    return %c0_i32, %c0_i32_0 : i32, i32
  }
  func.func @transform_10(%arg0: i32) -> (i32, i32) {
    %c0_i32 = arith.constant 0 : i32
    %c0_i32_0 = arith.constant 0 : i32
    %c0_i32_1 = arith.constant 0 : i32
    return %c0_i32, %c0_i32_0 : i32, i32
  }
  func.func @transform_11(%arg0: i32) -> (i32, i32) {
    %c0_i32 = arith.constant 0 : i32
    %c0_i32_0 = arith.constant 0 : i32
    return %arg0, %c0_i32 : i32, i32
  }
}

</mosaic_0001>

<llo_original>
// kernel: _lambda_.1
$region0: #{_lambda_.1}
  #allocation0 [shape = 'u32[]', space=smem, size = 0x4, offset = 0x4, fixed_abs, tag = 'smem constant byte address 0x4 - core index']
  #allocation1 [shape = 'u32[144,128]{1,0:T(1,128)}', space=vmem, size = 0x12000, scoped, tag = 'internal scratch']
  %s0 = inlined_call_operand.vmem [shape: bf16[16,896], index: 0, kind: input, shape index: {}]
  %s1 = inlined_call_operand.hbm [shape: bf16[896,2560], index: 1, kind: input, shape index: {}]
  %s2 = inlined_call_operand.hbm [shape: f32[1,640], index: 2, kind: input, shape index: {}]
  %s3 = inlined_call_operand.hbm [shape: bf16[640,512], index: 3, kind: input, shape index: {}]
  %s4 = inlined_call_operand.hbm [shape: f32[1,128], index: 4, kind: input, shape index: {}]
  %s5 = inlined_call_operand.hbm [shape: bf16[128,128], index: 5, kind: input, shape index: {}]
  %s6 = inlined_call_operand.hbm [shape: f32[1,128], index: 6, kind: input, shape index: {}]
  %s7 = inlined_call_operand.hbm [shape: bf16[128,128], index: 7, kind: input, shape index: {}]
  %s8 = inlined_call_operand.hbm [shape: f32[1,128], index: 8, kind: input, shape index: {}]
  %s9 = inlined_call_operand.hbm [shape: bf16[128,128], index: 9, kind: input, shape index: {}]
  %s10 = inlined_call_operand.hbm [shape: f32[1,128], index: 10, kind: input, shape index: {}]
  %s11 = inlined_call_operand.hbm [shape: f32[16,128], index: 11, kind: output, shape index: {}]
  %s12 = sld [smem:[#allocation0]]
  $region117: #{_lambda_.1} parent=0
    _
  %s14 = ssub.s32 1, %s12
  %s15 = scalar_select 0, %s14, %s12
  $region1: #{_lambda_.1} parent=0
    #allocation2 [shape = 'u8[4587520]{0}', space=vmem, size = 0x460000, scoped, tag = 'input window, operand 1, single buffered']
    #allocation3 [shape = 's32[2]{0}', space=sflag, size = 0x8, scoped, tag = 'scoped memory for _lambda_.1']
    #allocation4 [shape = 's32[2]{0}', space=sflag, size = 0x8, scoped, tag = 'scoped memory for _lambda_.1']
    #allocation5 [shape = 'u8[2560]{0}', space=vmem, size = 0xc00, scoped, tag = 'input window, operand 2, single buffered']
    #allocation6 [shape = 's32[1]{0}', space=sflag, size = 0x4, scoped, tag = 'scoped memory for _lambda_.1']
    #allocation7 [shape = 'u8[655360]{0}', space=vmem, size = 0xa0000, scoped, tag = 'input window, operand 3, single buffered']
    #allocation8 [shape = 'u8[512]{0}', space=vmem, size = 0x400, scoped, tag = 'input window, operand 4, single buffered']
    #allocation9 [shape = 's32[1]{0}', space=sflag, size = 0x4, scoped, tag = 'scoped memory for _lambda_.1']
    #allocation10 [shape = 'u8[32768]{0}', space=vmem, size = 0x8000, scoped, tag = 'input window, operand 5, single buffered']
    #allocation11 [shape = 'u8[512]{0}', space=vmem, size = 0x400, scoped, tag = 'input window, operand 6, single buffered']
    #allocation12 [shape = 's32[1]{0}', space=sflag, size = 0x4, scoped, tag = 'scoped memory for _lambda_.1']
    #allocation13 [shape = 'u8[32768]{0}', space=vmem, size = 0x8000, scoped, tag = 'input window, operand 7, single buffered']
    #allocation14 [shape = 'u8[512]{0}', space=vmem, size = 0x400, scoped, tag = 'input window, operand 8, single buffered']
    #allocation15 [shape = 's32[1]{0}', space=sflag, size = 0x4, scoped, tag = 'scoped memory for _lambda_.1']
    #allocation16 [shape = 'u8[32768]{0}', space=vmem, size = 0x8000, scoped, tag = 'input window, operand 9, single buffered']
    #allocation17 [shape = 'u8[512]{0}', space=vmem, size = 0x400, scoped, tag = 'input window, operand 10, single buffered']
    #allocation18 [shape = 's32[1]{0}', space=sflag, size = 0x4, scoped, tag = 'scoped memory for _lambda_.1']
    #allocation19 [shape = 'u8[8192]{0}', space=vmem, size = 0x2000, scoped, tag = 'output window, operand 0']
    %16 = vsyncpa [#allocation3], 0
    %17 = vsyncpa [#allocation6], 0
    %18 = vsyncpa [#allocation9], 0
    %19 = vsyncpa [#allocation12], 0
    %20 = vsyncpa [#allocation15], 0
    %21 = vsyncpa [#allocation18], 0
    %22 = vsyncpa [#allocation4], 0
    %s23 = scalar_lea.sflag [#allocation4], 1
    %24 = vsyncpa %s23, 0
    loop: start=0, step=1, limit=4
    $region2: #{_lambda_.1} parent=1 // loop_pre_header
      _
    $region3: #{_lambda_.1} parent=1 // loop_header
      %s26 = sphi 0, %s30
      %p27 = scmp.ge.s32.totalorder %s26, 4
      %s36 = sphi 0, %s38
      %s39 = sphi 0, %s36
      %s40 = sphi 0, %s39
      %s56 = sphi 0, %s40
      %s60 = sphi 0, %s60
      %s62 = sphi 0, %s60
      %s63 = sphi 0, %s62
      %s77 = sphi 0, %s63
      %s81 = sphi 0, %s81
      %s83 = sphi 0, %s81
      %s84 = sphi 0, %s83
      %s98 = sphi 0, %s84
      %s102 = sphi 0, %s102
      %s104 = sphi 0, %s102
      %s105 = sphi 0, %s104
      %s119 = sphi 0, %s105
      %s123 = sphi 0, %s123
      %s125 = sphi 0, %s123
      %s126 = sphi 0, %s125
      %s140 = sphi 0, %s126
      %s144 = sphi 0, %s144
      %s146 = sphi 0, %s144
      %s147 = sphi 0, %s146
      %s161 = sphi 0, %s147
      %s165 = sphi 0, %s165
      %s167 = sphi 0, %s165
      %s168 = sphi 0, %s167
      %s182 = sphi 0, %s168
      %s186 = sphi 0, %s186
      %s188 = sphi 0, %s186
      %s189 = sphi 0, %s188
      %s203 = sphi 0, %s189
      %s207 = sphi 0, %s207
      %s209 = sphi 0, %s207
      %s210 = sphi 0, %s209
      %s224 = sphi 0, %s210
      %s228 = sphi 0, %s228
      %s230 = sphi 0, %s228
      %s231 = sphi 0, %s230
      %s245 = sphi 0, %s231
      %s249 = sphi 0, %s249
      %s251 = sphi 0, %s249
      %s252 = sphi 0, %s251
      %s266 = sphi 0, %s252
      %s272 = sphi 0, %s274
      %s275 = sphi 0, %s272
      %s276 = sphi 0, %s275
      %s292 = sphi 0, %s276
    $region4: #{_lambda_.1} parent=1 // loop_header_branch
      %29 = sbr.rel (%p27) target = $region8
    $region5: #{_lambda_.1} parent=1 // loop_body
      %s31 = ssub.s32 %s26, 1
      %s32 = ssub.s32 %s26, 2
      %s33 = sadd.s32 %s26, 1
      %s34 = ssub.s32 %s26, %s33
      %p35 = scmp.eq.s32.totalorder %s34, 0
      %s37 = sadd.s32 %s36, 1
      %s38 = scalar_select %p35, %s36, %s37
      %p41 = pneg %p35
      %p42 = scmp.eq.s32.totalorder %s26, 1
      %p43 = por %p41, %p42
      %p44 = scmp.ne.s32.totalorder %s36, %s39
      %p45 = scmp.eq.s32.totalorder %s26, 0
      %p46 = por %p44, %p45
      %p47 = scmp.ne.s32.totalorder %s36, %s39
      %p48 = scmp.eq.s32.totalorder %s31, 1
      %p49 = por %p47, %p48
      %p50 = scmp.ne.s32.totalorder %s39, %s40
      %p51 = scmp.eq.s32.totalorder %s31, 0
      %p52 = por %p50, %p51
      %p53 = scmp.ne.s32.totalorder %s39, %s40
      %p54 = scmp.eq.s32.totalorder %s32, 1
      %p55 = por %p53, %p54
      %p57 = scmp.ne.s32.totalorder %s40, %s56
      %p58 = scmp.eq.s32.totalorder %s32, 0
      %p59 = por %p57, %p58
      %s61 = sadd.s32 %s60, 1
      %p64 = scmp.eq.s32.totalorder %s26, 1
      %p65 = scmp.ne.s32.totalorder %s60, %s62
      %p66 = scmp.eq.s32.totalorder %s26, 0
      %p67 = por %p65, %p66
      %p68 = scmp.ne.s32.totalorder %s60, %s62
      %p69 = scmp.eq.s32.totalorder %s31, 1
      %p70 = por %p68, %p69
      %p71 = scmp.ne.s32.totalorder %s62, %s63
      %p72 = scmp.eq.s32.totalorder %s31, 0
      %p73 = por %p71, %p72
      %p74 = scmp.ne.s32.totalorder %s62, %s63
      %p75 = scmp.eq.s32.totalorder %s32, 1
      %p76 = por %p74, %p75
      %p78 = scmp.ne.s32.totalorder %s63, %s77
      %p79 = scmp.eq.s32.totalorder %s32, 0
      %p80 = por %p78, %p79
      %s82 = sadd.s32 %s81, 1
      %p85 = scmp.eq.s32.totalorder %s26, 1
      %p86 = scmp.ne.s32.totalorder %s81, %s83
      %p87 = scmp.eq.s32.totalorder %s26, 0
      %p88 = por %p86, %p87
      %p89 = scmp.ne.s32.totalorder %s81, %s83
      %p90 = scmp.eq.s32.totalorder %s31, 1
      %p91 = por %p89, %p90
      %p92 = scmp.ne.s32.totalorder %s83, %s84
      %p93 = scmp.eq.s32.totalorder %s31, 0
      %p94 = por %p92, %p93
      %p95 = scmp.ne.s32.totalorder %s83, %s84
      %p96 = scmp.eq.s32.totalorder %s32, 1
      %p97 = por %p95, %p96
      %p99 = scmp.ne.s32.totalorder %s84, %s98
      %p100 = scmp.eq.s32.totalorder %s32, 0
      %p101 = por %p99, %p100
      %s103 = sadd.s32 %s102, 1
      %p106 = scmp.eq.s32.totalorder %s26, 1
      %p107 = scmp.ne.s32.totalorder %s102, %s104
      %p108 = scmp.eq.s32.totalorder %s26, 0
      %p109 = por %p107, %p108
      %p110 = scmp.ne.s32.totalorder %s102, %s104
      %p111 = scmp.eq.s32.totalorder %s31, 1
      %p112 = por %p110, %p111
      %p113 = scmp.ne.s32.totalorder %s104, %s105
      %p114 = scmp.eq.s32.totalorder %s31, 0
      %p115 = por %p113, %p114
      %p116 = scmp.ne.s32.totalorder %s104, %s105
      %p117 = scmp.eq.s32.totalorder %s32, 1
      %p118 = por %p116, %p117
      %p120 = scmp.ne.s32.totalorder %s105, %s119
      %p121 = scmp.eq.s32.totalorder %s32, 0
      %p122 = por %p120, %p121
      %s124 = sadd.s32 %s123, 1
      %p127 = scmp.eq.s32.totalorder %s26, 1
      %p128 = scmp.ne.s32.totalorder %s123, %s125
      %p129 = scmp.eq.s32.totalorder %s26, 0
      %p130 = por %p128, %p129
      %p131 = scmp.ne.s32.totalorder %s123, %s125
      %p132 = scmp.eq.s32.totalorder %s31, 1
      %p133 = por %p131, %p132
      %p134 = scmp.ne.s32.totalorder %s125, %s126
      %p135 = scmp.eq.s32.totalorder %s31, 0
      %p136 = por %p134, %p135
      %p137 = scmp.ne.s32.totalorder %s125, %s126
      %p138 = scmp.eq.s32.totalorder %s32, 1
      %p139 = por %p137, %p138
      %p141 = scmp.ne.s32.totalorder %s126, %s140
      %p142 = scmp.eq.s32.totalorder %s32, 0
      %p143 = por %p141, %p142
      %s145 = sadd.s32 %s144, 1
      %p148 = scmp.eq.s32.totalorder %s26, 1
      %p149 = scmp.ne.s32.totalorder %s144, %s146
      %p150 = scmp.eq.s32.totalorder %s26, 0
      %p151 = por %p149, %p150
      %p152 = scmp.ne.s32.totalorder %s144, %s146
      %p153 = scmp.eq.s32.totalorder %s31, 1
      %p154 = por %p152, %p153
      %p155 = scmp.ne.s32.totalorder %s146, %s147
      %p156 = scmp.eq.s32.totalorder %s31, 0
      %p157 = por %p155, %p156
      %p158 = scmp.ne.s32.totalorder %s146, %s147
      %p159 = scmp.eq.s32.totalorder %s32, 1
      %p160 = por %p158, %p159
      %p162 = scmp.ne.s32.totalorder %s147, %s161
      %p163 = scmp.eq.s32.totalorder %s32, 0
      %p164 = por %p162, %p163
      %s166 = sadd.s32 %s165, 1
      %p169 = scmp.eq.s32.totalorder %s26, 1
      %p170 = scmp.ne.s32.totalorder %s165, %s167
      %p171 = scmp.eq.s32.totalorder %s26, 0
      %p172 = por %p170, %p171
      %p173 = scmp.ne.s32.totalorder %s165, %s167
      %p174 = scmp.eq.s32.totalorder %s31, 1
      %p175 = por %p173, %p174
      %p176 = scmp.ne.s32.totalorder %s167, %s168
      %p177 = scmp.eq.s32.totalorder %s31, 0
      %p178 = por %p176, %p177
      %p179 = scmp.ne.s32.totalorder %s167, %s168
      %p180 = scmp.eq.s32.totalorder %s32, 1
      %p181 = por %p179, %p180
      %p183 = scmp.ne.s32.totalorder %s168, %s182
      %p184 = scmp.eq.s32.totalorder %s32, 0
      %p185 = por %p183, %p184
      %s187 = sadd.s32 %s186, 1
      %p190 = scmp.eq.s32.totalorder %s26, 1
      %p191 = scmp.ne.s32.totalorder %s186, %s188
      %p192 = scmp.eq.s32.totalorder %s26, 0
      %p193 = por %p191, %p192
      %p194 = scmp.ne.s32.totalorder %s186, %s188
      %p195 = scmp.eq.s32.totalorder %s31, 1
      %p196 = por %p194, %p195
      %p197 = scmp.ne.s32.totalorder %s188, %s189
      %p198 = scmp.eq.s32.totalorder %s31, 0
      %p199 = por %p197, %p198
      %p200 = scmp.ne.s32.totalorder %s188, %s189
      %p201 = scmp.eq.s32.totalorder %s32, 1
      %p202 = por %p200, %p201
      %p204 = scmp.ne.s32.totalorder %s189, %s203
      %p205 = scmp.eq.s32.totalorder %s32, 0
      %p206 = por %p204, %p205
      %s208 = sadd.s32 %s207, 1
      %p211 = scmp.eq.s32.totalorder %s26, 1
      %p212 = scmp.ne.s32.totalorder %s207, %s209
      %p213 = scmp.eq.s32.totalorder %s26, 0
      %p214 = por %p212, %p213
      %p215 = scmp.ne.s32.totalorder %s207, %s209
      %p216 = scmp.eq.s32.totalorder %s31, 1
      %p217 = por %p215, %p216
      %p218 = scmp.ne.s32.totalorder %s209, %s210
      %p219 = scmp.eq.s32.totalorder %s31, 0
      %p220 = por %p218, %p219
      %p221 = scmp.ne.s32.totalorder %s209, %s210
      %p222 = scmp.eq.s32.totalorder %s32, 1
      %p223 = por %p221, %p222
      %p225 = scmp.ne.s32.totalorder %s210, %s224
      %p226 = scmp.eq.s32.totalorder %s32, 0
      %p227 = por %p225, %p226
      %s229 = sadd.s32 %s228, 1
      %p232 = scmp.eq.s32.totalorder %s26, 1
      %p233 = scmp.ne.s32.totalorder %s228, %s230
      %p234 = scmp.eq.s32.totalorder %s26, 0
      %p235 = por %p233, %p234
      %p236 = scmp.ne.s32.totalorder %s228, %s230
      %p237 = scmp.eq.s32.totalorder %s31, 1
      %p238 = por %p236, %p237
      %p239 = scmp.ne.s32.totalorder %s230, %s231
      %p240 = scmp.eq.s32.totalorder %s31, 0
      %p241 = por %p239, %p240
      %p242 = scmp.ne.s32.totalorder %s230, %s231
      %p243 = scmp.eq.s32.totalorder %s32, 1
      %p244 = por %p242, %p243
      %p246 = scmp.ne.s32.totalorder %s231, %s245
      %p247 = scmp.eq.s32.totalorder %s32, 0
      %p248 = por %p246, %p247
      %s250 = sadd.s32 %s249, 1
      %p253 = scmp.eq.s32.totalorder %s26, 1
      %p254 = scmp.ne.s32.totalorder %s249, %s251
      %p255 = scmp.eq.s32.totalorder %s26, 0
      %p256 = por %p254, %p255
      %p257 = scmp.ne.s32.totalorder %s249, %s251
      %p258 = scmp.eq.s32.totalorder %s31, 1
      %p259 = por %p257, %p258
      %p260 = scmp.ne.s32.totalorder %s251, %s252
      %p261 = scmp.eq.s32.totalorder %s31, 0
      %p262 = por %p260, %p261
      %p263 = scmp.ne.s32.totalorder %s251, %s252
      %p264 = scmp.eq.s32.totalorder %s32, 1
      %p265 = por %p263, %p264
      %p267 = scmp.ne.s32.totalorder %s252, %s266
      %p268 = scmp.eq.s32.totalorder %s32, 0
      %p269 = por %p267, %p268
      %s270 = ssub.s32 %s26, %s33
      %p271 = scmp.eq.s32.totalorder %s270, 0
      %s273 = sadd.s32 %s272, 1
      %s274 = scalar_select %p271, %s272, %s273
      %p277 = pneg %p271
      %p278 = scmp.eq.s32.totalorder %s26, 1
      %p279 = por %p277, %p278
      %p280 = scmp.ne.s32.totalorder %s272, %s275
      %p281 = scmp.eq.s32.totalorder %s26, 0
      %p282 = por %p280, %p281
      %p283 = scmp.ne.s32.totalorder %s272, %s275
      %p284 = scmp.eq.s32.totalorder %s31, 1
      %p285 = por %p283, %p284
      %p286 = scmp.ne.s32.totalorder %s275, %s276
      %p287 = scmp.eq.s32.totalorder %s31, 0
      %p288 = por %p286, %p287
      %p289 = scmp.ne.s32.totalorder %s275, %s276
      %p290 = scmp.eq.s32.totalorder %s32, 1
      %p291 = por %p289, %p290
      %p293 = scmp.ne.s32.totalorder %s276, %s292
      %p294 = scmp.eq.s32.totalorder %s32, 0
      %p295 = por %p293, %p294
      %p296 = scmp.le.s32.totalorder 1, %s26
      %p297 = scmp.lt.s32.totalorder %s26, 3
      %p298 = pnand %p296, %p297
      %p299 = pneg %p298
      // Predicated region
      $region9: #{_lambda_.1} parent=5 // pred_check
        _
      $region10: #{_lambda_.1} parent=5 // pred_check_branch
        %301 = sbr.rel (%p298) target = $region12
      $region11: #{_lambda_.1} parent=5 // pred_region
        %s302 = ssub.s32 %s26, 1
        // Predicated region
        $region13: #{_lambda_.1} parent=11 // pred_check
          %p303 = pneg %p73
        $region14: #{_lambda_.1} parent=11 // pred_check_branch
          %305 = sbr.rel (%p303) target = $region16
        $region15: #{_lambda_.1} parent=11 // pred_region
          %s307 = ssub.s32 143360, 143360
          %308 = vsyncadd [#allocation3], %s307
          %s309 = sshll.u32 [#allocation2], 4
          %s310 = int_to_ptr.vmem [resolvable:$true] %s309
          %315 = dma.hbm_to_vmem [thread:$0]  %s1, 143360, %s310, [#allocation3], 1280, 1280, 80
        $region16: #{_lambda_.1} parent=11 // pred_fallthru
          _
        // Predicated region
        $region17: #{_lambda_.1} parent=11 // pred_check
          %p316 = pneg %p94
        $region18: #{_lambda_.1} parent=11 // pred_check_branch
          %318 = sbr.rel (%p316) target = $region20
        $region19: #{_lambda_.1} parent=11 // pred_region
          %s320 = ssub.s32 80, 80
          %321 = vsyncadd [#allocation6], %s320
          %s323 = sshll.u32 [#allocation5], 4
          %s324 = int_to_ptr.vmem [resolvable:$true] %s323
          %326 = dma.hbm_to_vmem [thread:$0]  %s2, 80, %s324, [#allocation6]
        $region20: #{_lambda_.1} parent=11 // pred_fallthru
          _
        // Predicated region
        $region21: #{_lambda_.1} parent=11 // pred_check
          %p327 = pneg %p115
        $region22: #{_lambda_.1} parent=11 // pred_check_branch
          %329 = sbr.rel (%p327) target = $region24
        $region23: #{_lambda_.1} parent=11 // pred_region
          %s331 = ssub.s32 20480, 20480
          %332 = vsyncadd [#allocation6], %s331
          %s333 = sshll.u32 [#allocation7], 4
          %s334 = int_to_ptr.vmem [resolvable:$true] %s333
          %339 = dma.hbm_to_vmem [thread:$0]  %s3, 20480, %s334, [#allocation6], 256, 256, 16
        $region24: #{_lambda_.1} parent=11 // pred_fallthru
          _
        // Predicated region
        $region25: #{_lambda_.1} parent=11 // pred_check
          %p340 = pneg %p136
        $region26: #{_lambda_.1} parent=11 // pred_check_branch
          %342 = sbr.rel (%p340) target = $region28
        $region27: #{_lambda_.1} parent=11 // pred_region
          %s344 = ssub.s32 16, 16
          %345 = vsyncadd [#allocation9], %s344
          %s347 = sshll.u32 [#allocation8], 4
          %s348 = int_to_ptr.vmem [resolvable:$true] %s347
          %350 = dma.hbm_to_vmem [thread:$0]  %s4, 16, %s348, [#allocation9]
        $region28: #{_lambda_.1} parent=11 // pred_fallthru
          _
        // Predicated region
        $region29: #{_lambda_.1} parent=11 // pred_check
          %p351 = pneg %p157
        $region30: #{_lambda_.1} parent=11 // pred_check_branch
          %353 = sbr.rel (%p351) target = $region32
        $region31: #{_lambda_.1} parent=11 // pred_region
          %s355 = ssub.s32 1024, 1024
          %356 = vsyncadd [#allocation9], %s355
          %s357 = sshll.u32 [#allocation10], 4
          %s358 = int_to_ptr.vmem [resolvable:$true] %s357
          %363 = dma.hbm_to_vmem [thread:$0]  %s5, 1024, %s358, [#allocation9], 64, 64, 4
        $region32: #{_lambda_.1} parent=11 // pred_fallthru
          _
        // Predicated region
        $region33: #{_lambda_.1} parent=11 // pred_check
          %p364 = pneg %p178
        $region34: #{_lambda_.1} parent=11 // pred_check_branch
          %366 = sbr.rel (%p364) target = $region36
        $region35: #{_lambda_.1} parent=11 // pred_region
          %s368 = ssub.s32 16, 16
          %369 = vsyncadd [#allocation12], %s368
          %s371 = sshll.u32 [#allocation11], 4
          %s372 = int_to_ptr.vmem [resolvable:$true] %s371
          %374 = dma.hbm_to_vmem [thread:$0]  %s6, 16, %s372, [#allocation12]
        $region36: #{_lambda_.1} parent=11 // pred_fallthru
          _
        // Predicated region
        $region37: #{_lambda_.1} parent=11 // pred_check
          %p375 = pneg %p199
        $region38: #{_lambda_.1} parent=11 // pred_check_branch
          %377 = sbr.rel (%p375) target = $region40
        $region39: #{_lambda_.1} parent=11 // pred_region
          %s379 = ssub.s32 1024, 1024
          %380 = vsyncadd [#allocation12], %s379
          %s381 = sshll.u32 [#allocation13], 4
          %s382 = int_to_ptr.vmem [resolvable:$true] %s381
          %387 = dma.hbm_to_vmem [thread:$0]  %s7, 1024, %s382, [#allocation12], 64, 64, 4
        $region40: #{_lambda_.1} parent=11 // pred_fallthru
          _
        // Predicated region
        $region41: #{_lambda_.1} parent=11 // pred_check
          %p388 = pneg %p220
        $region42: #{_lambda_.1} parent=11 // pred_check_branch
          %390 = sbr.rel (%p388) target = $region44
        $region43: #{_lambda_.1} parent=11 // pred_region
          %s392 = ssub.s32 16, 16
          %393 = vsyncadd [#allocation15], %s392
          %s395 = sshll.u32 [#allocation14], 4
          %s396 = int_to_ptr.vmem [resolvable:$true] %s395
          %398 = dma.hbm_to_vmem [thread:$0]  %s8, 16, %s396, [#allocation15]
        $region44: #{_lambda_.1} parent=11 // pred_fallthru
          _
        // Predicated region
        $region45: #{_lambda_.1} parent=11 // pred_check
          %p399 = pneg %p241
        $region46: #{_lambda_.1} parent=11 // pred_check_branch
          %401 = sbr.rel (%p399) target = $region48
        $region47: #{_lambda_.1} parent=11 // pred_region
          %s403 = ssub.s32 1024, 1024
          %404 = vsyncadd [#allocation15], %s403
          %s405 = sshll.u32 [#allocation16], 4
          %s406 = int_to_ptr.vmem [resolvable:$true] %s405
          %411 = dma.hbm_to_vmem [thread:$0]  %s9, 1024, %s406, [#allocation15], 64, 64, 4
        $region48: #{_lambda_.1} parent=11 // pred_fallthru
          _
        // Predicated region
        $region49: #{_lambda_.1} parent=11 // pred_check
          %p412 = pneg %p262
        $region50: #{_lambda_.1} parent=11 // pred_check_branch
          %414 = sbr.rel (%p412) target = $region52
        $region51: #{_lambda_.1} parent=11 // pred_region
          %s416 = ssub.s32 16, 16
          %417 = vsyncadd [#allocation18], %s416
          %s419 = sshll.u32 [#allocation17], 4
          %s420 = int_to_ptr.vmem [resolvable:$true] %s419
          %422 = dma.hbm_to_vmem [thread:$0]  %s10, 16, %s420, [#allocation18]
        $region52: #{_lambda_.1} parent=11 // pred_fallthru
          _
      $region12: #{_lambda_.1} parent=5 // pred_fallthru
        _
      %p423 = scmp.lt.s32.totalorder %s26, 2
      // Predicated region
      $region53: #{_lambda_.1} parent=5 // pred_check
        %p424 = pneg %p423
      $region54: #{_lambda_.1} parent=5 // pred_check_branch
        %426 = sbr.rel (%p424) target = $region56
      $region55: #{_lambda_.1} parent=5 // pred_region
        // Predicated region
        $region57: #{_lambda_.1} parent=55 // pred_check
          %p427 = pneg %p46
        $region58: #{_lambda_.1} parent=55 // pred_check_branch
          %429 = sbr.rel (%p427) target = $region60
        $region59: #{_lambda_.1} parent=55 // pred_region
          %p430 = scmp.lt.s32.totalorder %s26, 1
          %s431 = scalar_select %p430, %s26, 1
          %s432 = smul.addr %s431, 7
          %s433 = smul.addr %s432, 4
          %s434 = scalar_lea.vmem %s0, %s433
        $region60: #{_lambda_.1} parent=55 // pred_fallthru
          _
      $region56: #{_lambda_.1} parent=5 // pred_fallthru
        _
      %p435 = scmp.le.s32.totalorder 1, %s26
      %p436 = scmp.lt.s32.totalorder %s26, 3
      %p437 = pnand %p435, %p436
      %p438 = pneg %p437
      // Predicated region
      $region61: #{_lambda_.1} parent=5 // pred_check
        _
      $region62: #{_lambda_.1} parent=5 // pred_check_branch
        %440 = sbr.rel (%p437) target = $region64
      $region63: #{_lambda_.1} parent=5 // pred_region
        %s441 = ssub.s32 %s26, 1
        // Predicated region
        $region65: #{_lambda_.1} parent=63 // pred_check
          %p442 = pneg %p73
        $region66: #{_lambda_.1} parent=63 // pred_check_branch
          %444 = sbr.rel (%p442) target = $region68
        $region67: #{_lambda_.1} parent=63 // pred_region
          %445 = dma.done [#allocation3], 143360
        $region68: #{_lambda_.1} parent=63 // pred_fallthru
          _
        // Predicated region
        $region69: #{_lambda_.1} parent=63 // pred_check
          %p446 = pneg %p94
        $region70: #{_lambda_.1} parent=63 // pred_check_branch
          %448 = sbr.rel (%p446) target = $region72
        $region71: #{_lambda_.1} parent=63 // pred_region
          %449 = dma.done [#allocation6], 80
        $region72: #{_lambda_.1} parent=63 // pred_fallthru
          _
        // Predicated region
        $region73: #{_lambda_.1} parent=63 // pred_check
          %p450 = pneg %p115
        $region74: #{_lambda_.1} parent=63 // pred_check_branch
          %452 = sbr.rel (%p450) target = $region76
        $region75: #{_lambda_.1} parent=63 // pred_region
          %453 = dma.done [#allocation6], 20480
        $region76: #{_lambda_.1} parent=63 // pred_fallthru
          _
        // Predicated region
        $region77: #{_lambda_.1} parent=63 // pred_check
          %p454 = pneg %p136
        $region78: #{_lambda_.1} parent=63 // pred_check_branch
          %456 = sbr.rel (%p454) target = $region80
        $region79: #{_lambda_.1} parent=63 // pred_region
          %457 = dma.done [#allocation9], 16
        $region80: #{_lambda_.1} parent=63 // pred_fallthru
          _
        // Predicated region
        $region81: #{_lambda_.1} parent=63 // pred_check
          %p458 = pneg %p157
        $region82: #{_lambda_.1} parent=63 // pred_check_branch
          %460 = sbr.rel (%p458) target = $region84
        $region83: #{_lambda_.1} parent=63 // pred_region
          %461 = dma.done [#allocation9], 1024
        $region84: #{_lambda_.1} parent=63 // pred_fallthru
          _
        // Predicated region
        $region85: #{_lambda_.1} parent=63 // pred_check
          %p462 = pneg %p178
        $region86: #{_lambda_.1} parent=63 // pred_check_branch
          %464 = sbr.rel (%p462) target = $region88
        $region87: #{_lambda_.1} parent=63 // pred_region
          %465 = dma.done [#allocation12], 16
        $region88: #{_lambda_.1} parent=63 // pred_fallthru
          _
        // Predicated region
        $region89: #{_lambda_.1} parent=63 // pred_check
          %p466 = pneg %p199
        $region90: #{_lambda_.1} parent=63 // pred_check_branch
          %468 = sbr.rel (%p466) target = $region92
        $region91: #{_lambda_.1} parent=63 // pred_region
          %469 = dma.done [#allocation12], 1024
        $region92: #{_lambda_.1} parent=63 // pred_fallthru
          _
        // Predicated region
        $region93: #{_lambda_.1} parent=63 // pred_check
          %p470 = pneg %p220
        $region94: #{_lambda_.1} parent=63 // pred_check_branch
          %472 = sbr.rel (%p470) target = $region96
        $region95: #{_lambda_.1} parent=63 // pred_region
          %473 = dma.done [#allocation15], 16
        $region96: #{_lambda_.1} parent=63 // pred_fallthru
          _
        // Predicated region
        $region97: #{_lambda_.1} parent=63 // pred_check
          %p474 = pneg %p241
        $region98: #{_lambda_.1} parent=63 // pred_check_branch
          %476 = sbr.rel (%p474) target = $region100
        $region99: #{_lambda_.1} parent=63 // pred_region
          %477 = dma.done [#allocation15], 1024
        $region100: #{_lambda_.1} parent=63 // pred_fallthru
          _
        // Predicated region
        $region101: #{_lambda_.1} parent=63 // pred_check
          %p478 = pneg %p262
        $region102: #{_lambda_.1} parent=63 // pred_check_branch
          %480 = sbr.rel (%p478) target = $region104
        $region103: #{_lambda_.1} parent=63 // pred_region
          %481 = dma.done [#allocation18], 16
        $region104: #{_lambda_.1} parent=63 // pred_fallthru
          _
        %p482 = scmp.lt.s32.totalorder %s31, 1
        %s483 = scalar_select %p482, %s31, 1
        %s484 = smul.addr %s483, 7
        %s485 = smul.addr %s484, 4
        %s486 = scalar_lea.vmem %s0, %s485
        %p487 = pneg %p52
        %p488 = pneg %p49
        %p489 = pneg %p73
        %p490 = pneg %p70
        %p491 = pneg %p94
        %p492 = pneg %p91
        %p493 = pneg %p115
        %p494 = pneg %p112
        %p495 = pneg %p136
        %p496 = pneg %p133
        %p497 = pneg %p157
        %p498 = pneg %p154
        %p499 = pneg %p178
        %p500 = pneg %p175
        %p501 = pneg %p199
        %p502 = pneg %p196
        %p503 = pneg %p220
        %p504 = pneg %p217
        %p505 = pneg %p241
        %p506 = pneg %p238
        %p507 = pneg %p262
        %p508 = pneg %p259
        %p509 = pneg %p288
        %p510 = pneg %p285
        %s511 = sand.u32 %s275, 1
        %s512 = scalar_lea.sflag [#allocation4], %s511
        %s513 = sand.u32 %s275, 1
        %s514 = smul.addr %s513, 8
        %s515 = scalar_lea.vmem [#allocation19], %s514
        %p516 = scmp.lt.s32.totalorder %s31, 1
        %s517 = scalar_select %p516, %s31, 1
        %s518 = smul.addr %s517, 7
        %s519 = smul.addr %s518, 4
        %s520 = scalar_lea.vmem %s0, %s519
        %v522 = vld [vmem:[%s520] sm:$0xff]
        %v523 = vld [vmem:[%s520 + $0x8] sm:$0xff]
        %v524 = vld [vmem:[%s520 + $0x10] sm:$0xff]
        %v525 = vld [vmem:[%s520 + $0x18] sm:$0xf]
        %v526 = vld [vmem:[#allocation2] sm:$0xff]
        %v527 = vld [vmem:[#allocation2 + $0x8] sm:$0xff]
        %v528 = vld [vmem:[#allocation2 + $0x10] sm:$0xff]
        %v529 = vld [vmem:[#allocation2 + $0x18] sm:$0xff]
        %v530 = vld [vmem:[#allocation2 + $0x20] sm:$0xff]
        %v531 = vld [vmem:[#allocation2 + $0x28] sm:$0xff]
        %v532 = vld [vmem:[#allocation2 + $0x30] sm:$0xff]
        %v533 = vld [vmem:[#allocation2 + $0x38] sm:$0xff]
        %v534 = vld [vmem:[#allocation2 + $0x40] sm:$0xff]
        %v535 = vld [vmem:[#allocation2 + $0x48] sm:$0xff]
        %v536 = vld [vmem:[#allocation2 + $0x50] sm:$0xff]
        %v537 = vld [vmem:[#allocation2 + $0x58] sm:$0xff]
        %v538 = vld [vmem:[#allocation2 + $0x60] sm:$0xff]
        %v539 = vld [vmem:[#allocation2 + $0x68] sm:$0xff]
        %v540 = vld [vmem:[#allocation2 + $0x70] sm:$0xff]
        %v541 = vld [vmem:[#allocation2 + $0x78] sm:$0xff]
        %v542 = vld [vmem:[#allocation2 + $0x80] sm:$0xff]
        %v543 = vld [vmem:[#allocation2 + $0x88] sm:$0xff]
        %v544 = vld [vmem:[#allocation2 + $0x90] sm:$0xff]
        %v545 = vld [vmem:[#allocation2 + $0x98] sm:$0xff]
        %v546 = vld [vmem:[#allocation2 + $0xa0] sm:$0xff]
        %v547 = vld [vmem:[#allocation2 + $0xa8] sm:$0xff]
        %v548 = vld [vmem:[#allocation2 + $0xb0] sm:$0xff]
        %v549 = vld [vmem:[#allocation2 + $0xb8] sm:$0xff]
        %v550 = vld [vmem:[#allocation2 + $0xc0] sm:$0xff]
        %v551 = vld [vmem:[#allocation2 + $0xc8] sm:$0xff]
        %v552 = vld [vmem:[#allocation2 + $0xd0] sm:$0xff]
        %v553 = vld [vmem:[#allocation2 + $0xd8] sm:$0xff]
        %v554 = vld [vmem:[#allocation2 + $0xe0] sm:$0xff]
        %v555 = vld [vmem:[#allocation2 + $0xe8] sm:$0xff]
        %v556 = vld [vmem:[#allocation2 + $0xf0] sm:$0xff]
        %v557 = vld [vmem:[#allocation2 + $0xf8] sm:$0xff]
        %v558 = vld [vmem:[#allocation2 + $0x100] sm:$0xff]
        %v559 = vld [vmem:[#allocation2 + $0x108] sm:$0xff]
        %v560 = vld [vmem:[#allocation2 + $0x110] sm:$0xff]
        %v561 = vld [vmem:[#allocation2 + $0x118] sm:$0xff]
        %v562 = vld [vmem:[#allocation2 + $0x120] sm:$0xff]
        %v563 = vld [vmem:[#allocation2 + $0x128] sm:$0xff]
        %v564 = vld [vmem:[#allocation2 + $0x130] sm:$0xff]
        %v565 = vld [vmem:[#allocation2 + $0x138] sm:$0xff]
        %v566 = vld [vmem:[#allocation2 + $0x140] sm:$0xff]
        %v567 = vld [vmem:[#allocation2 + $0x148] sm:$0xff]
        %v568 = vld [vmem:[#allocation2 + $0x150] sm:$0xff]
        %v569 = vld [vmem:[#allocation2 + $0x158] sm:$0xff]
        %v570 = vld [vmem:[#allocation2 + $0x160] sm:$0xff]
        %v571 = vld [vmem:[#allocation2 + $0x168] sm:$0xff]
        %v572 = vld [vmem:[#allocation2 + $0x170] sm:$0xff]
        %v573 = vld [vmem:[#allocation2 + $0x178] sm:$0xff]
        %v574 = vld [vmem:[#allocation2 + $0x180] sm:$0xff]
        %v575 = vld [vmem:[#allocation2 + $0x188] sm:$0xff]
        %v576 = vld [vmem:[#allocation2 + $0x190] sm:$0xff]
        %v577 = vld [vmem:[#allocation2 + $0x198] sm:$0xff]
        %v578 = vld [vmem:[#allocation2 + $0x1a0] sm:$0xff]
        %v579 = vld [vmem:[#allocation2 + $0x1a8] sm:$0xff]
        %v580 = vld [vmem:[#allocation2 + $0x1b0] sm:$0xff]
        %v581 = vld [vmem:[#allocation2 + $0x1b8] sm:$0xff]
        %v582 = vld [vmem:[#allocation2 + $0x1c0] sm:$0xff]
        %v583 = vld [vmem:[#allocation2 + $0x1c8] sm:$0xff]
        %v584 = vld [vmem:[#allocation2 + $0x1d0] sm:$0xff]
        %v585 = vld [vmem:[#allocation2 + $0x1d8] sm:$0xff]
        %v586 = vld [vmem:[#allocation2 + $0x1e0] sm:$0xff]
        %v587 = vld [vmem:[#allocation2 + $0x1e8] sm:$0xff]
        %v588 = vld [vmem:[#allocation2 + $0x1f0] sm:$0xff]
        %v589 = vld [vmem:[#allocation2 + $0x1f8] sm:$0xff]
        %v590 = vld [vmem:[#allocation2 + $0x200] sm:$0xff]
        %v591 = vld [vmem:[#allocation2 + $0x208] sm:$0xff]
        %v592 = vld [vmem:[#allocation2 + $0x210] sm:$0xff]
        %v593 = vld [vmem:[#allocation2 + $0x218] sm:$0xff]
        %v594 = vld [vmem:[#allocation2 + $0x220] sm:$0xff]
        %v595 = vld [vmem:[#allocation2 + $0x228] sm:$0xff]
        %v596 = vld [vmem:[#allocation2 + $0x230] sm:$0xff]
        %v597 = vld [vmem:[#allocation2 + $0x238] sm:$0xff]
        %v598 = vld [vmem:[#allocation2 + $0x240] sm:$0xff]
        %v599 = vld [vmem:[#allocation2 + $0x248] sm:$0xff]
        %v600 = vld [vmem:[#allocation2 + $0x250] sm:$0xff]
        %v601 = vld [vmem:[#allocation2 + $0x258] sm:$0xff]
        %v602 = vld [vmem:[#allocation2 + $0x260] sm:$0xff]
        %v603 = vld [vmem:[#allocation2 + $0x268] sm:$0xff]
        %v604 = vld [vmem:[#allocation2 + $0x270] sm:$0xff]
        %v605 = vld [vmem:[#allocation2 + $0x278] sm:$0xff]
        %v606 = vld [vmem:[#allocation2 + $0x280] sm:$0xff]
        %v607 = vld [vmem:[#allocation2 + $0x288] sm:$0xff]
        %v608 = vld [vmem:[#allocation2 + $0x290] sm:$0xff]
        %v609 = vld [vmem:[#allocation2 + $0x298] sm:$0xff]
        %v610 = vld [vmem:[#allocation2 + $0x2a0] sm:$0xff]
        %v611 = vld [vmem:[#allocation2 + $0x2a8] sm:$0xff]
        %v612 = vld [vmem:[#allocation2 + $0x2b0] sm:$0xff]
        %v613 = vld [vmem:[#allocation2 + $0x2b8] sm:$0xff]
        %v614 = vld [vmem:[#allocation2 + $0x2c0] sm:$0xff]
        %v615 = vld [vmem:[#allocation2 + $0x2c8] sm:$0xff]
        %v616 = vld [vmem:[#allocation2 + $0x2d0] sm:$0xff]
        %v617 = vld [vmem:[#allocation2 + $0x2d8] sm:$0xff]
        %v618 = vld [vmem:[#allocation2 + $0x2e0] sm:$0xff]
        %v619 = vld [vmem:[#allocation2 + $0x2e8] sm:$0xff]
        %v620 = vld [vmem:[#allocation2 + $0x2f0] sm:$0xff]
        %v621 = vld [vmem:[#allocation2 + $0x2f8] sm:$0xff]
        %v622 = vld [vmem:[#allocation2 + $0x300] sm:$0xff]
        %v623 = vld [vmem:[#allocation2 + $0x308] sm:$0xff]
        %v624 = vld [vmem:[#allocation2 + $0x310] sm:$0xff]
        %v625 = vld [vmem:[#allocation2 + $0x318] sm:$0xff]
        %v626 = vld [vmem:[#allocation2 + $0x320] sm:$0xff]
        %v627 = vld [vmem:[#allocation2 + $0x328] sm:$0xff]
        %v628 = vld [vmem:[#allocation2 + $0x330] sm:$0xff]
        %v629 = vld [vmem:[#allocation2 + $0x338] sm:$0xff]
        %v630 = vld [vmem:[#allocation2 + $0x340] sm:$0xff]
        %v631 = vld [vmem:[#allocation2 + $0x348] sm:$0xff]
        %v632 = vld [vmem:[#allocation2 + $0x350] sm:$0xff]
        %v633 = vld [vmem:[#allocation2 + $0x358] sm:$0xff]
        %v634 = vld [vmem:[#allocation2 + $0x360] sm:$0xff]
        %v635 = vld [vmem:[#allocation2 + $0x368] sm:$0xff]
        %v636 = vld [vmem:[#allocation2 + $0x370] sm:$0xff]
        %v637 = vld [vmem:[#allocation2 + $0x378] sm:$0xff]
        %v638 = vld [vmem:[#allocation2 + $0x380] sm:$0xff]
        %v639 = vld [vmem:[#allocation2 + $0x388] sm:$0xff]
        %v640 = vld [vmem:[#allocation2 + $0x390] sm:$0xff]
        %v641 = vld [vmem:[#allocation2 + $0x398] sm:$0xff]
        %v642 = vld [vmem:[#allocation2 + $0x3a0] sm:$0xff]
        %v643 = vld [vmem:[#allocation2 + $0x3a8] sm:$0xff]
        %v644 = vld [vmem:[#allocation2 + $0x3b0] sm:$0xff]
        %v645 = vld [vmem:[#allocation2 + $0x3b8] sm:$0xff]
        %v646 = vld [vmem:[#allocation2 + $0x3c0] sm:$0xff]
        %v647 = vld [vmem:[#allocation2 + $0x3c8] sm:$0xff]
        %v648 = vld [vmem:[#allocation2 + $0x3d0] sm:$0xff]
        %v649 = vld [vmem:[#allocation2 + $0x3d8] sm:$0xff]
        %v650 = vld [vmem:[#allocation2 + $0x3e0] sm:$0xff]
        %v651 = vld [vmem:[#allocation2 + $0x3e8] sm:$0xff]
        %v652 = vld [vmem:[#allocation2 + $0x3f0] sm:$0xff]
        %v653 = vld [vmem:[#allocation2 + $0x3f8] sm:$0xff]
        %v654 = vld [vmem:[#allocation2 + $0x400] sm:$0xff]
        %v655 = vld [vmem:[#allocation2 + $0x408] sm:$0xff]
        %v656 = vld [vmem:[#allocation2 + $0x410] sm:$0xff]
        %v657 = vld [vmem:[#allocation2 + $0x418] sm:$0xff]
        %v658 = vld [vmem:[#allocation2 + $0x420] sm:$0xff]
        %v659 = vld [vmem:[#allocation2 + $0x428] sm:$0xff]
        %v660 = vld [vmem:[#allocation2 + $0x430] sm:$0xff]
        %v661 = vld [vmem:[#allocation2 + $0x438] sm:$0xff]
        %v662 = vld [vmem:[#allocation2 + $0x440] sm:$0xff]
        %v663 = vld [vmem:[#allocation2 + $0x448] sm:$0xff]
        %v664 = vld [vmem:[#allocation2 + $0x450] sm:$0xff]
        %v665 = vld [vmem:[#allocation2 + $0x458] sm:$0xff]
        %v666 = vld [vmem:[#allocation2 + $0x460] sm:$0xff]
        %v667 = vld [vmem:[#allocation2 + $0x468] sm:$0xff]
        %v668 = vld [vmem:[#allocation2 + $0x470] sm:$0xff]
        %v669 = vld [vmem:[#allocation2 + $0x478] sm:$0xff]
        %v670 = vld [vmem:[#allocation2 + $0x480] sm:$0xff]
        %v671 = vld [vmem:[#allocation2 + $0x488] sm:$0xff]
        %v672 = vld [vmem:[#allocation2 + $0x490] sm:$0xff]
        %v673 = vld [vmem:[#allocation2 + $0x498] sm:$0xff]
        %v674 = vld [vmem:[#allocation2 + $0x4a0] sm:$0xff]
        %v675 = vld [vmem:[#allocation2 + $0x4a8] sm:$0xff]
        %v676 = vld [vmem:[#allocation2 + $0x4b0] sm:$0xff]
        %v677 = vld [vmem:[#allocation2 + $0x4b8] sm:$0xff]
        %v678 = vld [vmem:[#allocation2 + $0x4c0] sm:$0xff]
        %v679 = vld [vmem:[#allocation2 + $0x4c8] sm:$0xff]
        %v680 = vld [vmem:[#allocation2 + $0x4d0] sm:$0xff]
        %v681 = vld [vmem:[#allocation2 + $0x4d8] sm:$0xff]
        %v682 = vld [vmem:[#allocation2 + $0x4e0] sm:$0xff]
        %v683 = vld [vmem:[#allocation2 + $0x4e8] sm:$0xff]
        %v684 = vld [vmem:[#allocation2 + $0x4f0] sm:$0xff]
        %v685 = vld [vmem:[#allocation2 + $0x4f8] sm:$0xff]
        %v686 = vld [vmem:[#allocation2 + $0x500] sm:$0xff]
        %v687 = vld [vmem:[#allocation2 + $0x508] sm:$0xff]
        %v688 = vld [vmem:[#allocation2 + $0x510] sm:$0xff]
        %v689 = vld [vmem:[#allocation2 + $0x518] sm:$0xff]
        %v690 = vld [vmem:[#allocation2 + $0x520] sm:$0xff]
        %v691 = vld [vmem:[#allocation2 + $0x528] sm:$0xff]
        %v692 = vld [vmem:[#allocation2 + $0x530] sm:$0xff]
        %v693 = vld [vmem:[#allocation2 + $0x538] sm:$0xff]
        %v694 = vld [vmem:[#allocation2 + $0x540] sm:$0xff]
        %v695 = vld [vmem:[#allocation2 + $0x548] sm:$0xff]
        %v696 = vld [vmem:[#allocation2 + $0x550] sm:$0xff]
        %v697 = vld [vmem:[#allocation2 + $0x558] sm:$0xff]
        %v698 = vld [vmem:[#allocation2 + $0x560] sm:$0xff]
        %v699 = vld [vmem:[#allocation2 + $0x568] sm:$0xff]
        %v700 = vld [vmem:[#allocation2 + $0x570] sm:$0xff]
        %v701 = vld [vmem:[#allocation2 + $0x578] sm:$0xff]
        %v702 = vld [vmem:[#allocation2 + $0x580] sm:$0xff]
        %v703 = vld [vmem:[#allocation2 + $0x588] sm:$0xff]
        %v704 = vld [vmem:[#allocation2 + $0x590] sm:$0xff]
        %v705 = vld [vmem:[#allocation2 + $0x598] sm:$0xff]
        %v706 = vld [vmem:[#allocation2 + $0x5a0] sm:$0xff]
        %v707 = vld [vmem:[#allocation2 + $0x5a8] sm:$0xff]
        %v708 = vld [vmem:[#allocation2 + $0x5b0] sm:$0xff]
        %v709 = vld [vmem:[#allocation2 + $0x5b8] sm:$0xff]
        %v710 = vld [vmem:[#allocation2 + $0x5c0] sm:$0xff]
        %v711 = vld [vmem:[#allocation2 + $0x5c8] sm:$0xff]
        %v712 = vld [vmem:[#allocation2 + $0x5d0] sm:$0xff]
        %v713 = vld [vmem:[#allocation2 + $0x5d8] sm:$0xff]
        %v714 = vld [vmem:[#allocation2 + $0x5e0] sm:$0xff]
        %v715 = vld [vmem:[#allocation2 + $0x5e8] sm:$0xff]
        %v716 = vld [vmem:[#allocation2 + $0x5f0] sm:$0xff]
        %v717 = vld [vmem:[#allocation2 + $0x5f8] sm:$0xff]
        %v718 = vld [vmem:[#allocation2 + $0x600] sm:$0xff]
        %v719 = vld [vmem:[#allocation2 + $0x608] sm:$0xff]
        %v720 = vld [vmem:[#allocation2 + $0x610] sm:$0xff]
        %v721 = vld [vmem:[#allocation2 + $0x618] sm:$0xff]
        %v722 = vld [vmem:[#allocation2 + $0x620] sm:$0xff]
        %v723 = vld [vmem:[#allocation2 + $0x628] sm:$0xff]
        %v724 = vld [vmem:[#allocation2 + $0x630] sm:$0xff]
        %v725 = vld [vmem:[#allocation2 + $0x638] sm:$0xff]
        %v726 = vld [vmem:[#allocation2 + $0x640] sm:$0xff]
        %v727 = vld [vmem:[#allocation2 + $0x648] sm:$0xff]
        %v728 = vld [vmem:[#allocation2 + $0x650] sm:$0xff]
        %v729 = vld [vmem:[#allocation2 + $0x658] sm:$0xff]
        %v730 = vld [vmem:[#allocation2 + $0x660] sm:$0xff]
        %v731 = vld [vmem:[#allocation2 + $0x668] sm:$0xff]
        %v732 = vld [vmem:[#allocation2 + $0x670] sm:$0xff]
        %v733 = vld [vmem:[#allocation2 + $0x678] sm:$0xff]
        %v734 = vld [vmem:[#allocation2 + $0x680] sm:$0xff]
        %v735 = vld [vmem:[#allocation2 + $0x688] sm:$0xff]
        %v736 = vld [vmem:[#allocation2 + $0x690] sm:$0xff]
        %v737 = vld [vmem:[#allocation2 + $0x698] sm:$0xff]
        %v738 = vld [vmem:[#allocation2 + $0x6a0] sm:$0xff]
        %v739 = vld [vmem:[#allocation2 + $0x6a8] sm:$0xff]
        %v740 = vld [vmem:[#allocation2 + $0x6b0] sm:$0xff]
        %v741 = vld [vmem:[#allocation2 + $0x6b8] sm:$0xff]
        %v742 = vld [vmem:[#allocation2 + $0x6c0] sm:$0xff]
        %v743 = vld [vmem:[#allocation2 + $0x6c8] sm:$0xff]
        %v744 = vld [vmem:[#allocation2 + $0x6d0] sm:$0xff]
        %v745 = vld [vmem:[#allocation2 + $0x6d8] sm:$0xff]
        %v746 = vld [vmem:[#allocation2 + $0x6e0] sm:$0xff]
        %v747 = vld [vmem:[#allocation2 + $0x6e8] sm:$0xff]
        %v748 = vld [vmem:[#allocation2 + $0x6f0] sm:$0xff]
        %v749 = vld [vmem:[#allocation2 + $0x6f8] sm:$0xff]
        %v750 = vld [vmem:[#allocation2 + $0x700] sm:$0xff]
        %v751 = vld [vmem:[#allocation2 + $0x708] sm:$0xff]
        %v752 = vld [vmem:[#allocation2 + $0x710] sm:$0xff]
        %v753 = vld [vmem:[#allocation2 + $0x718] sm:$0xff]
        %v754 = vld [vmem:[#allocation2 + $0x720] sm:$0xff]
        %v755 = vld [vmem:[#allocation2 + $0x728] sm:$0xff]
        %v756 = vld [vmem:[#allocation2 + $0x730] sm:$0xff]
        %v757 = vld [vmem:[#allocation2 + $0x738] sm:$0xff]
        %v758 = vld [vmem:[#allocation2 + $0x740] sm:$0xff]
        %v759 = vld [vmem:[#allocation2 + $0x748] sm:$0xff]
        %v760 = vld [vmem:[#allocation2 + $0x750] sm:$0xff]
        %v761 = vld [vmem:[#allocation2 + $0x758] sm:$0xff]
        %v762 = vld [vmem:[#allocation2 + $0x760] sm:$0xff]
        %v763 = vld [vmem:[#allocation2 + $0x768] sm:$0xff]
        %v764 = vld [vmem:[#allocation2 + $0x770] sm:$0xff]
        %v765 = vld [vmem:[#allocation2 + $0x778] sm:$0xff]
        %v766 = vld [vmem:[#allocation2 + $0x780] sm:$0xff]
        %v767 = vld [vmem:[#allocation2 + $0x788] sm:$0xff]
        %v768 = vld [vmem:[#allocation2 + $0x790] sm:$0xff]
        %v769 = vld [vmem:[#allocation2 + $0x798] sm:$0xff]
        %v770 = vld [vmem:[#allocation2 + $0x7a0] sm:$0xff]
        %v771 = vld [vmem:[#allocation2 + $0x7a8] sm:$0xff]
        %v772 = vld [vmem:[#allocation2 + $0x7b0] sm:$0xff]
        %v773 = vld [vmem:[#allocation2 + $0x7b8] sm:$0xff]
        %v774 = vld [vmem:[#allocation2 + $0x7c0] sm:$0xff]
        %v775 = vld [vmem:[#allocation2 + $0x7c8] sm:$0xff]
        %v776 = vld [vmem:[#allocation2 + $0x7d0] sm:$0xff]
        %v777 = vld [vmem:[#allocation2 + $0x7d8] sm:$0xff]
        %v778 = vld [vmem:[#allocation2 + $0x7e0] sm:$0xff]
        %v779 = vld [vmem:[#allocation2 + $0x7e8] sm:$0xff]
        %v780 = vld [vmem:[#allocation2 + $0x7f0] sm:$0xff]
        %v781 = vld [vmem:[#allocation2 + $0x7f8] sm:$0xff]
        %v782 = vld [vmem:[#allocation2 + $0x800] sm:$0xff]
        %v783 = vld [vmem:[#allocation2 + $0x808] sm:$0xff]
        %v784 = vld [vmem:[#allocation2 + $0x810] sm:$0xff]
        %v785 = vld [vmem:[#allocation2 + $0x818] sm:$0xff]
        %v786 = vld [vmem:[#allocation2 + $0x820] sm:$0xff]
        %v787 = vld [vmem:[#allocation2 + $0x828] sm:$0xff]
        %v788 = vld [vmem:[#allocation2 + $0x830] sm:$0xff]
        %v789 = vld [vmem:[#allocation2 + $0x838] sm:$0xff]
        %v790 = vld [vmem:[#allocation2 + $0x840] sm:$0xff]
        %v791 = vld [vmem:[#allocation2 + $0x848] sm:$0xff]
        %v792 = vld [vmem:[#allocation2 + $0x850] sm:$0xff]
        %v793 = vld [vmem:[#allocation2 + $0x858] sm:$0xff]
        %v794 = vld [vmem:[#allocation2 + $0x860] sm:$0xff]
        %v795 = vld [vmem:[#allocation2 + $0x868] sm:$0xff]
        %v796 = vld [vmem:[#allocation2 + $0x870] sm:$0xff]
        %v797 = vld [vmem:[#allocation2 + $0x878] sm:$0xff]
        %v798 = vld [vmem:[#allocation2 + $0x880] sm:$0xff]
        %v799 = vld [vmem:[#allocation2 + $0x888] sm:$0xff]
        %v800 = vld [vmem:[#allocation2 + $0x890] sm:$0xff]
        %v801 = vld [vmem:[#allocation2 + $0x898] sm:$0xff]
        %v802 = vld [vmem:[#allocation2 + $0x8a0] sm:$0xff]
        %v803 = vld [vmem:[#allocation2 + $0x8a8] sm:$0xff]
        %v804 = vld [vmem:[#allocation2 + $0x8b0] sm:$0xff]
        %v805 = vld [vmem:[#allocation2 + $0x8b8] sm:$0xff]
        %v806 = vld [vmem:[#allocation2 + $0x8c0] sm:$0xff]
        %v807 = vld [vmem:[#allocation2 + $0x8c8] sm:$0xff]
        %v808 = vld [vmem:[#allocation2 + $0x8d0] sm:$0xff]
        %v809 = vld [vmem:[#allocation2 + $0x8d8] sm:$0xff]
        %v810 = vld [vmem:[#allocation2 + $0x8e0] sm:$0xff]
        %v811 = vld [vmem:[#allocation2 + $0x8e8] sm:$0xff]
        %v812 = vld [vmem:[#allocation2 + $0x8f0] sm:$0xff]
        %v813 = vld [vmem:[#allocation2 + $0x8f8] sm:$0xff]
        %v814 = vld [vmem:[#allocation2 + $0x900] sm:$0xff]
        %v815 = vld [vmem:[#allocation2 + $0x908] sm:$0xff]
        %v816 = vld [vmem:[#allocation2 + $0x910] sm:$0xff]
        %v817 = vld [vmem:[#allocation2 + $0x918] sm:$0xff]
        %v818 = vld [vmem:[#allocation2 + $0x920] sm:$0xff]
        %v819 = vld [vmem:[#allocation2 + $0x928] sm:$0xff]
        %v820 = vld [vmem:[#allocation2 + $0x930] sm:$0xff]
        %v821 = vld [vmem:[#allocation2 + $0x938] sm:$0xff]
        %v822 = vld [vmem:[#allocation2 + $0x940] sm:$0xff]
        %v823 = vld [vmem:[#allocation2 + $0x948] sm:$0xff]
        %v824 = vld [vmem:[#allocation2 + $0x950] sm:$0xff]
        %v825 = vld [vmem:[#allocation2 + $0x958] sm:$0xff]
        %v826 = vld [vmem:[#allocation2 + $0x960] sm:$0xff]
        %v827 = vld [vmem:[#allocation2 + $0x968] sm:$0xff]
        %v828 = vld [vmem:[#allocation2 + $0x970] sm:$0xff]
        %v829 = vld [vmem:[#allocation2 + $0x978] sm:$0xff]
        %v830 = vld [vmem:[#allocation2 + $0x980] sm:$0xff]
        %v831 = vld [vmem:[#allocation2 + $0x988] sm:$0xff]
        %v832 = vld [vmem:[#allocation2 + $0x990] sm:$0xff]
        %v833 = vld [vmem:[#allocation2 + $0x998] sm:$0xff]
        %v834 = vld [vmem:[#allocation2 + $0x9a0] sm:$0xff]
        %v835 = vld [vmem:[#allocation2 + $0x9a8] sm:$0xff]
        %v836 = vld [vmem:[#allocation2 + $0x9b0] sm:$0xff]
        %v837 = vld [vmem:[#allocation2 + $0x9b8] sm:$0xff]
        %v838 = vld [vmem:[#allocation2 + $0x9c0] sm:$0xff]
        %v839 = vld [vmem:[#allocation2 + $0x9c8] sm:$0xff]
        %v840 = vld [vmem:[#allocation2 + $0x9d0] sm:$0xff]
        %v841 = vld [vmem:[#allocation2 + $0x9d8] sm:$0xff]
        %v842 = vld [vmem:[#allocation2 + $0x9e0] sm:$0xff]
        %v843 = vld [vmem:[#allocation2 + $0x9e8] sm:$0xff]
        %v844 = vld [vmem:[#allocation2 + $0x9f0] sm:$0xff]
        %v845 = vld [vmem:[#allocation2 + $0x9f8] sm:$0xff]
        %v846 = vld [vmem:[#allocation2 + $0xa00] sm:$0xff]
        %v847 = vld [vmem:[#allocation2 + $0xa08] sm:$0xff]
        %v848 = vld [vmem:[#allocation2 + $0xa10] sm:$0xff]
        %v849 = vld [vmem:[#allocation2 + $0xa18] sm:$0xff]
        %v850 = vld [vmem:[#allocation2 + $0xa20] sm:$0xff]
        %v851 = vld [vmem:[#allocation2 + $0xa28] sm:$0xff]
        %v852 = vld [vmem:[#allocation2 + $0xa30] sm:$0xff]
        %v853 = vld [vmem:[#allocation2 + $0xa38] sm:$0xff]
        %v854 = vld [vmem:[#allocation2 + $0xa40] sm:$0xff]
        %v855 = vld [vmem:[#allocation2 + $0xa48] sm:$0xff]
        %v856 = vld [vmem:[#allocation2 + $0xa50] sm:$0xff]
        %v857 = vld [vmem:[#allocation2 + $0xa58] sm:$0xff]
        %v858 = vld [vmem:[#allocation2 + $0xa60] sm:$0xff]
        %v859 = vld [vmem:[#allocation2 + $0xa68] sm:$0xff]
        %v860 = vld [vmem:[#allocation2 + $0xa70] sm:$0xff]
        %v861 = vld [vmem:[#allocation2 + $0xa78] sm:$0xff]
        %v862 = vld [vmem:[#allocation2 + $0xa80] sm:$0xff]
        %v863 = vld [vmem:[#allocation2 + $0xa88] sm:$0xff]
        %v864 = vld [vmem:[#allocation2 + $0xa90] sm:$0xff]
        %v865 = vld [vmem:[#allocation2 + $0xa98] sm:$0xff]
        %v866 = vld [vmem:[#allocation2 + $0xaa0] sm:$0xff]
        %v867 = vld [vmem:[#allocation2 + $0xaa8] sm:$0xff]
        %v868 = vld [vmem:[#allocation2 + $0xab0] sm:$0xff]
        %v869 = vld [vmem:[#allocation2 + $0xab8] sm:$0xff]
        %v870 = vld [vmem:[#allocation2 + $0xac0] sm:$0xff]
        %v871 = vld [vmem:[#allocation2 + $0xac8] sm:$0xff]
        %v872 = vld [vmem:[#allocation2 + $0xad0] sm:$0xff]
        %v873 = vld [vmem:[#allocation2 + $0xad8] sm:$0xff]
        %v874 = vld [vmem:[#allocation2 + $0xae0] sm:$0xff]
        %v875 = vld [vmem:[#allocation2 + $0xae8] sm:$0xff]
        %v876 = vld [vmem:[#allocation2 + $0xaf0] sm:$0xff]
        %v877 = vld [vmem:[#allocation2 + $0xaf8] sm:$0xff]
        %v878 = vld [vmem:[#allocation2 + $0xb00] sm:$0xff]
        %v879 = vld [vmem:[#allocation2 + $0xb08] sm:$0xff]
        %v880 = vld [vmem:[#allocation2 + $0xb10] sm:$0xff]
        %v881 = vld [vmem:[#allocation2 + $0xb18] sm:$0xff]
        %v882 = vld [vmem:[#allocation2 + $0xb20] sm:$0xff]
        %v883 = vld [vmem:[#allocation2 + $0xb28] sm:$0xff]
        %v884 = vld [vmem:[#allocation2 + $0xb30] sm:$0xff]
        %v885 = vld [vmem:[#allocation2 + $0xb38] sm:$0xff]
        %v886 = vld [vmem:[#allocation2 + $0xb40] sm:$0xff]
        %v887 = vld [vmem:[#allocation2 + $0xb48] sm:$0xff]
        %v888 = vld [vmem:[#allocation2 + $0xb50] sm:$0xff]
        %v889 = vld [vmem:[#allocation2 + $0xb58] sm:$0xff]
        %v890 = vld [vmem:[#allocation2 + $0xb60] sm:$0xff]
        %v891 = vld [vmem:[#allocation2 + $0xb68] sm:$0xff]
        %v892 = vld [vmem:[#allocation2 + $0xb70] sm:$0xff]
        %v893 = vld [vmem:[#allocation2 + $0xb78] sm:$0xff]
        %v894 = vld [vmem:[#allocation2 + $0xb80] sm:$0xff]
        %v895 = vld [vmem:[#allocation2 + $0xb88] sm:$0xff]
        %v896 = vld [vmem:[#allocation2 + $0xb90] sm:$0xff]
        %v897 = vld [vmem:[#allocation2 + $0xb98] sm:$0xff]
        %v898 = vld [vmem:[#allocation2 + $0xba0] sm:$0xff]
        %v899 = vld [vmem:[#allocation2 + $0xba8] sm:$0xff]
        %v900 = vld [vmem:[#allocation2 + $0xbb0] sm:$0xff]
        %v901 = vld [vmem:[#allocation2 + $0xbb8] sm:$0xff]
        %v902 = vld [vmem:[#allocation2 + $0xbc0] sm:$0xff]
        %v903 = vld [vmem:[#allocation2 + $0xbc8] sm:$0xff]
        %v904 = vld [vmem:[#allocation2 + $0xbd0] sm:$0xff]
        %v905 = vld [vmem:[#allocation2 + $0xbd8] sm:$0xff]
        %v906 = vld [vmem:[#allocation2 + $0xbe0] sm:$0xff]
        %v907 = vld [vmem:[#allocation2 + $0xbe8] sm:$0xff]
        %v908 = vld [vmem:[#allocation2 + $0xbf0] sm:$0xff]
        %v909 = vld [vmem:[#allocation2 + $0xbf8] sm:$0xff]
        %v910 = vld [vmem:[#allocation2 + $0xc00] sm:$0xff]
        %v911 = vld [vmem:[#allocation2 + $0xc08] sm:$0xff]
        %v912 = vld [vmem:[#allocation2 + $0xc10] sm:$0xff]
        %v913 = vld [vmem:[#allocation2 + $0xc18] sm:$0xff]
        %v914 = vld [vmem:[#allocation2 + $0xc20] sm:$0xff]
        %v915 = vld [vmem:[#allocation2 + $0xc28] sm:$0xff]
        %v916 = vld [vmem:[#allocation2 + $0xc30] sm:$0xff]
        %v917 = vld [vmem:[#allocation2 + $0xc38] sm:$0xff]
        %v918 = vld [vmem:[#allocation2 + $0xc40] sm:$0xff]
        %v919 = vld [vmem:[#allocation2 + $0xc48] sm:$0xff]
        %v920 = vld [vmem:[#allocation2 + $0xc50] sm:$0xff]
        %v921 = vld [vmem:[#allocation2 + $0xc58] sm:$0xff]
        %v922 = vld [vmem:[#allocation2 + $0xc60] sm:$0xff]
        %v923 = vld [vmem:[#allocation2 + $0xc68] sm:$0xff]
        %v924 = vld [vmem:[#allocation2 + $0xc70] sm:$0xff]
        %v925 = vld [vmem:[#allocation2 + $0xc78] sm:$0xff]
        %v926 = vld [vmem:[#allocation2 + $0xc80] sm:$0xff]
        %v927 = vld [vmem:[#allocation2 + $0xc88] sm:$0xff]
        %v928 = vld [vmem:[#allocation2 + $0xc90] sm:$0xff]
        %v929 = vld [vmem:[#allocation2 + $0xc98] sm:$0xff]
        %v930 = vld [vmem:[#allocation2 + $0xca0] sm:$0xff]
        %v931 = vld [vmem:[#allocation2 + $0xca8] sm:$0xff]
        %v932 = vld [vmem:[#allocation2 + $0xcb0] sm:$0xff]
        %v933 = vld [vmem:[#allocation2 + $0xcb8] sm:$0xff]
        %v934 = vld [vmem:[#allocation2 + $0xcc0] sm:$0xff]
        %v935 = vld [vmem:[#allocation2 + $0xcc8] sm:$0xff]
        %v936 = vld [vmem:[#allocation2 + $0xcd0] sm:$0xff]
        %v937 = vld [vmem:[#allocation2 + $0xcd8] sm:$0xff]
        %v938 = vld [vmem:[#allocation2 + $0xce0] sm:$0xff]
        %v939 = vld [vmem:[#allocation2 + $0xce8] sm:$0xff]
        %v940 = vld [vmem:[#allocation2 + $0xcf0] sm:$0xff]
        %v941 = vld [vmem:[#allocation2 + $0xcf8] sm:$0xff]
        %v942 = vld [vmem:[#allocation2 + $0xd00] sm:$0xff]
        %v943 = vld [vmem:[#allocation2 + $0xd08] sm:$0xff]
        %v944 = vld [vmem:[#allocation2 + $0xd10] sm:$0xff]
        %v945 = vld [vmem:[#allocation2 + $0xd18] sm:$0xff]
        %v946 = vld [vmem:[#allocation2 + $0xd20] sm:$0xff]
        %v947 = vld [vmem:[#allocation2 + $0xd28] sm:$0xff]
        %v948 = vld [vmem:[#allocation2 + $0xd30] sm:$0xff]
        %v949 = vld [vmem:[#allocation2 + $0xd38] sm:$0xff]
        %v950 = vld [vmem:[#allocation2 + $0xd40] sm:$0xff]
        %v951 = vld [vmem:[#allocation2 + $0xd48] sm:$0xff]
        %v952 = vld [vmem:[#allocation2 + $0xd50] sm:$0xff]
        %v953 = vld [vmem:[#allocation2 + $0xd58] sm:$0xff]
        %v954 = vld [vmem:[#allocation2 + $0xd60] sm:$0xff]
        %v955 = vld [vmem:[#allocation2 + $0xd68] sm:$0xff]
        %v956 = vld [vmem:[#allocation2 + $0xd70] sm:$0xff]
        %v957 = vld [vmem:[#allocation2 + $0xd78] sm:$0xff]
        %v958 = vld [vmem:[#allocation2 + $0xd80] sm:$0xff]
        %v959 = vld [vmem:[#allocation2 + $0xd88] sm:$0xff]
        %v960 = vld [vmem:[#allocation2 + $0xd90] sm:$0xff]
        %v961 = vld [vmem:[#allocation2 + $0xd98] sm:$0xff]
        %v962 = vld [vmem:[#allocation2 + $0xda0] sm:$0xff]
        %v963 = vld [vmem:[#allocation2 + $0xda8] sm:$0xff]
        %v964 = vld [vmem:[#allocation2 + $0xdb0] sm:$0xff]
        %v965 = vld [vmem:[#allocation2 + $0xdb8] sm:$0xff]
        %v966 = vld [vmem:[#allocation2 + $0xdc0] sm:$0xff]
        %v967 = vld [vmem:[#allocation2 + $0xdc8] sm:$0xff]
        %v968 = vld [vmem:[#allocation2 + $0xdd0] sm:$0xff]
        %v969 = vld [vmem:[#allocation2 + $0xdd8] sm:$0xff]
        %v970 = vld [vmem:[#allocation2 + $0xde0] sm:$0xff]
        %v971 = vld [vmem:[#allocation2 + $0xde8] sm:$0xff]
        %v972 = vld [vmem:[#allocation2 + $0xdf0] sm:$0xff]
        %v973 = vld [vmem:[#allocation2 + $0xdf8] sm:$0xff]
        %v974 = vld [vmem:[#allocation2 + $0xe00] sm:$0xff]
        %v975 = vld [vmem:[#allocation2 + $0xe08] sm:$0xff]
        %v976 = vld [vmem:[#allocation2 + $0xe10] sm:$0xff]
        %v977 = vld [vmem:[#allocation2 + $0xe18] sm:$0xff]
        %v978 = vld [vmem:[#allocation2 + $0xe20] sm:$0xff]
        %v979 = vld [vmem:[#allocation2 + $0xe28] sm:$0xff]
        %v980 = vld [vmem:[#allocation2 + $0xe30] sm:$0xff]
        %v981 = vld [vmem:[#allocation2 + $0xe38] sm:$0xff]
        %v982 = vld [vmem:[#allocation2 + $0xe40] sm:$0xff]
        %v983 = vld [vmem:[#allocation2 + $0xe48] sm:$0xff]
        %v984 = vld [vmem:[#allocation2 + $0xe50] sm:$0xff]
        %v985 = vld [vmem:[#allocation2 + $0xe58] sm:$0xff]
        %v986 = vld [vmem:[#allocation2 + $0xe60] sm:$0xff]
        %v987 = vld [vmem:[#allocation2 + $0xe68] sm:$0xff]
        %v988 = vld [vmem:[#allocation2 + $0xe70] sm:$0xff]
        %v989 = vld [vmem:[#allocation2 + $0xe78] sm:$0xff]
        %v990 = vld [vmem:[#allocation2 + $0xe80] sm:$0xff]
        %v991 = vld [vmem:[#allocation2 + $0xe88] sm:$0xff]
        %v992 = vld [vmem:[#allocation2 + $0xe90] sm:$0xff]
        %v993 = vld [vmem:[#allocation2 + $0xe98] sm:$0xff]
        %v994 = vld [vmem:[#allocation2 + $0xea0] sm:$0xff]
        %v995 = vld [vmem:[#allocation2 + $0xea8] sm:$0xff]
        %v996 = vld [vmem:[#allocation2 + $0xeb0] sm:$0xff]
        %v997 = vld [vmem:[#allocation2 + $0xeb8] sm:$0xff]
        %v998 = vld [vmem:[#allocation2 + $0xec0] sm:$0xff]
        %v999 = vld [vmem:[#allocation2 + $0xec8] sm:$0xff]
        %v1000 = vld [vmem:[#allocation2 + $0xed0] sm:$0xff]
        %v1001 = vld [vmem:[#allocation2 + $0xed8] sm:$0xff]
        %v1002 = vld [vmem:[#allocation2 + $0xee0] sm:$0xff]
        %v1003 = vld [vmem:[#allocation2 + $0xee8] sm:$0xff]
        %v1004 = vld [vmem:[#allocation2 + $0xef0] sm:$0xff]
        %v1005 = vld [vmem:[#allocation2 + $0xef8] sm:$0xff]
        %v1006 = vld [vmem:[#allocation2 + $0xf00] sm:$0xff]
        %v1007 = vld [vmem:[#allocation2 + $0xf08] sm:$0xff]
        %v1008 = vld [vmem:[#allocation2 + $0xf10] sm:$0xff]
        %v1009 = vld [vmem:[#allocation2 + $0xf18] sm:$0xff]
        %v1010 = vld [vmem:[#allocation2 + $0xf20] sm:$0xff]
        %v1011 = vld [vmem:[#allocation2 + $0xf28] sm:$0xff]
        %v1012 = vld [vmem:[#allocation2 + $0xf30] sm:$0xff]
        %v1013 = vld [vmem:[#allocation2 + $0xf38] sm:$0xff]
        %v1014 = vld [vmem:[#allocation2 + $0xf40] sm:$0xff]
        %v1015 = vld [vmem:[#allocation2 + $0xf48] sm:$0xff]
        %v1016 = vld [vmem:[#allocation2 + $0xf50] sm:$0xff]
        %v1017 = vld [vmem:[#allocation2 + $0xf58] sm:$0xff]
        %v1018 = vld [vmem:[#allocation2 + $0xf60] sm:$0xff]
        %v1019 = vld [vmem:[#allocation2 + $0xf68] sm:$0xff]
        %v1020 = vld [vmem:[#allocation2 + $0xf70] sm:$0xff]
        %v1021 = vld [vmem:[#allocation2 + $0xf78] sm:$0xff]
        %v1022 = vld [vmem:[#allocation2 + $0xf80] sm:$0xff]
        %v1023 = vld [vmem:[#allocation2 + $0xf88] sm:$0xff]
        %v1024 = vld [vmem:[#allocation2 + $0xf90] sm:$0xff]
        %v1025 = vld [vmem:[#allocation2 + $0xf98] sm:$0xff]
        %v1026 = vld [vmem:[#allocation2 + $0xfa0] sm:$0xff]
        %v1027 = vld [vmem:[#allocation2 + $0xfa8] sm:$0xff]
        %v1028 = vld [vmem:[#allocation2 + $0xfb0] sm:$0xff]
        %v1029 = vld [vmem:[#allocation2 + $0xfb8] sm:$0xff]
        %v1030 = vld [vmem:[#allocation2 + $0xfc0] sm:$0xff]
        %v1031 = vld [vmem:[#allocation2 + $0xfc8] sm:$0xff]
        %v1032 = vld [vmem:[#allocation2 + $0xfd0] sm:$0xff]
        %v1033 = vld [vmem:[#allocation2 + $0xfd8] sm:$0xff]
        %v1034 = vld [vmem:[#allocation2 + $0xfe0] sm:$0xff]
        %v1035 = vld [vmem:[#allocation2 + $0xfe8] sm:$0xff]
        %v1036 = vld [vmem:[#allocation2 + $0xff0] sm:$0xff]
        %v1037 = vld [vmem:[#allocation2 + $0xff8] sm:$0xff]
        %v1038 = vld [vmem:[#allocation2 + $0x1000] sm:$0xff]
        %v1039 = vld [vmem:[#allocation2 + $0x1008] sm:$0xff]
        %v1040 = vld [vmem:[#allocation2 + $0x1010] sm:$0xff]
        %v1041 = vld [vmem:[#allocation2 + $0x1018] sm:$0xff]
        %v1042 = vld [vmem:[#allocation2 + $0x1020] sm:$0xff]
        %v1043 = vld [vmem:[#allocation2 + $0x1028] sm:$0xff]
        %v1044 = vld [vmem:[#allocation2 + $0x1030] sm:$0xff]
        %v1045 = vld [vmem:[#allocation2 + $0x1038] sm:$0xff]
        %v1046 = vld [vmem:[#allocation2 + $0x1040] sm:$0xff]
        %v1047 = vld [vmem:[#allocation2 + $0x1048] sm:$0xff]
        %v1048 = vld [vmem:[#allocation2 + $0x1050] sm:$0xff]
        %v1049 = vld [vmem:[#allocation2 + $0x1058] sm:$0xff]
        %v1050 = vld [vmem:[#allocation2 + $0x1060] sm:$0xff]
        %v1051 = vld [vmem:[#allocation2 + $0x1068] sm:$0xff]
        %v1052 = vld [vmem:[#allocation2 + $0x1070] sm:$0xff]
        %v1053 = vld [vmem:[#allocation2 + $0x1078] sm:$0xff]
        %v1054 = vld [vmem:[#allocation2 + $0x1080] sm:$0xff]
        %v1055 = vld [vmem:[#allocation2 + $0x1088] sm:$0xff]
        %v1056 = vld [vmem:[#allocation2 + $0x1090] sm:$0xff]
        %v1057 = vld [vmem:[#allocation2 + $0x1098] sm:$0xff]
        %v1058 = vld [vmem:[#allocation2 + $0x10a0] sm:$0xff]
        %v1059 = vld [vmem:[#allocation2 + $0x10a8] sm:$0xff]
        %v1060 = vld [vmem:[#allocation2 + $0x10b0] sm:$0xff]
        %v1061 = vld [vmem:[#allocation2 + $0x10b8] sm:$0xff]
        %v1062 = vld [vmem:[#allocation2 + $0x10c0] sm:$0xff]
        %v1063 = vld [vmem:[#allocation2 + $0x10c8] sm:$0xff]
        %v1064 = vld [vmem:[#allocation2 + $0x10d0] sm:$0xff]
        %v1065 = vld [vmem:[#allocation2 + $0x10d8] sm:$0xff]
        %v1066 = vld [vmem:[#allocation2 + $0x10e0] sm:$0xff]
        %v1067 = vld [vmem:[#allocation2 + $0x10e8] sm:$0xff]
        %v1068 = vld [vmem:[#allocation2 + $0x10f0] sm:$0xff]
        %v1069 = vld [vmem:[#allocation2 + $0x10f8] sm:$0xff]
        %v1070 = vld [vmem:[#allocation2 + $0x1100] sm:$0xff]
        %v1071 = vld [vmem:[#allocation2 + $0x1108] sm:$0xff]
        %v1072 = vld [vmem:[#allocation2 + $0x1110] sm:$0xff]
        %v1073 = vld [vmem:[#allocation2 + $0x1118] sm:$0xff]
        %v1074 = vld [vmem:[#allocation2 + $0x1120] sm:$0xff]
        %v1075 = vld [vmem:[#allocation2 + $0x1128] sm:$0xff]
        %v1076 = vld [vmem:[#allocation2 + $0x1130] sm:$0xff]
        %v1077 = vld [vmem:[#allocation2 + $0x1138] sm:$0xff]
        %v1078 = vld [vmem:[#allocation2 + $0x1140] sm:$0xff]
        %v1079 = vld [vmem:[#allocation2 + $0x1148] sm:$0xff]
        %v1080 = vld [vmem:[#allocation2 + $0x1150] sm:$0xff]
        %v1081 = vld [vmem:[#allocation2 + $0x1158] sm:$0xff]
        %v1082 = vld [vmem:[#allocation2 + $0x1160] sm:$0xff]
        %v1083 = vld [vmem:[#allocation2 + $0x1168] sm:$0xff]
        %v1084 = vld [vmem:[#allocation2 + $0x1170] sm:$0xff]
        %v1085 = vld [vmem:[#allocation2 + $0x1178] sm:$0xff]
        %v1086 = vld [vmem:[#allocation2 + $0x1180] sm:$0xff]
        %v1087 = vld [vmem:[#allocation2 + $0x1188] sm:$0xff]
        %v1088 = vld [vmem:[#allocation2 + $0x1190] sm:$0xff]
        %v1089 = vld [vmem:[#allocation2 + $0x1198] sm:$0xff]
        %v1090 = vld [vmem:[#allocation2 + $0x11a0] sm:$0xff]
        %v1091 = vld [vmem:[#allocation2 + $0x11a8] sm:$0xff]
        %v1092 = vld [vmem:[#allocation2 + $0x11b0] sm:$0xff]
        %v1093 = vld [vmem:[#allocation2 + $0x11b8] sm:$0xff]
        %v1094 = vld [vmem:[#allocation2 + $0x11c0] sm:$0xff]
        %v1095 = vld [vmem:[#allocation2 + $0x11c8] sm:$0xff]
        %v1096 = vld [vmem:[#allocation2 + $0x11d0] sm:$0xff]
        %v1097 = vld [vmem:[#allocation2 + $0x11d8] sm:$0xff]
        %v1098 = vld [vmem:[#allocation2 + $0x11e0] sm:$0xff]
        %v1099 = vld [vmem:[#allocation2 + $0x11e8] sm:$0xff]
        %v1100 = vld [vmem:[#allocation2 + $0x11f0] sm:$0xff]
        %v1101 = vld [vmem:[#allocation2 + $0x11f8] sm:$0xff]
        %v1102 = vld [vmem:[#allocation2 + $0x1200] sm:$0xff]
        %v1103 = vld [vmem:[#allocation2 + $0x1208] sm:$0xff]
        %v1104 = vld [vmem:[#allocation2 + $0x1210] sm:$0xff]
        %v1105 = vld [vmem:[#allocation2 + $0x1218] sm:$0xff]
        %v1106 = vld [vmem:[#allocation2 + $0x1220] sm:$0xff]
        %v1107 = vld [vmem:[#allocation2 + $0x1228] sm:$0xff]
        %v1108 = vld [vmem:[#allocation2 + $0x1230] sm:$0xff]
        %v1109 = vld [vmem:[#allocation2 + $0x1238] sm:$0xff]
        %v1110 = vld [vmem:[#allocation2 + $0x1240] sm:$0xff]
        %v1111 = vld [vmem:[#allocation2 + $0x1248] sm:$0xff]
        %v1112 = vld [vmem:[#allocation2 + $0x1250] sm:$0xff]
        %v1113 = vld [vmem:[#allocation2 + $0x1258] sm:$0xff]
        %v1114 = vld [vmem:[#allocation2 + $0x1260] sm:$0xff]
        %v1115 = vld [vmem:[#allocation2 + $0x1268] sm:$0xff]
        %v1116 = vld [vmem:[#allocation2 + $0x1270] sm:$0xff]
        %v1117 = vld [vmem:[#allocation2 + $0x1278] sm:$0xff]
        %v1118 = vld [vmem:[#allocation2 + $0x1280] sm:$0xff]
        %v1119 = vld [vmem:[#allocation2 + $0x1288] sm:$0xff]
        %v1120 = vld [vmem:[#allocation2 + $0x1290] sm:$0xff]
        %v1121 = vld [vmem:[#allocation2 + $0x1298] sm:$0xff]
        %v1122 = vld [vmem:[#allocation2 + $0x12a0] sm:$0xff]
        %v1123 = vld [vmem:[#allocation2 + $0x12a8] sm:$0xff]
        %v1124 = vld [vmem:[#allocation2 + $0x12b0] sm:$0xff]
        %v1125 = vld [vmem:[#allocation2 + $0x12b8] sm:$0xff]
        %v1126 = vld [vmem:[#allocation2 + $0x12c0] sm:$0xff]
        %v1127 = vld [vmem:[#allocation2 + $0x12c8] sm:$0xff]
        %v1128 = vld [vmem:[#allocation2 + $0x12d0] sm:$0xff]
        %v1129 = vld [vmem:[#allocation2 + $0x12d8] sm:$0xff]
        %v1130 = vld [vmem:[#allocation2 + $0x12e0] sm:$0xff]
        %v1131 = vld [vmem:[#allocation2 + $0x12e8] sm:$0xff]
        %v1132 = vld [vmem:[#allocation2 + $0x12f0] sm:$0xff]
        %v1133 = vld [vmem:[#allocation2 + $0x12f8] sm:$0xff]
        %v1134 = vld [vmem:[#allocation2 + $0x1300] sm:$0xff]
        %v1135 = vld [vmem:[#allocation2 + $0x1308] sm:$0xff]
        %v1136 = vld [vmem:[#allocation2 + $0x1310] sm:$0xff]
        %v1137 = vld [vmem:[#allocation2 + $0x1318] sm:$0xff]
        %v1138 = vld [vmem:[#allocation2 + $0x1320] sm:$0xff]
        %v1139 = vld [vmem:[#allocation2 + $0x1328] sm:$0xff]
        %v1140 = vld [vmem:[#allocation2 + $0x1330] sm:$0xff]
        %v1141 = vld [vmem:[#allocation2 + $0x1338] sm:$0xff]
        %v1142 = vld [vmem:[#allocation2 + $0x1340] sm:$0xff]
        %v1143 = vld [vmem:[#allocation2 + $0x1348] sm:$0xff]
        %v1144 = vld [vmem:[#allocation2 + $0x1350] sm:$0xff]
        %v1145 = vld [vmem:[#allocation2 + $0x1358] sm:$0xff]
        %v1146 = vld [vmem:[#allocation2 + $0x1360] sm:$0xff]
        %v1147 = vld [vmem:[#allocation2 + $0x1368] sm:$0xff]
        %v1148 = vld [vmem:[#allocation2 + $0x1370] sm:$0xff]
        %v1149 = vld [vmem:[#allocation2 + $0x1378] sm:$0xff]
        %v1150 = vld [vmem:[#allocation2 + $0x1380] sm:$0xff]
        %v1151 = vld [vmem:[#allocation2 + $0x1388] sm:$0xff]
        %v1152 = vld [vmem:[#allocation2 + $0x1390] sm:$0xff]
        %v1153 = vld [vmem:[#allocation2 + $0x1398] sm:$0xff]
        %v1154 = vld [vmem:[#allocation2 + $0x13a0] sm:$0xff]
        %v1155 = vld [vmem:[#allocation2 + $0x13a8] sm:$0xff]
        %v1156 = vld [vmem:[#allocation2 + $0x13b0] sm:$0xff]
        %v1157 = vld [vmem:[#allocation2 + $0x13b8] sm:$0xff]
        %v1158 = vld [vmem:[#allocation2 + $0x13c0] sm:$0xff]
        %v1159 = vld [vmem:[#allocation2 + $0x13c8] sm:$0xff]
        %v1160 = vld [vmem:[#allocation2 + $0x13d0] sm:$0xff]
        %v1161 = vld [vmem:[#allocation2 + $0x13d8] sm:$0xff]
        %v1162 = vld [vmem:[#allocation2 + $0x13e0] sm:$0xff]
        %v1163 = vld [vmem:[#allocation2 + $0x13e8] sm:$0xff]
        %v1164 = vld [vmem:[#allocation2 + $0x13f0] sm:$0xff]
        %v1165 = vld [vmem:[#allocation2 + $0x13f8] sm:$0xff]
        %v1166 = vld [vmem:[#allocation2 + $0x1400] sm:$0xff]
        %v1167 = vld [vmem:[#allocation2 + $0x1408] sm:$0xff]
        %v1168 = vld [vmem:[#allocation2 + $0x1410] sm:$0xff]
        %v1169 = vld [vmem:[#allocation2 + $0x1418] sm:$0xff]
        %v1170 = vld [vmem:[#allocation2 + $0x1420] sm:$0xff]
        %v1171 = vld [vmem:[#allocation2 + $0x1428] sm:$0xff]
        %v1172 = vld [vmem:[#allocation2 + $0x1430] sm:$0xff]
        %v1173 = vld [vmem:[#allocation2 + $0x1438] sm:$0xff]
        %v1174 = vld [vmem:[#allocation2 + $0x1440] sm:$0xff]
        %v1175 = vld [vmem:[#allocation2 + $0x1448] sm:$0xff]
        %v1176 = vld [vmem:[#allocation2 + $0x1450] sm:$0xff]
        %v1177 = vld [vmem:[#allocation2 + $0x1458] sm:$0xff]
        %v1178 = vld [vmem:[#allocation2 + $0x1460] sm:$0xff]
        %v1179 = vld [vmem:[#allocation2 + $0x1468] sm:$0xff]
        %v1180 = vld [vmem:[#allocation2 + $0x1470] sm:$0xff]
        %v1181 = vld [vmem:[#allocation2 + $0x1478] sm:$0xff]
        %v1182 = vld [vmem:[#allocation2 + $0x1480] sm:$0xff]
        %v1183 = vld [vmem:[#allocation2 + $0x1488] sm:$0xff]
        %v1184 = vld [vmem:[#allocation2 + $0x1490] sm:$0xff]
        %v1185 = vld [vmem:[#allocation2 + $0x1498] sm:$0xff]
        %v1186 = vld [vmem:[#allocation2 + $0x14a0] sm:$0xff]
        %v1187 = vld [vmem:[#allocation2 + $0x14a8] sm:$0xff]
        %v1188 = vld [vmem:[#allocation2 + $0x14b0] sm:$0xff]
        %v1189 = vld [vmem:[#allocation2 + $0x14b8] sm:$0xff]
        %v1190 = vld [vmem:[#allocation2 + $0x14c0] sm:$0xff]
        %v1191 = vld [vmem:[#allocation2 + $0x14c8] sm:$0xff]
        %v1192 = vld [vmem:[#allocation2 + $0x14d0] sm:$0xff]
        %v1193 = vld [vmem:[#allocation2 + $0x14d8] sm:$0xff]
        %v1194 = vld [vmem:[#allocation2 + $0x14e0] sm:$0xff]
        %v1195 = vld [vmem:[#allocation2 + $0x14e8] sm:$0xff]
        %v1196 = vld [vmem:[#allocation2 + $0x14f0] sm:$0xff]
        %v1197 = vld [vmem:[#allocation2 + $0x14f8] sm:$0xff]
        %v1198 = vld [vmem:[#allocation2 + $0x1500] sm:$0xff]
        %v1199 = vld [vmem:[#allocation2 + $0x1508] sm:$0xff]
        %v1200 = vld [vmem:[#allocation2 + $0x1510] sm:$0xff]
        %v1201 = vld [vmem:[#allocation2 + $0x1518] sm:$0xff]
        %v1202 = vld [vmem:[#allocation2 + $0x1520] sm:$0xff]
        %v1203 = vld [vmem:[#allocation2 + $0x1528] sm:$0xff]
        %v1204 = vld [vmem:[#allocation2 + $0x1530] sm:$0xff]
        %v1205 = vld [vmem:[#allocation2 + $0x1538] sm:$0xff]
        %v1206 = vld [vmem:[#allocation2 + $0x1540] sm:$0xff]
        %v1207 = vld [vmem:[#allocation2 + $0x1548] sm:$0xff]
        %v1208 = vld [vmem:[#allocation2 + $0x1550] sm:$0xff]
        %v1209 = vld [vmem:[#allocation2 + $0x1558] sm:$0xff]
        %v1210 = vld [vmem:[#allocation2 + $0x1560] sm:$0xff]
        %v1211 = vld [vmem:[#allocation2 + $0x1568] sm:$0xff]
        %v1212 = vld [vmem:[#allocation2 + $0x1570] sm:$0xff]
        %v1213 = vld [vmem:[#allocation2 + $0x1578] sm:$0xff]
        %v1214 = vld [vmem:[#allocation2 + $0x1580] sm:$0xff]
        %v1215 = vld [vmem:[#allocation2 + $0x1588] sm:$0xff]
        %v1216 = vld [vmem:[#allocation2 + $0x1590] sm:$0xff]
        %v1217 = vld [vmem:[#allocation2 + $0x1598] sm:$0xff]
        %v1218 = vld [vmem:[#allocation2 + $0x15a0] sm:$0xff]
        %v1219 = vld [vmem:[#allocation2 + $0x15a8] sm:$0xff]
        %v1220 = vld [vmem:[#allocation2 + $0x15b0] sm:$0xff]
        %v1221 = vld [vmem:[#allocation2 + $0x15b8] sm:$0xff]
        %v1222 = vld [vmem:[#allocation2 + $0x15c0] sm:$0xff]
        %v1223 = vld [vmem:[#allocation2 + $0x15c8] sm:$0xff]
        %v1224 = vld [vmem:[#allocation2 + $0x15d0] sm:$0xff]
        %v1225 = vld [vmem:[#allocation2 + $0x15d8] sm:$0xff]
        %v1226 = vld [vmem:[#allocation2 + $0x15e0] sm:$0xff]
        %v1227 = vld [vmem:[#allocation2 + $0x15e8] sm:$0xff]
        %v1228 = vld [vmem:[#allocation2 + $0x15f0] sm:$0xff]
        %v1229 = vld [vmem:[#allocation2 + $0x15f8] sm:$0xff]
        %v1230 = vld [vmem:[#allocation2 + $0x1600] sm:$0xff]
        %v1231 = vld [vmem:[#allocation2 + $0x1608] sm:$0xff]
        %v1232 = vld [vmem:[#allocation2 + $0x1610] sm:$0xff]
        %v1233 = vld [vmem:[#allocation2 + $0x1618] sm:$0xff]
        %v1234 = vld [vmem:[#allocation2 + $0x1620] sm:$0xff]
        %v1235 = vld [vmem:[#allocation2 + $0x1628] sm:$0xff]
        %v1236 = vld [vmem:[#allocation2 + $0x1630] sm:$0xff]
        %v1237 = vld [vmem:[#allocation2 + $0x1638] sm:$0xff]
        %v1238 = vld [vmem:[#allocation2 + $0x1640] sm:$0xff]
        %v1239 = vld [vmem:[#allocation2 + $0x1648] sm:$0xff]
        %v1240 = vld [vmem:[#allocation2 + $0x1650] sm:$0xff]
        %v1241 = vld [vmem:[#allocation2 + $0x1658] sm:$0xff]
        %v1242 = vld [vmem:[#allocation2 + $0x1660] sm:$0xff]
        %v1243 = vld [vmem:[#allocation2 + $0x1668] sm:$0xff]
        %v1244 = vld [vmem:[#allocation2 + $0x1670] sm:$0xff]
        %v1245 = vld [vmem:[#allocation2 + $0x1678] sm:$0xff]
        %v1246 = vld [vmem:[#allocation2 + $0x1680] sm:$0xff]
        %v1247 = vld [vmem:[#allocation2 + $0x1688] sm:$0xff]
        %v1248 = vld [vmem:[#allocation2 + $0x1690] sm:$0xff]
        %v1249 = vld [vmem:[#allocation2 + $0x1698] sm:$0xff]
        %v1250 = vld [vmem:[#allocation2 + $0x16a0] sm:$0xff]
        %v1251 = vld [vmem:[#allocation2 + $0x16a8] sm:$0xff]
        %v1252 = vld [vmem:[#allocation2 + $0x16b0] sm:$0xff]
        %v1253 = vld [vmem:[#allocation2 + $0x16b8] sm:$0xff]
        %v1254 = vld [vmem:[#allocation2 + $0x16c0] sm:$0xff]
        %v1255 = vld [vmem:[#allocation2 + $0x16c8] sm:$0xff]
        %v1256 = vld [vmem:[#allocation2 + $0x16d0] sm:$0xff]
        %v1257 = vld [vmem:[#allocation2 + $0x16d8] sm:$0xff]
        %v1258 = vld [vmem:[#allocation2 + $0x16e0] sm:$0xff]
        %v1259 = vld [vmem:[#allocation2 + $0x16e8] sm:$0xff]
        %v1260 = vld [vmem:[#allocation2 + $0x16f0] sm:$0xff]
        %v1261 = vld [vmem:[#allocation2 + $0x16f8] sm:$0xff]
        %v1262 = vld [vmem:[#allocation2 + $0x1700] sm:$0xff]
        %v1263 = vld [vmem:[#allocation2 + $0x1708] sm:$0xff]
        %v1264 = vld [vmem:[#allocation2 + $0x1710] sm:$0xff]
        %v1265 = vld [vmem:[#allocation2 + $0x1718] sm:$0xff]
        %v1266 = vld [vmem:[#allocation2 + $0x1720] sm:$0xff]
        %v1267 = vld [vmem:[#allocation2 + $0x1728] sm:$0xff]
        %v1268 = vld [vmem:[#allocation2 + $0x1730] sm:$0xff]
        %v1269 = vld [vmem:[#allocation2 + $0x1738] sm:$0xff]
        %v1270 = vld [vmem:[#allocation2 + $0x1740] sm:$0xff]
        %v1271 = vld [vmem:[#allocation2 + $0x1748] sm:$0xff]
        %v1272 = vld [vmem:[#allocation2 + $0x1750] sm:$0xff]
        %v1273 = vld [vmem:[#allocation2 + $0x1758] sm:$0xff]
        %v1274 = vld [vmem:[#allocation2 + $0x1760] sm:$0xff]
        %v1275 = vld [vmem:[#allocation2 + $0x1768] sm:$0xff]
        %v1276 = vld [vmem:[#allocation2 + $0x1770] sm:$0xff]
        %v1277 = vld [vmem:[#allocation2 + $0x1778] sm:$0xff]
        %v1278 = vld [vmem:[#allocation2 + $0x1780] sm:$0xff]
        %v1279 = vld [vmem:[#allocation2 + $0x1788] sm:$0xff]
        %v1280 = vld [vmem:[#allocation2 + $0x1790] sm:$0xff]
        %v1281 = vld [vmem:[#allocation2 + $0x1798] sm:$0xff]
        %v1282 = vld [vmem:[#allocation2 + $0x17a0] sm:$0xff]
        %v1283 = vld [vmem:[#allocation2 + $0x17a8] sm:$0xff]
        %v1284 = vld [vmem:[#allocation2 + $0x17b0] sm:$0xff]
        %v1285 = vld [vmem:[#allocation2 + $0x17b8] sm:$0xff]
        %v1286 = vld [vmem:[#allocation2 + $0x17c0] sm:$0xff]
        %v1287 = vld [vmem:[#allocation2 + $0x17c8] sm:$0xff]
        %v1288 = vld [vmem:[#allocation2 + $0x17d0] sm:$0xff]
        %v1289 = vld [vmem:[#allocation2 + $0x17d8] sm:$0xff]
        %v1290 = vld [vmem:[#allocation2 + $0x17e0] sm:$0xff]
        %v1291 = vld [vmem:[#allocation2 + $0x17e8] sm:$0xff]
        %v1292 = vld [vmem:[#allocation2 + $0x17f0] sm:$0xff]
        %v1293 = vld [vmem:[#allocation2 + $0x17f8] sm:$0xff]
        %v1294 = vld [vmem:[#allocation2 + $0x1800] sm:$0xff]
        %v1295 = vld [vmem:[#allocation2 + $0x1808] sm:$0xff]
        %v1296 = vld [vmem:[#allocation2 + $0x1810] sm:$0xff]
        %v1297 = vld [vmem:[#allocation2 + $0x1818] sm:$0xff]
        %v1298 = vld [vmem:[#allocation2 + $0x1820] sm:$0xff]
        %v1299 = vld [vmem:[#allocation2 + $0x1828] sm:$0xff]
        %v1300 = vld [vmem:[#allocation2 + $0x1830] sm:$0xff]
        %v1301 = vld [vmem:[#allocation2 + $0x1838] sm:$0xff]
        %v1302 = vld [vmem:[#allocation2 + $0x1840] sm:$0xff]
        %v1303 = vld [vmem:[#allocation2 + $0x1848] sm:$0xff]
        %v1304 = vld [vmem:[#allocation2 + $0x1850] sm:$0xff]
        %v1305 = vld [vmem:[#allocation2 + $0x1858] sm:$0xff]
        %v1306 = vld [vmem:[#allocation2 + $0x1860] sm:$0xff]
        %v1307 = vld [vmem:[#allocation2 + $0x1868] sm:$0xff]
        %v1308 = vld [vmem:[#allocation2 + $0x1870] sm:$0xff]
        %v1309 = vld [vmem:[#allocation2 + $0x1878] sm:$0xff]
        %v1310 = vld [vmem:[#allocation2 + $0x1880] sm:$0xff]
        %v1311 = vld [vmem:[#allocation2 + $0x1888] sm:$0xff]
        %v1312 = vld [vmem:[#allocation2 + $0x1890] sm:$0xff]
        %v1313 = vld [vmem:[#allocation2 + $0x1898] sm:$0xff]
        %v1314 = vld [vmem:[#allocation2 + $0x18a0] sm:$0xff]
        %v1315 = vld [vmem:[#allocation2 + $0x18a8] sm:$0xff]
        %v1316 = vld [vmem:[#allocation2 + $0x18b0] sm:$0xff]
        %v1317 = vld [vmem:[#allocation2 + $0x18b8] sm:$0xff]
        %v1318 = vld [vmem:[#allocation2 + $0x18c0] sm:$0xff]
        %v1319 = vld [vmem:[#allocation2 + $0x18c8] sm:$0xff]
        %v1320 = vld [vmem:[#allocation2 + $0x18d0] sm:$0xff]
        %v1321 = vld [vmem:[#allocation2 + $0x18d8] sm:$0xff]
        %v1322 = vld [vmem:[#allocation2 + $0x18e0] sm:$0xff]
        %v1323 = vld [vmem:[#allocation2 + $0x18e8] sm:$0xff]
        %v1324 = vld [vmem:[#allocation2 + $0x18f0] sm:$0xff]
        %v1325 = vld [vmem:[#allocation2 + $0x18f8] sm:$0xff]
        %v1326 = vld [vmem:[#allocation2 + $0x1900] sm:$0xff]
        %v1327 = vld [vmem:[#allocation2 + $0x1908] sm:$0xff]
        %v1328 = vld [vmem:[#allocation2 + $0x1910] sm:$0xff]
        %v1329 = vld [vmem:[#allocation2 + $0x1918] sm:$0xff]
        %v1330 = vld [vmem:[#allocation2 + $0x1920] sm:$0xff]
        %v1331 = vld [vmem:[#allocation2 + $0x1928] sm:$0xff]
        %v1332 = vld [vmem:[#allocation2 + $0x1930] sm:$0xff]
        %v1333 = vld [vmem:[#allocation2 + $0x1938] sm:$0xff]
        %v1334 = vld [vmem:[#allocation2 + $0x1940] sm:$0xff]
        %v1335 = vld [vmem:[#allocation2 + $0x1948] sm:$0xff]
        %v1336 = vld [vmem:[#allocation2 + $0x1950] sm:$0xff]
        %v1337 = vld [vmem:[#allocation2 + $0x1958] sm:$0xff]
        %v1338 = vld [vmem:[#allocation2 + $0x1960] sm:$0xff]
        %v1339 = vld [vmem:[#allocation2 + $0x1968] sm:$0xff]
        %v1340 = vld [vmem:[#allocation2 + $0x1970] sm:$0xff]
        %v1341 = vld [vmem:[#allocation2 + $0x1978] sm:$0xff]
        %v1342 = vld [vmem:[#allocation2 + $0x1980] sm:$0xff]
        %v1343 = vld [vmem:[#allocation2 + $0x1988] sm:$0xff]
        %v1344 = vld [vmem:[#allocation2 + $0x1990] sm:$0xff]
        %v1345 = vld [vmem:[#allocation2 + $0x1998] sm:$0xff]
        %v1346 = vld [vmem:[#allocation2 + $0x19a0] sm:$0xff]
        %v1347 = vld [vmem:[#allocation2 + $0x19a8] sm:$0xff]
        %v1348 = vld [vmem:[#allocation2 + $0x19b0] sm:$0xff]
        %v1349 = vld [vmem:[#allocation2 + $0x19b8] sm:$0xff]
        %v1350 = vld [vmem:[#allocation2 + $0x19c0] sm:$0xff]
        %v1351 = vld [vmem:[#allocation2 + $0x19c8] sm:$0xff]
        %v1352 = vld [vmem:[#allocation2 + $0x19d0] sm:$0xff]
        %v1353 = vld [vmem:[#allocation2 + $0x19d8] sm:$0xff]
        %v1354 = vld [vmem:[#allocation2 + $0x19e0] sm:$0xff]
        %v1355 = vld [vmem:[#allocation2 + $0x19e8] sm:$0xff]
        %v1356 = vld [vmem:[#allocation2 + $0x19f0] sm:$0xff]
        %v1357 = vld [vmem:[#allocation2 + $0x19f8] sm:$0xff]
        %v1358 = vld [vmem:[#allocation2 + $0x1a00] sm:$0xff]
        %v1359 = vld [vmem:[#allocation2 + $0x1a08] sm:$0xff]
        %v1360 = vld [vmem:[#allocation2 + $0x1a10] sm:$0xff]
        %v1361 = vld [vmem:[#allocation2 + $0x1a18] sm:$0xff]
        %v1362 = vld [vmem:[#allocation2 + $0x1a20] sm:$0xff]
        %v1363 = vld [vmem:[#allocation2 + $0x1a28] sm:$0xff]
        %v1364 = vld [vmem:[#allocation2 + $0x1a30] sm:$0xff]
        %v1365 = vld [vmem:[#allocation2 + $0x1a38] sm:$0xff]
        %v1366 = vld [vmem:[#allocation2 + $0x1a40] sm:$0xff]
        %v1367 = vld [vmem:[#allocation2 + $0x1a48] sm:$0xff]
        %v1368 = vld [vmem:[#allocation2 + $0x1a50] sm:$0xff]
        %v1369 = vld [vmem:[#allocation2 + $0x1a58] sm:$0xff]
        %v1370 = vld [vmem:[#allocation2 + $0x1a60] sm:$0xff]
        %v1371 = vld [vmem:[#allocation2 + $0x1a68] sm:$0xff]
        %v1372 = vld [vmem:[#allocation2 + $0x1a70] sm:$0xff]
        %v1373 = vld [vmem:[#allocation2 + $0x1a78] sm:$0xff]
        %v1374 = vld [vmem:[#allocation2 + $0x1a80] sm:$0xff]
        %v1375 = vld [vmem:[#allocation2 + $0x1a88] sm:$0xff]
        %v1376 = vld [vmem:[#allocation2 + $0x1a90] sm:$0xff]
        %v1377 = vld [vmem:[#allocation2 + $0x1a98] sm:$0xff]
        %v1378 = vld [vmem:[#allocation2 + $0x1aa0] sm:$0xff]
        %v1379 = vld [vmem:[#allocation2 + $0x1aa8] sm:$0xff]
        %v1380 = vld [vmem:[#allocation2 + $0x1ab0] sm:$0xff]
        %v1381 = vld [vmem:[#allocation2 + $0x1ab8] sm:$0xff]
        %v1382 = vld [vmem:[#allocation2 + $0x1ac0] sm:$0xff]
        %v1383 = vld [vmem:[#allocation2 + $0x1ac8] sm:$0xff]
        %v1384 = vld [vmem:[#allocation2 + $0x1ad0] sm:$0xff]
        %v1385 = vld [vmem:[#allocation2 + $0x1ad8] sm:$0xff]
        %v1386 = vld [vmem:[#allocation2 + $0x1ae0] sm:$0xff]
        %v1387 = vld [vmem:[#allocation2 + $0x1ae8] sm:$0xff]
        %v1388 = vld [vmem:[#allocation2 + $0x1af0] sm:$0xff]
        %v1389 = vld [vmem:[#allocation2 + $0x1af8] sm:$0xff]
        %v1390 = vld [vmem:[#allocation2 + $0x1b00] sm:$0xff]
        %v1391 = vld [vmem:[#allocation2 + $0x1b08] sm:$0xff]
        %v1392 = vld [vmem:[#allocation2 + $0x1b10] sm:$0xff]
        %v1393 = vld [vmem:[#allocation2 + $0x1b18] sm:$0xff]
        %v1394 = vld [vmem:[#allocation2 + $0x1b20] sm:$0xff]
        %v1395 = vld [vmem:[#allocation2 + $0x1b28] sm:$0xff]
        %v1396 = vld [vmem:[#allocation2 + $0x1b30] sm:$0xff]
        %v1397 = vld [vmem:[#allocation2 + $0x1b38] sm:$0xff]
        %v1398 = vld [vmem:[#allocation2 + $0x1b40] sm:$0xff]
        %v1399 = vld [vmem:[#allocation2 + $0x1b48] sm:$0xff]
        %v1400 = vld [vmem:[#allocation2 + $0x1b50] sm:$0xff]
        %v1401 = vld [vmem:[#allocation2 + $0x1b58] sm:$0xff]
        %v1402 = vld [vmem:[#allocation2 + $0x1b60] sm:$0xff]
        %v1403 = vld [vmem:[#allocation2 + $0x1b68] sm:$0xff]
        %v1404 = vld [vmem:[#allocation2 + $0x1b70] sm:$0xff]
        %v1405 = vld [vmem:[#allocation2 + $0x1b78] sm:$0xff]
        %v1406 = vld [vmem:[#allocation2 + $0x1b80] sm:$0xff]
        %v1407 = vld [vmem:[#allocation2 + $0x1b88] sm:$0xff]
        %v1408 = vld [vmem:[#allocation2 + $0x1b90] sm:$0xff]
        %v1409 = vld [vmem:[#allocation2 + $0x1b98] sm:$0xff]
        %v1410 = vld [vmem:[#allocation2 + $0x1ba0] sm:$0xff]
        %v1411 = vld [vmem:[#allocation2 + $0x1ba8] sm:$0xff]
        %v1412 = vld [vmem:[#allocation2 + $0x1bb0] sm:$0xff]
        %v1413 = vld [vmem:[#allocation2 + $0x1bb8] sm:$0xff]
        %v1414 = vld [vmem:[#allocation2 + $0x1bc0] sm:$0xff]
        %v1415 = vld [vmem:[#allocation2 + $0x1bc8] sm:$0xff]
        %v1416 = vld [vmem:[#allocation2 + $0x1bd0] sm:$0xff]
        %v1417 = vld [vmem:[#allocation2 + $0x1bd8] sm:$0xff]
        %v1418 = vld [vmem:[#allocation2 + $0x1be0] sm:$0xff]
        %v1419 = vld [vmem:[#allocation2 + $0x1be8] sm:$0xff]
        %v1420 = vld [vmem:[#allocation2 + $0x1bf0] sm:$0xff]
        %v1421 = vld [vmem:[#allocation2 + $0x1bf8] sm:$0xff]
        %v1422 = vld [vmem:[#allocation2 + $0x1c00] sm:$0xff]
        %v1423 = vld [vmem:[#allocation2 + $0x1c08] sm:$0xff]
        %v1424 = vld [vmem:[#allocation2 + $0x1c10] sm:$0xff]
        %v1425 = vld [vmem:[#allocation2 + $0x1c18] sm:$0xff]
        %v1426 = vld [vmem:[#allocation2 + $0x1c20] sm:$0xff]
        %v1427 = vld [vmem:[#allocation2 + $0x1c28] sm:$0xff]
        %v1428 = vld [vmem:[#allocation2 + $0x1c30] sm:$0xff]
        %v1429 = vld [vmem:[#allocation2 + $0x1c38] sm:$0xff]
        %v1430 = vld [vmem:[#allocation2 + $0x1c40] sm:$0xff]
        %v1431 = vld [vmem:[#allocation2 + $0x1c48] sm:$0xff]
        %v1432 = vld [vmem:[#allocation2 + $0x1c50] sm:$0xff]
        %v1433 = vld [vmem:[#allocation2 + $0x1c58] sm:$0xff]
        %v1434 = vld [vmem:[#allocation2 + $0x1c60] sm:$0xff]
        %v1435 = vld [vmem:[#allocation2 + $0x1c68] sm:$0xff]
        %v1436 = vld [vmem:[#allocation2 + $0x1c70] sm:$0xff]
        %v1437 = vld [vmem:[#allocation2 + $0x1c78] sm:$0xff]
        %v1438 = vld [vmem:[#allocation2 + $0x1c80] sm:$0xff]
        %v1439 = vld [vmem:[#allocation2 + $0x1c88] sm:$0xff]
        %v1440 = vld [vmem:[#allocation2 + $0x1c90] sm:$0xff]
        %v1441 = vld [vmem:[#allocation2 + $0x1c98] sm:$0xff]
        %v1442 = vld [vmem:[#allocation2 + $0x1ca0] sm:$0xff]
        %v1443 = vld [vmem:[#allocation2 + $0x1ca8] sm:$0xff]
        %v1444 = vld [vmem:[#allocation2 + $0x1cb0] sm:$0xff]
        %v1445 = vld [vmem:[#allocation2 + $0x1cb8] sm:$0xff]
        %v1446 = vld [vmem:[#allocation2 + $0x1cc0] sm:$0xff]
        %v1447 = vld [vmem:[#allocation2 + $0x1cc8] sm:$0xff]
        %v1448 = vld [vmem:[#allocation2 + $0x1cd0] sm:$0xff]
        %v1449 = vld [vmem:[#allocation2 + $0x1cd8] sm:$0xff]
        %v1450 = vld [vmem:[#allocation2 + $0x1ce0] sm:$0xff]
        %v1451 = vld [vmem:[#allocation2 + $0x1ce8] sm:$0xff]
        %v1452 = vld [vmem:[#allocation2 + $0x1cf0] sm:$0xff]
        %v1453 = vld [vmem:[#allocation2 + $0x1cf8] sm:$0xff]
        %v1454 = vld [vmem:[#allocation2 + $0x1d00] sm:$0xff]
        %v1455 = vld [vmem:[#allocation2 + $0x1d08] sm:$0xff]
        %v1456 = vld [vmem:[#allocation2 + $0x1d10] sm:$0xff]
        %v1457 = vld [vmem:[#allocation2 + $0x1d18] sm:$0xff]
        %v1458 = vld [vmem:[#allocation2 + $0x1d20] sm:$0xff]
        %v1459 = vld [vmem:[#allocation2 + $0x1d28] sm:$0xff]
        %v1460 = vld [vmem:[#allocation2 + $0x1d30] sm:$0xff]
        %v1461 = vld [vmem:[#allocation2 + $0x1d38] sm:$0xff]
        %v1462 = vld [vmem:[#allocation2 + $0x1d40] sm:$0xff]
        %v1463 = vld [vmem:[#allocation2 + $0x1d48] sm:$0xff]
        %v1464 = vld [vmem:[#allocation2 + $0x1d50] sm:$0xff]
        %v1465 = vld [vmem:[#allocation2 + $0x1d58] sm:$0xff]
        %v1466 = vld [vmem:[#allocation2 + $0x1d60] sm:$0xff]
        %v1467 = vld [vmem:[#allocation2 + $0x1d68] sm:$0xff]
        %v1468 = vld [vmem:[#allocation2 + $0x1d70] sm:$0xff]
        %v1469 = vld [vmem:[#allocation2 + $0x1d78] sm:$0xff]
        %v1470 = vld [vmem:[#allocation2 + $0x1d80] sm:$0xff]
        %v1471 = vld [vmem:[#allocation2 + $0x1d88] sm:$0xff]
        %v1472 = vld [vmem:[#allocation2 + $0x1d90] sm:$0xff]
        %v1473 = vld [vmem:[#allocation2 + $0x1d98] sm:$0xff]
        %v1474 = vld [vmem:[#allocation2 + $0x1da0] sm:$0xff]
        %v1475 = vld [vmem:[#allocation2 + $0x1da8] sm:$0xff]
        %v1476 = vld [vmem:[#allocation2 + $0x1db0] sm:$0xff]
        %v1477 = vld [vmem:[#allocation2 + $0x1db8] sm:$0xff]
        %v1478 = vld [vmem:[#allocation2 + $0x1dc0] sm:$0xff]
        %v1479 = vld [vmem:[#allocation2 + $0x1dc8] sm:$0xff]
        %v1480 = vld [vmem:[#allocation2 + $0x1dd0] sm:$0xff]
        %v1481 = vld [vmem:[#allocation2 + $0x1dd8] sm:$0xff]
        %v1482 = vld [vmem:[#allocation2 + $0x1de0] sm:$0xff]
        %v1483 = vld [vmem:[#allocation2 + $0x1de8] sm:$0xff]
        %v1484 = vld [vmem:[#allocation2 + $0x1df0] sm:$0xff]
        %v1485 = vld [vmem:[#allocation2 + $0x1df8] sm:$0xff]
        %v1486 = vld [vmem:[#allocation2 + $0x1e00] sm:$0xff]
        %v1487 = vld [vmem:[#allocation2 + $0x1e08] sm:$0xff]
        %v1488 = vld [vmem:[#allocation2 + $0x1e10] sm:$0xff]
        %v1489 = vld [vmem:[#allocation2 + $0x1e18] sm:$0xff]
        %v1490 = vld [vmem:[#allocation2 + $0x1e20] sm:$0xff]
        %v1491 = vld [vmem:[#allocation2 + $0x1e28] sm:$0xff]
        %v1492 = vld [vmem:[#allocation2 + $0x1e30] sm:$0xff]
        %v1493 = vld [vmem:[#allocation2 + $0x1e38] sm:$0xff]
        %v1494 = vld [vmem:[#allocation2 + $0x1e40] sm:$0xff]
        %v1495 = vld [vmem:[#allocation2 + $0x1e48] sm:$0xff]
        %v1496 = vld [vmem:[#allocation2 + $0x1e50] sm:$0xff]
        %v1497 = vld [vmem:[#allocation2 + $0x1e58] sm:$0xff]
        %v1498 = vld [vmem:[#allocation2 + $0x1e60] sm:$0xff]
        %v1499 = vld [vmem:[#allocation2 + $0x1e68] sm:$0xff]
        %v1500 = vld [vmem:[#allocation2 + $0x1e70] sm:$0xff]
        %v1501 = vld [vmem:[#allocation2 + $0x1e78] sm:$0xff]
        %v1502 = vld [vmem:[#allocation2 + $0x1e80] sm:$0xff]
        %v1503 = vld [vmem:[#allocation2 + $0x1e88] sm:$0xff]
        %v1504 = vld [vmem:[#allocation2 + $0x1e90] sm:$0xff]
        %v1505 = vld [vmem:[#allocation2 + $0x1e98] sm:$0xff]
        %v1506 = vld [vmem:[#allocation2 + $0x1ea0] sm:$0xff]
        %v1507 = vld [vmem:[#allocation2 + $0x1ea8] sm:$0xff]
        %v1508 = vld [vmem:[#allocation2 + $0x1eb0] sm:$0xff]
        %v1509 = vld [vmem:[#allocation2 + $0x1eb8] sm:$0xff]
        %v1510 = vld [vmem:[#allocation2 + $0x1ec0] sm:$0xff]
        %v1511 = vld [vmem:[#allocation2 + $0x1ec8] sm:$0xff]
        %v1512 = vld [vmem:[#allocation2 + $0x1ed0] sm:$0xff]
        %v1513 = vld [vmem:[#allocation2 + $0x1ed8] sm:$0xff]
        %v1514 = vld [vmem:[#allocation2 + $0x1ee0] sm:$0xff]
        %v1515 = vld [vmem:[#allocation2 + $0x1ee8] sm:$0xff]
        %v1516 = vld [vmem:[#allocation2 + $0x1ef0] sm:$0xff]
        %v1517 = vld [vmem:[#allocation2 + $0x1ef8] sm:$0xff]
        %v1518 = vld [vmem:[#allocation2 + $0x1f00] sm:$0xff]
        %v1519 = vld [vmem:[#allocation2 + $0x1f08] sm:$0xff]
        %v1520 = vld [vmem:[#allocation2 + $0x1f10] sm:$0xff]
        %v1521 = vld [vmem:[#allocation2 + $0x1f18] sm:$0xff]
        %v1522 = vld [vmem:[#allocation2 + $0x1f20] sm:$0xff]
        %v1523 = vld [vmem:[#allocation2 + $0x1f28] sm:$0xff]
        %v1524 = vld [vmem:[#allocation2 + $0x1f30] sm:$0xff]
        %v1525 = vld [vmem:[#allocation2 + $0x1f38] sm:$0xff]
        %v1526 = vld [vmem:[#allocation2 + $0x1f40] sm:$0xff]
        %v1527 = vld [vmem:[#allocation2 + $0x1f48] sm:$0xff]
        %v1528 = vld [vmem:[#allocation2 + $0x1f50] sm:$0xff]
        %v1529 = vld [vmem:[#allocation2 + $0x1f58] sm:$0xff]
        %v1530 = vld [vmem:[#allocation2 + $0x1f60] sm:$0xff]
        %v1531 = vld [vmem:[#allocation2 + $0x1f68] sm:$0xff]
        %v1532 = vld [vmem:[#allocation2 + $0x1f70] sm:$0xff]
        %v1533 = vld [vmem:[#allocation2 + $0x1f78] sm:$0xff]
        %v1534 = vld [vmem:[#allocation2 + $0x1f80] sm:$0xff]
        %v1535 = vld [vmem:[#allocation2 + $0x1f88] sm:$0xff]
        %v1536 = vld [vmem:[#allocation2 + $0x1f90] sm:$0xff]
        %v1537 = vld [vmem:[#allocation2 + $0x1f98] sm:$0xff]
        %v1538 = vld [vmem:[#allocation2 + $0x1fa0] sm:$0xff]
        %v1539 = vld [vmem:[#allocation2 + $0x1fa8] sm:$0xff]
        %v1540 = vld [vmem:[#allocation2 + $0x1fb0] sm:$0xff]
        %v1541 = vld [vmem:[#allocation2 + $0x1fb8] sm:$0xff]
        %v1542 = vld [vmem:[#allocation2 + $0x1fc0] sm:$0xff]
        %v1543 = vld [vmem:[#allocation2 + $0x1fc8] sm:$0xff]
        %v1544 = vld [vmem:[#allocation2 + $0x1fd0] sm:$0xff]
        %v1545 = vld [vmem:[#allocation2 + $0x1fd8] sm:$0xff]
        %v1546 = vld [vmem:[#allocation2 + $0x1fe0] sm:$0xff]
        %v1547 = vld [vmem:[#allocation2 + $0x1fe8] sm:$0xff]
        %v1548 = vld [vmem:[#allocation2 + $0x1ff0] sm:$0xff]
        %v1549 = vld [vmem:[#allocation2 + $0x1ff8] sm:$0xff]
        %v1550 = vld [vmem:[#allocation2 + $0x2000] sm:$0xff]
        %v1551 = vld [vmem:[#allocation2 + $0x2008] sm:$0xff]
        %v1552 = vld [vmem:[#allocation2 + $0x2010] sm:$0xff]
        %v1553 = vld [vmem:[#allocation2 + $0x2018] sm:$0xff]
        %v1554 = vld [vmem:[#allocation2 + $0x2020] sm:$0xff]
        %v1555 = vld [vmem:[#allocation2 + $0x2028] sm:$0xff]
        %v1556 = vld [vmem:[#allocation2 + $0x2030] sm:$0xff]
        %v1557 = vld [vmem:[#allocation2 + $0x2038] sm:$0xff]
        %v1558 = vld [vmem:[#allocation2 + $0x2040] sm:$0xff]
        %v1559 = vld [vmem:[#allocation2 + $0x2048] sm:$0xff]
        %v1560 = vld [vmem:[#allocation2 + $0x2050] sm:$0xff]
        %v1561 = vld [vmem:[#allocation2 + $0x2058] sm:$0xff]
        %v1562 = vld [vmem:[#allocation2 + $0x2060] sm:$0xff]
        %v1563 = vld [vmem:[#allocation2 + $0x2068] sm:$0xff]
        %v1564 = vld [vmem:[#allocation2 + $0x2070] sm:$0xff]
        %v1565 = vld [vmem:[#allocation2 + $0x2078] sm:$0xff]
        %v1566 = vld [vmem:[#allocation2 + $0x2080] sm:$0xff]
        %v1567 = vld [vmem:[#allocation2 + $0x2088] sm:$0xff]
        %v1568 = vld [vmem:[#allocation2 + $0x2090] sm:$0xff]
        %v1569 = vld [vmem:[#allocation2 + $0x2098] sm:$0xff]
        %v1570 = vld [vmem:[#allocation2 + $0x20a0] sm:$0xff]
        %v1571 = vld [vmem:[#allocation2 + $0x20a8] sm:$0xff]
        %v1572 = vld [vmem:[#allocation2 + $0x20b0] sm:$0xff]
        %v1573 = vld [vmem:[#allocation2 + $0x20b8] sm:$0xff]
        %v1574 = vld [vmem:[#allocation2 + $0x20c0] sm:$0xff]
        %v1575 = vld [vmem:[#allocation2 + $0x20c8] sm:$0xff]
        %v1576 = vld [vmem:[#allocation2 + $0x20d0] sm:$0xff]
        %v1577 = vld [vmem:[#allocation2 + $0x20d8] sm:$0xff]
        %v1578 = vld [vmem:[#allocation2 + $0x20e0] sm:$0xff]
        %v1579 = vld [vmem:[#allocation2 + $0x20e8] sm:$0xff]
        %v1580 = vld [vmem:[#allocation2 + $0x20f0] sm:$0xff]
        %v1581 = vld [vmem:[#allocation2 + $0x20f8] sm:$0xff]
        %v1582 = vld [vmem:[#allocation2 + $0x2100] sm:$0xff]
        %v1583 = vld [vmem:[#allocation2 + $0x2108] sm:$0xff]
        %v1584 = vld [vmem:[#allocation2 + $0x2110] sm:$0xff]
        %v1585 = vld [vmem:[#allocation2 + $0x2118] sm:$0xff]
        %v1586 = vld [vmem:[#allocation2 + $0x2120] sm:$0xff]
        %v1587 = vld [vmem:[#allocation2 + $0x2128] sm:$0xff]
        %v1588 = vld [vmem:[#allocation2 + $0x2130] sm:$0xff]
        %v1589 = vld [vmem:[#allocation2 + $0x2138] sm:$0xff]
        %v1590 = vld [vmem:[#allocation2 + $0x2140] sm:$0xff]
        %v1591 = vld [vmem:[#allocation2 + $0x2148] sm:$0xff]
        %v1592 = vld [vmem:[#allocation2 + $0x2150] sm:$0xff]
        %v1593 = vld [vmem:[#allocation2 + $0x2158] sm:$0xff]
        %v1594 = vld [vmem:[#allocation2 + $0x2160] sm:$0xff]
        %v1595 = vld [vmem:[#allocation2 + $0x2168] sm:$0xff]
        %v1596 = vld [vmem:[#allocation2 + $0x2170] sm:$0xff]
        %v1597 = vld [vmem:[#allocation2 + $0x2178] sm:$0xff]
        %v1598 = vld [vmem:[#allocation2 + $0x2180] sm:$0xff]
        %v1599 = vld [vmem:[#allocation2 + $0x2188] sm:$0xff]
        %v1600 = vld [vmem:[#allocation2 + $0x2190] sm:$0xff]
        %v1601 = vld [vmem:[#allocation2 + $0x2198] sm:$0xff]
        %v1602 = vld [vmem:[#allocation2 + $0x21a0] sm:$0xff]
        %v1603 = vld [vmem:[#allocation2 + $0x21a8] sm:$0xff]
        %v1604 = vld [vmem:[#allocation2 + $0x21b0] sm:$0xff]
        %v1605 = vld [vmem:[#allocation2 + $0x21b8] sm:$0xff]
        %v1606 = vld [vmem:[#allocation2 + $0x21c0] sm:$0xff]
        %v1607 = vld [vmem:[#allocation2 + $0x21c8] sm:$0xff]
        %v1608 = vld [vmem:[#allocation2 + $0x21d0] sm:$0xff]
        %v1609 = vld [vmem:[#allocation2 + $0x21d8] sm:$0xff]
        %v1610 = vld [vmem:[#allocation2 + $0x21e0] sm:$0xff]
        %v1611 = vld [vmem:[#allocation2 + $0x21e8] sm:$0xff]
        %v1612 = vld [vmem:[#allocation2 + $0x21f0] sm:$0xff]
        %v1613 = vld [vmem:[#allocation2 + $0x21f8] sm:$0xff]
        %v1614 = vld [vmem:[#allocation2 + $0x2200] sm:$0xff]
        %v1615 = vld [vmem:[#allocation2 + $0x2208] sm:$0xff]
        %v1616 = vld [vmem:[#allocation2 + $0x2210] sm:$0xff]
        %v1617 = vld [vmem:[#allocation2 + $0x2218] sm:$0xff]
        %v1618 = vld [vmem:[#allocation2 + $0x2220] sm:$0xff]
        %v1619 = vld [vmem:[#allocation2 + $0x2228] sm:$0xff]
        %v1620 = vld [vmem:[#allocation2 + $0x2230] sm:$0xff]
        %v1621 = vld [vmem:[#allocation2 + $0x2238] sm:$0xff]
        %v1622 = vld [vmem:[#allocation2 + $0x2240] sm:$0xff]
        %v1623 = vld [vmem:[#allocation2 + $0x2248] sm:$0xff]
        %v1624 = vld [vmem:[#allocation2 + $0x2250] sm:$0xff]
        %v1625 = vld [vmem:[#allocation2 + $0x2258] sm:$0xff]
        %v1626 = vld [vmem:[#allocation2 + $0x2260] sm:$0xff]
        %v1627 = vld [vmem:[#allocation2 + $0x2268] sm:$0xff]
        %v1628 = vld [vmem:[#allocation2 + $0x2270] sm:$0xff]
        %v1629 = vld [vmem:[#allocation2 + $0x2278] sm:$0xff]
        %v1630 = vld [vmem:[#allocation2 + $0x2280] sm:$0xff]
        %v1631 = vld [vmem:[#allocation2 + $0x2288] sm:$0xff]
        %v1632 = vld [vmem:[#allocation2 + $0x2290] sm:$0xff]
        %v1633 = vld [vmem:[#allocation2 + $0x2298] sm:$0xff]
        %v1634 = vld [vmem:[#allocation2 + $0x22a0] sm:$0xff]
        %v1635 = vld [vmem:[#allocation2 + $0x22a8] sm:$0xff]
        %v1636 = vld [vmem:[#allocation2 + $0x22b0] sm:$0xff]
        %v1637 = vld [vmem:[#allocation2 + $0x22b8] sm:$0xff]
        %v1638 = vld [vmem:[#allocation2 + $0x22c0] sm:$0xff]
        %v1639 = vld [vmem:[#allocation2 + $0x22c8] sm:$0xff]
        %v1640 = vld [vmem:[#allocation2 + $0x22d0] sm:$0xff]
        %v1641 = vld [vmem:[#allocation2 + $0x22d8] sm:$0xff]
        %v1642 = vld [vmem:[#allocation2 + $0x22e0] sm:$0xff]
        %v1643 = vld [vmem:[#allocation2 + $0x22e8] sm:$0xff]
        %v1644 = vld [vmem:[#allocation2 + $0x22f0] sm:$0xff]
        %v1645 = vld [vmem:[#allocation2 + $0x22f8] sm:$0xff]
        %v1650 = vunpack.c.l.b16 %v522
        %v1651 = vunpack.c.h.b16 %v522
        %v1652 = vunpack.c.l.b16 %v523
        %v1653 = vunpack.c.h.b16 %v523
        %v1654 = vunpack.c.l.b16 %v524
        %v1655 = vunpack.c.h.b16 %v524
        %v1656 = vunpack.c.l.b16 %v525
        %v1657 = vpack.c.b16 %v1650, %v1650
        %v1658 = vpack.c.b16 %v1651, %v1651
        %v1659 = vpack.c.b16 %v1652, %v1652
        %v1660 = vpack.c.b16 %v1653, %v1653
        %v1661 = vpack.c.b16 %v1654, %v1654
        %v1662 = vpack.c.b16 %v1655, %v1655
        %v1663 = vpack.c.b16 %v1656, %v1656
        %v2791 = vunpack.c.l.b16 %v526
        %v2792 = vunpack.c.h.b16 %v526
        %v2793 = vunpack.c.l.b16 %v527
        %v2794 = vunpack.c.h.b16 %v527
        %v2795 = vunpack.c.l.b16 %v528
        %v2796 = vunpack.c.h.b16 %v528
        %v2797 = vunpack.c.l.b16 %v529
        %v2798 = vunpack.c.h.b16 %v529
        %v2799 = vunpack.c.l.b16 %v530
        %v2800 = vunpack.c.h.b16 %v530
        %v2801 = vunpack.c.l.b16 %v531
        %v2802 = vunpack.c.h.b16 %v531
        %v2803 = vunpack.c.l.b16 %v532
        %v2804 = vunpack.c.h.b16 %v532
        %v2805 = vunpack.c.l.b16 %v533
        %v2806 = vunpack.c.h.b16 %v533
        %v2807 = vunpack.c.l.b16 %v534
        %v2808 = vunpack.c.h.b16 %v534
        %v2809 = vunpack.c.l.b16 %v535
        %v2810 = vunpack.c.h.b16 %v535
        %v2811 = vunpack.c.l.b16 %v536
        %v2812 = vunpack.c.h.b16 %v536
        %v2813 = vunpack.c.l.b16 %v537
        %v2814 = vunpack.c.h.b16 %v537
        %v2815 = vunpack.c.l.b16 %v538
        %v2816 = vunpack.c.h.b16 %v538
        %v2817 = vunpack.c.l.b16 %v539
        %v2818 = vunpack.c.h.b16 %v539
        %v2819 = vunpack.c.l.b16 %v540
        %v2820 = vunpack.c.h.b16 %v540
        %v2821 = vunpack.c.l.b16 %v541
        %v2822 = vunpack.c.h.b16 %v541
        %v2823 = vunpack.c.l.b16 %v542
        %v2824 = vunpack.c.h.b16 %v542
        %v2825 = vunpack.c.l.b16 %v543
        %v2826 = vunpack.c.h.b16 %v543
        %v2827 = vunpack.c.l.b16 %v544
        %v2828 = vunpack.c.h.b16 %v544
        %v2829 = vunpack.c.l.b16 %v545
        %v2830 = vunpack.c.h.b16 %v545
        %v2831 = vunpack.c.l.b16 %v546
        %v2832 = vunpack.c.h.b16 %v546
        %v2833 = vunpack.c.l.b16 %v547
        %v2834 = vunpack.c.h.b16 %v547
        %v2835 = vunpack.c.l.b16 %v548
        %v2836 = vunpack.c.h.b16 %v548
        %v2837 = vunpack.c.l.b16 %v549
        %v2838 = vunpack.c.h.b16 %v549
        %v2839 = vunpack.c.l.b16 %v550
        %v2840 = vunpack.c.h.b16 %v550
        %v2841 = vunpack.c.l.b16 %v551
        %v2842 = vunpack.c.h.b16 %v551
        %v2843 = vunpack.c.l.b16 %v552
        %v2844 = vunpack.c.h.b16 %v552
        %v2845 = vunpack.c.l.b16 %v553
        %v2846 = vunpack.c.h.b16 %v553
        %v2847 = vunpack.c.l.b16 %v554
        %v2848 = vunpack.c.h.b16 %v554
        %v2849 = vunpack.c.l.b16 %v555
        %v2850 = vunpack.c.h.b16 %v555
        %v2851 = vunpack.c.l.b16 %v556
        %v2852 = vunpack.c.h.b16 %v556
        %v2853 = vunpack.c.l.b16 %v557
        %v2854 = vunpack.c.h.b16 %v557
        %v2855 = vunpack.c.l.b16 %v558
        %v2856 = vunpack.c.h.b16 %v558
        %v2857 = vunpack.c.l.b16 %v559
        %v2858 = vunpack.c.h.b16 %v559
        %v2859 = vunpack.c.l.b16 %v560
        %v2860 = vunpack.c.h.b16 %v560
        %v2861 = vunpack.c.l.b16 %v561
        %v2862 = vunpack.c.h.b16 %v561
        %v2863 = vunpack.c.l.b16 %v562
        %v2864 = vunpack.c.h.b16 %v562
        %v2865 = vunpack.c.l.b16 %v563
        %v2866 = vunpack.c.h.b16 %v563
        %v2867 = vunpack.c.l.b16 %v564
        %v2868 = vunpack.c.h.b16 %v564
        %v2869 = vunpack.c.l.b16 %v565
        %v2870 = vunpack.c.h.b16 %v565
        %v2871 = vunpack.c.l.b16 %v566
        %v2872 = vunpack.c.h.b16 %v566
        %v2873 = vunpack.c.l.b16 %v567
        %v2874 = vunpack.c.h.b16 %v567
        %v2875 = vunpack.c.l.b16 %v568
        %v2876 = vunpack.c.h.b16 %v568
        %v2877 = vunpack.c.l.b16 %v569
        %v2878 = vunpack.c.h.b16 %v569
        %v2879 = vunpack.c.l.b16 %v570
        %v2880 = vunpack.c.h.b16 %v570
        %v2881 = vunpack.c.l.b16 %v571
        %v2882 = vunpack.c.h.b16 %v571
        %v2883 = vunpack.c.l.b16 %v572
        %v2884 = vunpack.c.h.b16 %v572
        %v2885 = vunpack.c.l.b16 %v573
        %v2886 = vunpack.c.h.b16 %v573
        %v2887 = vunpack.c.l.b16 %v574
        %v2888 = vunpack.c.h.b16 %v574
        %v2889 = vunpack.c.l.b16 %v575
        %v2890 = vunpack.c.h.b16 %v575
        %v2891 = vunpack.c.l.b16 %v576
        %v2892 = vunpack.c.h.b16 %v576
        %v2893 = vunpack.c.l.b16 %v577
        %v2894 = vunpack.c.h.b16 %v577
        %v2895 = vunpack.c.l.b16 %v578
        %v2896 = vunpack.c.h.b16 %v578
        %v2897 = vunpack.c.l.b16 %v579
        %v2898 = vunpack.c.h.b16 %v579
        %v2899 = vunpack.c.l.b16 %v580
        %v2900 = vunpack.c.h.b16 %v580
        %v2901 = vunpack.c.l.b16 %v581
        %v2902 = vunpack.c.h.b16 %v581
        %v2903 = vunpack.c.l.b16 %v582
        %v2904 = vunpack.c.h.b16 %v582
        %v2905 = vunpack.c.l.b16 %v583
        %v2906 = vunpack.c.h.b16 %v583
        %v2907 = vunpack.c.l.b16 %v584
        %v2908 = vunpack.c.h.b16 %v584
        %v2909 = vunpack.c.l.b16 %v585
        %v2910 = vunpack.c.h.b16 %v585
        %v2911 = vunpack.c.l.b16 %v586
        %v2912 = vunpack.c.h.b16 %v586
        %v2913 = vunpack.c.l.b16 %v587
        %v2914 = vunpack.c.h.b16 %v587
        %v2915 = vunpack.c.l.b16 %v588
        %v2916 = vunpack.c.h.b16 %v588
        %v2917 = vunpack.c.l.b16 %v589
        %v2918 = vunpack.c.h.b16 %v589
        %v2919 = vunpack.c.l.b16 %v590
        %v2920 = vunpack.c.h.b16 %v590
        %v2921 = vunpack.c.l.b16 %v591
        %v2922 = vunpack.c.h.b16 %v591
        %v2923 = vunpack.c.l.b16 %v592
        %v2924 = vunpack.c.h.b16 %v592
        %v2925 = vunpack.c.l.b16 %v593
        %v2926 = vunpack.c.h.b16 %v593
        %v2927 = vunpack.c.l.b16 %v594
        %v2928 = vunpack.c.h.b16 %v594
        %v2929 = vunpack.c.l.b16 %v595
        %v2930 = vunpack.c.h.b16 %v595
        %v2931 = vunpack.c.l.b16 %v596
        %v2932 = vunpack.c.h.b16 %v596
        %v2933 = vunpack.c.l.b16 %v597
        %v2934 = vunpack.c.h.b16 %v597
        %v2935 = vunpack.c.l.b16 %v598
        %v2936 = vunpack.c.h.b16 %v598
        %v2937 = vunpack.c.l.b16 %v599
        %v2938 = vunpack.c.h.b16 %v599
        %v2939 = vunpack.c.l.b16 %v600
        %v2940 = vunpack.c.h.b16 %v600
        %v2941 = vunpack.c.l.b16 %v601
        %v2942 = vunpack.c.h.b16 %v601
        %v2943 = vunpack.c.l.b16 %v602
        %v2944 = vunpack.c.h.b16 %v602
        %v2945 = vunpack.c.l.b16 %v603
        %v2946 = vunpack.c.h.b16 %v603
        %v2947 = vunpack.c.l.b16 %v604
        %v2948 = vunpack.c.h.b16 %v604
        %v2949 = vunpack.c.l.b16 %v605
        %v2950 = vunpack.c.h.b16 %v605
        %v2951 = vunpack.c.l.b16 %v606
        %v2952 = vunpack.c.h.b16 %v606
        %v2953 = vunpack.c.l.b16 %v607
        %v2954 = vunpack.c.h.b16 %v607
        %v2955 = vunpack.c.l.b16 %v608
        %v2956 = vunpack.c.h.b16 %v608
        %v2957 = vunpack.c.l.b16 %v609
        %v2958 = vunpack.c.h.b16 %v609
        %v2959 = vunpack.c.l.b16 %v610
        %v2960 = vunpack.c.h.b16 %v610
        %v2961 = vunpack.c.l.b16 %v611
        %v2962 = vunpack.c.h.b16 %v611
        %v2963 = vunpack.c.l.b16 %v612
        %v2964 = vunpack.c.h.b16 %v612
        %v2965 = vunpack.c.l.b16 %v613
        %v2966 = vunpack.c.h.b16 %v613
        %v2967 = vunpack.c.l.b16 %v614
        %v2968 = vunpack.c.h.b16 %v614
        %v2969 = vunpack.c.l.b16 %v615
        %v2970 = vunpack.c.h.b16 %v615
        %v2971 = vunpack.c.l.b16 %v616
        %v2972 = vunpack.c.h.b16 %v616
        %v2973 = vunpack.c.l.b16 %v617
        %v2974 = vunpack.c.h.b16 %v617
        %v2975 = vunpack.c.l.b16 %v618
        %v2976 = vunpack.c.h.b16 %v618
        %v2977 = vunpack.c.l.b16 %v619
        %v2978 = vunpack.c.h.b16 %v619
        %v2979 = vunpack.c.l.b16 %v620
        %v2980 = vunpack.c.h.b16 %v620
        %v2981 = vunpack.c.l.b16 %v621
        %v2982 = vunpack.c.h.b16 %v621
        %v2983 = vunpack.c.l.b16 %v622
        %v2984 = vunpack.c.h.b16 %v622
        %v2985 = vunpack.c.l.b16 %v623
        %v2986 = vunpack.c.h.b16 %v623
        %v2987 = vunpack.c.l.b16 %v624
        %v2988 = vunpack.c.h.b16 %v624
        %v2989 = vunpack.c.l.b16 %v625
        %v2990 = vunpack.c.h.b16 %v625
        %v2991 = vunpack.c.l.b16 %v626
        %v2992 = vunpack.c.h.b16 %v626
        %v2993 = vunpack.c.l.b16 %v627
        %v2994 = vunpack.c.h.b16 %v627
        %v2995 = vunpack.c.l.b16 %v628
        %v2996 = vunpack.c.h.b16 %v628
        %v2997 = vunpack.c.l.b16 %v629
        %v2998 = vunpack.c.h.b16 %v629
        %v2999 = vunpack.c.l.b16 %v630
        %v3000 = vunpack.c.h.b16 %v630
        %v3001 = vunpack.c.l.b16 %v631
        %v3002 = vunpack.c.h.b16 %v631
        %v3003 = vunpack.c.l.b16 %v632
        %v3004 = vunpack.c.h.b16 %v632
        %v3005 = vunpack.c.l.b16 %v633
        %v3006 = vunpack.c.h.b16 %v633
        %v3007 = vunpack.c.l.b16 %v634
        %v3008 = vunpack.c.h.b16 %v634
        %v3009 = vunpack.c.l.b16 %v635
        %v3010 = vunpack.c.h.b16 %v635
        %v3011 = vunpack.c.l.b16 %v636
        %v3012 = vunpack.c.h.b16 %v636
        %v3013 = vunpack.c.l.b16 %v637
        %v3014 = vunpack.c.h.b16 %v637
        %v3015 = vunpack.c.l.b16 %v638
        %v3016 = vunpack.c.h.b16 %v638
        %v3017 = vunpack.c.l.b16 %v639
        %v3018 = vunpack.c.h.b16 %v639
        %v3019 = vunpack.c.l.b16 %v640
        %v3020 = vunpack.c.h.b16 %v640
        %v3021 = vunpack.c.l.b16 %v641
        %v3022 = vunpack.c.h.b16 %v641
        %v3023 = vunpack.c.l.b16 %v642
        %v3024 = vunpack.c.h.b16 %v642
        %v3025 = vunpack.c.l.b16 %v643
        %v3026 = vunpack.c.h.b16 %v643
        %v3027 = vunpack.c.l.b16 %v644
        %v3028 = vunpack.c.h.b16 %v644
        %v3029 = vunpack.c.l.b16 %v645
        %v3030 = vunpack.c.h.b16 %v645
        %v3031 = vunpack.c.l.b16 %v646
        %v3032 = vunpack.c.h.b16 %v646
        %v3033 = vunpack.c.l.b16 %v647
        %v3034 = vunpack.c.h.b16 %v647
        %v3035 = vunpack.c.l.b16 %v648
        %v3036 = vunpack.c.h.b16 %v648
        %v3037 = vunpack.c.l.b16 %v649
        %v3038 = vunpack.c.h.b16 %v649
        %v3039 = vunpack.c.l.b16 %v650
        %v3040 = vunpack.c.h.b16 %v650
        %v3041 = vunpack.c.l.b16 %v651
        %v3042 = vunpack.c.h.b16 %v651
        %v3043 = vunpack.c.l.b16 %v652
        %v3044 = vunpack.c.h.b16 %v652
        %v3045 = vunpack.c.l.b16 %v653
        %v3046 = vunpack.c.h.b16 %v653
        %v3047 = vunpack.c.l.b16 %v654
        %v3048 = vunpack.c.h.b16 %v654
        %v3049 = vunpack.c.l.b16 %v655
        %v3050 = vunpack.c.h.b16 %v655
        %v3051 = vunpack.c.l.b16 %v656
        %v3052 = vunpack.c.h.b16 %v656
        %v3053 = vunpack.c.l.b16 %v657
        %v3054 = vunpack.c.h.b16 %v657
        %v3055 = vunpack.c.l.b16 %v658
        %v3056 = vunpack.c.h.b16 %v658
        %v3057 = vunpack.c.l.b16 %v659
        %v3058 = vunpack.c.h.b16 %v659
        %v3059 = vunpack.c.l.b16 %v660
        %v3060 = vunpack.c.h.b16 %v660
        %v3061 = vunpack.c.l.b16 %v661
        %v3062 = vunpack.c.h.b16 %v661
        %v3063 = vunpack.c.l.b16 %v662
        %v3064 = vunpack.c.h.b16 %v662
        %v3065 = vunpack.c.l.b16 %v663
        %v3066 = vunpack.c.h.b16 %v663
        %v3067 = vunpack.c.l.b16 %v664
        %v3068 = vunpack.c.h.b16 %v664
        %v3069 = vunpack.c.l.b16 %v665
        %v3070 = vunpack.c.h.b16 %v665
        %v3071 = vunpack.c.l.b16 %v666
        %v3072 = vunpack.c.h.b16 %v666
        %v3073 = vunpack.c.l.b16 %v667
        %v3074 = vunpack.c.h.b16 %v667
        %v3075 = vunpack.c.l.b16 %v668
        %v3076 = vunpack.c.h.b16 %v668
        %v3077 = vunpack.c.l.b16 %v669
        %v3078 = vunpack.c.h.b16 %v669
        %v3079 = vunpack.c.l.b16 %v670
        %v3080 = vunpack.c.h.b16 %v670
        %v3081 = vunpack.c.l.b16 %v671
        %v3082 = vunpack.c.h.b16 %v671
        %v3083 = vunpack.c.l.b16 %v672
        %v3084 = vunpack.c.h.b16 %v672
        %v3085 = vunpack.c.l.b16 %v673
        %v3086 = vunpack.c.h.b16 %v673
        %v3087 = vunpack.c.l.b16 %v674
        %v3088 = vunpack.c.h.b16 %v674
        %v3089 = vunpack.c.l.b16 %v675
        %v3090 = vunpack.c.h.b16 %v675
        %v3091 = vunpack.c.l.b16 %v676
        %v3092 = vunpack.c.h.b16 %v676
        %v3093 = vunpack.c.l.b16 %v677
        %v3094 = vunpack.c.h.b16 %v677
        %v3095 = vunpack.c.l.b16 %v678
        %v3096 = vunpack.c.h.b16 %v678
        %v3097 = vunpack.c.l.b16 %v679
        %v3098 = vunpack.c.h.b16 %v679
        %v3099 = vunpack.c.l.b16 %v680
        %v3100 = vunpack.c.h.b16 %v680
        %v3101 = vunpack.c.l.b16 %v681
        %v3102 = vunpack.c.h.b16 %v681
        %v3103 = vunpack.c.l.b16 %v682
        %v3104 = vunpack.c.h.b16 %v682
        %v3105 = vunpack.c.l.b16 %v683
        %v3106 = vunpack.c.h.b16 %v683
        %v3107 = vunpack.c.l.b16 %v684
        %v3108 = vunpack.c.h.b16 %v684
        %v3109 = vunpack.c.l.b16 %v685
        %v3110 = vunpack.c.h.b16 %v685
        %v3111 = vunpack.c.l.b16 %v686
        %v3112 = vunpack.c.h.b16 %v686
        %v3113 = vunpack.c.l.b16 %v687
        %v3114 = vunpack.c.h.b16 %v687
        %v3115 = vunpack.c.l.b16 %v688
        %v3116 = vunpack.c.h.b16 %v688
        %v3117 = vunpack.c.l.b16 %v689
        %v3118 = vunpack.c.h.b16 %v689
        %v3119 = vunpack.c.l.b16 %v690
        %v3120 = vunpack.c.h.b16 %v690
        %v3121 = vunpack.c.l.b16 %v691
        %v3122 = vunpack.c.h.b16 %v691
        %v3123 = vunpack.c.l.b16 %v692
        %v3124 = vunpack.c.h.b16 %v692
        %v3125 = vunpack.c.l.b16 %v693
        %v3126 = vunpack.c.h.b16 %v693
        %v3127 = vunpack.c.l.b16 %v694
        %v3128 = vunpack.c.h.b16 %v694
        %v3129 = vunpack.c.l.b16 %v695
        %v3130 = vunpack.c.h.b16 %v695
        %v3131 = vunpack.c.l.b16 %v696
        %v3132 = vunpack.c.h.b16 %v696
        %v3133 = vunpack.c.l.b16 %v697
        %v3134 = vunpack.c.h.b16 %v697
        %v3135 = vunpack.c.l.b16 %v698
        %v3136 = vunpack.c.h.b16 %v698
        %v3137 = vunpack.c.l.b16 %v699
        %v3138 = vunpack.c.h.b16 %v699
        %v3139 = vunpack.c.l.b16 %v700
        %v3140 = vunpack.c.h.b16 %v700
        %v3141 = vunpack.c.l.b16 %v701
        %v3142 = vunpack.c.h.b16 %v701
        %v3143 = vunpack.c.l.b16 %v702
        %v3144 = vunpack.c.h.b16 %v702
        %v3145 = vunpack.c.l.b16 %v703
        %v3146 = vunpack.c.h.b16 %v703
        %v3147 = vunpack.c.l.b16 %v704
        %v3148 = vunpack.c.h.b16 %v704
        %v3149 = vunpack.c.l.b16 %v705
        %v3150 = vunpack.c.h.b16 %v705
        %v3151 = vunpack.c.l.b16 %v706
        %v3152 = vunpack.c.h.b16 %v706
        %v3153 = vunpack.c.l.b16 %v707
        %v3154 = vunpack.c.h.b16 %v707
        %v3155 = vunpack.c.l.b16 %v708
        %v3156 = vunpack.c.h.b16 %v708
        %v3157 = vunpack.c.l.b16 %v709
        %v3158 = vunpack.c.h.b16 %v709
        %v3159 = vunpack.c.l.b16 %v710
        %v3160 = vunpack.c.h.b16 %v710
        %v3161 = vunpack.c.l.b16 %v711
        %v3162 = vunpack.c.h.b16 %v711
        %v3163 = vunpack.c.l.b16 %v712
        %v3164 = vunpack.c.h.b16 %v712
        %v3165 = vunpack.c.l.b16 %v713
        %v3166 = vunpack.c.h.b16 %v713
        %v3167 = vunpack.c.l.b16 %v714
        %v3168 = vunpack.c.h.b16 %v714
        %v3169 = vunpack.c.l.b16 %v715
        %v3170 = vunpack.c.h.b16 %v715
        %v3171 = vunpack.c.l.b16 %v716
        %v3172 = vunpack.c.h.b16 %v716
        %v3173 = vunpack.c.l.b16 %v717
        %v3174 = vunpack.c.h.b16 %v717
        %v3175 = vunpack.c.l.b16 %v718
        %v3176 = vunpack.c.h.b16 %v718
        %v3177 = vunpack.c.l.b16 %v719
        %v3178 = vunpack.c.h.b16 %v719
        %v3179 = vunpack.c.l.b16 %v720
        %v3180 = vunpack.c.h.b16 %v720
        %v3181 = vunpack.c.l.b16 %v721
        %v3182 = vunpack.c.h.b16 %v721
        %v3183 = vunpack.c.l.b16 %v722
        %v3184 = vunpack.c.h.b16 %v722
        %v3185 = vunpack.c.l.b16 %v723
        %v3186 = vunpack.c.h.b16 %v723
        %v3187 = vunpack.c.l.b16 %v724
        %v3188 = vunpack.c.h.b16 %v724
        %v3189 = vunpack.c.l.b16 %v725
        %v3190 = vunpack.c.h.b16 %v725
        %v3191 = vunpack.c.l.b16 %v726
        %v3192 = vunpack.c.h.b16 %v726
        %v3193 = vunpack.c.l.b16 %v727
        %v3194 = vunpack.c.h.b16 %v727
        %v3195 = vunpack.c.l.b16 %v728
        %v3196 = vunpack.c.h.b16 %v728
        %v3197 = vunpack.c.l.b16 %v729
        %v3198 = vunpack.c.h.b16 %v729
        %v3199 = vunpack.c.l.b16 %v730
        %v3200 = vunpack.c.h.b16 %v730
        %v3201 = vunpack.c.l.b16 %v731
        %v3202 = vunpack.c.h.b16 %v731
        %v3203 = vunpack.c.l.b16 %v732
        %v3204 = vunpack.c.h.b16 %v732
        %v3205 = vunpack.c.l.b16 %v733
        %v3206 = vunpack.c.h.b16 %v733
        %v3207 = vunpack.c.l.b16 %v734
        %v3208 = vunpack.c.h.b16 %v734
        %v3209 = vunpack.c.l.b16 %v735
        %v3210 = vunpack.c.h.b16 %v735
        %v3211 = vunpack.c.l.b16 %v736
        %v3212 = vunpack.c.h.b16 %v736
        %v3213 = vunpack.c.l.b16 %v737
        %v3214 = vunpack.c.h.b16 %v737
        %v3215 = vunpack.c.l.b16 %v738
        %v3216 = vunpack.c.h.b16 %v738
        %v3217 = vunpack.c.l.b16 %v739
        %v3218 = vunpack.c.h.b16 %v739
        %v3219 = vunpack.c.l.b16 %v740
        %v3220 = vunpack.c.h.b16 %v740
        %v3221 = vunpack.c.l.b16 %v741
        %v3222 = vunpack.c.h.b16 %v741
        %v3223 = vunpack.c.l.b16 %v742
        %v3224 = vunpack.c.h.b16 %v742
        %v3225 = vunpack.c.l.b16 %v743
        %v3226 = vunpack.c.h.b16 %v743
        %v3227 = vunpack.c.l.b16 %v744
        %v3228 = vunpack.c.h.b16 %v744
        %v3229 = vunpack.c.l.b16 %v745
        %v3230 = vunpack.c.h.b16 %v745
        %v3231 = vunpack.c.l.b16 %v746
        %v3232 = vunpack.c.h.b16 %v746
        %v3233 = vunpack.c.l.b16 %v747
        %v3234 = vunpack.c.h.b16 %v747
        %v3235 = vunpack.c.l.b16 %v748
        %v3236 = vunpack.c.h.b16 %v748
        %v3237 = vunpack.c.l.b16 %v749
        %v3238 = vunpack.c.h.b16 %v749
        %v3239 = vunpack.c.l.b16 %v750
        %v3240 = vunpack.c.h.b16 %v750
        %v3241 = vunpack.c.l.b16 %v751
        %v3242 = vunpack.c.h.b16 %v751
        %v3243 = vunpack.c.l.b16 %v752
        %v3244 = vunpack.c.h.b16 %v752
        %v3245 = vunpack.c.l.b16 %v753
        %v3246 = vunpack.c.h.b16 %v753
        %v3247 = vunpack.c.l.b16 %v754
        %v3248 = vunpack.c.h.b16 %v754
        %v3249 = vunpack.c.l.b16 %v755
        %v3250 = vunpack.c.h.b16 %v755
        %v3251 = vunpack.c.l.b16 %v756
        %v3252 = vunpack.c.h.b16 %v756
        %v3253 = vunpack.c.l.b16 %v757
        %v3254 = vunpack.c.h.b16 %v757
        %v3255 = vunpack.c.l.b16 %v758
        %v3256 = vunpack.c.h.b16 %v758
        %v3257 = vunpack.c.l.b16 %v759
        %v3258 = vunpack.c.h.b16 %v759
        %v3259 = vunpack.c.l.b16 %v760
        %v3260 = vunpack.c.h.b16 %v760
        %v3261 = vunpack.c.l.b16 %v761
        %v3262 = vunpack.c.h.b16 %v761
        %v3263 = vunpack.c.l.b16 %v762
        %v3264 = vunpack.c.h.b16 %v762
        %v3265 = vunpack.c.l.b16 %v763
        %v3266 = vunpack.c.h.b16 %v763
        %v3267 = vunpack.c.l.b16 %v764
        %v3268 = vunpack.c.h.b16 %v764
        %v3269 = vunpack.c.l.b16 %v765
        %v3270 = vunpack.c.h.b16 %v765
        %v3271 = vunpack.c.l.b16 %v766
        %v3272 = vunpack.c.h.b16 %v766
        %v3273 = vunpack.c.l.b16 %v767
        %v3274 = vunpack.c.h.b16 %v767
        %v3275 = vunpack.c.l.b16 %v768
        %v3276 = vunpack.c.h.b16 %v768
        %v3277 = vunpack.c.l.b16 %v769
        %v3278 = vunpack.c.h.b16 %v769
        %v3279 = vunpack.c.l.b16 %v770
        %v3280 = vunpack.c.h.b16 %v770
        %v3281 = vunpack.c.l.b16 %v771
        %v3282 = vunpack.c.h.b16 %v771
        %v3283 = vunpack.c.l.b16 %v772
        %v3284 = vunpack.c.h.b16 %v772
        %v3285 = vunpack.c.l.b16 %v773
        %v3286 = vunpack.c.h.b16 %v773
        %v3287 = vunpack.c.l.b16 %v774
        %v3288 = vunpack.c.h.b16 %v774
        %v3289 = vunpack.c.l.b16 %v775
        %v3290 = vunpack.c.h.b16 %v775
        %v3291 = vunpack.c.l.b16 %v776
        %v3292 = vunpack.c.h.b16 %v776
        %v3293 = vunpack.c.l.b16 %v777
        %v3294 = vunpack.c.h.b16 %v777
        %v3295 = vunpack.c.l.b16 %v778
        %v3296 = vunpack.c.h.b16 %v778
        %v3297 = vunpack.c.l.b16 %v779
        %v3298 = vunpack.c.h.b16 %v779
        %v3299 = vunpack.c.l.b16 %v780
        %v3300 = vunpack.c.h.b16 %v780
        %v3301 = vunpack.c.l.b16 %v781
        %v3302 = vunpack.c.h.b16 %v781
        %v3303 = vunpack.c.l.b16 %v782
        %v3304 = vunpack.c.h.b16 %v782
        %v3305 = vunpack.c.l.b16 %v783
        %v3306 = vunpack.c.h.b16 %v783
        %v3307 = vunpack.c.l.b16 %v784
        %v3308 = vunpack.c.h.b16 %v784
        %v3309 = vunpack.c.l.b16 %v785
        %v3310 = vunpack.c.h.b16 %v785
        %v3311 = vunpack.c.l.b16 %v786
        %v3312 = vunpack.c.h.b16 %v786
        %v3313 = vunpack.c.l.b16 %v787
        %v3314 = vunpack.c.h.b16 %v787
        %v3315 = vunpack.c.l.b16 %v788
        %v3316 = vunpack.c.h.b16 %v788
        %v3317 = vunpack.c.l.b16 %v789
        %v3318 = vunpack.c.h.b16 %v789
        %v3319 = vunpack.c.l.b16 %v790
        %v3320 = vunpack.c.h.b16 %v790
        %v3321 = vunpack.c.l.b16 %v791
        %v3322 = vunpack.c.h.b16 %v791
        %v3323 = vunpack.c.l.b16 %v792
        %v3324 = vunpack.c.h.b16 %v792
        %v3325 = vunpack.c.l.b16 %v793
        %v3326 = vunpack.c.h.b16 %v793
        %v3327 = vunpack.c.l.b16 %v794
        %v3328 = vunpack.c.h.b16 %v794
        %v3329 = vunpack.c.l.b16 %v795
        %v3330 = vunpack.c.h.b16 %v795
        %v3331 = vunpack.c.l.b16 %v796
        %v3332 = vunpack.c.h.b16 %v796
        %v3333 = vunpack.c.l.b16 %v797
        %v3334 = vunpack.c.h.b16 %v797
        %v3335 = vunpack.c.l.b16 %v798
        %v3336 = vunpack.c.h.b16 %v798
        %v3337 = vunpack.c.l.b16 %v799
        %v3338 = vunpack.c.h.b16 %v799
        %v3339 = vunpack.c.l.b16 %v800
        %v3340 = vunpack.c.h.b16 %v800
        %v3341 = vunpack.c.l.b16 %v801
        %v3342 = vunpack.c.h.b16 %v801
        %v3343 = vunpack.c.l.b16 %v802
        %v3344 = vunpack.c.h.b16 %v802
        %v3345 = vunpack.c.l.b16 %v803
        %v3346 = vunpack.c.h.b16 %v803
        %v3347 = vunpack.c.l.b16 %v804
        %v3348 = vunpack.c.h.b16 %v804
        %v3349 = vunpack.c.l.b16 %v805
        %v3350 = vunpack.c.h.b16 %v805
        %v3351 = vunpack.c.l.b16 %v806
        %v3352 = vunpack.c.h.b16 %v806
        %v3353 = vunpack.c.l.b16 %v807
        %v3354 = vunpack.c.h.b16 %v807
        %v3355 = vunpack.c.l.b16 %v808
        %v3356 = vunpack.c.h.b16 %v808
        %v3357 = vunpack.c.l.b16 %v809
        %v3358 = vunpack.c.h.b16 %v809
        %v3359 = vunpack.c.l.b16 %v810
        %v3360 = vunpack.c.h.b16 %v810
        %v3361 = vunpack.c.l.b16 %v811
        %v3362 = vunpack.c.h.b16 %v811
        %v3363 = vunpack.c.l.b16 %v812
        %v3364 = vunpack.c.h.b16 %v812
        %v3365 = vunpack.c.l.b16 %v813
        %v3366 = vunpack.c.h.b16 %v813
        %v3367 = vunpack.c.l.b16 %v814
        %v3368 = vunpack.c.h.b16 %v814
        %v3369 = vunpack.c.l.b16 %v815
        %v3370 = vunpack.c.h.b16 %v815
        %v3371 = vunpack.c.l.b16 %v816
        %v3372 = vunpack.c.h.b16 %v816
        %v3373 = vunpack.c.l.b16 %v817
        %v3374 = vunpack.c.h.b16 %v817
        %v3375 = vunpack.c.l.b16 %v818
        %v3376 = vunpack.c.h.b16 %v818
        %v3377 = vunpack.c.l.b16 %v819
        %v3378 = vunpack.c.h.b16 %v819
        %v3379 = vunpack.c.l.b16 %v820
        %v3380 = vunpack.c.h.b16 %v820
        %v3381 = vunpack.c.l.b16 %v821
        %v3382 = vunpack.c.h.b16 %v821
        %v3383 = vunpack.c.l.b16 %v822
        %v3384 = vunpack.c.h.b16 %v822
        %v3385 = vunpack.c.l.b16 %v823
        %v3386 = vunpack.c.h.b16 %v823
        %v3387 = vunpack.c.l.b16 %v824
        %v3388 = vunpack.c.h.b16 %v824
        %v3389 = vunpack.c.l.b16 %v825
        %v3390 = vunpack.c.h.b16 %v825
        %v3391 = vunpack.c.l.b16 %v826
        %v3392 = vunpack.c.h.b16 %v826
        %v3393 = vunpack.c.l.b16 %v827
        %v3394 = vunpack.c.h.b16 %v827
        %v3395 = vunpack.c.l.b16 %v828
        %v3396 = vunpack.c.h.b16 %v828
        %v3397 = vunpack.c.l.b16 %v829
        %v3398 = vunpack.c.h.b16 %v829
        %v3399 = vunpack.c.l.b16 %v830
        %v3400 = vunpack.c.h.b16 %v830
        %v3401 = vunpack.c.l.b16 %v831
        %v3402 = vunpack.c.h.b16 %v831
        %v3403 = vunpack.c.l.b16 %v832
        %v3404 = vunpack.c.h.b16 %v832
        %v3405 = vunpack.c.l.b16 %v833
        %v3406 = vunpack.c.h.b16 %v833
        %v3407 = vunpack.c.l.b16 %v834
        %v3408 = vunpack.c.h.b16 %v834
        %v3409 = vunpack.c.l.b16 %v835
        %v3410 = vunpack.c.h.b16 %v835
        %v3411 = vunpack.c.l.b16 %v836
        %v3412 = vunpack.c.h.b16 %v836
        %v3413 = vunpack.c.l.b16 %v837
        %v3414 = vunpack.c.h.b16 %v837
        %v3415 = vunpack.c.l.b16 %v838
        %v3416 = vunpack.c.h.b16 %v838
        %v3417 = vunpack.c.l.b16 %v839
        %v3418 = vunpack.c.h.b16 %v839
        %v3419 = vunpack.c.l.b16 %v840
        %v3420 = vunpack.c.h.b16 %v840
        %v3421 = vunpack.c.l.b16 %v841
        %v3422 = vunpack.c.h.b16 %v841
        %v3423 = vunpack.c.l.b16 %v842
        %v3424 = vunpack.c.h.b16 %v842
        %v3425 = vunpack.c.l.b16 %v843
        %v3426 = vunpack.c.h.b16 %v843
        %v3427 = vunpack.c.l.b16 %v844
        %v3428 = vunpack.c.h.b16 %v844
        %v3429 = vunpack.c.l.b16 %v845
        %v3430 = vunpack.c.h.b16 %v845
        %v3431 = vunpack.c.l.b16 %v846
        %v3432 = vunpack.c.h.b16 %v846
        %v3433 = vunpack.c.l.b16 %v847
        %v3434 = vunpack.c.h.b16 %v847
        %v3435 = vunpack.c.l.b16 %v848
        %v3436 = vunpack.c.h.b16 %v848
        %v3437 = vunpack.c.l.b16 %v849
        %v3438 = vunpack.c.h.b16 %v849
        %v3439 = vunpack.c.l.b16 %v850
        %v3440 = vunpack.c.h.b16 %v850
        %v3441 = vunpack.c.l.b16 %v851
        %v3442 = vunpack.c.h.b16 %v851
        %v3443 = vunpack.c.l.b16 %v852
        %v3444 = vunpack.c.h.b16 %v852
        %v3445 = vunpack.c.l.b16 %v853
        %v3446 = vunpack.c.h.b16 %v853
        %v3447 = vunpack.c.l.b16 %v854
        %v3448 = vunpack.c.h.b16 %v854
        %v3449 = vunpack.c.l.b16 %v855
        %v3450 = vunpack.c.h.b16 %v855
        %v3451 = vunpack.c.l.b16 %v856
        %v3452 = vunpack.c.h.b16 %v856
        %v3453 = vunpack.c.l.b16 %v857
        %v3454 = vunpack.c.h.b16 %v857
        %v3455 = vunpack.c.l.b16 %v858
        %v3456 = vunpack.c.h.b16 %v858
        %v3457 = vunpack.c.l.b16 %v859
        %v3458 = vunpack.c.h.b16 %v859
        %v3459 = vunpack.c.l.b16 %v860
        %v3460 = vunpack.c.h.b16 %v860
        %v3461 = vunpack.c.l.b16 %v861
        %v3462 = vunpack.c.h.b16 %v861
        %v3463 = vunpack.c.l.b16 %v862
        %v3464 = vunpack.c.h.b16 %v862
        %v3465 = vunpack.c.l.b16 %v863
        %v3466 = vunpack.c.h.b16 %v863
        %v3467 = vunpack.c.l.b16 %v864
        %v3468 = vunpack.c.h.b16 %v864
        %v3469 = vunpack.c.l.b16 %v865
        %v3470 = vunpack.c.h.b16 %v865
        %v3471 = vunpack.c.l.b16 %v866
        %v3472 = vunpack.c.h.b16 %v866
        %v3473 = vunpack.c.l.b16 %v867
        %v3474 = vunpack.c.h.b16 %v867
        %v3475 = vunpack.c.l.b16 %v868
        %v3476 = vunpack.c.h.b16 %v868
        %v3477 = vunpack.c.l.b16 %v869
        %v3478 = vunpack.c.h.b16 %v869
        %v3479 = vunpack.c.l.b16 %v870
        %v3480 = vunpack.c.h.b16 %v870
        %v3481 = vunpack.c.l.b16 %v871
        %v3482 = vunpack.c.h.b16 %v871
        %v3483 = vunpack.c.l.b16 %v872
        %v3484 = vunpack.c.h.b16 %v872
        %v3485 = vunpack.c.l.b16 %v873
        %v3486 = vunpack.c.h.b16 %v873
        %v3487 = vunpack.c.l.b16 %v874
        %v3488 = vunpack.c.h.b16 %v874
        %v3489 = vunpack.c.l.b16 %v875
        %v3490 = vunpack.c.h.b16 %v875
        %v3491 = vunpack.c.l.b16 %v876
        %v3492 = vunpack.c.h.b16 %v876
        %v3493 = vunpack.c.l.b16 %v877
        %v3494 = vunpack.c.h.b16 %v877
        %v3495 = vunpack.c.l.b16 %v878
        %v3496 = vunpack.c.h.b16 %v878
        %v3497 = vunpack.c.l.b16 %v879
        %v3498 = vunpack.c.h.b16 %v879
        %v3499 = vunpack.c.l.b16 %v880
        %v3500 = vunpack.c.h.b16 %v880
        %v3501 = vunpack.c.l.b16 %v881
        %v3502 = vunpack.c.h.b16 %v881
        %v3503 = vunpack.c.l.b16 %v882
        %v3504 = vunpack.c.h.b16 %v882
        %v3505 = vunpack.c.l.b16 %v883
        %v3506 = vunpack.c.h.b16 %v883
        %v3507 = vunpack.c.l.b16 %v884
        %v3508 = vunpack.c.h.b16 %v884
        %v3509 = vunpack.c.l.b16 %v885
        %v3510 = vunpack.c.h.b16 %v885
        %v3511 = vunpack.c.l.b16 %v886
        %v3512 = vunpack.c.h.b16 %v886
        %v3513 = vunpack.c.l.b16 %v887
        %v3514 = vunpack.c.h.b16 %v887
        %v3515 = vunpack.c.l.b16 %v888
        %v3516 = vunpack.c.h.b16 %v888
        %v3517 = vunpack.c.l.b16 %v889
        %v3518 = vunpack.c.h.b16 %v889
        %v3519 = vunpack.c.l.b16 %v890
        %v3520 = vunpack.c.h.b16 %v890
        %v3521 = vunpack.c.l.b16 %v891
        %v3522 = vunpack.c.h.b16 %v891
        %v3523 = vunpack.c.l.b16 %v892
        %v3524 = vunpack.c.h.b16 %v892
        %v3525 = vunpack.c.l.b16 %v893
        %v3526 = vunpack.c.h.b16 %v893
        %v3527 = vunpack.c.l.b16 %v894
        %v3528 = vunpack.c.h.b16 %v894
        %v3529 = vunpack.c.l.b16 %v895
        %v3530 = vunpack.c.h.b16 %v895
        %v3531 = vunpack.c.l.b16 %v896
        %v3532 = vunpack.c.h.b16 %v896
        %v3533 = vunpack.c.l.b16 %v897
        %v3534 = vunpack.c.h.b16 %v897
        %v3535 = vunpack.c.l.b16 %v898
        %v3536 = vunpack.c.h.b16 %v898
        %v3537 = vunpack.c.l.b16 %v899
        %v3538 = vunpack.c.h.b16 %v899
        %v3539 = vunpack.c.l.b16 %v900
        %v3540 = vunpack.c.h.b16 %v900
        %v3541 = vunpack.c.l.b16 %v901
        %v3542 = vunpack.c.h.b16 %v901
        %v3543 = vunpack.c.l.b16 %v902
        %v3544 = vunpack.c.h.b16 %v902
        %v3545 = vunpack.c.l.b16 %v903
        %v3546 = vunpack.c.h.b16 %v903
        %v3547 = vunpack.c.l.b16 %v904
        %v3548 = vunpack.c.h.b16 %v904
        %v3549 = vunpack.c.l.b16 %v905
        %v3550 = vunpack.c.h.b16 %v905
        %v3551 = vunpack.c.l.b16 %v906
        %v3552 = vunpack.c.h.b16 %v906
        %v3553 = vunpack.c.l.b16 %v907
        %v3554 = vunpack.c.h.b16 %v907
        %v3555 = vunpack.c.l.b16 %v908
        %v3556 = vunpack.c.h.b16 %v908
        %v3557 = vunpack.c.l.b16 %v909
        %v3558 = vunpack.c.h.b16 %v909
        %v3559 = vunpack.c.l.b16 %v910
        %v3560 = vunpack.c.h.b16 %v910
        %v3561 = vunpack.c.l.b16 %v911
        %v3562 = vunpack.c.h.b16 %v911
        %v3563 = vunpack.c.l.b16 %v912
        %v3564 = vunpack.c.h.b16 %v912
        %v3565 = vunpack.c.l.b16 %v913
        %v3566 = vunpack.c.h.b16 %v913
        %v3567 = vunpack.c.l.b16 %v914
        %v3568 = vunpack.c.h.b16 %v914
        %v3569 = vunpack.c.l.b16 %v915
        %v3570 = vunpack.c.h.b16 %v915
        %v3571 = vunpack.c.l.b16 %v916
        %v3572 = vunpack.c.h.b16 %v916
        %v3573 = vunpack.c.l.b16 %v917
        %v3574 = vunpack.c.h.b16 %v917
        %v3575 = vunpack.c.l.b16 %v918
        %v3576 = vunpack.c.h.b16 %v918
        %v3577 = vunpack.c.l.b16 %v919
        %v3578 = vunpack.c.h.b16 %v919
        %v3579 = vunpack.c.l.b16 %v920
        %v3580 = vunpack.c.h.b16 %v920
        %v3581 = vunpack.c.l.b16 %v921
        %v3582 = vunpack.c.h.b16 %v921
        %v3583 = vunpack.c.l.b16 %v922
        %v3584 = vunpack.c.h.b16 %v922
        %v3585 = vunpack.c.l.b16 %v923
        %v3586 = vunpack.c.h.b16 %v923
        %v3587 = vunpack.c.l.b16 %v924
        %v3588 = vunpack.c.h.b16 %v924
        %v3589 = vunpack.c.l.b16 %v925
        %v3590 = vunpack.c.h.b16 %v925
        %v3591 = vunpack.c.l.b16 %v926
        %v3592 = vunpack.c.h.b16 %v926
        %v3593 = vunpack.c.l.b16 %v927
        %v3594 = vunpack.c.h.b16 %v927
        %v3595 = vunpack.c.l.b16 %v928
        %v3596 = vunpack.c.h.b16 %v928
        %v3597 = vunpack.c.l.b16 %v929
        %v3598 = vunpack.c.h.b16 %v929
        %v3599 = vunpack.c.l.b16 %v930
        %v3600 = vunpack.c.h.b16 %v930
        %v3601 = vunpack.c.l.b16 %v931
        %v3602 = vunpack.c.h.b16 %v931
        %v3603 = vunpack.c.l.b16 %v932
        %v3604 = vunpack.c.h.b16 %v932
        %v3605 = vunpack.c.l.b16 %v933
        %v3606 = vunpack.c.h.b16 %v933
        %v3607 = vunpack.c.l.b16 %v934
        %v3608 = vunpack.c.h.b16 %v934
        %v3609 = vunpack.c.l.b16 %v935
        %v3610 = vunpack.c.h.b16 %v935
        %v3611 = vunpack.c.l.b16 %v936
        %v3612 = vunpack.c.h.b16 %v936
        %v3613 = vunpack.c.l.b16 %v937
        %v3614 = vunpack.c.h.b16 %v937
        %v3615 = vunpack.c.l.b16 %v938
        %v3616 = vunpack.c.h.b16 %v938
        %v3617 = vunpack.c.l.b16 %v939
        %v3618 = vunpack.c.h.b16 %v939
        %v3619 = vunpack.c.l.b16 %v940
        %v3620 = vunpack.c.h.b16 %v940
        %v3621 = vunpack.c.l.b16 %v941
        %v3622 = vunpack.c.h.b16 %v941
        %v3623 = vunpack.c.l.b16 %v942
        %v3624 = vunpack.c.h.b16 %v942
        %v3625 = vunpack.c.l.b16 %v943
        %v3626 = vunpack.c.h.b16 %v943
        %v3627 = vunpack.c.l.b16 %v944
        %v3628 = vunpack.c.h.b16 %v944
        %v3629 = vunpack.c.l.b16 %v945
        %v3630 = vunpack.c.h.b16 %v945
        %v3631 = vunpack.c.l.b16 %v946
        %v3632 = vunpack.c.h.b16 %v946
        %v3633 = vunpack.c.l.b16 %v947
        %v3634 = vunpack.c.h.b16 %v947
        %v3635 = vunpack.c.l.b16 %v948
        %v3636 = vunpack.c.h.b16 %v948
        %v3637 = vunpack.c.l.b16 %v949
        %v3638 = vunpack.c.h.b16 %v949
        %v3639 = vunpack.c.l.b16 %v950
        %v3640 = vunpack.c.h.b16 %v950
        %v3641 = vunpack.c.l.b16 %v951
        %v3642 = vunpack.c.h.b16 %v951
        %v3643 = vunpack.c.l.b16 %v952
        %v3644 = vunpack.c.h.b16 %v952
        %v3645 = vunpack.c.l.b16 %v953
        %v3646 = vunpack.c.h.b16 %v953
        %v3647 = vunpack.c.l.b16 %v954
        %v3648 = vunpack.c.h.b16 %v954
        %v3649 = vunpack.c.l.b16 %v955
        %v3650 = vunpack.c.h.b16 %v955
        %v3651 = vunpack.c.l.b16 %v956
        %v3652 = vunpack.c.h.b16 %v956
        %v3653 = vunpack.c.l.b16 %v957
        %v3654 = vunpack.c.h.b16 %v957
        %v3655 = vunpack.c.l.b16 %v958
        %v3656 = vunpack.c.h.b16 %v958
        %v3657 = vunpack.c.l.b16 %v959
        %v3658 = vunpack.c.h.b16 %v959
        %v3659 = vunpack.c.l.b16 %v960
        %v3660 = vunpack.c.h.b16 %v960
        %v3661 = vunpack.c.l.b16 %v961
        %v3662 = vunpack.c.h.b16 %v961
        %v3663 = vunpack.c.l.b16 %v962
        %v3664 = vunpack.c.h.b16 %v962
        %v3665 = vunpack.c.l.b16 %v963
        %v3666 = vunpack.c.h.b16 %v963
        %v3667 = vunpack.c.l.b16 %v964
        %v3668 = vunpack.c.h.b16 %v964
        %v3669 = vunpack.c.l.b16 %v965
        %v3670 = vunpack.c.h.b16 %v965
        %v3671 = vunpack.c.l.b16 %v966
        %v3672 = vunpack.c.h.b16 %v966
        %v3673 = vunpack.c.l.b16 %v967
        %v3674 = vunpack.c.h.b16 %v967
        %v3675 = vunpack.c.l.b16 %v968
        %v3676 = vunpack.c.h.b16 %v968
        %v3677 = vunpack.c.l.b16 %v969
        %v3678 = vunpack.c.h.b16 %v969
        %v3679 = vunpack.c.l.b16 %v970
        %v3680 = vunpack.c.h.b16 %v970
        %v3681 = vunpack.c.l.b16 %v971
        %v3682 = vunpack.c.h.b16 %v971
        %v3683 = vunpack.c.l.b16 %v972
        %v3684 = vunpack.c.h.b16 %v972
        %v3685 = vunpack.c.l.b16 %v973
        %v3686 = vunpack.c.h.b16 %v973
        %v3687 = vunpack.c.l.b16 %v974
        %v3688 = vunpack.c.h.b16 %v974
        %v3689 = vunpack.c.l.b16 %v975
        %v3690 = vunpack.c.h.b16 %v975
        %v3691 = vunpack.c.l.b16 %v976
        %v3692 = vunpack.c.h.b16 %v976
        %v3693 = vunpack.c.l.b16 %v977
        %v3694 = vunpack.c.h.b16 %v977
        %v3695 = vunpack.c.l.b16 %v978
        %v3696 = vunpack.c.h.b16 %v978
        %v3697 = vunpack.c.l.b16 %v979
        %v3698 = vunpack.c.h.b16 %v979
        %v3699 = vunpack.c.l.b16 %v980
        %v3700 = vunpack.c.h.b16 %v980
        %v3701 = vunpack.c.l.b16 %v981
        %v3702 = vunpack.c.h.b16 %v981
        %v3703 = vunpack.c.l.b16 %v982
        %v3704 = vunpack.c.h.b16 %v982
        %v3705 = vunpack.c.l.b16 %v983
        %v3706 = vunpack.c.h.b16 %v983
        %v3707 = vunpack.c.l.b16 %v984
        %v3708 = vunpack.c.h.b16 %v984
        %v3709 = vunpack.c.l.b16 %v985
        %v3710 = vunpack.c.h.b16 %v985
        %v3711 = vunpack.c.l.b16 %v986
        %v3712 = vunpack.c.h.b16 %v986
        %v3713 = vunpack.c.l.b16 %v987
        %v3714 = vunpack.c.h.b16 %v987
        %v3715 = vunpack.c.l.b16 %v988
        %v3716 = vunpack.c.h.b16 %v988
        %v3717 = vunpack.c.l.b16 %v989
        %v3718 = vunpack.c.h.b16 %v989
        %v3719 = vunpack.c.l.b16 %v990
        %v3720 = vunpack.c.h.b16 %v990
        %v3721 = vunpack.c.l.b16 %v991
        %v3722 = vunpack.c.h.b16 %v991
        %v3723 = vunpack.c.l.b16 %v992
        %v3724 = vunpack.c.h.b16 %v992
        %v3725 = vunpack.c.l.b16 %v993
        %v3726 = vunpack.c.h.b16 %v993
        %v3727 = vunpack.c.l.b16 %v994
        %v3728 = vunpack.c.h.b16 %v994
        %v3729 = vunpack.c.l.b16 %v995
        %v3730 = vunpack.c.h.b16 %v995
        %v3731 = vunpack.c.l.b16 %v996
        %v3732 = vunpack.c.h.b16 %v996
        %v3733 = vunpack.c.l.b16 %v997
        %v3734 = vunpack.c.h.b16 %v997
        %v3735 = vunpack.c.l.b16 %v998
        %v3736 = vunpack.c.h.b16 %v998
        %v3737 = vunpack.c.l.b16 %v999
        %v3738 = vunpack.c.h.b16 %v999
        %v3739 = vunpack.c.l.b16 %v1000
        %v3740 = vunpack.c.h.b16 %v1000
        %v3741 = vunpack.c.l.b16 %v1001
        %v3742 = vunpack.c.h.b16 %v1001
        %v3743 = vunpack.c.l.b16 %v1002
        %v3744 = vunpack.c.h.b16 %v1002
        %v3745 = vunpack.c.l.b16 %v1003
        %v3746 = vunpack.c.h.b16 %v1003
        %v3747 = vunpack.c.l.b16 %v1004
        %v3748 = vunpack.c.h.b16 %v1004
        %v3749 = vunpack.c.l.b16 %v1005
        %v3750 = vunpack.c.h.b16 %v1005
        %v3751 = vunpack.c.l.b16 %v1006
        %v3752 = vunpack.c.h.b16 %v1006
        %v3753 = vunpack.c.l.b16 %v1007
        %v3754 = vunpack.c.h.b16 %v1007
        %v3755 = vunpack.c.l.b16 %v1008
        %v3756 = vunpack.c.h.b16 %v1008
        %v3757 = vunpack.c.l.b16 %v1009
        %v3758 = vunpack.c.h.b16 %v1009
        %v3759 = vunpack.c.l.b16 %v1010
        %v3760 = vunpack.c.h.b16 %v1010
        %v3761 = vunpack.c.l.b16 %v1011
        %v3762 = vunpack.c.h.b16 %v1011
        %v3763 = vunpack.c.l.b16 %v1012
        %v3764 = vunpack.c.h.b16 %v1012
        %v3765 = vunpack.c.l.b16 %v1013
        %v3766 = vunpack.c.h.b16 %v1013
        %v3767 = vunpack.c.l.b16 %v1014
        %v3768 = vunpack.c.h.b16 %v1014
        %v3769 = vunpack.c.l.b16 %v1015
        %v3770 = vunpack.c.h.b16 %v1015
        %v3771 = vunpack.c.l.b16 %v1016
        %v3772 = vunpack.c.h.b16 %v1016
        %v3773 = vunpack.c.l.b16 %v1017
        %v3774 = vunpack.c.h.b16 %v1017
        %v3775 = vunpack.c.l.b16 %v1018
        %v3776 = vunpack.c.h.b16 %v1018
        %v3777 = vunpack.c.l.b16 %v1019
        %v3778 = vunpack.c.h.b16 %v1019
        %v3779 = vunpack.c.l.b16 %v1020
        %v3780 = vunpack.c.h.b16 %v1020
        %v3781 = vunpack.c.l.b16 %v1021
        %v3782 = vunpack.c.h.b16 %v1021
        %v3783 = vunpack.c.l.b16 %v1022
        %v3784 = vunpack.c.h.b16 %v1022
        %v3785 = vunpack.c.l.b16 %v1023
        %v3786 = vunpack.c.h.b16 %v1023
        %v3787 = vunpack.c.l.b16 %v1024
        %v3788 = vunpack.c.h.b16 %v1024
        %v3789 = vunpack.c.l.b16 %v1025
        %v3790 = vunpack.c.h.b16 %v1025
        %v3791 = vunpack.c.l.b16 %v1026
        %v3792 = vunpack.c.h.b16 %v1026
        %v3793 = vunpack.c.l.b16 %v1027
        %v3794 = vunpack.c.h.b16 %v1027
        %v3795 = vunpack.c.l.b16 %v1028
        %v3796 = vunpack.c.h.b16 %v1028
        %v3797 = vunpack.c.l.b16 %v1029
        %v3798 = vunpack.c.h.b16 %v1029
        %v3799 = vunpack.c.l.b16 %v1030
        %v3800 = vunpack.c.h.b16 %v1030
        %v3801 = vunpack.c.l.b16 %v1031
        %v3802 = vunpack.c.h.b16 %v1031
        %v3803 = vunpack.c.l.b16 %v1032
        %v3804 = vunpack.c.h.b16 %v1032
        %v3805 = vunpack.c.l.b16 %v1033
        %v3806 = vunpack.c.h.b16 %v1033
        %v3807 = vunpack.c.l.b16 %v1034
        %v3808 = vunpack.c.h.b16 %v1034
        %v3809 = vunpack.c.l.b16 %v1035
        %v3810 = vunpack.c.h.b16 %v1035
        %v3811 = vunpack.c.l.b16 %v1036
        %v3812 = vunpack.c.h.b16 %v1036
        %v3813 = vunpack.c.l.b16 %v1037
        %v3814 = vunpack.c.h.b16 %v1037
        %v3815 = vunpack.c.l.b16 %v1038
        %v3816 = vunpack.c.h.b16 %v1038
        %v3817 = vunpack.c.l.b16 %v1039
        %v3818 = vunpack.c.h.b16 %v1039
        %v3819 = vunpack.c.l.b16 %v1040
        %v3820 = vunpack.c.h.b16 %v1040
        %v3821 = vunpack.c.l.b16 %v1041
        %v3822 = vunpack.c.h.b16 %v1041
        %v3823 = vunpack.c.l.b16 %v1042
        %v3824 = vunpack.c.h.b16 %v1042
        %v3825 = vunpack.c.l.b16 %v1043
        %v3826 = vunpack.c.h.b16 %v1043
        %v3827 = vunpack.c.l.b16 %v1044
        %v3828 = vunpack.c.h.b16 %v1044
        %v3829 = vunpack.c.l.b16 %v1045
        %v3830 = vunpack.c.h.b16 %v1045
        %v3831 = vunpack.c.l.b16 %v1046
        %v3832 = vunpack.c.h.b16 %v1046
        %v3833 = vunpack.c.l.b16 %v1047
        %v3834 = vunpack.c.h.b16 %v1047
        %v3835 = vunpack.c.l.b16 %v1048
        %v3836 = vunpack.c.h.b16 %v1048
        %v3837 = vunpack.c.l.b16 %v1049
        %v3838 = vunpack.c.h.b16 %v1049
        %v3839 = vunpack.c.l.b16 %v1050
        %v3840 = vunpack.c.h.b16 %v1050
        %v3841 = vunpack.c.l.b16 %v1051
        %v3842 = vunpack.c.h.b16 %v1051
        %v3843 = vunpack.c.l.b16 %v1052
        %v3844 = vunpack.c.h.b16 %v1052
        %v3845 = vunpack.c.l.b16 %v1053
        %v3846 = vunpack.c.h.b16 %v1053
        %v3847 = vunpack.c.l.b16 %v1054
        %v3848 = vunpack.c.h.b16 %v1054
        %v3849 = vunpack.c.l.b16 %v1055
        %v3850 = vunpack.c.h.b16 %v1055
        %v3851 = vunpack.c.l.b16 %v1056
        %v3852 = vunpack.c.h.b16 %v1056
        %v3853 = vunpack.c.l.b16 %v1057
        %v3854 = vunpack.c.h.b16 %v1057
        %v3855 = vunpack.c.l.b16 %v1058
        %v3856 = vunpack.c.h.b16 %v1058
        %v3857 = vunpack.c.l.b16 %v1059
        %v3858 = vunpack.c.h.b16 %v1059
        %v3859 = vunpack.c.l.b16 %v1060
        %v3860 = vunpack.c.h.b16 %v1060
        %v3861 = vunpack.c.l.b16 %v1061
        %v3862 = vunpack.c.h.b16 %v1061
        %v3863 = vunpack.c.l.b16 %v1062
        %v3864 = vunpack.c.h.b16 %v1062
        %v3865 = vunpack.c.l.b16 %v1063
        %v3866 = vunpack.c.h.b16 %v1063
        %v3867 = vunpack.c.l.b16 %v1064
        %v3868 = vunpack.c.h.b16 %v1064
        %v3869 = vunpack.c.l.b16 %v1065
        %v3870 = vunpack.c.h.b16 %v1065
        %v3871 = vunpack.c.l.b16 %v1066
        %v3872 = vunpack.c.h.b16 %v1066
        %v3873 = vunpack.c.l.b16 %v1067
        %v3874 = vunpack.c.h.b16 %v1067
        %v3875 = vunpack.c.l.b16 %v1068
        %v3876 = vunpack.c.h.b16 %v1068
        %v3877 = vunpack.c.l.b16 %v1069
        %v3878 = vunpack.c.h.b16 %v1069
        %v3879 = vunpack.c.l.b16 %v1070
        %v3880 = vunpack.c.h.b16 %v1070
        %v3881 = vunpack.c.l.b16 %v1071
        %v3882 = vunpack.c.h.b16 %v1071
        %v3883 = vunpack.c.l.b16 %v1072
        %v3884 = vunpack.c.h.b16 %v1072
        %v3885 = vunpack.c.l.b16 %v1073
        %v3886 = vunpack.c.h.b16 %v1073
        %v3887 = vunpack.c.l.b16 %v1074
        %v3888 = vunpack.c.h.b16 %v1074
        %v3889 = vunpack.c.l.b16 %v1075
        %v3890 = vunpack.c.h.b16 %v1075
        %v3891 = vunpack.c.l.b16 %v1076
        %v3892 = vunpack.c.h.b16 %v1076
        %v3893 = vunpack.c.l.b16 %v1077
        %v3894 = vunpack.c.h.b16 %v1077
        %v3895 = vunpack.c.l.b16 %v1078
        %v3896 = vunpack.c.h.b16 %v1078
        %v3897 = vunpack.c.l.b16 %v1079
        %v3898 = vunpack.c.h.b16 %v1079
        %v3899 = vunpack.c.l.b16 %v1080
        %v3900 = vunpack.c.h.b16 %v1080
        %v3901 = vunpack.c.l.b16 %v1081
        %v3902 = vunpack.c.h.b16 %v1081
        %v3903 = vunpack.c.l.b16 %v1082
        %v3904 = vunpack.c.h.b16 %v1082
        %v3905 = vunpack.c.l.b16 %v1083
        %v3906 = vunpack.c.h.b16 %v1083
        %v3907 = vunpack.c.l.b16 %v1084
        %v3908 = vunpack.c.h.b16 %v1084
        %v3909 = vunpack.c.l.b16 %v1085
        %v3910 = vunpack.c.h.b16 %v1085
        %v3911 = vunpack.c.l.b16 %v1086
        %v3912 = vunpack.c.h.b16 %v1086
        %v3913 = vunpack.c.l.b16 %v1087
        %v3914 = vunpack.c.h.b16 %v1087
        %v3915 = vunpack.c.l.b16 %v1088
        %v3916 = vunpack.c.h.b16 %v1088
        %v3917 = vunpack.c.l.b16 %v1089
        %v3918 = vunpack.c.h.b16 %v1089
        %v3919 = vunpack.c.l.b16 %v1090
        %v3920 = vunpack.c.h.b16 %v1090
        %v3921 = vunpack.c.l.b16 %v1091
        %v3922 = vunpack.c.h.b16 %v1091
        %v3923 = vunpack.c.l.b16 %v1092
        %v3924 = vunpack.c.h.b16 %v1092
        %v3925 = vunpack.c.l.b16 %v1093
        %v3926 = vunpack.c.h.b16 %v1093
        %v3927 = vunpack.c.l.b16 %v1094
        %v3928 = vunpack.c.h.b16 %v1094
        %v3929 = vunpack.c.l.b16 %v1095
        %v3930 = vunpack.c.h.b16 %v1095
        %v3931 = vunpack.c.l.b16 %v1096
        %v3932 = vunpack.c.h.b16 %v1096
        %v3933 = vunpack.c.l.b16 %v1097
        %v3934 = vunpack.c.h.b16 %v1097
        %v3935 = vunpack.c.l.b16 %v1098
        %v3936 = vunpack.c.h.b16 %v1098
        %v3937 = vunpack.c.l.b16 %v1099
        %v3938 = vunpack.c.h.b16 %v1099
        %v3939 = vunpack.c.l.b16 %v1100
        %v3940 = vunpack.c.h.b16 %v1100
        %v3941 = vunpack.c.l.b16 %v1101
        %v3942 = vunpack.c.h.b16 %v1101
        %v3943 = vunpack.c.l.b16 %v1102
        %v3944 = vunpack.c.h.b16 %v1102
        %v3945 = vunpack.c.l.b16 %v1103
        %v3946 = vunpack.c.h.b16 %v1103
        %v3947 = vunpack.c.l.b16 %v1104
        %v3948 = vunpack.c.h.b16 %v1104
        %v3949 = vunpack.c.l.b16 %v1105
        %v3950 = vunpack.c.h.b16 %v1105
        %v3951 = vunpack.c.l.b16 %v1106
        %v3952 = vunpack.c.h.b16 %v1106
        %v3953 = vunpack.c.l.b16 %v1107
        %v3954 = vunpack.c.h.b16 %v1107
        %v3955 = vunpack.c.l.b16 %v1108
        %v3956 = vunpack.c.h.b16 %v1108
        %v3957 = vunpack.c.l.b16 %v1109
        %v3958 = vunpack.c.h.b16 %v1109
        %v3959 = vunpack.c.l.b16 %v1110
        %v3960 = vunpack.c.h.b16 %v1110
        %v3961 = vunpack.c.l.b16 %v1111
        %v3962 = vunpack.c.h.b16 %v1111
        %v3963 = vunpack.c.l.b16 %v1112
        %v3964 = vunpack.c.h.b16 %v1112
        %v3965 = vunpack.c.l.b16 %v1113
        %v3966 = vunpack.c.h.b16 %v1113
        %v3967 = vunpack.c.l.b16 %v1114
        %v3968 = vunpack.c.h.b16 %v1114
        %v3969 = vunpack.c.l.b16 %v1115
        %v3970 = vunpack.c.h.b16 %v1115
        %v3971 = vunpack.c.l.b16 %v1116
        %v3972 = vunpack.c.h.b16 %v1116
        %v3973 = vunpack.c.l.b16 %v1117
        %v3974 = vunpack.c.h.b16 %v1117
        %v3975 = vunpack.c.l.b16 %v1118
        %v3976 = vunpack.c.h.b16 %v1118
        %v3977 = vunpack.c.l.b16 %v1119
        %v3978 = vunpack.c.h.b16 %v1119
        %v3979 = vunpack.c.l.b16 %v1120
        %v3980 = vunpack.c.h.b16 %v1120
        %v3981 = vunpack.c.l.b16 %v1121
        %v3982 = vunpack.c.h.b16 %v1121
        %v3983 = vunpack.c.l.b16 %v1122
        %v3984 = vunpack.c.h.b16 %v1122
        %v3985 = vunpack.c.l.b16 %v1123
        %v3986 = vunpack.c.h.b16 %v1123
        %v3987 = vunpack.c.l.b16 %v1124
        %v3988 = vunpack.c.h.b16 %v1124
        %v3989 = vunpack.c.l.b16 %v1125
        %v3990 = vunpack.c.h.b16 %v1125
        %v3991 = vunpack.c.l.b16 %v1126
        %v3992 = vunpack.c.h.b16 %v1126
        %v3993 = vunpack.c.l.b16 %v1127
        %v3994 = vunpack.c.h.b16 %v1127
        %v3995 = vunpack.c.l.b16 %v1128
        %v3996 = vunpack.c.h.b16 %v1128
        %v3997 = vunpack.c.l.b16 %v1129
        %v3998 = vunpack.c.h.b16 %v1129
        %v3999 = vunpack.c.l.b16 %v1130
        %v4000 = vunpack.c.h.b16 %v1130
        %v4001 = vunpack.c.l.b16 %v1131
        %v4002 = vunpack.c.h.b16 %v1131
        %v4003 = vunpack.c.l.b16 %v1132
        %v4004 = vunpack.c.h.b16 %v1132
        %v4005 = vunpack.c.l.b16 %v1133
        %v4006 = vunpack.c.h.b16 %v1133
        %v4007 = vunpack.c.l.b16 %v1134
        %v4008 = vunpack.c.h.b16 %v1134
        %v4009 = vunpack.c.l.b16 %v1135
        %v4010 = vunpack.c.h.b16 %v1135
        %v4011 = vunpack.c.l.b16 %v1136
        %v4012 = vunpack.c.h.b16 %v1136
        %v4013 = vunpack.c.l.b16 %v1137
        %v4014 = vunpack.c.h.b16 %v1137
        %v4015 = vunpack.c.l.b16 %v1138
        %v4016 = vunpack.c.h.b16 %v1138
        %v4017 = vunpack.c.l.b16 %v1139
        %v4018 = vunpack.c.h.b16 %v1139
        %v4019 = vunpack.c.l.b16 %v1140
        %v4020 = vunpack.c.h.b16 %v1140
        %v4021 = vunpack.c.l.b16 %v1141
        %v4022 = vunpack.c.h.b16 %v1141
        %v4023 = vunpack.c.l.b16 %v1142
        %v4024 = vunpack.c.h.b16 %v1142
        %v4025 = vunpack.c.l.b16 %v1143
        %v4026 = vunpack.c.h.b16 %v1143
        %v4027 = vunpack.c.l.b16 %v1144
        %v4028 = vunpack.c.h.b16 %v1144
        %v4029 = vunpack.c.l.b16 %v1145
        %v4030 = vunpack.c.h.b16 %v1145
        %v4031 = vunpack.c.l.b16 %v1146
        %v4032 = vunpack.c.h.b16 %v1146
        %v4033 = vunpack.c.l.b16 %v1147
        %v4034 = vunpack.c.h.b16 %v1147
        %v4035 = vunpack.c.l.b16 %v1148
        %v4036 = vunpack.c.h.b16 %v1148
        %v4037 = vunpack.c.l.b16 %v1149
        %v4038 = vunpack.c.h.b16 %v1149
        %v4039 = vunpack.c.l.b16 %v1150
        %v4040 = vunpack.c.h.b16 %v1150
        %v4041 = vunpack.c.l.b16 %v1151
        %v4042 = vunpack.c.h.b16 %v1151
        %v4043 = vunpack.c.l.b16 %v1152
        %v4044 = vunpack.c.h.b16 %v1152
        %v4045 = vunpack.c.l.b16 %v1153
        %v4046 = vunpack.c.h.b16 %v1153
        %v4047 = vunpack.c.l.b16 %v1154
        %v4048 = vunpack.c.h.b16 %v1154
        %v4049 = vunpack.c.l.b16 %v1155
        %v4050 = vunpack.c.h.b16 %v1155
        %v4051 = vunpack.c.l.b16 %v1156
        %v4052 = vunpack.c.h.b16 %v1156
        %v4053 = vunpack.c.l.b16 %v1157
        %v4054 = vunpack.c.h.b16 %v1157
        %v4055 = vunpack.c.l.b16 %v1158
        %v4056 = vunpack.c.h.b16 %v1158
        %v4057 = vunpack.c.l.b16 %v1159
        %v4058 = vunpack.c.h.b16 %v1159
        %v4059 = vunpack.c.l.b16 %v1160
        %v4060 = vunpack.c.h.b16 %v1160
        %v4061 = vunpack.c.l.b16 %v1161
        %v4062 = vunpack.c.h.b16 %v1161
        %v4063 = vunpack.c.l.b16 %v1162
        %v4064 = vunpack.c.h.b16 %v1162
        %v4065 = vunpack.c.l.b16 %v1163
        %v4066 = vunpack.c.h.b16 %v1163
        %v4067 = vunpack.c.l.b16 %v1164
        %v4068 = vunpack.c.h.b16 %v1164
        %v4069 = vunpack.c.l.b16 %v1165
        %v4070 = vunpack.c.h.b16 %v1165
        %v4071 = vunpack.c.l.b16 %v1166
        %v4072 = vunpack.c.h.b16 %v1166
        %v4073 = vunpack.c.l.b16 %v1167
        %v4074 = vunpack.c.h.b16 %v1167
        %v4075 = vunpack.c.l.b16 %v1168
        %v4076 = vunpack.c.h.b16 %v1168
        %v4077 = vunpack.c.l.b16 %v1169
        %v4078 = vunpack.c.h.b16 %v1169
        %v4079 = vunpack.c.l.b16 %v1170
        %v4080 = vunpack.c.h.b16 %v1170
        %v4081 = vunpack.c.l.b16 %v1171
        %v4082 = vunpack.c.h.b16 %v1171
        %v4083 = vunpack.c.l.b16 %v1172
        %v4084 = vunpack.c.h.b16 %v1172
        %v4085 = vunpack.c.l.b16 %v1173
        %v4086 = vunpack.c.h.b16 %v1173
        %v4087 = vunpack.c.l.b16 %v1174
        %v4088 = vunpack.c.h.b16 %v1174
        %v4089 = vunpack.c.l.b16 %v1175
        %v4090 = vunpack.c.h.b16 %v1175
        %v4091 = vunpack.c.l.b16 %v1176
        %v4092 = vunpack.c.h.b16 %v1176
        %v4093 = vunpack.c.l.b16 %v1177
        %v4094 = vunpack.c.h.b16 %v1177
        %v4095 = vunpack.c.l.b16 %v1178
        %v4096 = vunpack.c.h.b16 %v1178
        %v4097 = vunpack.c.l.b16 %v1179
        %v4098 = vunpack.c.h.b16 %v1179
        %v4099 = vunpack.c.l.b16 %v1180
        %v4100 = vunpack.c.h.b16 %v1180
        %v4101 = vunpack.c.l.b16 %v1181
        %v4102 = vunpack.c.h.b16 %v1181
        %v4103 = vunpack.c.l.b16 %v1182
        %v4104 = vunpack.c.h.b16 %v1182
        %v4105 = vunpack.c.l.b16 %v1183
        %v4106 = vunpack.c.h.b16 %v1183
        %v4107 = vunpack.c.l.b16 %v1184
        %v4108 = vunpack.c.h.b16 %v1184
        %v4109 = vunpack.c.l.b16 %v1185
        %v4110 = vunpack.c.h.b16 %v1185
        %v4111 = vunpack.c.l.b16 %v1186
        %v4112 = vunpack.c.h.b16 %v1186
        %v4113 = vunpack.c.l.b16 %v1187
        %v4114 = vunpack.c.h.b16 %v1187
        %v4115 = vunpack.c.l.b16 %v1188
        %v4116 = vunpack.c.h.b16 %v1188
        %v4117 = vunpack.c.l.b16 %v1189
        %v4118 = vunpack.c.h.b16 %v1189
        %v4119 = vunpack.c.l.b16 %v1190
        %v4120 = vunpack.c.h.b16 %v1190
        %v4121 = vunpack.c.l.b16 %v1191
        %v4122 = vunpack.c.h.b16 %v1191
        %v4123 = vunpack.c.l.b16 %v1192
        %v4124 = vunpack.c.h.b16 %v1192
        %v4125 = vunpack.c.l.b16 %v1193
        %v4126 = vunpack.c.h.b16 %v1193
        %v4127 = vunpack.c.l.b16 %v1194
        %v4128 = vunpack.c.h.b16 %v1194
        %v4129 = vunpack.c.l.b16 %v1195
        %v4130 = vunpack.c.h.b16 %v1195
        %v4131 = vunpack.c.l.b16 %v1196
        %v4132 = vunpack.c.h.b16 %v1196
        %v4133 = vunpack.c.l.b16 %v1197
        %v4134 = vunpack.c.h.b16 %v1197
        %v4135 = vunpack.c.l.b16 %v1198
        %v4136 = vunpack.c.h.b16 %v1198
        %v4137 = vunpack.c.l.b16 %v1199
        %v4138 = vunpack.c.h.b16 %v1199
        %v4139 = vunpack.c.l.b16 %v1200
        %v4140 = vunpack.c.h.b16 %v1200
        %v4141 = vunpack.c.l.b16 %v1201
        %v4142 = vunpack.c.h.b16 %v1201
        %v4143 = vunpack.c.l.b16 %v1202
        %v4144 = vunpack.c.h.b16 %v1202
        %v4145 = vunpack.c.l.b16 %v1203
        %v4146 = vunpack.c.h.b16 %v1203
        %v4147 = vunpack.c.l.b16 %v1204
        %v4148 = vunpack.c.h.b16 %v1204
        %v4149 = vunpack.c.l.b16 %v1205
        %v4150 = vunpack.c.h.b16 %v1205
        %v4151 = vunpack.c.l.b16 %v1206
        %v4152 = vunpack.c.h.b16 %v1206
        %v4153 = vunpack.c.l.b16 %v1207
        %v4154 = vunpack.c.h.b16 %v1207
        %v4155 = vunpack.c.l.b16 %v1208
        %v4156 = vunpack.c.h.b16 %v1208
        %v4157 = vunpack.c.l.b16 %v1209
        %v4158 = vunpack.c.h.b16 %v1209
        %v4159 = vunpack.c.l.b16 %v1210
        %v4160 = vunpack.c.h.b16 %v1210
        %v4161 = vunpack.c.l.b16 %v1211
        %v4162 = vunpack.c.h.b16 %v1211
        %v4163 = vunpack.c.l.b16 %v1212
        %v4164 = vunpack.c.h.b16 %v1212
        %v4165 = vunpack.c.l.b16 %v1213
        %v4166 = vunpack.c.h.b16 %v1213
        %v4167 = vunpack.c.l.b16 %v1214
        %v4168 = vunpack.c.h.b16 %v1214
        %v4169 = vunpack.c.l.b16 %v1215
        %v4170 = vunpack.c.h.b16 %v1215
        %v4171 = vunpack.c.l.b16 %v1216
        %v4172 = vunpack.c.h.b16 %v1216
        %v4173 = vunpack.c.l.b16 %v1217
        %v4174 = vunpack.c.h.b16 %v1217
        %v4175 = vunpack.c.l.b16 %v1218
        %v4176 = vunpack.c.h.b16 %v1218
        %v4177 = vunpack.c.l.b16 %v1219
        %v4178 = vunpack.c.h.b16 %v1219
        %v4179 = vunpack.c.l.b16 %v1220
        %v4180 = vunpack.c.h.b16 %v1220
        %v4181 = vunpack.c.l.b16 %v1221
        %v4182 = vunpack.c.h.b16 %v1221
        %v4183 = vunpack.c.l.b16 %v1222
        %v4184 = vunpack.c.h.b16 %v1222
        %v4185 = vunpack.c.l.b16 %v1223
        %v4186 = vunpack.c.h.b16 %v1223
        %v4187 = vunpack.c.l.b16 %v1224
        %v4188 = vunpack.c.h.b16 %v1224
        %v4189 = vunpack.c.l.b16 %v1225
        %v4190 = vunpack.c.h.b16 %v1225
        %v4191 = vunpack.c.l.b16 %v1226
        %v4192 = vunpack.c.h.b16 %v1226
        %v4193 = vunpack.c.l.b16 %v1227
        %v4194 = vunpack.c.h.b16 %v1227
        %v4195 = vunpack.c.l.b16 %v1228
        %v4196 = vunpack.c.h.b16 %v1228
        %v4197 = vunpack.c.l.b16 %v1229
        %v4198 = vunpack.c.h.b16 %v1229
        %v4199 = vunpack.c.l.b16 %v1230
        %v4200 = vunpack.c.h.b16 %v1230
        %v4201 = vunpack.c.l.b16 %v1231
        %v4202 = vunpack.c.h.b16 %v1231
        %v4203 = vunpack.c.l.b16 %v1232
        %v4204 = vunpack.c.h.b16 %v1232
        %v4205 = vunpack.c.l.b16 %v1233
        %v4206 = vunpack.c.h.b16 %v1233
        %v4207 = vunpack.c.l.b16 %v1234
        %v4208 = vunpack.c.h.b16 %v1234
        %v4209 = vunpack.c.l.b16 %v1235
        %v4210 = vunpack.c.h.b16 %v1235
        %v4211 = vunpack.c.l.b16 %v1236
        %v4212 = vunpack.c.h.b16 %v1236
        %v4213 = vunpack.c.l.b16 %v1237
        %v4214 = vunpack.c.h.b16 %v1237
        %v4215 = vunpack.c.l.b16 %v1238
        %v4216 = vunpack.c.h.b16 %v1238
        %v4217 = vunpack.c.l.b16 %v1239
        %v4218 = vunpack.c.h.b16 %v1239
        %v4219 = vunpack.c.l.b16 %v1240
        %v4220 = vunpack.c.h.b16 %v1240
        %v4221 = vunpack.c.l.b16 %v1241
        %v4222 = vunpack.c.h.b16 %v1241
        %v4223 = vunpack.c.l.b16 %v1242
        %v4224 = vunpack.c.h.b16 %v1242
        %v4225 = vunpack.c.l.b16 %v1243
        %v4226 = vunpack.c.h.b16 %v1243
        %v4227 = vunpack.c.l.b16 %v1244
        %v4228 = vunpack.c.h.b16 %v1244
        %v4229 = vunpack.c.l.b16 %v1245
        %v4230 = vunpack.c.h.b16 %v1245
        %v4231 = vunpack.c.l.b16 %v1246
        %v4232 = vunpack.c.h.b16 %v1246
        %v4233 = vunpack.c.l.b16 %v1247
        %v4234 = vunpack.c.h.b16 %v1247
        %v4235 = vunpack.c.l.b16 %v1248
        %v4236 = vunpack.c.h.b16 %v1248
        %v4237 = vunpack.c.l.b16 %v1249
        %v4238 = vunpack.c.h.b16 %v1249
        %v4239 = vunpack.c.l.b16 %v1250
        %v4240 = vunpack.c.h.b16 %v1250
        %v4241 = vunpack.c.l.b16 %v1251
        %v4242 = vunpack.c.h.b16 %v1251
        %v4243 = vunpack.c.l.b16 %v1252
        %v4244 = vunpack.c.h.b16 %v1252
        %v4245 = vunpack.c.l.b16 %v1253
        %v4246 = vunpack.c.h.b16 %v1253
        %v4247 = vunpack.c.l.b16 %v1254
        %v4248 = vunpack.c.h.b16 %v1254
        %v4249 = vunpack.c.l.b16 %v1255
        %v4250 = vunpack.c.h.b16 %v1255
        %v4251 = vunpack.c.l.b16 %v1256
        %v4252 = vunpack.c.h.b16 %v1256
        %v4253 = vunpack.c.l.b16 %v1257
        %v4254 = vunpack.c.h.b16 %v1257
        %v4255 = vunpack.c.l.b16 %v1258
        %v4256 = vunpack.c.h.b16 %v1258
        %v4257 = vunpack.c.l.b16 %v1259
        %v4258 = vunpack.c.h.b16 %v1259
        %v4259 = vunpack.c.l.b16 %v1260
        %v4260 = vunpack.c.h.b16 %v1260
        %v4261 = vunpack.c.l.b16 %v1261
        %v4262 = vunpack.c.h.b16 %v1261
        %v4263 = vunpack.c.l.b16 %v1262
        %v4264 = vunpack.c.h.b16 %v1262
        %v4265 = vunpack.c.l.b16 %v1263
        %v4266 = vunpack.c.h.b16 %v1263
        %v4267 = vunpack.c.l.b16 %v1264
        %v4268 = vunpack.c.h.b16 %v1264
        %v4269 = vunpack.c.l.b16 %v1265
        %v4270 = vunpack.c.h.b16 %v1265
        %v4271 = vunpack.c.l.b16 %v1266
        %v4272 = vunpack.c.h.b16 %v1266
        %v4273 = vunpack.c.l.b16 %v1267
        %v4274 = vunpack.c.h.b16 %v1267
        %v4275 = vunpack.c.l.b16 %v1268
        %v4276 = vunpack.c.h.b16 %v1268
        %v4277 = vunpack.c.l.b16 %v1269
        %v4278 = vunpack.c.h.b16 %v1269
        %v4279 = vunpack.c.l.b16 %v1270
        %v4280 = vunpack.c.h.b16 %v1270
        %v4281 = vunpack.c.l.b16 %v1271
        %v4282 = vunpack.c.h.b16 %v1271
        %v4283 = vunpack.c.l.b16 %v1272
        %v4284 = vunpack.c.h.b16 %v1272
        %v4285 = vunpack.c.l.b16 %v1273
        %v4286 = vunpack.c.h.b16 %v1273
        %v4287 = vunpack.c.l.b16 %v1274
        %v4288 = vunpack.c.h.b16 %v1274
        %v4289 = vunpack.c.l.b16 %v1275
        %v4290 = vunpack.c.h.b16 %v1275
        %v4291 = vunpack.c.l.b16 %v1276
        %v4292 = vunpack.c.h.b16 %v1276
        %v4293 = vunpack.c.l.b16 %v1277
        %v4294 = vunpack.c.h.b16 %v1277
        %v4295 = vunpack.c.l.b16 %v1278
        %v4296 = vunpack.c.h.b16 %v1278
        %v4297 = vunpack.c.l.b16 %v1279
        %v4298 = vunpack.c.h.b16 %v1279
        %v4299 = vunpack.c.l.b16 %v1280
        %v4300 = vunpack.c.h.b16 %v1280
        %v4301 = vunpack.c.l.b16 %v1281
        %v4302 = vunpack.c.h.b16 %v1281
        %v4303 = vunpack.c.l.b16 %v1282
        %v4304 = vunpack.c.h.b16 %v1282
        %v4305 = vunpack.c.l.b16 %v1283
        %v4306 = vunpack.c.h.b16 %v1283
        %v4307 = vunpack.c.l.b16 %v1284
        %v4308 = vunpack.c.h.b16 %v1284
        %v4309 = vunpack.c.l.b16 %v1285
        %v4310 = vunpack.c.h.b16 %v1285
        %v4311 = vunpack.c.l.b16 %v1286
        %v4312 = vunpack.c.h.b16 %v1286
        %v4313 = vunpack.c.l.b16 %v1287
        %v4314 = vunpack.c.h.b16 %v1287
        %v4315 = vunpack.c.l.b16 %v1288
        %v4316 = vunpack.c.h.b16 %v1288
        %v4317 = vunpack.c.l.b16 %v1289
        %v4318 = vunpack.c.h.b16 %v1289
        %v4319 = vunpack.c.l.b16 %v1290
        %v4320 = vunpack.c.h.b16 %v1290
        %v4321 = vunpack.c.l.b16 %v1291
        %v4322 = vunpack.c.h.b16 %v1291
        %v4323 = vunpack.c.l.b16 %v1292
        %v4324 = vunpack.c.h.b16 %v1292
        %v4325 = vunpack.c.l.b16 %v1293
        %v4326 = vunpack.c.h.b16 %v1293
        %v4327 = vunpack.c.l.b16 %v1294
        %v4328 = vunpack.c.h.b16 %v1294
        %v4329 = vunpack.c.l.b16 %v1295
        %v4330 = vunpack.c.h.b16 %v1295
        %v4331 = vunpack.c.l.b16 %v1296
        %v4332 = vunpack.c.h.b16 %v1296
        %v4333 = vunpack.c.l.b16 %v1297
        %v4334 = vunpack.c.h.b16 %v1297
        %v4335 = vunpack.c.l.b16 %v1298
        %v4336 = vunpack.c.h.b16 %v1298
        %v4337 = vunpack.c.l.b16 %v1299
        %v4338 = vunpack.c.h.b16 %v1299
        %v4339 = vunpack.c.l.b16 %v1300
        %v4340 = vunpack.c.h.b16 %v1300
        %v4341 = vunpack.c.l.b16 %v1301
        %v4342 = vunpack.c.h.b16 %v1301
        %v4343 = vunpack.c.l.b16 %v1302
        %v4344 = vunpack.c.h.b16 %v1302
        %v4345 = vunpack.c.l.b16 %v1303
        %v4346 = vunpack.c.h.b16 %v1303
        %v4347 = vunpack.c.l.b16 %v1304
        %v4348 = vunpack.c.h.b16 %v1304
        %v4349 = vunpack.c.l.b16 %v1305
        %v4350 = vunpack.c.h.b16 %v1305
        %v4351 = vunpack.c.l.b16 %v1306
        %v4352 = vunpack.c.h.b16 %v1306
        %v4353 = vunpack.c.l.b16 %v1307
        %v4354 = vunpack.c.h.b16 %v1307
        %v4355 = vunpack.c.l.b16 %v1308
        %v4356 = vunpack.c.h.b16 %v1308
        %v4357 = vunpack.c.l.b16 %v1309
        %v4358 = vunpack.c.h.b16 %v1309
        %v4359 = vunpack.c.l.b16 %v1310
        %v4360 = vunpack.c.h.b16 %v1310
        %v4361 = vunpack.c.l.b16 %v1311
        %v4362 = vunpack.c.h.b16 %v1311
        %v4363 = vunpack.c.l.b16 %v1312
        %v4364 = vunpack.c.h.b16 %v1312
        %v4365 = vunpack.c.l.b16 %v1313
        %v4366 = vunpack.c.h.b16 %v1313
        %v4367 = vunpack.c.l.b16 %v1314
        %v4368 = vunpack.c.h.b16 %v1314
        %v4369 = vunpack.c.l.b16 %v1315
        %v4370 = vunpack.c.h.b16 %v1315
        %v4371 = vunpack.c.l.b16 %v1316
        %v4372 = vunpack.c.h.b16 %v1316
        %v4373 = vunpack.c.l.b16 %v1317
        %v4374 = vunpack.c.h.b16 %v1317
        %v4375 = vunpack.c.l.b16 %v1318
        %v4376 = vunpack.c.h.b16 %v1318
        %v4377 = vunpack.c.l.b16 %v1319
        %v4378 = vunpack.c.h.b16 %v1319
        %v4379 = vunpack.c.l.b16 %v1320
        %v4380 = vunpack.c.h.b16 %v1320
        %v4381 = vunpack.c.l.b16 %v1321
        %v4382 = vunpack.c.h.b16 %v1321
        %v4383 = vunpack.c.l.b16 %v1322
        %v4384 = vunpack.c.h.b16 %v1322
        %v4385 = vunpack.c.l.b16 %v1323
        %v4386 = vunpack.c.h.b16 %v1323
        %v4387 = vunpack.c.l.b16 %v1324
        %v4388 = vunpack.c.h.b16 %v1324
        %v4389 = vunpack.c.l.b16 %v1325
        %v4390 = vunpack.c.h.b16 %v1325
        %v4391 = vunpack.c.l.b16 %v1326
        %v4392 = vunpack.c.h.b16 %v1326
        %v4393 = vunpack.c.l.b16 %v1327
        %v4394 = vunpack.c.h.b16 %v1327
        %v4395 = vunpack.c.l.b16 %v1328
        %v4396 = vunpack.c.h.b16 %v1328
        %v4397 = vunpack.c.l.b16 %v1329
        %v4398 = vunpack.c.h.b16 %v1329
        %v4399 = vunpack.c.l.b16 %v1330
        %v4400 = vunpack.c.h.b16 %v1330
        %v4401 = vunpack.c.l.b16 %v1331
        %v4402 = vunpack.c.h.b16 %v1331
        %v4403 = vunpack.c.l.b16 %v1332
        %v4404 = vunpack.c.h.b16 %v1332
        %v4405 = vunpack.c.l.b16 %v1333
        %v4406 = vunpack.c.h.b16 %v1333
        %v4407 = vunpack.c.l.b16 %v1334
        %v4408 = vunpack.c.h.b16 %v1334
        %v4409 = vunpack.c.l.b16 %v1335
        %v4410 = vunpack.c.h.b16 %v1335
        %v4411 = vunpack.c.l.b16 %v1336
        %v4412 = vunpack.c.h.b16 %v1336
        %v4413 = vunpack.c.l.b16 %v1337
        %v4414 = vunpack.c.h.b16 %v1337
        %v4415 = vunpack.c.l.b16 %v1338
        %v4416 = vunpack.c.h.b16 %v1338
        %v4417 = vunpack.c.l.b16 %v1339
        %v4418 = vunpack.c.h.b16 %v1339
        %v4419 = vunpack.c.l.b16 %v1340
        %v4420 = vunpack.c.h.b16 %v1340
        %v4421 = vunpack.c.l.b16 %v1341
        %v4422 = vunpack.c.h.b16 %v1341
        %v4423 = vunpack.c.l.b16 %v1342
        %v4424 = vunpack.c.h.b16 %v1342
        %v4425 = vunpack.c.l.b16 %v1343
        %v4426 = vunpack.c.h.b16 %v1343
        %v4427 = vunpack.c.l.b16 %v1344
        %v4428 = vunpack.c.h.b16 %v1344
        %v4429 = vunpack.c.l.b16 %v1345
        %v4430 = vunpack.c.h.b16 %v1345
        %v4431 = vunpack.c.l.b16 %v1346
        %v4432 = vunpack.c.h.b16 %v1346
        %v4433 = vunpack.c.l.b16 %v1347
        %v4434 = vunpack.c.h.b16 %v1347
        %v4435 = vunpack.c.l.b16 %v1348
        %v4436 = vunpack.c.h.b16 %v1348
        %v4437 = vunpack.c.l.b16 %v1349
        %v4438 = vunpack.c.h.b16 %v1349
        %v4439 = vunpack.c.l.b16 %v1350
        %v4440 = vunpack.c.h.b16 %v1350
        %v4441 = vunpack.c.l.b16 %v1351
        %v4442 = vunpack.c.h.b16 %v1351
        %v4443 = vunpack.c.l.b16 %v1352
        %v4444 = vunpack.c.h.b16 %v1352
        %v4445 = vunpack.c.l.b16 %v1353
        %v4446 = vunpack.c.h.b16 %v1353
        %v4447 = vunpack.c.l.b16 %v1354
        %v4448 = vunpack.c.h.b16 %v1354
        %v4449 = vunpack.c.l.b16 %v1355
        %v4450 = vunpack.c.h.b16 %v1355
        %v4451 = vunpack.c.l.b16 %v1356
        %v4452 = vunpack.c.h.b16 %v1356
        %v4453 = vunpack.c.l.b16 %v1357
        %v4454 = vunpack.c.h.b16 %v1357
        %v4455 = vunpack.c.l.b16 %v1358
        %v4456 = vunpack.c.h.b16 %v1358
        %v4457 = vunpack.c.l.b16 %v1359
        %v4458 = vunpack.c.h.b16 %v1359
        %v4459 = vunpack.c.l.b16 %v1360
        %v4460 = vunpack.c.h.b16 %v1360
        %v4461 = vunpack.c.l.b16 %v1361
        %v4462 = vunpack.c.h.b16 %v1361
        %v4463 = vunpack.c.l.b16 %v1362
        %v4464 = vunpack.c.h.b16 %v1362
        %v4465 = vunpack.c.l.b16 %v1363
        %v4466 = vunpack.c.h.b16 %v1363
        %v4467 = vunpack.c.l.b16 %v1364
        %v4468 = vunpack.c.h.b16 %v1364
        %v4469 = vunpack.c.l.b16 %v1365
        %v4470 = vunpack.c.h.b16 %v1365
        %v4471 = vunpack.c.l.b16 %v1366
        %v4472 = vunpack.c.h.b16 %v1366
        %v4473 = vunpack.c.l.b16 %v1367
        %v4474 = vunpack.c.h.b16 %v1367
        %v4475 = vunpack.c.l.b16 %v1368
        %v4476 = vunpack.c.h.b16 %v1368
        %v4477 = vunpack.c.l.b16 %v1369
        %v4478 = vunpack.c.h.b16 %v1369
        %v4479 = vunpack.c.l.b16 %v1370
        %v4480 = vunpack.c.h.b16 %v1370
        %v4481 = vunpack.c.l.b16 %v1371
        %v4482 = vunpack.c.h.b16 %v1371
        %v4483 = vunpack.c.l.b16 %v1372
        %v4484 = vunpack.c.h.b16 %v1372
        %v4485 = vunpack.c.l.b16 %v1373
        %v4486 = vunpack.c.h.b16 %v1373
        %v4487 = vunpack.c.l.b16 %v1374
        %v4488 = vunpack.c.h.b16 %v1374
        %v4489 = vunpack.c.l.b16 %v1375
        %v4490 = vunpack.c.h.b16 %v1375
        %v4491 = vunpack.c.l.b16 %v1376
        %v4492 = vunpack.c.h.b16 %v1376
        %v4493 = vunpack.c.l.b16 %v1377
        %v4494 = vunpack.c.h.b16 %v1377
        %v4495 = vunpack.c.l.b16 %v1378
        %v4496 = vunpack.c.h.b16 %v1378
        %v4497 = vunpack.c.l.b16 %v1379
        %v4498 = vunpack.c.h.b16 %v1379
        %v4499 = vunpack.c.l.b16 %v1380
        %v4500 = vunpack.c.h.b16 %v1380
        %v4501 = vunpack.c.l.b16 %v1381
        %v4502 = vunpack.c.h.b16 %v1381
        %v4503 = vunpack.c.l.b16 %v1382
        %v4504 = vunpack.c.h.b16 %v1382
        %v4505 = vunpack.c.l.b16 %v1383
        %v4506 = vunpack.c.h.b16 %v1383
        %v4507 = vunpack.c.l.b16 %v1384
        %v4508 = vunpack.c.h.b16 %v1384
        %v4509 = vunpack.c.l.b16 %v1385
        %v4510 = vunpack.c.h.b16 %v1385
        %v4511 = vunpack.c.l.b16 %v1386
        %v4512 = vunpack.c.h.b16 %v1386
        %v4513 = vunpack.c.l.b16 %v1387
        %v4514 = vunpack.c.h.b16 %v1387
        %v4515 = vunpack.c.l.b16 %v1388
        %v4516 = vunpack.c.h.b16 %v1388
        %v4517 = vunpack.c.l.b16 %v1389
        %v4518 = vunpack.c.h.b16 %v1389
        %v4519 = vunpack.c.l.b16 %v1390
        %v4520 = vunpack.c.h.b16 %v1390
        %v4521 = vunpack.c.l.b16 %v1391
        %v4522 = vunpack.c.h.b16 %v1391
        %v4523 = vunpack.c.l.b16 %v1392
        %v4524 = vunpack.c.h.b16 %v1392
        %v4525 = vunpack.c.l.b16 %v1393
        %v4526 = vunpack.c.h.b16 %v1393
        %v4527 = vunpack.c.l.b16 %v1394
        %v4528 = vunpack.c.h.b16 %v1394
        %v4529 = vunpack.c.l.b16 %v1395
        %v4530 = vunpack.c.h.b16 %v1395
        %v4531 = vunpack.c.l.b16 %v1396
        %v4532 = vunpack.c.h.b16 %v1396
        %v4533 = vunpack.c.l.b16 %v1397
        %v4534 = vunpack.c.h.b16 %v1397
        %v4535 = vunpack.c.l.b16 %v1398
        %v4536 = vunpack.c.h.b16 %v1398
        %v4537 = vunpack.c.l.b16 %v1399
        %v4538 = vunpack.c.h.b16 %v1399
        %v4539 = vunpack.c.l.b16 %v1400
        %v4540 = vunpack.c.h.b16 %v1400
        %v4541 = vunpack.c.l.b16 %v1401
        %v4542 = vunpack.c.h.b16 %v1401
        %v4543 = vunpack.c.l.b16 %v1402
        %v4544 = vunpack.c.h.b16 %v1402
        %v4545 = vunpack.c.l.b16 %v1403
        %v4546 = vunpack.c.h.b16 %v1403
        %v4547 = vunpack.c.l.b16 %v1404
        %v4548 = vunpack.c.h.b16 %v1404
        %v4549 = vunpack.c.l.b16 %v1405
        %v4550 = vunpack.c.h.b16 %v1405
        %v4551 = vunpack.c.l.b16 %v1406
        %v4552 = vunpack.c.h.b16 %v1406
        %v4553 = vunpack.c.l.b16 %v1407
        %v4554 = vunpack.c.h.b16 %v1407
        %v4555 = vunpack.c.l.b16 %v1408
        %v4556 = vunpack.c.h.b16 %v1408
        %v4557 = vunpack.c.l.b16 %v1409
        %v4558 = vunpack.c.h.b16 %v1409
        %v4559 = vunpack.c.l.b16 %v1410
        %v4560 = vunpack.c.h.b16 %v1410
        %v4561 = vunpack.c.l.b16 %v1411
        %v4562 = vunpack.c.h.b16 %v1411
        %v4563 = vunpack.c.l.b16 %v1412
        %v4564 = vunpack.c.h.b16 %v1412
        %v4565 = vunpack.c.l.b16 %v1413
        %v4566 = vunpack.c.h.b16 %v1413
        %v4567 = vunpack.c.l.b16 %v1414
        %v4568 = vunpack.c.h.b16 %v1414
        %v4569 = vunpack.c.l.b16 %v1415
        %v4570 = vunpack.c.h.b16 %v1415
        %v4571 = vunpack.c.l.b16 %v1416
        %v4572 = vunpack.c.h.b16 %v1416
        %v4573 = vunpack.c.l.b16 %v1417
        %v4574 = vunpack.c.h.b16 %v1417
        %v4575 = vunpack.c.l.b16 %v1418
        %v4576 = vunpack.c.h.b16 %v1418
        %v4577 = vunpack.c.l.b16 %v1419
        %v4578 = vunpack.c.h.b16 %v1419
        %v4579 = vunpack.c.l.b16 %v1420
        %v4580 = vunpack.c.h.b16 %v1420
        %v4581 = vunpack.c.l.b16 %v1421
        %v4582 = vunpack.c.h.b16 %v1421
        %v4583 = vunpack.c.l.b16 %v1422
        %v4584 = vunpack.c.h.b16 %v1422
        %v4585 = vunpack.c.l.b16 %v1423
        %v4586 = vunpack.c.h.b16 %v1423
        %v4587 = vunpack.c.l.b16 %v1424
        %v4588 = vunpack.c.h.b16 %v1424
        %v4589 = vunpack.c.l.b16 %v1425
        %v4590 = vunpack.c.h.b16 %v1425
        %v4591 = vunpack.c.l.b16 %v1426
        %v4592 = vunpack.c.h.b16 %v1426
        %v4593 = vunpack.c.l.b16 %v1427
        %v4594 = vunpack.c.h.b16 %v1427
        %v4595 = vunpack.c.l.b16 %v1428
        %v4596 = vunpack.c.h.b16 %v1428
        %v4597 = vunpack.c.l.b16 %v1429
        %v4598 = vunpack.c.h.b16 %v1429
        %v4599 = vunpack.c.l.b16 %v1430
        %v4600 = vunpack.c.h.b16 %v1430
        %v4601 = vunpack.c.l.b16 %v1431
        %v4602 = vunpack.c.h.b16 %v1431
        %v4603 = vunpack.c.l.b16 %v1432
        %v4604 = vunpack.c.h.b16 %v1432
        %v4605 = vunpack.c.l.b16 %v1433
        %v4606 = vunpack.c.h.b16 %v1433
        %v4607 = vunpack.c.l.b16 %v1434
        %v4608 = vunpack.c.h.b16 %v1434
        %v4609 = vunpack.c.l.b16 %v1435
        %v4610 = vunpack.c.h.b16 %v1435
        %v4611 = vunpack.c.l.b16 %v1436
        %v4612 = vunpack.c.h.b16 %v1436
        %v4613 = vunpack.c.l.b16 %v1437
        %v4614 = vunpack.c.h.b16 %v1437
        %v4615 = vunpack.c.l.b16 %v1438
        %v4616 = vunpack.c.h.b16 %v1438
        %v4617 = vunpack.c.l.b16 %v1439
        %v4618 = vunpack.c.h.b16 %v1439
        %v4619 = vunpack.c.l.b16 %v1440
        %v4620 = vunpack.c.h.b16 %v1440
        %v4621 = vunpack.c.l.b16 %v1441
        %v4622 = vunpack.c.h.b16 %v1441
        %v4623 = vunpack.c.l.b16 %v1442
        %v4624 = vunpack.c.h.b16 %v1442
        %v4625 = vunpack.c.l.b16 %v1443
        %v4626 = vunpack.c.h.b16 %v1443
        %v4627 = vunpack.c.l.b16 %v1444
        %v4628 = vunpack.c.h.b16 %v1444
        %v4629 = vunpack.c.l.b16 %v1445
        %v4630 = vunpack.c.h.b16 %v1445
        %v4631 = vunpack.c.l.b16 %v1446
        %v4632 = vunpack.c.h.b16 %v1446
        %v4633 = vunpack.c.l.b16 %v1447
        %v4634 = vunpack.c.h.b16 %v1447
        %v4635 = vunpack.c.l.b16 %v1448
        %v4636 = vunpack.c.h.b16 %v1448
        %v4637 = vunpack.c.l.b16 %v1449
        %v4638 = vunpack.c.h.b16 %v1449
        %v4639 = vunpack.c.l.b16 %v1450
        %v4640 = vunpack.c.h.b16 %v1450
        %v4641 = vunpack.c.l.b16 %v1451
        %v4642 = vunpack.c.h.b16 %v1451
        %v4643 = vunpack.c.l.b16 %v1452
        %v4644 = vunpack.c.h.b16 %v1452
        %v4645 = vunpack.c.l.b16 %v1453
        %v4646 = vunpack.c.h.b16 %v1453
        %v4647 = vunpack.c.l.b16 %v1454
        %v4648 = vunpack.c.h.b16 %v1454
        %v4649 = vunpack.c.l.b16 %v1455
        %v4650 = vunpack.c.h.b16 %v1455
        %v4651 = vunpack.c.l.b16 %v1456
        %v4652 = vunpack.c.h.b16 %v1456
        %v4653 = vunpack.c.l.b16 %v1457
        %v4654 = vunpack.c.h.b16 %v1457
        %v4655 = vunpack.c.l.b16 %v1458
        %v4656 = vunpack.c.h.b16 %v1458
        %v4657 = vunpack.c.l.b16 %v1459
        %v4658 = vunpack.c.h.b16 %v1459
        %v4659 = vunpack.c.l.b16 %v1460
        %v4660 = vunpack.c.h.b16 %v1460
        %v4661 = vunpack.c.l.b16 %v1461
        %v4662 = vunpack.c.h.b16 %v1461
        %v4663 = vunpack.c.l.b16 %v1462
        %v4664 = vunpack.c.h.b16 %v1462
        %v4665 = vunpack.c.l.b16 %v1463
        %v4666 = vunpack.c.h.b16 %v1463
        %v4667 = vunpack.c.l.b16 %v1464
        %v4668 = vunpack.c.h.b16 %v1464
        %v4669 = vunpack.c.l.b16 %v1465
        %v4670 = vunpack.c.h.b16 %v1465
        %v4671 = vunpack.c.l.b16 %v1466
        %v4672 = vunpack.c.h.b16 %v1466
        %v4673 = vunpack.c.l.b16 %v1467
        %v4674 = vunpack.c.h.b16 %v1467
        %v4675 = vunpack.c.l.b16 %v1468
        %v4676 = vunpack.c.h.b16 %v1468
        %v4677 = vunpack.c.l.b16 %v1469
        %v4678 = vunpack.c.h.b16 %v1469
        %v4679 = vunpack.c.l.b16 %v1470
        %v4680 = vunpack.c.h.b16 %v1470
        %v4681 = vunpack.c.l.b16 %v1471
        %v4682 = vunpack.c.h.b16 %v1471
        %v4683 = vunpack.c.l.b16 %v1472
        %v4684 = vunpack.c.h.b16 %v1472
        %v4685 = vunpack.c.l.b16 %v1473
        %v4686 = vunpack.c.h.b16 %v1473
        %v4687 = vunpack.c.l.b16 %v1474
        %v4688 = vunpack.c.h.b16 %v1474
        %v4689 = vunpack.c.l.b16 %v1475
        %v4690 = vunpack.c.h.b16 %v1475
        %v4691 = vunpack.c.l.b16 %v1476
        %v4692 = vunpack.c.h.b16 %v1476
        %v4693 = vunpack.c.l.b16 %v1477
        %v4694 = vunpack.c.h.b16 %v1477
        %v4695 = vunpack.c.l.b16 %v1478
        %v4696 = vunpack.c.h.b16 %v1478
        %v4697 = vunpack.c.l.b16 %v1479
        %v4698 = vunpack.c.h.b16 %v1479
        %v4699 = vunpack.c.l.b16 %v1480
        %v4700 = vunpack.c.h.b16 %v1480
        %v4701 = vunpack.c.l.b16 %v1481
        %v4702 = vunpack.c.h.b16 %v1481
        %v4703 = vunpack.c.l.b16 %v1482
        %v4704 = vunpack.c.h.b16 %v1482
        %v4705 = vunpack.c.l.b16 %v1483
        %v4706 = vunpack.c.h.b16 %v1483
        %v4707 = vunpack.c.l.b16 %v1484
        %v4708 = vunpack.c.h.b16 %v1484
        %v4709 = vunpack.c.l.b16 %v1485
        %v4710 = vunpack.c.h.b16 %v1485
        %v4711 = vunpack.c.l.b16 %v1486
        %v4712 = vunpack.c.h.b16 %v1486
        %v4713 = vunpack.c.l.b16 %v1487
        %v4714 = vunpack.c.h.b16 %v1487
        %v4715 = vunpack.c.l.b16 %v1488
        %v4716 = vunpack.c.h.b16 %v1488
        %v4717 = vunpack.c.l.b16 %v1489
        %v4718 = vunpack.c.h.b16 %v1489
        %v4719 = vunpack.c.l.b16 %v1490
        %v4720 = vunpack.c.h.b16 %v1490
        %v4721 = vunpack.c.l.b16 %v1491
        %v4722 = vunpack.c.h.b16 %v1491
        %v4723 = vunpack.c.l.b16 %v1492
        %v4724 = vunpack.c.h.b16 %v1492
        %v4725 = vunpack.c.l.b16 %v1493
        %v4726 = vunpack.c.h.b16 %v1493
        %v4727 = vunpack.c.l.b16 %v1494
        %v4728 = vunpack.c.h.b16 %v1494
        %v4729 = vunpack.c.l.b16 %v1495
        %v4730 = vunpack.c.h.b16 %v1495
        %v4731 = vunpack.c.l.b16 %v1496
        %v4732 = vunpack.c.h.b16 %v1496
        %v4733 = vunpack.c.l.b16 %v1497
        %v4734 = vunpack.c.h.b16 %v1497
        %v4735 = vunpack.c.l.b16 %v1498
        %v4736 = vunpack.c.h.b16 %v1498
        %v4737 = vunpack.c.l.b16 %v1499
        %v4738 = vunpack.c.h.b16 %v1499
        %v4739 = vunpack.c.l.b16 %v1500
        %v4740 = vunpack.c.h.b16 %v1500
        %v4741 = vunpack.c.l.b16 %v1501
        %v4742 = vunpack.c.h.b16 %v1501
        %v4743 = vunpack.c.l.b16 %v1502
        %v4744 = vunpack.c.h.b16 %v1502
        %v4745 = vunpack.c.l.b16 %v1503
        %v4746 = vunpack.c.h.b16 %v1503
        %v4747 = vunpack.c.l.b16 %v1504
        %v4748 = vunpack.c.h.b16 %v1504
        %v4749 = vunpack.c.l.b16 %v1505
        %v4750 = vunpack.c.h.b16 %v1505
        %v4751 = vunpack.c.l.b16 %v1506
        %v4752 = vunpack.c.h.b16 %v1506
        %v4753 = vunpack.c.l.b16 %v1507
        %v4754 = vunpack.c.h.b16 %v1507
        %v4755 = vunpack.c.l.b16 %v1508
        %v4756 = vunpack.c.h.b16 %v1508
        %v4757 = vunpack.c.l.b16 %v1509
        %v4758 = vunpack.c.h.b16 %v1509
        %v4759 = vunpack.c.l.b16 %v1510
        %v4760 = vunpack.c.h.b16 %v1510
        %v4761 = vunpack.c.l.b16 %v1511
        %v4762 = vunpack.c.h.b16 %v1511
        %v4763 = vunpack.c.l.b16 %v1512
        %v4764 = vunpack.c.h.b16 %v1512
        %v4765 = vunpack.c.l.b16 %v1513
        %v4766 = vunpack.c.h.b16 %v1513
        %v4767 = vunpack.c.l.b16 %v1514
        %v4768 = vunpack.c.h.b16 %v1514
        %v4769 = vunpack.c.l.b16 %v1515
        %v4770 = vunpack.c.h.b16 %v1515
        %v4771 = vunpack.c.l.b16 %v1516
        %v4772 = vunpack.c.h.b16 %v1516
        %v4773 = vunpack.c.l.b16 %v1517
        %v4774 = vunpack.c.h.b16 %v1517
        %v4775 = vunpack.c.l.b16 %v1518
        %v4776 = vunpack.c.h.b16 %v1518
        %v4777 = vunpack.c.l.b16 %v1519
        %v4778 = vunpack.c.h.b16 %v1519
        %v4779 = vunpack.c.l.b16 %v1520
        %v4780 = vunpack.c.h.b16 %v1520
        %v4781 = vunpack.c.l.b16 %v1521
        %v4782 = vunpack.c.h.b16 %v1521
        %v4783 = vunpack.c.l.b16 %v1522
        %v4784 = vunpack.c.h.b16 %v1522
        %v4785 = vunpack.c.l.b16 %v1523
        %v4786 = vunpack.c.h.b16 %v1523
        %v4787 = vunpack.c.l.b16 %v1524
        %v4788 = vunpack.c.h.b16 %v1524
        %v4789 = vunpack.c.l.b16 %v1525
        %v4790 = vunpack.c.h.b16 %v1525
        %v4791 = vunpack.c.l.b16 %v1526
        %v4792 = vunpack.c.h.b16 %v1526
        %v4793 = vunpack.c.l.b16 %v1527
        %v4794 = vunpack.c.h.b16 %v1527
        %v4795 = vunpack.c.l.b16 %v1528
        %v4796 = vunpack.c.h.b16 %v1528
        %v4797 = vunpack.c.l.b16 %v1529
        %v4798 = vunpack.c.h.b16 %v1529
        %v4799 = vunpack.c.l.b16 %v1530
        %v4800 = vunpack.c.h.b16 %v1530
        %v4801 = vunpack.c.l.b16 %v1531
        %v4802 = vunpack.c.h.b16 %v1531
        %v4803 = vunpack.c.l.b16 %v1532
        %v4804 = vunpack.c.h.b16 %v1532
        %v4805 = vunpack.c.l.b16 %v1533
        %v4806 = vunpack.c.h.b16 %v1533
        %v4807 = vunpack.c.l.b16 %v1534
        %v4808 = vunpack.c.h.b16 %v1534
        %v4809 = vunpack.c.l.b16 %v1535
        %v4810 = vunpack.c.h.b16 %v1535
        %v4811 = vunpack.c.l.b16 %v1536
        %v4812 = vunpack.c.h.b16 %v1536
        %v4813 = vunpack.c.l.b16 %v1537
        %v4814 = vunpack.c.h.b16 %v1537
        %v4815 = vunpack.c.l.b16 %v1538
        %v4816 = vunpack.c.h.b16 %v1538
        %v4817 = vunpack.c.l.b16 %v1539
        %v4818 = vunpack.c.h.b16 %v1539
        %v4819 = vunpack.c.l.b16 %v1540
        %v4820 = vunpack.c.h.b16 %v1540
        %v4821 = vunpack.c.l.b16 %v1541
        %v4822 = vunpack.c.h.b16 %v1541
        %v4823 = vunpack.c.l.b16 %v1542
        %v4824 = vunpack.c.h.b16 %v1542
        %v4825 = vunpack.c.l.b16 %v1543
        %v4826 = vunpack.c.h.b16 %v1543
        %v4827 = vunpack.c.l.b16 %v1544
        %v4828 = vunpack.c.h.b16 %v1544
        %v4829 = vunpack.c.l.b16 %v1545
        %v4830 = vunpack.c.h.b16 %v1545
        %v4831 = vunpack.c.l.b16 %v1546
        %v4832 = vunpack.c.h.b16 %v1546
        %v4833 = vunpack.c.l.b16 %v1547
        %v4834 = vunpack.c.h.b16 %v1547
        %v4835 = vunpack.c.l.b16 %v1548
        %v4836 = vunpack.c.h.b16 %v1548
        %v4837 = vunpack.c.l.b16 %v1549
        %v4838 = vunpack.c.h.b16 %v1549
        %v4839 = vunpack.c.l.b16 %v1550
        %v4840 = vunpack.c.h.b16 %v1550
        %v4841 = vunpack.c.l.b16 %v1551
        %v4842 = vunpack.c.h.b16 %v1551
        %v4843 = vunpack.c.l.b16 %v1552
        %v4844 = vunpack.c.h.b16 %v1552
        %v4845 = vunpack.c.l.b16 %v1553
        %v4846 = vunpack.c.h.b16 %v1553
        %v4847 = vunpack.c.l.b16 %v1554
        %v4848 = vunpack.c.h.b16 %v1554
        %v4849 = vunpack.c.l.b16 %v1555
        %v4850 = vunpack.c.h.b16 %v1555
        %v4851 = vunpack.c.l.b16 %v1556
        %v4852 = vunpack.c.h.b16 %v1556
        %v4853 = vunpack.c.l.b16 %v1557
        %v4854 = vunpack.c.h.b16 %v1557
        %v4855 = vunpack.c.l.b16 %v1558
        %v4856 = vunpack.c.h.b16 %v1558
        %v4857 = vunpack.c.l.b16 %v1559
        %v4858 = vunpack.c.h.b16 %v1559
        %v4859 = vunpack.c.l.b16 %v1560
        %v4860 = vunpack.c.h.b16 %v1560
        %v4861 = vunpack.c.l.b16 %v1561
        %v4862 = vunpack.c.h.b16 %v1561
        %v4863 = vunpack.c.l.b16 %v1562
        %v4864 = vunpack.c.h.b16 %v1562
        %v4865 = vunpack.c.l.b16 %v1563
        %v4866 = vunpack.c.h.b16 %v1563
        %v4867 = vunpack.c.l.b16 %v1564
        %v4868 = vunpack.c.h.b16 %v1564
        %v4869 = vunpack.c.l.b16 %v1565
        %v4870 = vunpack.c.h.b16 %v1565
        %v4871 = vunpack.c.l.b16 %v1566
        %v4872 = vunpack.c.h.b16 %v1566
        %v4873 = vunpack.c.l.b16 %v1567
        %v4874 = vunpack.c.h.b16 %v1567
        %v4875 = vunpack.c.l.b16 %v1568
        %v4876 = vunpack.c.h.b16 %v1568
        %v4877 = vunpack.c.l.b16 %v1569
        %v4878 = vunpack.c.h.b16 %v1569
        %v4879 = vunpack.c.l.b16 %v1570
        %v4880 = vunpack.c.h.b16 %v1570
        %v4881 = vunpack.c.l.b16 %v1571
        %v4882 = vunpack.c.h.b16 %v1571
        %v4883 = vunpack.c.l.b16 %v1572
        %v4884 = vunpack.c.h.b16 %v1572
        %v4885 = vunpack.c.l.b16 %v1573
        %v4886 = vunpack.c.h.b16 %v1573
        %v4887 = vunpack.c.l.b16 %v1574
        %v4888 = vunpack.c.h.b16 %v1574
        %v4889 = vunpack.c.l.b16 %v1575
        %v4890 = vunpack.c.h.b16 %v1575
        %v4891 = vunpack.c.l.b16 %v1576
        %v4892 = vunpack.c.h.b16 %v1576
        %v4893 = vunpack.c.l.b16 %v1577
        %v4894 = vunpack.c.h.b16 %v1577
        %v4895 = vunpack.c.l.b16 %v1578
        %v4896 = vunpack.c.h.b16 %v1578
        %v4897 = vunpack.c.l.b16 %v1579
        %v4898 = vunpack.c.h.b16 %v1579
        %v4899 = vunpack.c.l.b16 %v1580
        %v4900 = vunpack.c.h.b16 %v1580
        %v4901 = vunpack.c.l.b16 %v1581
        %v4902 = vunpack.c.h.b16 %v1581
        %v4903 = vunpack.c.l.b16 %v1582
        %v4904 = vunpack.c.h.b16 %v1582
        %v4905 = vunpack.c.l.b16 %v1583
        %v4906 = vunpack.c.h.b16 %v1583
        %v4907 = vunpack.c.l.b16 %v1584
        %v4908 = vunpack.c.h.b16 %v1584
        %v4909 = vunpack.c.l.b16 %v1585
        %v4910 = vunpack.c.h.b16 %v1585
        %v4911 = vunpack.c.l.b16 %v1586
        %v4912 = vunpack.c.h.b16 %v1586
        %v4913 = vunpack.c.l.b16 %v1587
        %v4914 = vunpack.c.h.b16 %v1587
        %v4915 = vunpack.c.l.b16 %v1588
        %v4916 = vunpack.c.h.b16 %v1588
        %v4917 = vunpack.c.l.b16 %v1589
        %v4918 = vunpack.c.h.b16 %v1589
        %v4919 = vunpack.c.l.b16 %v1590
        %v4920 = vunpack.c.h.b16 %v1590
        %v4921 = vunpack.c.l.b16 %v1591
        %v4922 = vunpack.c.h.b16 %v1591
        %v4923 = vunpack.c.l.b16 %v1592
        %v4924 = vunpack.c.h.b16 %v1592
        %v4925 = vunpack.c.l.b16 %v1593
        %v4926 = vunpack.c.h.b16 %v1593
        %v4927 = vunpack.c.l.b16 %v1594
        %v4928 = vunpack.c.h.b16 %v1594
        %v4929 = vunpack.c.l.b16 %v1595
        %v4930 = vunpack.c.h.b16 %v1595
        %v4931 = vunpack.c.l.b16 %v1596
        %v4932 = vunpack.c.h.b16 %v1596
        %v4933 = vunpack.c.l.b16 %v1597
        %v4934 = vunpack.c.h.b16 %v1597
        %v4935 = vunpack.c.l.b16 %v1598
        %v4936 = vunpack.c.h.b16 %v1598
        %v4937 = vunpack.c.l.b16 %v1599
        %v4938 = vunpack.c.h.b16 %v1599
        %v4939 = vunpack.c.l.b16 %v1600
        %v4940 = vunpack.c.h.b16 %v1600
        %v4941 = vunpack.c.l.b16 %v1601
        %v4942 = vunpack.c.h.b16 %v1601
        %v4943 = vunpack.c.l.b16 %v1602
        %v4944 = vunpack.c.h.b16 %v1602
        %v4945 = vunpack.c.l.b16 %v1603
        %v4946 = vunpack.c.h.b16 %v1603
        %v4947 = vunpack.c.l.b16 %v1604
        %v4948 = vunpack.c.h.b16 %v1604
        %v4949 = vunpack.c.l.b16 %v1605
        %v4950 = vunpack.c.h.b16 %v1605
        %v4951 = vunpack.c.l.b16 %v1606
        %v4952 = vunpack.c.h.b16 %v1606
        %v4953 = vunpack.c.l.b16 %v1607
        %v4954 = vunpack.c.h.b16 %v1607
        %v4955 = vunpack.c.l.b16 %v1608
        %v4956 = vunpack.c.h.b16 %v1608
        %v4957 = vunpack.c.l.b16 %v1609
        %v4958 = vunpack.c.h.b16 %v1609
        %v4959 = vunpack.c.l.b16 %v1610
        %v4960 = vunpack.c.h.b16 %v1610
        %v4961 = vunpack.c.l.b16 %v1611
        %v4962 = vunpack.c.h.b16 %v1611
        %v4963 = vunpack.c.l.b16 %v1612
        %v4964 = vunpack.c.h.b16 %v1612
        %v4965 = vunpack.c.l.b16 %v1613
        %v4966 = vunpack.c.h.b16 %v1613
        %v4967 = vunpack.c.l.b16 %v1614
        %v4968 = vunpack.c.h.b16 %v1614
        %v4969 = vunpack.c.l.b16 %v1615
        %v4970 = vunpack.c.h.b16 %v1615
        %v4971 = vunpack.c.l.b16 %v1616
        %v4972 = vunpack.c.h.b16 %v1616
        %v4973 = vunpack.c.l.b16 %v1617
        %v4974 = vunpack.c.h.b16 %v1617
        %v4975 = vunpack.c.l.b16 %v1618
        %v4976 = vunpack.c.h.b16 %v1618
        %v4977 = vunpack.c.l.b16 %v1619
        %v4978 = vunpack.c.h.b16 %v1619
        %v4979 = vunpack.c.l.b16 %v1620
        %v4980 = vunpack.c.h.b16 %v1620
        %v4981 = vunpack.c.l.b16 %v1621
        %v4982 = vunpack.c.h.b16 %v1621
        %v4983 = vunpack.c.l.b16 %v1622
        %v4984 = vunpack.c.h.b16 %v1622
        %v4985 = vunpack.c.l.b16 %v1623
        %v4986 = vunpack.c.h.b16 %v1623
        %v4987 = vunpack.c.l.b16 %v1624
        %v4988 = vunpack.c.h.b16 %v1624
        %v4989 = vunpack.c.l.b16 %v1625
        %v4990 = vunpack.c.h.b16 %v1625
        %v4991 = vunpack.c.l.b16 %v1626
        %v4992 = vunpack.c.h.b16 %v1626
        %v4993 = vunpack.c.l.b16 %v1627
        %v4994 = vunpack.c.h.b16 %v1627
        %v4995 = vunpack.c.l.b16 %v1628
        %v4996 = vunpack.c.h.b16 %v1628
        %v4997 = vunpack.c.l.b16 %v1629
        %v4998 = vunpack.c.h.b16 %v1629
        %v4999 = vunpack.c.l.b16 %v1630
        %v5000 = vunpack.c.h.b16 %v1630
        %v5001 = vunpack.c.l.b16 %v1631
        %v5002 = vunpack.c.h.b16 %v1631
        %v5003 = vunpack.c.l.b16 %v1632
        %v5004 = vunpack.c.h.b16 %v1632
        %v5005 = vunpack.c.l.b16 %v1633
        %v5006 = vunpack.c.h.b16 %v1633
        %v5007 = vunpack.c.l.b16 %v1634
        %v5008 = vunpack.c.h.b16 %v1634
        %v5009 = vunpack.c.l.b16 %v1635
        %v5010 = vunpack.c.h.b16 %v1635
        %v5011 = vunpack.c.l.b16 %v1636
        %v5012 = vunpack.c.h.b16 %v1636
        %v5013 = vunpack.c.l.b16 %v1637
        %v5014 = vunpack.c.h.b16 %v1637
        %v5015 = vunpack.c.l.b16 %v1638
        %v5016 = vunpack.c.h.b16 %v1638
        %v5017 = vunpack.c.l.b16 %v1639
        %v5018 = vunpack.c.h.b16 %v1639
        %v5019 = vunpack.c.l.b16 %v1640
        %v5020 = vunpack.c.h.b16 %v1640
        %v5021 = vunpack.c.l.b16 %v1641
        %v5022 = vunpack.c.h.b16 %v1641
        %v5023 = vunpack.c.l.b16 %v1642
        %v5024 = vunpack.c.h.b16 %v1642
        %v5025 = vunpack.c.l.b16 %v1643
        %v5026 = vunpack.c.h.b16 %v1643
        %v5027 = vunpack.c.l.b16 %v1644
        %v5028 = vunpack.c.h.b16 %v1644
        %v5029 = vunpack.c.l.b16 %v1645
        %v5030 = vunpack.c.h.b16 %v1645
        %v5031 = vpack.c.b16 %v2811, %v2791
        %v5032 = vpack.c.b16 %v2812, %v2792
        %v5033 = vpack.c.b16 %v2813, %v2793
        %v5034 = vpack.c.b16 %v2814, %v2794
        %v5035 = vpack.c.b16 %v2815, %v2795
        %v5036 = vpack.c.b16 %v2816, %v2796
        %v5037 = vpack.c.b16 %v2817, %v2797
        %v5038 = vpack.c.b16 %v2818, %v2798
        %v5039 = vpack.c.b16 %v2819, %v2799
        %v5040 = vpack.c.b16 %v2820, %v2800
        %v5041 = vpack.c.b16 %v2821, %v2801
        %v5042 = vpack.c.b16 %v2822, %v2802
        %v5043 = vpack.c.b16 %v2823, %v2803
        %v5044 = vpack.c.b16 %v2824, %v2804
        %v5045 = vpack.c.b16 %v2825, %v2805
        %v5046 = vpack.c.b16 %v2826, %v2806
        %v5047 = vpack.c.b16 %v2827, %v2807
        %v5048 = vpack.c.b16 %v2828, %v2808
        %v5049 = vpack.c.b16 %v2829, %v2809
        %v5050 = vpack.c.b16 %v2830, %v2810
        %v5051 = vpack.c.b16 %v2851, %v2831
        %v5052 = vpack.c.b16 %v2852, %v2832
        %v5053 = vpack.c.b16 %v2853, %v2833
        %v5054 = vpack.c.b16 %v2854, %v2834
        %v5055 = vpack.c.b16 %v2855, %v2835
        %v5056 = vpack.c.b16 %v2856, %v2836
        %v5057 = vpack.c.b16 %v2857, %v2837
        %v5058 = vpack.c.b16 %v2858, %v2838
        %v5059 = vpack.c.b16 %v2859, %v2839
        %v5060 = vpack.c.b16 %v2860, %v2840
        %v5061 = vpack.c.b16 %v2861, %v2841
        %v5062 = vpack.c.b16 %v2862, %v2842
        %v5063 = vpack.c.b16 %v2863, %v2843
        %v5064 = vpack.c.b16 %v2864, %v2844
        %v5065 = vpack.c.b16 %v2865, %v2845
        %v5066 = vpack.c.b16 %v2866, %v2846
        %v5067 = vpack.c.b16 %v2867, %v2847
        %v5068 = vpack.c.b16 %v2868, %v2848
        %v5069 = vpack.c.b16 %v2869, %v2849
        %v5070 = vpack.c.b16 %v2870, %v2850
        %v5071 = vpack.c.b16 %v2891, %v2871
        %v5072 = vpack.c.b16 %v2892, %v2872
        %v5073 = vpack.c.b16 %v2893, %v2873
        %v5074 = vpack.c.b16 %v2894, %v2874
        %v5075 = vpack.c.b16 %v2895, %v2875
        %v5076 = vpack.c.b16 %v2896, %v2876
        %v5077 = vpack.c.b16 %v2897, %v2877
        %v5078 = vpack.c.b16 %v2898, %v2878
        %v5079 = vpack.c.b16 %v2899, %v2879
        %v5080 = vpack.c.b16 %v2900, %v2880
        %v5081 = vpack.c.b16 %v2901, %v2881
        %v5082 = vpack.c.b16 %v2902, %v2882
        %v5083 = vpack.c.b16 %v2903, %v2883
        %v5084 = vpack.c.b16 %v2904, %v2884
        %v5085 = vpack.c.b16 %v2905, %v2885
        %v5086 = vpack.c.b16 %v2906, %v2886
        %v5087 = vpack.c.b16 %v2907, %v2887
        %v5088 = vpack.c.b16 %v2908, %v2888
        %v5089 = vpack.c.b16 %v2909, %v2889
        %v5090 = vpack.c.b16 %v2910, %v2890
        %v5091 = vpack.c.b16 %v2931, %v2911
        %v5092 = vpack.c.b16 %v2932, %v2912
        %v5093 = vpack.c.b16 %v2933, %v2913
        %v5094 = vpack.c.b16 %v2934, %v2914
        %v5095 = vpack.c.b16 %v2935, %v2915
        %v5096 = vpack.c.b16 %v2936, %v2916
        %v5097 = vpack.c.b16 %v2937, %v2917
        %v5098 = vpack.c.b16 %v2938, %v2918
        %v5099 = vpack.c.b16 %v2939, %v2919
        %v5100 = vpack.c.b16 %v2940, %v2920
        %v5101 = vpack.c.b16 %v2941, %v2921
        %v5102 = vpack.c.b16 %v2942, %v2922
        %v5103 = vpack.c.b16 %v2943, %v2923
        %v5104 = vpack.c.b16 %v2944, %v2924
        %v5105 = vpack.c.b16 %v2945, %v2925
        %v5106 = vpack.c.b16 %v2946, %v2926
        %v5107 = vpack.c.b16 %v2947, %v2927
        %v5108 = vpack.c.b16 %v2948, %v2928
        %v5109 = vpack.c.b16 %v2949, %v2929
        %v5110 = vpack.c.b16 %v2950, %v2930
        %v5111 = vpack.c.b16 %v2971, %v2951
        %v5112 = vpack.c.b16 %v2972, %v2952
        %v5113 = vpack.c.b16 %v2973, %v2953
        %v5114 = vpack.c.b16 %v2974, %v2954
        %v5115 = vpack.c.b16 %v2975, %v2955
        %v5116 = vpack.c.b16 %v2976, %v2956
        %v5117 = vpack.c.b16 %v2977, %v2957
        %v5118 = vpack.c.b16 %v2978, %v2958
        %v5119 = vpack.c.b16 %v2979, %v2959
        %v5120 = vpack.c.b16 %v2980, %v2960
        %v5121 = vpack.c.b16 %v2981, %v2961
        %v5122 = vpack.c.b16 %v2982, %v2962
        %v5123 = vpack.c.b16 %v2983, %v2963
        %v5124 = vpack.c.b16 %v2984, %v2964
        %v5125 = vpack.c.b16 %v2985, %v2965
        %v5126 = vpack.c.b16 %v2986, %v2966
        %v5127 = vpack.c.b16 %v2987, %v2967
        %v5128 = vpack.c.b16 %v2988, %v2968
        %v5129 = vpack.c.b16 %v2989, %v2969
        %v5130 = vpack.c.b16 %v2990, %v2970
        %v5131 = vpack.c.b16 %v3011, %v2991
        %v5132 = vpack.c.b16 %v3012, %v2992
        %v5133 = vpack.c.b16 %v3013, %v2993
        %v5134 = vpack.c.b16 %v3014, %v2994
        %v5135 = vpack.c.b16 %v3015, %v2995
        %v5136 = vpack.c.b16 %v3016, %v2996
        %v5137 = vpack.c.b16 %v3017, %v2997
        %v5138 = vpack.c.b16 %v3018, %v2998
        %v5139 = vpack.c.b16 %v3019, %v2999
        %v5140 = vpack.c.b16 %v3020, %v3000
        %v5141 = vpack.c.b16 %v3021, %v3001
        %v5142 = vpack.c.b16 %v3022, %v3002
        %v5143 = vpack.c.b16 %v3023, %v3003
        %v5144 = vpack.c.b16 %v3024, %v3004
        %v5145 = vpack.c.b16 %v3025, %v3005
        %v5146 = vpack.c.b16 %v3026, %v3006
        %v5147 = vpack.c.b16 %v3027, %v3007
        %v5148 = vpack.c.b16 %v3028, %v3008
        %v5149 = vpack.c.b16 %v3029, %v3009
        %v5150 = vpack.c.b16 %v3030, %v3010
        %v5151 = vpack.c.b16 %v3051, %v3031
        %v5152 = vpack.c.b16 %v3052, %v3032
        %v5153 = vpack.c.b16 %v3053, %v3033
        %v5154 = vpack.c.b16 %v3054, %v3034
        %v5155 = vpack.c.b16 %v3055, %v3035
        %v5156 = vpack.c.b16 %v3056, %v3036
        %v5157 = vpack.c.b16 %v3057, %v3037
        %v5158 = vpack.c.b16 %v3058, %v3038
        %v5159 = vpack.c.b16 %v3059, %v3039
        %v5160 = vpack.c.b16 %v3060, %v3040
        %v5161 = vpack.c.b16 %v3061, %v3041
        %v5162 = vpack.c.b16 %v3062, %v3042
        %v5163 = vpack.c.b16 %v3063, %v3043
        %v5164 = vpack.c.b16 %v3064, %v3044
        %v5165 = vpack.c.b16 %v3065, %v3045
        %v5166 = vpack.c.b16 %v3066, %v3046
        %v5167 = vpack.c.b16 %v3067, %v3047
        %v5168 = vpack.c.b16 %v3068, %v3048
        %v5169 = vpack.c.b16 %v3069, %v3049
        %v5170 = vpack.c.b16 %v3070, %v3050
        %v5171 = vpack.c.b16 %v3091, %v3071
        %v5172 = vpack.c.b16 %v3092, %v3072
        %v5173 = vpack.c.b16 %v3093, %v3073
        %v5174 = vpack.c.b16 %v3094, %v3074
        %v5175 = vpack.c.b16 %v3095, %v3075
        %v5176 = vpack.c.b16 %v3096, %v3076
        %v5177 = vpack.c.b16 %v3097, %v3077
        %v5178 = vpack.c.b16 %v3098, %v3078
        %v5179 = vpack.c.b16 %v3099, %v3079
        %v5180 = vpack.c.b16 %v3100, %v3080
        %v5181 = vpack.c.b16 %v3101, %v3081
        %v5182 = vpack.c.b16 %v3102, %v3082
        %v5183 = vpack.c.b16 %v3103, %v3083
        %v5184 = vpack.c.b16 %v3104, %v3084
        %v5185 = vpack.c.b16 %v3105, %v3085
        %v5186 = vpack.c.b16 %v3106, %v3086
        %v5187 = vpack.c.b16 %v3107, %v3087
        %v5188 = vpack.c.b16 %v3108, %v3088
        %v5189 = vpack.c.b16 %v3109, %v3089
        %v5190 = vpack.c.b16 %v3110, %v3090
        %v5191 = vpack.c.b16 %v3131, %v3111
        %v5192 = vpack.c.b16 %v3132, %v3112
        %v5193 = vpack.c.b16 %v3133, %v3113
        %v5194 = vpack.c.b16 %v3134, %v3114
        %v5195 = vpack.c.b16 %v3135, %v3115
        %v5196 = vpack.c.b16 %v3136, %v3116
        %v5197 = vpack.c.b16 %v3137, %v3117
        %v5198 = vpack.c.b16 %v3138, %v3118
        %v5199 = vpack.c.b16 %v3139, %v3119
        %v5200 = vpack.c.b16 %v3140, %v3120
        %v5201 = vpack.c.b16 %v3141, %v3121
        %v5202 = vpack.c.b16 %v3142, %v3122
        %v5203 = vpack.c.b16 %v3143, %v3123
        %v5204 = vpack.c.b16 %v3144, %v3124
        %v5205 = vpack.c.b16 %v3145, %v3125
        %v5206 = vpack.c.b16 %v3146, %v3126
        %v5207 = vpack.c.b16 %v3147, %v3127
        %v5208 = vpack.c.b16 %v3148, %v3128
        %v5209 = vpack.c.b16 %v3149, %v3129
        %v5210 = vpack.c.b16 %v3150, %v3130
        %v5211 = vpack.c.b16 %v3171, %v3151
        %v5212 = vpack.c.b16 %v3172, %v3152
        %v5213 = vpack.c.b16 %v3173, %v3153
        %v5214 = vpack.c.b16 %v3174, %v3154
        %v5215 = vpack.c.b16 %v3175, %v3155
        %v5216 = vpack.c.b16 %v3176, %v3156
        %v5217 = vpack.c.b16 %v3177, %v3157
        %v5218 = vpack.c.b16 %v3178, %v3158
        %v5219 = vpack.c.b16 %v3179, %v3159
        %v5220 = vpack.c.b16 %v3180, %v3160
        %v5221 = vpack.c.b16 %v3181, %v3161
        %v5222 = vpack.c.b16 %v3182, %v3162
        %v5223 = vpack.c.b16 %v3183, %v3163
        %v5224 = vpack.c.b16 %v3184, %v3164
        %v5225 = vpack.c.b16 %v3185, %v3165
        %v5226 = vpack.c.b16 %v3186, %v3166
        %v5227 = vpack.c.b16 %v3187, %v3167
        %v5228 = vpack.c.b16 %v3188, %v3168
        %v5229 = vpack.c.b16 %v3189, %v3169
        %v5230 = vpack.c.b16 %v3190, %v3170
        %v5231 = vpack.c.b16 %v3211, %v3191
        %v5232 = vpack.c.b16 %v3212, %v3192
        %v5233 = vpack.c.b16 %v3213, %v3193
        %v5234 = vpack.c.b16 %v3214, %v3194
        %v5235 = vpack.c.b16 %v3215, %v3195
        %v5236 = vpack.c.b16 %v3216, %v3196
        %v5237 = vpack.c.b16 %v3217, %v3197
        %v5238 = vpack.c.b16 %v3218, %v3198
        %v5239 = vpack.c.b16 %v3219, %v3199
        %v5240 = vpack.c.b16 %v3220, %v3200
        %v5241 = vpack.c.b16 %v3221, %v3201
        %v5242 = vpack.c.b16 %v3222, %v3202
        %v5243 = vpack.c.b16 %v3223, %v3203
        %v5244 = vpack.c.b16 %v3224, %v3204
        %v5245 = vpack.c.b16 %v3225, %v3205
        %v5246 = vpack.c.b16 %v3226, %v3206
        %v5247 = vpack.c.b16 %v3227, %v3207
        %v5248 = vpack.c.b16 %v3228, %v3208
        %v5249 = vpack.c.b16 %v3229, %v3209
        %v5250 = vpack.c.b16 %v3230, %v3210
        %v5251 = vpack.c.b16 %v3251, %v3231
        %v5252 = vpack.c.b16 %v3252, %v3232
        %v5253 = vpack.c.b16 %v3253, %v3233
        %v5254 = vpack.c.b16 %v3254, %v3234
        %v5255 = vpack.c.b16 %v3255, %v3235
        %v5256 = vpack.c.b16 %v3256, %v3236
        %v5257 = vpack.c.b16 %v3257, %v3237
        %v5258 = vpack.c.b16 %v3258, %v3238
        %v5259 = vpack.c.b16 %v3259, %v3239
        %v5260 = vpack.c.b16 %v3260, %v3240
        %v5261 = vpack.c.b16 %v3261, %v3241
        %v5262 = vpack.c.b16 %v3262, %v3242
        %v5263 = vpack.c.b16 %v3263, %v3243
        %v5264 = vpack.c.b16 %v3264, %v3244
        %v5265 = vpack.c.b16 %v3265, %v3245
        %v5266 = vpack.c.b16 %v3266, %v3246
        %v5267 = vpack.c.b16 %v3267, %v3247
        %v5268 = vpack.c.b16 %v3268, %v3248
        %v5269 = vpack.c.b16 %v3269, %v3249
        %v5270 = vpack.c.b16 %v3270, %v3250
        %v5271 = vpack.c.b16 %v3291, %v3271
        %v5272 = vpack.c.b16 %v3292, %v3272
        %v5273 = vpack.c.b16 %v3293, %v3273
        %v5274 = vpack.c.b16 %v3294, %v3274
        %v5275 = vpack.c.b16 %v3295, %v3275
        %v5276 = vpack.c.b16 %v3296, %v3276
        %v5277 = vpack.c.b16 %v3297, %v3277
        %v5278 = vpack.c.b16 %v3298, %v3278
        %v5279 = vpack.c.b16 %v3299, %v3279
        %v5280 = vpack.c.b16 %v3300, %v3280
        %v5281 = vpack.c.b16 %v3301, %v3281
        %v5282 = vpack.c.b16 %v3302, %v3282
        %v5283 = vpack.c.b16 %v3303, %v3283
        %v5284 = vpack.c.b16 %v3304, %v3284
        %v5285 = vpack.c.b16 %v3305, %v3285
        %v5286 = vpack.c.b16 %v3306, %v3286
        %v5287 = vpack.c.b16 %v3307, %v3287
        %v5288 = vpack.c.b16 %v3308, %v3288
        %v5289 = vpack.c.b16 %v3309, %v3289
        %v5290 = vpack.c.b16 %v3310, %v3290
        %v5291 = vpack.c.b16 %v3331, %v3311
        %v5292 = vpack.c.b16 %v3332, %v3312
        %v5293 = vpack.c.b16 %v3333, %v3313
        %v5294 = vpack.c.b16 %v3334, %v3314
        %v5295 = vpack.c.b16 %v3335, %v3315
        %v5296 = vpack.c.b16 %v3336, %v3316
        %v5297 = vpack.c.b16 %v3337, %v3317
        %v5298 = vpack.c.b16 %v3338, %v3318
        %v5299 = vpack.c.b16 %v3339, %v3319
        %v5300 = vpack.c.b16 %v3340, %v3320
        %v5301 = vpack.c.b16 %v3341, %v3321
        %v5302 = vpack.c.b16 %v3342, %v3322
        %v5303 = vpack.c.b16 %v3343, %v3323
        %v5304 = vpack.c.b16 %v3344, %v3324
        %v5305 = vpack.c.b16 %v3345, %v3325
        %v5306 = vpack.c.b16 %v3346, %v3326
        %v5307 = vpack.c.b16 %v3347, %v3327
        %v5308 = vpack.c.b16 %v3348, %v3328
        %v5309 = vpack.c.b16 %v3349, %v3329
        %v5310 = vpack.c.b16 %v3350, %v3330
        %v5311 = vpack.c.b16 %v3371, %v3351
        %v5312 = vpack.c.b16 %v3372, %v3352
        %v5313 = vpack.c.b16 %v3373, %v3353
        %v5314 = vpack.c.b16 %v3374, %v3354
        %v5315 = vpack.c.b16 %v3375, %v3355
        %v5316 = vpack.c.b16 %v3376, %v3356
        %v5317 = vpack.c.b16 %v3377, %v3357
        %v5318 = vpack.c.b16 %v3378, %v3358
        %v5319 = vpack.c.b16 %v3379, %v3359
        %v5320 = vpack.c.b16 %v3380, %v3360
        %v5321 = vpack.c.b16 %v3381, %v3361
        %v5322 = vpack.c.b16 %v3382, %v3362
        %v5323 = vpack.c.b16 %v3383, %v3363
        %v5324 = vpack.c.b16 %v3384, %v3364
        %v5325 = vpack.c.b16 %v3385, %v3365
        %v5326 = vpack.c.b16 %v3386, %v3366
        %v5327 = vpack.c.b16 %v3387, %v3367
        %v5328 = vpack.c.b16 %v3388, %v3368
        %v5329 = vpack.c.b16 %v3389, %v3369
        %v5330 = vpack.c.b16 %v3390, %v3370
        %v5331 = vpack.c.b16 %v3411, %v3391
        %v5332 = vpack.c.b16 %v3412, %v3392
        %v5333 = vpack.c.b16 %v3413, %v3393
        %v5334 = vpack.c.b16 %v3414, %v3394
        %v5335 = vpack.c.b16 %v3415, %v3395
        %v5336 = vpack.c.b16 %v3416, %v3396
        %v5337 = vpack.c.b16 %v3417, %v3397
        %v5338 = vpack.c.b16 %v3418, %v3398
        %v5339 = vpack.c.b16 %v3419, %v3399
        %v5340 = vpack.c.b16 %v3420, %v3400
        %v5341 = vpack.c.b16 %v3421, %v3401
        %v5342 = vpack.c.b16 %v3422, %v3402
        %v5343 = vpack.c.b16 %v3423, %v3403
        %v5344 = vpack.c.b16 %v3424, %v3404
        %v5345 = vpack.c.b16 %v3425, %v3405
        %v5346 = vpack.c.b16 %v3426, %v3406
        %v5347 = vpack.c.b16 %v3427, %v3407
        %v5348 = vpack.c.b16 %v3428, %v3408
        %v5349 = vpack.c.b16 %v3429, %v3409
        %v5350 = vpack.c.b16 %v3430, %v3410
        %v5351 = vpack.c.b16 %v3451, %v3431
        %v5352 = vpack.c.b16 %v3452, %v3432
        %v5353 = vpack.c.b16 %v3453, %v3433
        %v5354 = vpack.c.b16 %v3454, %v3434
        %v5355 = vpack.c.b16 %v3455, %v3435
        %v5356 = vpack.c.b16 %v3456, %v3436
        %v5357 = vpack.c.b16 %v3457, %v3437
        %v5358 = vpack.c.b16 %v3458, %v3438
        %v5359 = vpack.c.b16 %v3459, %v3439
        %v5360 = vpack.c.b16 %v3460, %v3440
        %v5361 = vpack.c.b16 %v3461, %v3441
        %v5362 = vpack.c.b16 %v3462, %v3442
        %v5363 = vpack.c.b16 %v3463, %v3443
        %v5364 = vpack.c.b16 %v3464, %v3444
        %v5365 = vpack.c.b16 %v3465, %v3445
        %v5366 = vpack.c.b16 %v3466, %v3446
        %v5367 = vpack.c.b16 %v3467, %v3447
        %v5368 = vpack.c.b16 %v3468, %v3448
        %v5369 = vpack.c.b16 %v3469, %v3449
        %v5370 = vpack.c.b16 %v3470, %v3450
        %v5371 = vpack.c.b16 %v3491, %v3471
        %v5372 = vpack.c.b16 %v3492, %v3472
        %v5373 = vpack.c.b16 %v3493, %v3473
        %v5374 = vpack.c.b16 %v3494, %v3474
        %v5375 = vpack.c.b16 %v3495, %v3475
        %v5376 = vpack.c.b16 %v3496, %v3476
        %v5377 = vpack.c.b16 %v3497, %v3477
        %v5378 = vpack.c.b16 %v3498, %v3478
        %v5379 = vpack.c.b16 %v3499, %v3479
        %v5380 = vpack.c.b16 %v3500, %v3480
        %v5381 = vpack.c.b16 %v3501, %v3481
        %v5382 = vpack.c.b16 %v3502, %v3482
        %v5383 = vpack.c.b16 %v3503, %v3483
        %v5384 = vpack.c.b16 %v3504, %v3484
        %v5385 = vpack.c.b16 %v3505, %v3485
        %v5386 = vpack.c.b16 %v3506, %v3486
        %v5387 = vpack.c.b16 %v3507, %v3487
        %v5388 = vpack.c.b16 %v3508, %v3488
        %v5389 = vpack.c.b16 %v3509, %v3489
        %v5390 = vpack.c.b16 %v3510, %v3490
        %v5391 = vpack.c.b16 %v3531, %v3511
        %v5392 = vpack.c.b16 %v3532, %v3512
        %v5393 = vpack.c.b16 %v3533, %v3513
        %v5394 = vpack.c.b16 %v3534, %v3514
        %v5395 = vpack.c.b16 %v3535, %v3515
        %v5396 = vpack.c.b16 %v3536, %v3516
        %v5397 = vpack.c.b16 %v3537, %v3517
        %v5398 = vpack.c.b16 %v3538, %v3518
        %v5399 = vpack.c.b16 %v3539, %v3519
        %v5400 = vpack.c.b16 %v3540, %v3520
        %v5401 = vpack.c.b16 %v3541, %v3521
        %v5402 = vpack.c.b16 %v3542, %v3522
        %v5403 = vpack.c.b16 %v3543, %v3523
        %v5404 = vpack.c.b16 %v3544, %v3524
        %v5405 = vpack.c.b16 %v3545, %v3525
        %v5406 = vpack.c.b16 %v3546, %v3526
        %v5407 = vpack.c.b16 %v3547, %v3527
        %v5408 = vpack.c.b16 %v3548, %v3528
        %v5409 = vpack.c.b16 %v3549, %v3529
        %v5410 = vpack.c.b16 %v3550, %v3530
        %v5411 = vpack.c.b16 %v3571, %v3551
        %v5412 = vpack.c.b16 %v3572, %v3552
        %v5413 = vpack.c.b16 %v3573, %v3553
        %v5414 = vpack.c.b16 %v3574, %v3554
        %v5415 = vpack.c.b16 %v3575, %v3555
        %v5416 = vpack.c.b16 %v3576, %v3556
        %v5417 = vpack.c.b16 %v3577, %v3557
        %v5418 = vpack.c.b16 %v3578, %v3558
        %v5419 = vpack.c.b16 %v3579, %v3559
        %v5420 = vpack.c.b16 %v3580, %v3560
        %v5421 = vpack.c.b16 %v3581, %v3561
        %v5422 = vpack.c.b16 %v3582, %v3562
        %v5423 = vpack.c.b16 %v3583, %v3563
        %v5424 = vpack.c.b16 %v3584, %v3564
        %v5425 = vpack.c.b16 %v3585, %v3565
        %v5426 = vpack.c.b16 %v3586, %v3566
        %v5427 = vpack.c.b16 %v3587, %v3567
        %v5428 = vpack.c.b16 %v3588, %v3568
        %v5429 = vpack.c.b16 %v3589, %v3569
        %v5430 = vpack.c.b16 %v3590, %v3570
        %v5431 = vpack.c.b16 %v3611, %v3591
        %v5432 = vpack.c.b16 %v3612, %v3592
        %v5433 = vpack.c.b16 %v3613, %v3593
        %v5434 = vpack.c.b16 %v3614, %v3594
        %v5435 = vpack.c.b16 %v3615, %v3595
        %v5436 = vpack.c.b16 %v3616, %v3596
        %v5437 = vpack.c.b16 %v3617, %v3597
        %v5438 = vpack.c.b16 %v3618, %v3598
        %v5439 = vpack.c.b16 %v3619, %v3599
        %v5440 = vpack.c.b16 %v3620, %v3600
        %v5441 = vpack.c.b16 %v3621, %v3601
        %v5442 = vpack.c.b16 %v3622, %v3602
        %v5443 = vpack.c.b16 %v3623, %v3603
        %v5444 = vpack.c.b16 %v3624, %v3604
        %v5445 = vpack.c.b16 %v3625, %v3605
        %v5446 = vpack.c.b16 %v3626, %v3606
        %v5447 = vpack.c.b16 %v3627, %v3607
        %v5448 = vpack.c.b16 %v3628, %v3608
        %v5449 = vpack.c.b16 %v3629, %v3609
        %v5450 = vpack.c.b16 %v3630, %v3610
        %v5451 = vpack.c.b16 %v3651, %v3631
        %v5452 = vpack.c.b16 %v3652, %v3632
        %v5453 = vpack.c.b16 %v3653, %v3633
        %v5454 = vpack.c.b16 %v3654, %v3634
        %v5455 = vpack.c.b16 %v3655, %v3635
        %v5456 = vpack.c.b16 %v3656, %v3636
        %v5457 = vpack.c.b16 %v3657, %v3637
        %v5458 = vpack.c.b16 %v3658, %v3638
        %v5459 = vpack.c.b16 %v3659, %v3639
        %v5460 = vpack.c.b16 %v3660, %v3640
        %v5461 = vpack.c.b16 %v3661, %v3641
        %v5462 = vpack.c.b16 %v3662, %v3642
        %v5463 = vpack.c.b16 %v3663, %v3643
        %v5464 = vpack.c.b16 %v3664, %v3644
        %v5465 = vpack.c.b16 %v3665, %v3645
        %v5466 = vpack.c.b16 %v3666, %v3646
        %v5467 = vpack.c.b16 %v3667, %v3647
        %v5468 = vpack.c.b16 %v3668, %v3648
        %v5469 = vpack.c.b16 %v3669, %v3649
        %v5470 = vpack.c.b16 %v3670, %v3650
        %v5471 = vpack.c.b16 %v3691, %v3671
        %v5472 = vpack.c.b16 %v3692, %v3672
        %v5473 = vpack.c.b16 %v3693, %v3673
        %v5474 = vpack.c.b16 %v3694, %v3674
        %v5475 = vpack.c.b16 %v3695, %v3675
        %v5476 = vpack.c.b16 %v3696, %v3676
        %v5477 = vpack.c.b16 %v3697, %v3677
        %v5478 = vpack.c.b16 %v3698, %v3678
        %v5479 = vpack.c.b16 %v3699, %v3679
        %v5480 = vpack.c.b16 %v3700, %v3680
        %v5481 = vpack.c.b16 %v3701, %v3681
        %v5482 = vpack.c.b16 %v3702, %v3682
        %v5483 = vpack.c.b16 %v3703, %v3683
        %v5484 = vpack.c.b16 %v3704, %v3684
        %v5485 = vpack.c.b16 %v3705, %v3685
        %v5486 = vpack.c.b16 %v3706, %v3686
        %v5487 = vpack.c.b16 %v3707, %v3687
        %v5488 = vpack.c.b16 %v3708, %v3688
        %v5489 = vpack.c.b16 %v3709, %v3689
        %v5490 = vpack.c.b16 %v3710, %v3690
        %v5491 = vpack.c.b16 %v3731, %v3711
        %v5492 = vpack.c.b16 %v3732, %v3712
        %v5493 = vpack.c.b16 %v3733, %v3713
        %v5494 = vpack.c.b16 %v3734, %v3714
        %v5495 = vpack.c.b16 %v3735, %v3715
        %v5496 = vpack.c.b16 %v3736, %v3716
        %v5497 = vpack.c.b16 %v3737, %v3717
        %v5498 = vpack.c.b16 %v3738, %v3718
        %v5499 = vpack.c.b16 %v3739, %v3719
        %v5500 = vpack.c.b16 %v3740, %v3720
        %v5501 = vpack.c.b16 %v3741, %v3721
        %v5502 = vpack.c.b16 %v3742, %v3722
        %v5503 = vpack.c.b16 %v3743, %v3723
        %v5504 = vpack.c.b16 %v3744, %v3724
        %v5505 = vpack.c.b16 %v3745, %v3725
        %v5506 = vpack.c.b16 %v3746, %v3726
        %v5507 = vpack.c.b16 %v3747, %v3727
        %v5508 = vpack.c.b16 %v3748, %v3728
        %v5509 = vpack.c.b16 %v3749, %v3729
        %v5510 = vpack.c.b16 %v3750, %v3730
        %v5511 = vpack.c.b16 %v3771, %v3751
        %v5512 = vpack.c.b16 %v3772, %v3752
        %v5513 = vpack.c.b16 %v3773, %v3753
        %v5514 = vpack.c.b16 %v3774, %v3754
        %v5515 = vpack.c.b16 %v3775, %v3755
        %v5516 = vpack.c.b16 %v3776, %v3756
        %v5517 = vpack.c.b16 %v3777, %v3757
        %v5518 = vpack.c.b16 %v3778, %v3758
        %v5519 = vpack.c.b16 %v3779, %v3759
        %v5520 = vpack.c.b16 %v3780, %v3760
        %v5521 = vpack.c.b16 %v3781, %v3761
        %v5522 = vpack.c.b16 %v3782, %v3762
        %v5523 = vpack.c.b16 %v3783, %v3763
        %v5524 = vpack.c.b16 %v3784, %v3764
        %v5525 = vpack.c.b16 %v3785, %v3765
        %v5526 = vpack.c.b16 %v3786, %v3766
        %v5527 = vpack.c.b16 %v3787, %v3767
        %v5528 = vpack.c.b16 %v3788, %v3768
        %v5529 = vpack.c.b16 %v3789, %v3769
        %v5530 = vpack.c.b16 %v3790, %v3770
        %v5531 = vpack.c.b16 %v3811, %v3791
        %v5532 = vpack.c.b16 %v3812, %v3792
        %v5533 = vpack.c.b16 %v3813, %v3793
        %v5534 = vpack.c.b16 %v3814, %v3794
        %v5535 = vpack.c.b16 %v3815, %v3795
        %v5536 = vpack.c.b16 %v3816, %v3796
        %v5537 = vpack.c.b16 %v3817, %v3797
        %v5538 = vpack.c.b16 %v3818, %v3798
        %v5539 = vpack.c.b16 %v3819, %v3799
        %v5540 = vpack.c.b16 %v3820, %v3800
        %v5541 = vpack.c.b16 %v3821, %v3801
        %v5542 = vpack.c.b16 %v3822, %v3802
        %v5543 = vpack.c.b16 %v3823, %v3803
        %v5544 = vpack.c.b16 %v3824, %v3804
        %v5545 = vpack.c.b16 %v3825, %v3805
        %v5546 = vpack.c.b16 %v3826, %v3806
        %v5547 = vpack.c.b16 %v3827, %v3807
        %v5548 = vpack.c.b16 %v3828, %v3808
        %v5549 = vpack.c.b16 %v3829, %v3809
        %v5550 = vpack.c.b16 %v3830, %v3810
        %v5551 = vpack.c.b16 %v3851, %v3831
        %v5552 = vpack.c.b16 %v3852, %v3832
        %v5553 = vpack.c.b16 %v3853, %v3833
        %v5554 = vpack.c.b16 %v3854, %v3834
        %v5555 = vpack.c.b16 %v3855, %v3835
        %v5556 = vpack.c.b16 %v3856, %v3836
        %v5557 = vpack.c.b16 %v3857, %v3837
        %v5558 = vpack.c.b16 %v3858, %v3838
        %v5559 = vpack.c.b16 %v3859, %v3839
        %v5560 = vpack.c.b16 %v3860, %v3840
        %v5561 = vpack.c.b16 %v3861, %v3841
        %v5562 = vpack.c.b16 %v3862, %v3842
        %v5563 = vpack.c.b16 %v3863, %v3843
        %v5564 = vpack.c.b16 %v3864, %v3844
        %v5565 = vpack.c.b16 %v3865, %v3845
        %v5566 = vpack.c.b16 %v3866, %v3846
        %v5567 = vpack.c.b16 %v3867, %v3847
        %v5568 = vpack.c.b16 %v3868, %v3848
        %v5569 = vpack.c.b16 %v3869, %v3849
        %v5570 = vpack.c.b16 %v3870, %v3850
        %v5571 = vpack.c.b16 %v3891, %v3871
        %v5572 = vpack.c.b16 %v3892, %v3872
        %v5573 = vpack.c.b16 %v3893, %v3873
        %v5574 = vpack.c.b16 %v3894, %v3874
        %v5575 = vpack.c.b16 %v3895, %v3875
        %v5576 = vpack.c.b16 %v3896, %v3876
        %v5577 = vpack.c.b16 %v3897, %v3877
        %v5578 = vpack.c.b16 %v3898, %v3878
        %v5579 = vpack.c.b16 %v3899, %v3879
        %v5580 = vpack.c.b16 %v3900, %v3880
        %v5581 = vpack.c.b16 %v3901, %v3881
        %v5582 = vpack.c.b16 %v3902, %v3882
        %v5583 = vpack.c.b16 %v3903, %v3883
        %v5584 = vpack.c.b16 %v3904, %v3884
        %v5585 = vpack.c.b16 %v3905, %v3885
        %v5586 = vpack.c.b16 %v3906, %v3886
        %v5587 = vpack.c.b16 %v3907, %v3887
        %v5588 = vpack.c.b16 %v3908, %v3888
        %v5589 = vpack.c.b16 %v3909, %v3889
        %v5590 = vpack.c.b16 %v3910, %v3890
        %v5591 = vpack.c.b16 %v3931, %v3911
        %v5592 = vpack.c.b16 %v3932, %v3912
        %v5593 = vpack.c.b16 %v3933, %v3913
        %v5594 = vpack.c.b16 %v3934, %v3914
        %v5595 = vpack.c.b16 %v3935, %v3915
        %v5596 = vpack.c.b16 %v3936, %v3916
        %v5597 = vpack.c.b16 %v3937, %v3917
        %v5598 = vpack.c.b16 %v3938, %v3918
        %v5599 = vpack.c.b16 %v3939, %v3919
        %v5600 = vpack.c.b16 %v3940, %v3920
        %v5601 = vpack.c.b16 %v3941, %v3921
        %v5602 = vpack.c.b16 %v3942, %v3922
        %v5603 = vpack.c.b16 %v3943, %v3923
        %v5604 = vpack.c.b16 %v3944, %v3924
        %v5605 = vpack.c.b16 %v3945, %v3925
        %v5606 = vpack.c.b16 %v3946, %v3926
        %v5607 = vpack.c.b16 %v3947, %v3927
        %v5608 = vpack.c.b16 %v3948, %v3928
        %v5609 = vpack.c.b16 %v3949, %v3929
        %v5610 = vpack.c.b16 %v3950, %v3930
        %v5611 = vpack.c.b16 %v3971, %v3951
        %v5612 = vpack.c.b16 %v3972, %v3952
        %v5613 = vpack.c.b16 %v3973, %v3953
        %v5614 = vpack.c.b16 %v3974, %v3954
        %v5615 = vpack.c.b16 %v3975, %v3955
        %v5616 = vpack.c.b16 %v3976, %v3956
        %v5617 = vpack.c.b16 %v3977, %v3957
        %v5618 = vpack.c.b16 %v3978, %v3958
        %v5619 = vpack.c.b16 %v3979, %v3959
        %v5620 = vpack.c.b16 %v3980, %v3960
        %v5621 = vpack.c.b16 %v3981, %v3961
        %v5622 = vpack.c.b16 %v3982, %v3962
        %v5623 = vpack.c.b16 %v3983, %v3963
        %v5624 = vpack.c.b16 %v3984, %v3964
        %v5625 = vpack.c.b16 %v3985, %v3965
        %v5626 = vpack.c.b16 %v3986, %v3966
        %v5627 = vpack.c.b16 %v3987, %v3967
        %v5628 = vpack.c.b16 %v3988, %v3968
        %v5629 = vpack.c.b16 %v3989, %v3969
        %v5630 = vpack.c.b16 %v3990, %v3970
        %v5631 = vpack.c.b16 %v4011, %v3991
        %v5632 = vpack.c.b16 %v4012, %v3992
        %v5633 = vpack.c.b16 %v4013, %v3993
        %v5634 = vpack.c.b16 %v4014, %v3994
        %v5635 = vpack.c.b16 %v4015, %v3995
        %v5636 = vpack.c.b16 %v4016, %v3996
        %v5637 = vpack.c.b16 %v4017, %v3997
        %v5638 = vpack.c.b16 %v4018, %v3998
        %v5639 = vpack.c.b16 %v4019, %v3999
        %v5640 = vpack.c.b16 %v4020, %v4000
        %v5641 = vpack.c.b16 %v4021, %v4001
        %v5642 = vpack.c.b16 %v4022, %v4002
        %v5643 = vpack.c.b16 %v4023, %v4003
        %v5644 = vpack.c.b16 %v4024, %v4004
        %v5645 = vpack.c.b16 %v4025, %v4005
        %v5646 = vpack.c.b16 %v4026, %v4006
        %v5647 = vpack.c.b16 %v4027, %v4007
        %v5648 = vpack.c.b16 %v4028, %v4008
        %v5649 = vpack.c.b16 %v4029, %v4009
        %v5650 = vpack.c.b16 %v4030, %v4010
        %v5651 = vpack.c.b16 %v4051, %v4031
        %v5652 = vpack.c.b16 %v4052, %v4032
        %v5653 = vpack.c.b16 %v4053, %v4033
        %v5654 = vpack.c.b16 %v4054, %v4034
        %v5655 = vpack.c.b16 %v4055, %v4035
        %v5656 = vpack.c.b16 %v4056, %v4036
        %v5657 = vpack.c.b16 %v4057, %v4037
        %v5658 = vpack.c.b16 %v4058, %v4038
        %v5659 = vpack.c.b16 %v4059, %v4039
        %v5660 = vpack.c.b16 %v4060, %v4040
        %v5661 = vpack.c.b16 %v4061, %v4041
        %v5662 = vpack.c.b16 %v4062, %v4042
        %v5663 = vpack.c.b16 %v4063, %v4043
        %v5664 = vpack.c.b16 %v4064, %v4044
        %v5665 = vpack.c.b16 %v4065, %v4045
        %v5666 = vpack.c.b16 %v4066, %v4046
        %v5667 = vpack.c.b16 %v4067, %v4047
        %v5668 = vpack.c.b16 %v4068, %v4048
        %v5669 = vpack.c.b16 %v4069, %v4049
        %v5670 = vpack.c.b16 %v4070, %v4050
        %v5671 = vpack.c.b16 %v4091, %v4071
        %v5672 = vpack.c.b16 %v4092, %v4072
        %v5673 = vpack.c.b16 %v4093, %v4073
        %v5674 = vpack.c.b16 %v4094, %v4074
        %v5675 = vpack.c.b16 %v4095, %v4075
        %v5676 = vpack.c.b16 %v4096, %v4076
        %v5677 = vpack.c.b16 %v4097, %v4077
        %v5678 = vpack.c.b16 %v4098, %v4078
        %v5679 = vpack.c.b16 %v4099, %v4079
        %v5680 = vpack.c.b16 %v4100, %v4080
        %v5681 = vpack.c.b16 %v4101, %v4081
        %v5682 = vpack.c.b16 %v4102, %v4082
        %v5683 = vpack.c.b16 %v4103, %v4083
        %v5684 = vpack.c.b16 %v4104, %v4084
        %v5685 = vpack.c.b16 %v4105, %v4085
        %v5686 = vpack.c.b16 %v4106, %v4086
        %v5687 = vpack.c.b16 %v4107, %v4087
        %v5688 = vpack.c.b16 %v4108, %v4088
        %v5689 = vpack.c.b16 %v4109, %v4089
        %v5690 = vpack.c.b16 %v4110, %v4090
        %v5691 = vpack.c.b16 %v4131, %v4111
        %v5692 = vpack.c.b16 %v4132, %v4112
        %v5693 = vpack.c.b16 %v4133, %v4113
        %v5694 = vpack.c.b16 %v4134, %v4114
        %v5695 = vpack.c.b16 %v4135, %v4115
        %v5696 = vpack.c.b16 %v4136, %v4116
        %v5697 = vpack.c.b16 %v4137, %v4117
        %v5698 = vpack.c.b16 %v4138, %v4118
        %v5699 = vpack.c.b16 %v4139, %v4119
        %v5700 = vpack.c.b16 %v4140, %v4120
        %v5701 = vpack.c.b16 %v4141, %v4121
        %v5702 = vpack.c.b16 %v4142, %v4122
        %v5703 = vpack.c.b16 %v4143, %v4123
        %v5704 = vpack.c.b16 %v4144, %v4124
        %v5705 = vpack.c.b16 %v4145, %v4125
        %v5706 = vpack.c.b16 %v4146, %v4126
        %v5707 = vpack.c.b16 %v4147, %v4127
        %v5708 = vpack.c.b16 %v4148, %v4128
        %v5709 = vpack.c.b16 %v4149, %v4129
        %v5710 = vpack.c.b16 %v4150, %v4130
        %v5711 = vpack.c.b16 %v4171, %v4151
        %v5712 = vpack.c.b16 %v4172, %v4152
        %v5713 = vpack.c.b16 %v4173, %v4153
        %v5714 = vpack.c.b16 %v4174, %v4154
        %v5715 = vpack.c.b16 %v4175, %v4155
        %v5716 = vpack.c.b16 %v4176, %v4156
        %v5717 = vpack.c.b16 %v4177, %v4157
        %v5718 = vpack.c.b16 %v4178, %v4158
        %v5719 = vpack.c.b16 %v4179, %v4159
        %v5720 = vpack.c.b16 %v4180, %v4160
        %v5721 = vpack.c.b16 %v4181, %v4161
        %v5722 = vpack.c.b16 %v4182, %v4162
        %v5723 = vpack.c.b16 %v4183, %v4163
        %v5724 = vpack.c.b16 %v4184, %v4164
        %v5725 = vpack.c.b16 %v4185, %v4165
        %v5726 = vpack.c.b16 %v4186, %v4166
        %v5727 = vpack.c.b16 %v4187, %v4167
        %v5728 = vpack.c.b16 %v4188, %v4168
        %v5729 = vpack.c.b16 %v4189, %v4169
        %v5730 = vpack.c.b16 %v4190, %v4170
        %v5731 = vpack.c.b16 %v4211, %v4191
        %v5732 = vpack.c.b16 %v4212, %v4192
        %v5733 = vpack.c.b16 %v4213, %v4193
        %v5734 = vpack.c.b16 %v4214, %v4194
        %v5735 = vpack.c.b16 %v4215, %v4195
        %v5736 = vpack.c.b16 %v4216, %v4196
        %v5737 = vpack.c.b16 %v4217, %v4197
        %v5738 = vpack.c.b16 %v4218, %v4198
        %v5739 = vpack.c.b16 %v4219, %v4199
        %v5740 = vpack.c.b16 %v4220, %v4200
        %v5741 = vpack.c.b16 %v4221, %v4201
        %v5742 = vpack.c.b16 %v4222, %v4202
        %v5743 = vpack.c.b16 %v4223, %v4203
        %v5744 = vpack.c.b16 %v4224, %v4204
        %v5745 = vpack.c.b16 %v4225, %v4205
        %v5746 = vpack.c.b16 %v4226, %v4206
        %v5747 = vpack.c.b16 %v4227, %v4207
        %v5748 = vpack.c.b16 %v4228, %v4208
        %v5749 = vpack.c.b16 %v4229, %v4209
        %v5750 = vpack.c.b16 %v4230, %v4210
        %v5751 = vpack.c.b16 %v4251, %v4231
        %v5752 = vpack.c.b16 %v4252, %v4232
        %v5753 = vpack.c.b16 %v4253, %v4233
        %v5754 = vpack.c.b16 %v4254, %v4234
        %v5755 = vpack.c.b16 %v4255, %v4235
        %v5756 = vpack.c.b16 %v4256, %v4236
        %v5757 = vpack.c.b16 %v4257, %v4237
        %v5758 = vpack.c.b16 %v4258, %v4238
        %v5759 = vpack.c.b16 %v4259, %v4239
        %v5760 = vpack.c.b16 %v4260, %v4240
        %v5761 = vpack.c.b16 %v4261, %v4241
        %v5762 = vpack.c.b16 %v4262, %v4242
        %v5763 = vpack.c.b16 %v4263, %v4243
        %v5764 = vpack.c.b16 %v4264, %v4244
        %v5765 = vpack.c.b16 %v4265, %v4245
        %v5766 = vpack.c.b16 %v4266, %v4246
        %v5767 = vpack.c.b16 %v4267, %v4247
        %v5768 = vpack.c.b16 %v4268, %v4248
        %v5769 = vpack.c.b16 %v4269, %v4249
        %v5770 = vpack.c.b16 %v4270, %v4250
        %v5771 = vpack.c.b16 %v4291, %v4271
        %v5772 = vpack.c.b16 %v4292, %v4272
        %v5773 = vpack.c.b16 %v4293, %v4273
        %v5774 = vpack.c.b16 %v4294, %v4274
        %v5775 = vpack.c.b16 %v4295, %v4275
        %v5776 = vpack.c.b16 %v4296, %v4276
        %v5777 = vpack.c.b16 %v4297, %v4277
        %v5778 = vpack.c.b16 %v4298, %v4278
        %v5779 = vpack.c.b16 %v4299, %v4279
        %v5780 = vpack.c.b16 %v4300, %v4280
        %v5781 = vpack.c.b16 %v4301, %v4281
        %v5782 = vpack.c.b16 %v4302, %v4282
        %v5783 = vpack.c.b16 %v4303, %v4283
        %v5784 = vpack.c.b16 %v4304, %v4284
        %v5785 = vpack.c.b16 %v4305, %v4285
        %v5786 = vpack.c.b16 %v4306, %v4286
        %v5787 = vpack.c.b16 %v4307, %v4287
        %v5788 = vpack.c.b16 %v4308, %v4288
        %v5789 = vpack.c.b16 %v4309, %v4289
        %v5790 = vpack.c.b16 %v4310, %v4290
        %v5791 = vpack.c.b16 %v4331, %v4311
        %v5792 = vpack.c.b16 %v4332, %v4312
        %v5793 = vpack.c.b16 %v4333, %v4313
        %v5794 = vpack.c.b16 %v4334, %v4314
        %v5795 = vpack.c.b16 %v4335, %v4315
        %v5796 = vpack.c.b16 %v4336, %v4316
        %v5797 = vpack.c.b16 %v4337, %v4317
        %v5798 = vpack.c.b16 %v4338, %v4318
        %v5799 = vpack.c.b16 %v4339, %v4319
        %v5800 = vpack.c.b16 %v4340, %v4320
        %v5801 = vpack.c.b16 %v4341, %v4321
        %v5802 = vpack.c.b16 %v4342, %v4322
        %v5803 = vpack.c.b16 %v4343, %v4323
        %v5804 = vpack.c.b16 %v4344, %v4324
        %v5805 = vpack.c.b16 %v4345, %v4325
        %v5806 = vpack.c.b16 %v4346, %v4326
        %v5807 = vpack.c.b16 %v4347, %v4327
        %v5808 = vpack.c.b16 %v4348, %v4328
        %v5809 = vpack.c.b16 %v4349, %v4329
        %v5810 = vpack.c.b16 %v4350, %v4330
        %v5811 = vpack.c.b16 %v4371, %v4351
        %v5812 = vpack.c.b16 %v4372, %v4352
        %v5813 = vpack.c.b16 %v4373, %v4353
        %v5814 = vpack.c.b16 %v4374, %v4354
        %v5815 = vpack.c.b16 %v4375, %v4355
        %v5816 = vpack.c.b16 %v4376, %v4356
        %v5817 = vpack.c.b16 %v4377, %v4357
        %v5818 = vpack.c.b16 %v4378, %v4358
        %v5819 = vpack.c.b16 %v4379, %v4359
        %v5820 = vpack.c.b16 %v4380, %v4360
        %v5821 = vpack.c.b16 %v4381, %v4361
        %v5822 = vpack.c.b16 %v4382, %v4362
        %v5823 = vpack.c.b16 %v4383, %v4363
        %v5824 = vpack.c.b16 %v4384, %v4364
        %v5825 = vpack.c.b16 %v4385, %v4365
        %v5826 = vpack.c.b16 %v4386, %v4366
        %v5827 = vpack.c.b16 %v4387, %v4367
        %v5828 = vpack.c.b16 %v4388, %v4368
        %v5829 = vpack.c.b16 %v4389, %v4369
        %v5830 = vpack.c.b16 %v4390, %v4370
        %v5831 = vpack.c.b16 %v4411, %v4391
        %v5832 = vpack.c.b16 %v4412, %v4392
        %v5833 = vpack.c.b16 %v4413, %v4393
        %v5834 = vpack.c.b16 %v4414, %v4394
        %v5835 = vpack.c.b16 %v4415, %v4395
        %v5836 = vpack.c.b16 %v4416, %v4396
        %v5837 = vpack.c.b16 %v4417, %v4397
        %v5838 = vpack.c.b16 %v4418, %v4398
        %v5839 = vpack.c.b16 %v4419, %v4399
        %v5840 = vpack.c.b16 %v4420, %v4400
        %v5841 = vpack.c.b16 %v4421, %v4401
        %v5842 = vpack.c.b16 %v4422, %v4402
        %v5843 = vpack.c.b16 %v4423, %v4403
        %v5844 = vpack.c.b16 %v4424, %v4404
        %v5845 = vpack.c.b16 %v4425, %v4405
        %v5846 = vpack.c.b16 %v4426, %v4406
        %v5847 = vpack.c.b16 %v4427, %v4407
        %v5848 = vpack.c.b16 %v4428, %v4408
        %v5849 = vpack.c.b16 %v4429, %v4409
        %v5850 = vpack.c.b16 %v4430, %v4410
        %v5851 = vpack.c.b16 %v4451, %v4431
        %v5852 = vpack.c.b16 %v4452, %v4432
        %v5853 = vpack.c.b16 %v4453, %v4433
        %v5854 = vpack.c.b16 %v4454, %v4434
        %v5855 = vpack.c.b16 %v4455, %v4435
        %v5856 = vpack.c.b16 %v4456, %v4436
        %v5857 = vpack.c.b16 %v4457, %v4437
        %v5858 = vpack.c.b16 %v4458, %v4438
        %v5859 = vpack.c.b16 %v4459, %v4439
        %v5860 = vpack.c.b16 %v4460, %v4440
        %v5861 = vpack.c.b16 %v4461, %v4441
        %v5862 = vpack.c.b16 %v4462, %v4442
        %v5863 = vpack.c.b16 %v4463, %v4443
        %v5864 = vpack.c.b16 %v4464, %v4444
        %v5865 = vpack.c.b16 %v4465, %v4445
        %v5866 = vpack.c.b16 %v4466, %v4446
        %v5867 = vpack.c.b16 %v4467, %v4447
        %v5868 = vpack.c.b16 %v4468, %v4448
        %v5869 = vpack.c.b16 %v4469, %v4449
        %v5870 = vpack.c.b16 %v4470, %v4450
        %v5871 = vpack.c.b16 %v4491, %v4471
        %v5872 = vpack.c.b16 %v4492, %v4472
        %v5873 = vpack.c.b16 %v4493, %v4473
        %v5874 = vpack.c.b16 %v4494, %v4474
        %v5875 = vpack.c.b16 %v4495, %v4475
        %v5876 = vpack.c.b16 %v4496, %v4476
        %v5877 = vpack.c.b16 %v4497, %v4477
        %v5878 = vpack.c.b16 %v4498, %v4478
        %v5879 = vpack.c.b16 %v4499, %v4479
        %v5880 = vpack.c.b16 %v4500, %v4480
        %v5881 = vpack.c.b16 %v4501, %v4481
        %v5882 = vpack.c.b16 %v4502, %v4482
        %v5883 = vpack.c.b16 %v4503, %v4483
        %v5884 = vpack.c.b16 %v4504, %v4484
        %v5885 = vpack.c.b16 %v4505, %v4485
        %v5886 = vpack.c.b16 %v4506, %v4486
        %v5887 = vpack.c.b16 %v4507, %v4487
        %v5888 = vpack.c.b16 %v4508, %v4488
        %v5889 = vpack.c.b16 %v4509, %v4489
        %v5890 = vpack.c.b16 %v4510, %v4490
        %v5891 = vpack.c.b16 %v4531, %v4511
        %v5892 = vpack.c.b16 %v4532, %v4512
        %v5893 = vpack.c.b16 %v4533, %v4513
        %v5894 = vpack.c.b16 %v4534, %v4514
        %v5895 = vpack.c.b16 %v4535, %v4515
        %v5896 = vpack.c.b16 %v4536, %v4516
        %v5897 = vpack.c.b16 %v4537, %v4517
        %v5898 = vpack.c.b16 %v4538, %v4518
        %v5899 = vpack.c.b16 %v4539, %v4519
        %v5900 = vpack.c.b16 %v4540, %v4520
        %v5901 = vpack.c.b16 %v4541, %v4521
        %v5902 = vpack.c.b16 %v4542, %v4522
        %v5903 = vpack.c.b16 %v4543, %v4523
        %v5904 = vpack.c.b16 %v4544, %v4524
        %v5905 = vpack.c.b16 %v4545, %v4525
        %v5906 = vpack.c.b16 %v4546, %v4526
        %v5907 = vpack.c.b16 %v4547, %v4527
        %v5908 = vpack.c.b16 %v4548, %v4528
        %v5909 = vpack.c.b16 %v4549, %v4529
        %v5910 = vpack.c.b16 %v4550, %v4530
        %v5911 = vpack.c.b16 %v4571, %v4551
        %v5912 = vpack.c.b16 %v4572, %v4552
        %v5913 = vpack.c.b16 %v4573, %v4553
        %v5914 = vpack.c.b16 %v4574, %v4554
        %v5915 = vpack.c.b16 %v4575, %v4555
        %v5916 = vpack.c.b16 %v4576, %v4556
        %v5917 = vpack.c.b16 %v4577, %v4557
        %v5918 = vpack.c.b16 %v4578, %v4558
        %v5919 = vpack.c.b16 %v4579, %v4559
        %v5920 = vpack.c.b16 %v4580, %v4560
        %v5921 = vpack.c.b16 %v4581, %v4561
        %v5922 = vpack.c.b16 %v4582, %v4562
        %v5923 = vpack.c.b16 %v4583, %v4563
        %v5924 = vpack.c.b16 %v4584, %v4564
        %v5925 = vpack.c.b16 %v4585, %v4565
        %v5926 = vpack.c.b16 %v4586, %v4566
        %v5927 = vpack.c.b16 %v4587, %v4567
        %v5928 = vpack.c.b16 %v4588, %v4568
        %v5929 = vpack.c.b16 %v4589, %v4569
        %v5930 = vpack.c.b16 %v4590, %v4570
        %v5931 = vpack.c.b16 %v4611, %v4591
        %v5932 = vpack.c.b16 %v4612, %v4592
        %v5933 = vpack.c.b16 %v4613, %v4593
        %v5934 = vpack.c.b16 %v4614, %v4594
        %v5935 = vpack.c.b16 %v4615, %v4595
        %v5936 = vpack.c.b16 %v4616, %v4596
        %v5937 = vpack.c.b16 %v4617, %v4597
        %v5938 = vpack.c.b16 %v4618, %v4598
        %v5939 = vpack.c.b16 %v4619, %v4599
        %v5940 = vpack.c.b16 %v4620, %v4600
        %v5941 = vpack.c.b16 %v4621, %v4601
        %v5942 = vpack.c.b16 %v4622, %v4602
        %v5943 = vpack.c.b16 %v4623, %v4603
        %v5944 = vpack.c.b16 %v4624, %v4604
        %v5945 = vpack.c.b16 %v4625, %v4605
        %v5946 = vpack.c.b16 %v4626, %v4606
        %v5947 = vpack.c.b16 %v4627, %v4607
        %v5948 = vpack.c.b16 %v4628, %v4608
        %v5949 = vpack.c.b16 %v4629, %v4609
        %v5950 = vpack.c.b16 %v4630, %v4610
        %v5951 = vpack.c.b16 %v4651, %v4631
        %v5952 = vpack.c.b16 %v4652, %v4632
        %v5953 = vpack.c.b16 %v4653, %v4633
        %v5954 = vpack.c.b16 %v4654, %v4634
        %v5955 = vpack.c.b16 %v4655, %v4635
        %v5956 = vpack.c.b16 %v4656, %v4636
        %v5957 = vpack.c.b16 %v4657, %v4637
        %v5958 = vpack.c.b16 %v4658, %v4638
        %v5959 = vpack.c.b16 %v4659, %v4639
        %v5960 = vpack.c.b16 %v4660, %v4640
        %v5961 = vpack.c.b16 %v4661, %v4641
        %v5962 = vpack.c.b16 %v4662, %v4642
        %v5963 = vpack.c.b16 %v4663, %v4643
        %v5964 = vpack.c.b16 %v4664, %v4644
        %v5965 = vpack.c.b16 %v4665, %v4645
        %v5966 = vpack.c.b16 %v4666, %v4646
        %v5967 = vpack.c.b16 %v4667, %v4647
        %v5968 = vpack.c.b16 %v4668, %v4648
        %v5969 = vpack.c.b16 %v4669, %v4649
        %v5970 = vpack.c.b16 %v4670, %v4650
        %v5971 = vpack.c.b16 %v4691, %v4671
        %v5972 = vpack.c.b16 %v4692, %v4672
        %v5973 = vpack.c.b16 %v4693, %v4673
        %v5974 = vpack.c.b16 %v4694, %v4674
        %v5975 = vpack.c.b16 %v4695, %v4675
        %v5976 = vpack.c.b16 %v4696, %v4676
        %v5977 = vpack.c.b16 %v4697, %v4677
        %v5978 = vpack.c.b16 %v4698, %v4678
        %v5979 = vpack.c.b16 %v4699, %v4679
        %v5980 = vpack.c.b16 %v4700, %v4680
        %v5981 = vpack.c.b16 %v4701, %v4681
        %v5982 = vpack.c.b16 %v4702, %v4682
        %v5983 = vpack.c.b16 %v4703, %v4683
        %v5984 = vpack.c.b16 %v4704, %v4684
        %v5985 = vpack.c.b16 %v4705, %v4685
        %v5986 = vpack.c.b16 %v4706, %v4686
        %v5987 = vpack.c.b16 %v4707, %v4687
        %v5988 = vpack.c.b16 %v4708, %v4688
        %v5989 = vpack.c.b16 %v4709, %v4689
        %v5990 = vpack.c.b16 %v4710, %v4690
        %v5991 = vpack.c.b16 %v4731, %v4711
        %v5992 = vpack.c.b16 %v4732, %v4712
        %v5993 = vpack.c.b16 %v4733, %v4713
        %v5994 = vpack.c.b16 %v4734, %v4714
        %v5995 = vpack.c.b16 %v4735, %v4715
        %v5996 = vpack.c.b16 %v4736, %v4716
        %v5997 = vpack.c.b16 %v4737, %v4717
        %v5998 = vpack.c.b16 %v4738, %v4718
        %v5999 = vpack.c.b16 %v4739, %v4719
        %v6000 = vpack.c.b16 %v4740, %v4720
        %v6001 = vpack.c.b16 %v4741, %v4721
        %v6002 = vpack.c.b16 %v4742, %v4722
        %v6003 = vpack.c.b16 %v4743, %v4723
        %v6004 = vpack.c.b16 %v4744, %v4724
        %v6005 = vpack.c.b16 %v4745, %v4725
        %v6006 = vpack.c.b16 %v4746, %v4726
        %v6007 = vpack.c.b16 %v4747, %v4727
        %v6008 = vpack.c.b16 %v4748, %v4728
        %v6009 = vpack.c.b16 %v4749, %v4729
        %v6010 = vpack.c.b16 %v4750, %v4730
        %v6011 = vpack.c.b16 %v4771, %v4751
        %v6012 = vpack.c.b16 %v4772, %v4752
        %v6013 = vpack.c.b16 %v4773, %v4753
        %v6014 = vpack.c.b16 %v4774, %v4754
        %v6015 = vpack.c.b16 %v4775, %v4755
        %v6016 = vpack.c.b16 %v4776, %v4756
        %v6017 = vpack.c.b16 %v4777, %v4757
        %v6018 = vpack.c.b16 %v4778, %v4758
        %v6019 = vpack.c.b16 %v4779, %v4759
        %v6020 = vpack.c.b16 %v4780, %v4760
        %v6021 = vpack.c.b16 %v4781, %v4761
        %v6022 = vpack.c.b16 %v4782, %v4762
        %v6023 = vpack.c.b16 %v4783, %v4763
        %v6024 = vpack.c.b16 %v4784, %v4764
        %v6025 = vpack.c.b16 %v4785, %v4765
        %v6026 = vpack.c.b16 %v4786, %v4766
        %v6027 = vpack.c.b16 %v4787, %v4767
        %v6028 = vpack.c.b16 %v4788, %v4768
        %v6029 = vpack.c.b16 %v4789, %v4769
        %v6030 = vpack.c.b16 %v4790, %v4770
        %v6031 = vpack.c.b16 %v4811, %v4791
        %v6032 = vpack.c.b16 %v4812, %v4792
        %v6033 = vpack.c.b16 %v4813, %v4793
        %v6034 = vpack.c.b16 %v4814, %v4794
        %v6035 = vpack.c.b16 %v4815, %v4795
        %v6036 = vpack.c.b16 %v4816, %v4796
        %v6037 = vpack.c.b16 %v4817, %v4797
        %v6038 = vpack.c.b16 %v4818, %v4798
        %v6039 = vpack.c.b16 %v4819, %v4799
        %v6040 = vpack.c.b16 %v4820, %v4800
        %v6041 = vpack.c.b16 %v4821, %v4801
        %v6042 = vpack.c.b16 %v4822, %v4802
        %v6043 = vpack.c.b16 %v4823, %v4803
        %v6044 = vpack.c.b16 %v4824, %v4804
        %v6045 = vpack.c.b16 %v4825, %v4805
        %v6046 = vpack.c.b16 %v4826, %v4806
        %v6047 = vpack.c.b16 %v4827, %v4807
        %v6048 = vpack.c.b16 %v4828, %v4808
        %v6049 = vpack.c.b16 %v4829, %v4809
        %v6050 = vpack.c.b16 %v4830, %v4810
        %v6051 = vpack.c.b16 %v4851, %v4831
        %v6052 = vpack.c.b16 %v4852, %v4832
        %v6053 = vpack.c.b16 %v4853, %v4833
        %v6054 = vpack.c.b16 %v4854, %v4834
        %v6055 = vpack.c.b16 %v4855, %v4835
        %v6056 = vpack.c.b16 %v4856, %v4836
        %v6057 = vpack.c.b16 %v4857, %v4837
        %v6058 = vpack.c.b16 %v4858, %v4838
        %v6059 = vpack.c.b16 %v4859, %v4839
        %v6060 = vpack.c.b16 %v4860, %v4840
        %v6061 = vpack.c.b16 %v4861, %v4841
        %v6062 = vpack.c.b16 %v4862, %v4842
        %v6063 = vpack.c.b16 %v4863, %v4843
        %v6064 = vpack.c.b16 %v4864, %v4844
        %v6065 = vpack.c.b16 %v4865, %v4845
        %v6066 = vpack.c.b16 %v4866, %v4846
        %v6067 = vpack.c.b16 %v4867, %v4847
        %v6068 = vpack.c.b16 %v4868, %v4848
        %v6069 = vpack.c.b16 %v4869, %v4849
        %v6070 = vpack.c.b16 %v4870, %v4850
        %v6071 = vpack.c.b16 %v4891, %v4871
        %v6072 = vpack.c.b16 %v4892, %v4872
        %v6073 = vpack.c.b16 %v4893, %v4873
        %v6074 = vpack.c.b16 %v4894, %v4874
        %v6075 = vpack.c.b16 %v4895, %v4875
        %v6076 = vpack.c.b16 %v4896, %v4876
        %v6077 = vpack.c.b16 %v4897, %v4877
        %v6078 = vpack.c.b16 %v4898, %v4878
        %v6079 = vpack.c.b16 %v4899, %v4879
        %v6080 = vpack.c.b16 %v4900, %v4880
        %v6081 = vpack.c.b16 %v4901, %v4881
        %v6082 = vpack.c.b16 %v4902, %v4882
        %v6083 = vpack.c.b16 %v4903, %v4883
        %v6084 = vpack.c.b16 %v4904, %v4884
        %v6085 = vpack.c.b16 %v4905, %v4885
        %v6086 = vpack.c.b16 %v4906, %v4886
        %v6087 = vpack.c.b16 %v4907, %v4887
        %v6088 = vpack.c.b16 %v4908, %v4888
        %v6089 = vpack.c.b16 %v4909, %v4889
        %v6090 = vpack.c.b16 %v4910, %v4890
        %v6091 = vpack.c.b16 %v4931, %v4911
        %v6092 = vpack.c.b16 %v4932, %v4912
        %v6093 = vpack.c.b16 %v4933, %v4913
        %v6094 = vpack.c.b16 %v4934, %v4914
        %v6095 = vpack.c.b16 %v4935, %v4915
        %v6096 = vpack.c.b16 %v4936, %v4916
        %v6097 = vpack.c.b16 %v4937, %v4917
        %v6098 = vpack.c.b16 %v4938, %v4918
        %v6099 = vpack.c.b16 %v4939, %v4919
        %v6100 = vpack.c.b16 %v4940, %v4920
        %v6101 = vpack.c.b16 %v4941, %v4921
        %v6102 = vpack.c.b16 %v4942, %v4922
        %v6103 = vpack.c.b16 %v4943, %v4923
        %v6104 = vpack.c.b16 %v4944, %v4924
        %v6105 = vpack.c.b16 %v4945, %v4925
        %v6106 = vpack.c.b16 %v4946, %v4926
        %v6107 = vpack.c.b16 %v4947, %v4927
        %v6108 = vpack.c.b16 %v4948, %v4928
        %v6109 = vpack.c.b16 %v4949, %v4929
        %v6110 = vpack.c.b16 %v4950, %v4930
        %v6111 = vpack.c.b16 %v4971, %v4951
        %v6112 = vpack.c.b16 %v4972, %v4952
        %v6113 = vpack.c.b16 %v4973, %v4953
        %v6114 = vpack.c.b16 %v4974, %v4954
        %v6115 = vpack.c.b16 %v4975, %v4955
        %v6116 = vpack.c.b16 %v4976, %v4956
        %v6117 = vpack.c.b16 %v4977, %v4957
        %v6118 = vpack.c.b16 %v4978, %v4958
        %v6119 = vpack.c.b16 %v4979, %v4959
        %v6120 = vpack.c.b16 %v4980, %v4960
        %v6121 = vpack.c.b16 %v4981, %v4961
        %v6122 = vpack.c.b16 %v4982, %v4962
        %v6123 = vpack.c.b16 %v4983, %v4963
        %v6124 = vpack.c.b16 %v4984, %v4964
        %v6125 = vpack.c.b16 %v4985, %v4965
        %v6126 = vpack.c.b16 %v4986, %v4966
        %v6127 = vpack.c.b16 %v4987, %v4967
        %v6128 = vpack.c.b16 %v4988, %v4968
        %v6129 = vpack.c.b16 %v4989, %v4969
        %v6130 = vpack.c.b16 %v4990, %v4970
        %v6131 = vpack.c.b16 %v5011, %v4991
        %v6132 = vpack.c.b16 %v5012, %v4992
        %v6133 = vpack.c.b16 %v5013, %v4993
        %v6134 = vpack.c.b16 %v5014, %v4994
        %v6135 = vpack.c.b16 %v5015, %v4995
        %v6136 = vpack.c.b16 %v5016, %v4996
        %v6137 = vpack.c.b16 %v5017, %v4997
        %v6138 = vpack.c.b16 %v5018, %v4998
        %v6139 = vpack.c.b16 %v5019, %v4999
        %v6140 = vpack.c.b16 %v5020, %v5000
        %v6141 = vpack.c.b16 %v5021, %v5001
        %v6142 = vpack.c.b16 %v5022, %v5002
        %v6143 = vpack.c.b16 %v5023, %v5003
        %v6144 = vpack.c.b16 %v5024, %v5004
        %v6145 = vpack.c.b16 %v5025, %v5005
        %v6146 = vpack.c.b16 %v5026, %v5006
        %v6147 = vpack.c.b16 %v5027, %v5007
        %v6148 = vpack.c.b16 %v5028, %v5008
        %v6149 = vpack.c.b16 %v5029, %v5009
        %v6150 = vpack.c.b16 %v5030, %v5010
        %7271 = vmatprep.subr.bf16.mxu0 %v5032
        %7272 = vmatpush1.bf16.msra.mxu0 %v5031
        %7273 = vmatprep.subr.bf16.mxu0 %v5052
        %7274 = vmatpush1.bf16.msra.mxu0 %v5051
        %7275 = vmatprep.subr.bf16.mxu0 %v5072
        %7276 = vmatpush1.bf16.msra.mxu0 %v5071
        %7277 = vmatprep.subr.bf16.mxu0 %v5092
        %7278 = vmatpush1.bf16.msra.mxu0 %v5091
        %7279 = vmatprep.subr.bf16.mxu0 %v5112
        %7280 = vmatpush1.bf16.msra.mxu0 %v5111
        %7281 = vmatprep.subr.bf16.mxu0 %v5132
        %7282 = vmatpush1.bf16.msra.mxu0 %v5131
        %7283 = vmatprep.subr.bf16.mxu0 %v5152
        %7284 = vmatpush1.bf16.msra.mxu0 %v5151
        %7285 = vmatprep.subr.bf16.mxu0 %v5172
        %7286 = vmatpush1.bf16.msra.mxu0 %v5171
        %7287 = vmatprep.subr.bf16.mxu0 %v5192
        %7288 = vmatpush1.bf16.msra.mxu0 %v5191
        %7289 = vmatprep.subr.bf16.mxu0 %v5212
        %7290 = vmatpush1.bf16.msra.mxu0 %v5211
        %7291 = vmatprep.subr.bf16.mxu0 %v5232
        %7292 = vmatpush1.bf16.msra.mxu0 %v5231
        %7293 = vmatprep.subr.bf16.mxu0 %v5252
        %7294 = vmatpush1.bf16.msra.mxu0 %v5251
        %7295 = vmatprep.subr.bf16.mxu0 %v5272
        %7296 = vmatpush1.bf16.msra.mxu0 %v5271
        %7297 = vmatprep.subr.bf16.mxu0 %v5292
        %7298 = vmatpush1.bf16.msra.mxu0 %v5291
        %7299 = vmatprep.subr.bf16.mxu0 %v5312
        %7300 = vmatpush1.bf16.msra.mxu0 %v5311
        %7301 = vmatprep.subr.bf16.mxu0 %v5332
        %7302 = vmatpush1.bf16.msra.mxu0 %v5331
        %7303 = vmatprep.mubr.bf16.mxu0 %v1658
        %7304 = vmatmul.mubr.bf16.gmra.mrb[0].mxu0 %v1657
        %v7305 = vpop.f32.mrb[0].mxu0
        %v7306 = vadd.f32 0.0, %v7305
        %v7307 = vpop.f32.mrb[0].mxu0
        %v7308 = vadd.f32 0.0, %v7307
        %v7309 = vpop.f32.mrb[0].mxu0
        %v7310 = vpop.f32.mrb[0].mxu0
        %7311 = vdwg.mxu0
        %7312 = vmatprep.subr.bf16.mxu0 %v5352
        %7313 = vmatpush1.bf16.msra.mxu0 %v5351
        %7314 = vmatprep.subr.bf16.mxu0 %v5372
        %7315 = vmatpush1.bf16.msra.mxu0 %v5371
        %7316 = vmatprep.subr.bf16.mxu0 %v5392
        %7317 = vmatpush1.bf16.msra.mxu0 %v5391
        %7318 = vmatprep.subr.bf16.mxu0 %v5412
        %7319 = vmatpush1.bf16.msra.mxu0 %v5411
        %7320 = vmatprep.subr.bf16.mxu0 %v5432
        %7321 = vmatpush1.bf16.msra.mxu0 %v5431
        %7322 = vmatprep.subr.bf16.mxu0 %v5452
        %7323 = vmatpush1.bf16.msra.mxu0 %v5451
        %7324 = vmatprep.subr.bf16.mxu0 %v5472
        %7325 = vmatpush1.bf16.msra.mxu0 %v5471
        %7326 = vmatprep.subr.bf16.mxu0 %v5492
        %7327 = vmatpush1.bf16.msra.mxu0 %v5491
        %7328 = vmatprep.subr.bf16.mxu0 %v5512
        %7329 = vmatpush1.bf16.msra.mxu0 %v5511
        %7330 = vmatprep.subr.bf16.mxu0 %v5532
        %7331 = vmatpush1.bf16.msra.mxu0 %v5531
        %7332 = vmatprep.subr.bf16.mxu0 %v5552
        %7333 = vmatpush1.bf16.msra.mxu0 %v5551
        %7334 = vmatprep.subr.bf16.mxu0 %v5572
        %7335 = vmatpush1.bf16.msra.mxu0 %v5571
        %7336 = vmatprep.subr.bf16.mxu0 %v5592
        %7337 = vmatpush1.bf16.msra.mxu0 %v5591
        %7338 = vmatprep.subr.bf16.mxu0 %v5612
        %7339 = vmatpush1.bf16.msra.mxu0 %v5611
        %7340 = vmatprep.subr.bf16.mxu0 %v5632
        %7341 = vmatpush1.bf16.msra.mxu0 %v5631
        %7342 = vmatprep.subr.bf16.mxu0 %v5652
        %7343 = vmatpush1.bf16.msra.mxu0 %v5651
        %7344 = vmatprep.mubr.bf16.mxu0 %v1660
        %7345 = vmatmul.mubr.bf16.gmra.mrb[0].mxu0 %v1659
        %v7346 = vpop.f32.mrb[0].mxu0
        %v7347 = vadd.f32 %v7306, %v7346
        %v7348 = vpop.f32.mrb[0].mxu0
        %v7349 = vadd.f32 %v7308, %v7348
        %v7350 = vpop.f32.mrb[0].mxu0
        %v7351 = vpop.f32.mrb[0].mxu0
        %7352 = vdwg.mxu0
        %7353 = vmatprep.subr.bf16.mxu0 %v5672
        %7354 = vmatpush1.bf16.msra.mxu0 %v5671
        %7355 = vmatprep.subr.bf16.mxu0 %v5692
        %7356 = vmatpush1.bf16.msra.mxu0 %v5691
        %7357 = vmatprep.subr.bf16.mxu0 %v5712
        %7358 = vmatpush1.bf16.msra.mxu0 %v5711
        %7359 = vmatprep.subr.bf16.mxu0 %v5732
        %7360 = vmatpush1.bf16.msra.mxu0 %v5731
        %7361 = vmatprep.subr.bf16.mxu0 %v5752
        %7362 = vmatpush1.bf16.msra.mxu0 %v5751
        %7363 = vmatprep.subr.bf16.mxu0 %v5772
        %7364 = vmatpush1.bf16.msra.mxu0 %v5771
        %7365 = vmatprep.subr.bf16.mxu0 %v5792
        %7366 = vmatpush1.bf16.msra.mxu0 %v5791
        %7367 = vmatprep.subr.bf16.mxu0 %v5812
        %7368 = vmatpush1.bf16.msra.mxu0 %v5811
        %7369 = vmatprep.subr.bf16.mxu0 %v5832
        %7370 = vmatpush1.bf16.msra.mxu0 %v5831
        %7371 = vmatprep.subr.bf16.mxu0 %v5852
        %7372 = vmatpush1.bf16.msra.mxu0 %v5851
        %7373 = vmatprep.subr.bf16.mxu0 %v5872
        %7374 = vmatpush1.bf16.msra.mxu0 %v5871
        %7375 = vmatprep.subr.bf16.mxu0 %v5892
        %7376 = vmatpush1.bf16.msra.mxu0 %v5891
        %7377 = vmatprep.subr.bf16.mxu0 %v5912
        %7378 = vmatpush1.bf16.msra.mxu0 %v5911
        %7379 = vmatprep.subr.bf16.mxu0 %v5932
        %7380 = vmatpush1.bf16.msra.mxu0 %v5931
        %7381 = vmatprep.subr.bf16.mxu0 %v5952
        %7382 = vmatpush1.bf16.msra.mxu0 %v5951
        %7383 = vmatprep.subr.bf16.mxu0 %v5972
        %7384 = vmatpush1.bf16.msra.mxu0 %v5971
        %7385 = vmatprep.mubr.bf16.mxu0 %v1662
        %7386 = vmatmul.mubr.bf16.gmra.mrb[0].mxu0 %v1661
        %v7387 = vpop.f32.mrb[0].mxu0
        %v7388 = vadd.f32 %v7347, %v7387
        %v7389 = vpop.f32.mrb[0].mxu0
        %v7390 = vadd.f32 %v7349, %v7389
        %v7391 = vpop.f32.mrb[0].mxu0
        %v7392 = vpop.f32.mrb[0].mxu0
        %7393 = vdwg.mxu0
        %7394 = vmatprep.subr.bf16.mxu0 %v5992
        %7395 = vmatpush1.bf16.msra.mxu0 %v5991
        %7396 = vmatprep.subr.bf16.mxu0 %v6012
        %7397 = vmatpush1.bf16.msra.mxu0 %v6011
        %7398 = vmatprep.subr.bf16.mxu0 %v6032
        %7399 = vmatpush1.bf16.msra.mxu0 %v6031
        %7400 = vmatprep.subr.bf16.mxu0 %v6052
        %7401 = vmatpush1.bf16.msra.mxu0 %v6051
        %7402 = vmatprep.subr.bf16.mxu0 %v6072
        %7403 = vmatpush1.bf16.msra.mxu0 %v6071
        %7404 = vmatprep.subr.bf16.mxu0 %v6092
        %7405 = vmatpush1.bf16.msra.mxu0 %v6091
        %7406 = vmatprep.subr.bf16.mxu0 %v6112
        %7407 = vmatpush1.bf16.msra.mxu0 %v6111
        %7408 = vmatprep.subr.bf16.mxu0 %v6132
        %7409 = vmatpush1.bf16.msra.mxu0 %v6131
        %7410 = vmatprep.subr.bf16.mxu0 0
        %7411 = vmatpush1.bf16.msra.mxu0 0
        %7412 = vmatprep.subr.bf16.mxu0 0
        %7413 = vmatpush1.bf16.msra.mxu0 0
        %7414 = vmatprep.subr.bf16.mxu0 0
        %7415 = vmatpush1.bf16.msra.mxu0 0
        %7416 = vmatprep.subr.bf16.mxu0 0
        %7417 = vmatpush1.bf16.msra.mxu0 0
        %7418 = vmatprep.subr.bf16.mxu0 0
        %7419 = vmatpush1.bf16.msra.mxu0 0
        %7420 = vmatprep.subr.bf16.mxu0 0
        %7421 = vmatpush1.bf16.msra.mxu0 0
        %7422 = vmatprep.subr.bf16.mxu0 0
        %7423 = vmatpush1.bf16.msra.mxu0 0
        %7424 = vmatprep.subr.bf16.mxu0 0
        %7425 = vmatpush1.bf16.msra.mxu0 0
        %7426 = vmatprep.mubr.bf16.mxu0 0
        %7427 = vmatmul.mubr.bf16.gmra.mrb[0].mxu0 %v1663
        %v7428 = vpop.f32.mrb[0].mxu0
        %v7429 = vadd.f32 %v7388, %v7428
        %v7430 = vpop.f32.mrb[0].mxu0
        %v7431 = vadd.f32 %v7390, %v7430
        %v7432 = vpop.f32.mrb[0].mxu0
        %v7433 = vpop.f32.mrb[0].mxu0
        %7434 = vdwg.mxu0
        %7435 = vmatprep.subr.bf16.mxu0 %v5034
        %7436 = vmatpush1.bf16.msra.mxu0 %v5033
        %7437 = vmatprep.subr.bf16.mxu0 %v5054
        %7438 = vmatpush1.bf16.msra.mxu0 %v5053
        %7439 = vmatprep.subr.bf16.mxu0 %v5074
        %7440 = vmatpush1.bf16.msra.mxu0 %v5073
        %7441 = vmatprep.subr.bf16.mxu0 %v5094
        %7442 = vmatpush1.bf16.msra.mxu0 %v5093
        %7443 = vmatprep.subr.bf16.mxu0 %v5114
        %7444 = vmatpush1.bf16.msra.mxu0 %v5113
        %7445 = vmatprep.subr.bf16.mxu0 %v5134
        %7446 = vmatpush1.bf16.msra.mxu0 %v5133
        %7447 = vmatprep.subr.bf16.mxu0 %v5154
        %7448 = vmatpush1.bf16.msra.mxu0 %v5153
        %7449 = vmatprep.subr.bf16.mxu0 %v5174
        %7450 = vmatpush1.bf16.msra.mxu0 %v5173
        %7451 = vmatprep.subr.bf16.mxu0 %v5194
        %7452 = vmatpush1.bf16.msra.mxu0 %v5193
        %7453 = vmatprep.subr.bf16.mxu0 %v5214
        %7454 = vmatpush1.bf16.msra.mxu0 %v5213
        %7455 = vmatprep.subr.bf16.mxu0 %v5234
        %7456 = vmatpush1.bf16.msra.mxu0 %v5233
        %7457 = vmatprep.subr.bf16.mxu0 %v5254
        %7458 = vmatpush1.bf16.msra.mxu0 %v5253
        %7459 = vmatprep.subr.bf16.mxu0 %v5274
        %7460 = vmatpush1.bf16.msra.mxu0 %v5273
        %7461 = vmatprep.subr.bf16.mxu0 %v5294
        %7462 = vmatpush1.bf16.msra.mxu0 %v5293
        %7463 = vmatprep.subr.bf16.mxu0 %v5314
        %7464 = vmatpush1.bf16.msra.mxu0 %v5313
        %7465 = vmatprep.subr.bf16.mxu0 %v5334
        %7466 = vmatpush1.bf16.msra.mxu0 %v5333
        %7467 = vmatprep.mubr.bf16.mxu0 %v1658
        %7468 = vmatmul.mubr.bf16.gmra.mrb[0].mxu0 %v1657
        %v7469 = vpop.f32.mrb[0].mxu0
        %v7470 = vadd.f32 0.0, %v7469
        %v7471 = vpop.f32.mrb[0].mxu0
        %v7472 = vadd.f32 0.0, %v7471
        %v7473 = vpop.f32.mrb[0].mxu0
        %v7474 = vpop.f32.mrb[0].mxu0
        %7475 = vdwg.mxu0
        %7476 = vmatprep.subr.bf16.mxu0 %v5354
        %7477 = vmatpush1.bf16.msra.mxu0 %v5353
        %7478 = vmatprep.subr.bf16.mxu0 %v5374
        %7479 = vmatpush1.bf16.msra.mxu0 %v5373
        %7480 = vmatprep.subr.bf16.mxu0 %v5394
        %7481 = vmatpush1.bf16.msra.mxu0 %v5393
        %7482 = vmatprep.subr.bf16.mxu0 %v5414
        %7483 = vmatpush1.bf16.msra.mxu0 %v5413
        %7484 = vmatprep.subr.bf16.mxu0 %v5434
        %7485 = vmatpush1.bf16.msra.mxu0 %v5433
        %7486 = vmatprep.subr.bf16.mxu0 %v5454
        %7487 = vmatpush1.bf16.msra.mxu0 %v5453
        %7488 = vmatprep.subr.bf16.mxu0 %v5474
        %7489 = vmatpush1.bf16.msra.mxu0 %v5473
        %7490 = vmatprep.subr.bf16.mxu0 %v5494
        %7491 = vmatpush1.bf16.msra.mxu0 %v5493
        %7492 = vmatprep.subr.bf16.mxu0 %v5514
        %7493 = vmatpush1.bf16.msra.mxu0 %v5513
        %7494 = vmatprep.subr.bf16.mxu0 %v5534
        %7495 = vmatpush1.bf16.msra.mxu0 %v5533
        %7496 = vmatprep.subr.bf16.mxu0 %v5554
        %7497 = vmatpush1.bf16.msra.mxu0 %v5553
        %7498 = vmatprep.subr.bf16.mxu0 %v5574
        %7499 = vmatpush1.bf16.msra.mxu0 %v5573
        %7500 = vmatprep.subr.bf16.mxu0 %v5594
        %7501 = vmatpush1.bf16.msra.mxu0 %v5593
        %7502 = vmatprep.subr.bf16.mxu0 %v5614
        %7503 = vmatpush1.bf16.msra.mxu0 %v5613
        %7504 = vmatprep.subr.bf16.mxu0 %v5634
        %7505 = vmatpush1.bf16.msra.mxu0 %v5633
        %7506 = vmatprep.subr.bf16.mxu0 %v5654
        %7507 = vmatpush1.bf16.msra.mxu0 %v5653
        %7508 = vmatprep.mubr.bf16.mxu0 %v1660
        %7509 = vmatmul.mubr.bf16.gmra.mrb[0].mxu0 %v1659
        %v7510 = vpop.f32.mrb[0].mxu0
        %v7511 = vadd.f32 %v7470, %v7510
        %v7512 = vpop.f32.mrb[0].mxu0
        %v7513 = vadd.f32 %v7472, %v7512
        %v7514 = vpop.f32.mrb[0].mxu0
        %v7515 = vpop.f32.mrb[0].mxu0
        %7516 = vdwg.mxu0
        %7517 = vmatprep.subr.bf16.mxu0 %v5674
        %7518 = vmatpush1.bf16.msra.mxu0 %v5673
        %7519 = vmatprep.subr.bf16.mxu0 %v5694
        %7520 = vmatpush1.bf16.msra.mxu0 %v5693
        %7521 = vmatprep.subr.bf16.mxu0 %v5714
        %7522 = vmatpush1.bf16.msra.mxu0 %v5713
        %7523 = vmatprep.subr.bf16.mxu0 %v5734
        %7524 = vmatpush1.bf16.msra.mxu0 %v5733
        %7525 = vmatprep.subr.bf16.mxu0 %v5754
        %7526 = vmatpush1.bf16.msra.mxu0 %v5753
        %7527 = vmatprep.subr.bf16.mxu0 %v5774
        %7528 = vmatpush1.bf16.msra.mxu0 %v5773
        %7529 = vmatprep.subr.bf16.mxu0 %v5794
        %7530 = vmatpush1.bf16.msra.mxu0 %v5793
        %7531 = vmatprep.subr.bf16.mxu0 %v5814
        %7532 = vmatpush1.bf16.msra.mxu0 %v5813
        %7533 = vmatprep.subr.bf16.mxu0 %v5834
        %7534 = vmatpush1.bf16.msra.mxu0 %v5833
        %7535 = vmatprep.subr.bf16.mxu0 %v5854
        %7536 = vmatpush1.bf16.msra.mxu0 %v5853
        %7537 = vmatprep.subr.bf16.mxu0 %v5874
        %7538 = vmatpush1.bf16.msra.mxu0 %v5873
        %7539 = vmatprep.subr.bf16.mxu0 %v5894
        %7540 = vmatpush1.bf16.msra.mxu0 %v5893
        %7541 = vmatprep.subr.bf16.mxu0 %v5914
        %7542 = vmatpush1.bf16.msra.mxu0 %v5913
        %7543 = vmatprep.subr.bf16.mxu0 %v5934
        %7544 = vmatpush1.bf16.msra.mxu0 %v5933
        %7545 = vmatprep.subr.bf16.mxu0 %v5954
        %7546 = vmatpush1.bf16.msra.mxu0 %v5953
        %7547 = vmatprep.subr.bf16.mxu0 %v5974
        %7548 = vmatpush1.bf16.msra.mxu0 %v5973
        %7549 = vmatprep.mubr.bf16.mxu0 %v1662
        %7550 = vmatmul.mubr.bf16.gmra.mrb[0].mxu0 %v1661
        %v7551 = vpop.f32.mrb[0].mxu0
        %v7552 = vadd.f32 %v7511, %v7551
        %v7553 = vpop.f32.mrb[0].mxu0
        %v7554 = vadd.f32 %v7513, %v7553
        %v7555 = vpop.f32.mrb[0].mxu0
        %v7556 = vpop.f32.mrb[0].mxu0
        %7557 = vdwg.mxu0
        %7558 = vmatprep.subr.bf16.mxu0 %v5994
        %7559 = vmatpush1.bf16.msra.mxu0 %v5993
        %7560 = vmatprep.subr.bf16.mxu0 %v6014
        %7561 = vmatpush1.bf16.msra.mxu0 %v6013
        %7562 = vmatprep.subr.bf16.mxu0 %v6034
        %7563 = vmatpush1.bf16.msra.mxu0 %v6033
        %7564 = vmatprep.subr.bf16.mxu0 %v6054
        %7565 = vmatpush1.bf16.msra.mxu0 %v6053
        %7566 = vmatprep.subr.bf16.mxu0 %v6074
        %7567 = vmatpush1.bf16.msra.mxu0 %v6073
        %7568 = vmatprep.subr.bf16.mxu0 %v6094
        %7569 = vmatpush1.bf16.msra.mxu0 %v6093
        %7570 = vmatprep.subr.bf16.mxu0 %v6114
        %7571 = vmatpush1.bf16.msra.mxu0 %v6113
        %7572 = vmatprep.subr.bf16.mxu0 %v6134
        %7573 = vmatpush1.bf16.msra.mxu0 %v6133
        %7574 = vmatprep.subr.bf16.mxu0 0
        %7575 = vmatpush1.bf16.msra.mxu0 0
        %7576 = vmatprep.subr.bf16.mxu0 0
        %7577 = vmatpush1.bf16.msra.mxu0 0
        %7578 = vmatprep.subr.bf16.mxu0 0
        %7579 = vmatpush1.bf16.msra.mxu0 0
        %7580 = vmatprep.subr.bf16.mxu0 0
        %7581 = vmatpush1.bf16.msra.mxu0 0
        %7582 = vmatprep.subr.bf16.mxu0 0
        %7583 = vmatpush1.bf16.msra.mxu0 0
        %7584 = vmatprep.subr.bf16.mxu0 0
        %7585 = vmatpush1.bf16.msra.mxu0 0
        %7586 = vmatprep.subr.bf16.mxu0 0
        %7587 = vmatpush1.bf16.msra.mxu0 0
        %7588 = vmatprep.subr.bf16.mxu0 0
        %7589 = vmatpush1.bf16.msra.mxu0 0
        %7590 = vmatprep.mubr.bf16.mxu0 0
        %7591 = vmatmul.mubr.bf16.gmra.mrb[0].mxu0 %v1663
        %v7592 = vpop.f32.mrb[0].mxu0
        %v7593 = vadd.f32 %v7552, %v7592
        %v7594 = vpop.f32.mrb[0].mxu0
        %v7595 = vadd.f32 %v7554, %v7594
        %v7596 = vpop.f32.mrb[0].mxu0
        %v7597 = vpop.f32.mrb[0].mxu0
        %7598 = vdwg.mxu0
        %7599 = vmatprep.subr.bf16.mxu0 %v5036
        %7600 = vmatpush1.bf16.msra.mxu0 %v5035
        %7601 = vmatprep.subr.bf16.mxu0 %v5056
        %7602 = vmatpush1.bf16.msra.mxu0 %v5055
        %7603 = vmatprep.subr.bf16.mxu0 %v5076
        %7604 = vmatpush1.bf16.msra.mxu0 %v5075
        %7605 = vmatprep.subr.bf16.mxu0 %v5096
        %7606 = vmatpush1.bf16.msra.mxu0 %v5095
        %7607 = vmatprep.subr.bf16.mxu0 %v5116
        %7608 = vmatpush1.bf16.msra.mxu0 %v5115
        %7609 = vmatprep.subr.bf16.mxu0 %v5136
        %7610 = vmatpush1.bf16.msra.mxu0 %v5135
        %7611 = vmatprep.subr.bf16.mxu0 %v5156
        %7612 = vmatpush1.bf16.msra.mxu0 %v5155
        %7613 = vmatprep.subr.bf16.mxu0 %v5176
        %7614 = vmatpush1.bf16.msra.mxu0 %v5175
        %7615 = vmatprep.subr.bf16.mxu0 %v5196
        %7616 = vmatpush1.bf16.msra.mxu0 %v5195
        %7617 = vmatprep.subr.bf16.mxu0 %v5216
        %7618 = vmatpush1.bf16.msra.mxu0 %v5215
        %7619 = vmatprep.subr.bf16.mxu0 %v5236
        %7620 = vmatpush1.bf16.msra.mxu0 %v5235
        %7621 = vmatprep.subr.bf16.mxu0 %v5256
        %7622 = vmatpush1.bf16.msra.mxu0 %v5255
        %7623 = vmatprep.subr.bf16.mxu0 %v5276
        %7624 = vmatpush1.bf16.msra.mxu0 %v5275
        %7625 = vmatprep.subr.bf16.mxu0 %v5296
        %7626 = vmatpush1.bf16.msra.mxu0 %v5295
        %7627 = vmatprep.subr.bf16.mxu0 %v5316
        %7628 = vmatpush1.bf16.msra.mxu0 %v5315
        %7629 = vmatprep.subr.bf16.mxu0 %v5336
        %7630 = vmatpush1.bf16.msra.mxu0 %v5335
        %7631 = vmatprep.mubr.bf16.mxu0 %v1658
        %7632 = vmatmul.mubr.bf16.gmra.mrb[0].mxu0 %v1657
        %v7633 = vpop.f32.mrb[0].mxu0
        %v7634 = vadd.f32 0.0, %v7633
        %v7635 = vpop.f32.mrb[0].mxu0
        %v7636 = vadd.f32 0.0, %v7635
        %v7637 = vpop.f32.mrb[0].mxu0
        %v7638 = vpop.f32.mrb[0].mxu0
        %7639 = vdwg.mxu0
        %7640 = vmatprep.subr.bf16.mxu0 %v5356
        %7641 = vmatpush1.bf16.msra.mxu0 %v5355
        %7642 = vmatprep.subr.bf16.mxu0 %v5376
        %7643 = vmatpush1.bf16.msra.mxu0 %v5375
        %7644 = vmatprep.subr.bf16.mxu0 %v5396
        %7645 = vmatpush1.bf16.msra.mxu0 %v5395
        %7646 = vmatprep.subr.bf16.mxu0 %v5416
        %7647 = vmatpush1.bf16.msra.mxu0 %v5415
        %7648 = vmatprep.subr.bf16.mxu0 %v5436
        %7649 = vmatpush1.bf16.msra.mxu0 %v5435
        %7650 = vmatprep.subr.bf16.mxu0 %v5456
        %7651 = vmatpush1.bf16.msra.mxu0 %v5455
        %7652 = vmatprep.subr.bf16.mxu0 %v5476
        %7653 = vmatpush1.bf16.msra.mxu0 %v5475
        %7654 = vmatprep.subr.bf16.mxu0 %v5496
        %7655 = vmatpush1.bf16.msra.mxu0 %v5495
        %7656 = vmatprep.subr.bf16.mxu0 %v5516
        %7657 = vmatpush1.bf16.msra.mxu0 %v5515
        %7658 = vmatprep.subr.bf16.mxu0 %v5536
        %7659 = vmatpush1.bf16.msra.mxu0 %v5535
        %7660 = vmatprep.subr.bf16.mxu0 %v5556
        %7661 = vmatpush1.bf16.msra.mxu0 %v5555
        %7662 = vmatprep.subr.bf16.mxu0 %v5576
        %7663 = vmatpush1.bf16.msra.mxu0 %v5575
        %7664 = vmatprep.subr.bf16.mxu0 %v5596
        %7665 = vmatpush1.bf16.msra.mxu0 %v5595
        %7666 = vmatprep.subr.bf16.mxu0 %v5616
        %7667 = vmatpush1.bf16.msra.mxu0 %v5615
        %7668 = vmatprep.subr.bf16.mxu0 %v5636
        %7669 = vmatpush1.bf16.msra.mxu0 %v5635
        %7670 = vmatprep.subr.bf16.mxu0 %v5656
        %7671 = vmatpush1.bf16.msra.mxu0 %v5655
        %7672 = vmatprep.mubr.bf16.mxu0 %v1660
        %7673 = vmatmul.mubr.bf16.gmra.mrb[0].mxu0 %v1659
        %v7674 = vpop.f32.mrb[0].mxu0
        %v7675 = vadd.f32 %v7634, %v7674
        %v7676 = vpop.f32.mrb[0].mxu0
        %v7677 = vadd.f32 %v7636, %v7676
        %v7678 = vpop.f32.mrb[0].mxu0
        %v7679 = vpop.f32.mrb[0].mxu0
        %7680 = vdwg.mxu0
        %7681 = vmatprep.subr.bf16.mxu0 %v5676
        %7682 = vmatpush1.bf16.msra.mxu0 %v5675
        %7683 = vmatprep.subr.bf16.mxu0 %v5696
        %7684 = vmatpush1.bf16.msra.mxu0 %v5695
        %7685 = vmatprep.subr.bf16.mxu0 %v5716
        %7686 = vmatpush1.bf16.msra.mxu0 %v5715
        %7687 = vmatprep.subr.bf16.mxu0 %v5736
        %7688 = vmatpush1.bf16.msra.mxu0 %v5735
        %7689 = vmatprep.subr.bf16.mxu0 %v5756
        %7690 = vmatpush1.bf16.msra.mxu0 %v5755
        %7691 = vmatprep.subr.bf16.mxu0 %v5776
        %7692 = vmatpush1.bf16.msra.mxu0 %v5775
        %7693 = vmatprep.subr.bf16.mxu0 %v5796
        %7694 = vmatpush1.bf16.msra.mxu0 %v5795
        %7695 = vmatprep.subr.bf16.mxu0 %v5816
        %7696 = vmatpush1.bf16.msra.mxu0 %v5815
        %7697 = vmatprep.subr.bf16.mxu0 %v5836
        %7698 = vmatpush1.bf16.msra.mxu0 %v5835
        %7699 = vmatprep.subr.bf16.mxu0 %v5856
        %7700 = vmatpush1.bf16.msra.mxu0 %v5855
        %7701 = vmatprep.subr.bf16.mxu0 %v5876
        %7702 = vmatpush1.bf16.msra.mxu0 %v5875
        %7703 = vmatprep.subr.bf16.mxu0 %v5896
        %7704 = vmatpush1.bf16.msra.mxu0 %v5895
        %7705 = vmatprep.subr.bf16.mxu0 %v5916
        %7706 = vmatpush1.bf16.msra.mxu0 %v5915
        %7707 = vmatprep.subr.bf16.mxu0 %v5936
        %7708 = vmatpush1.bf16.msra.mxu0 %v5935
        %7709 = vmatprep.subr.bf16.mxu0 %v5956
        %7710 = vmatpush1.bf16.msra.mxu0 %v5955
        %7711 = vmatprep.subr.bf16.mxu0 %v5976
        %7712 = vmatpush1.bf16.msra.mxu0 %v5975
        %7713 = vmatprep.mubr.bf16.mxu0 %v1662
        %7714 = vmatmul.mubr.bf16.gmra.mrb[0].mxu0 %v1661
        %v7715 = vpop.f32.mrb[0].mxu0
        %v7716 = vadd.f32 %v7675, %v7715
        %v7717 = vpop.f32.mrb[0].mxu0
        %v7718 = vadd.f32 %v7677, %v7717
        %v7719 = vpop.f32.mrb[0].mxu0
        %v7720 = vpop.f32.mrb[0].mxu0
        %7721 = vdwg.mxu0
        %7722 = vmatprep.subr.bf16.mxu0 %v5996
        %7723 = vmatpush1.bf16.msra.mxu0 %v5995
        %7724 = vmatprep.subr.bf16.mxu0 %v6016
        %7725 = vmatpush1.bf16.msra.mxu0 %v6015
        %7726 = vmatprep.subr.bf16.mxu0 %v6036
        %7727 = vmatpush1.bf16.msra.mxu0 %v6035
        %7728 = vmatprep.subr.bf16.mxu0 %v6056
        %7729 = vmatpush1.bf16.msra.mxu0 %v6055
        %7730 = vmatprep.subr.bf16.mxu0 %v6076
        %7731 = vmatpush1.bf16.msra.mxu0 %v6075
        %7732 = vmatprep.subr.bf16.mxu0 %v6096
        %7733 = vmatpush1.bf16.msra.mxu0 %v6095
        %7734 = vmatprep.subr.bf16.mxu0 %v6116
        %7735 = vmatpush1.bf16.msra.mxu0 %v6115
        %7736 = vmatprep.subr.bf16.mxu0 %v6136
        %7737 = vmatpush1.bf16.msra.mxu0 %v6135
        %7738 = vmatprep.subr.bf16.mxu0 0
        %7739 = vmatpush1.bf16.msra.mxu0 0
        %7740 = vmatprep.subr.bf16.mxu0 0
        %7741 = vmatpush1.bf16.msra.mxu0 0
        %7742 = vmatprep.subr.bf16.mxu0 0
        %7743 = vmatpush1.bf16.msra.mxu0 0
        %7744 = vmatprep.subr.bf16.mxu0 0
        %7745 = vmatpush1.bf16.msra.mxu0 0
        %7746 = vmatprep.subr.bf16.mxu0 0
        %7747 = vmatpush1.bf16.msra.mxu0 0
        %7748 = vmatprep.subr.bf16.mxu0 0
        %7749 = vmatpush1.bf16.msra.mxu0 0
        %7750 = vmatprep.subr.bf16.mxu0 0
        %7751 = vmatpush1.bf16.msra.mxu0 0
        %7752 = vmatprep.subr.bf16.mxu0 0
        %7753 = vmatpush1.bf16.msra.mxu0 0
        %7754 = vmatprep.mubr.bf16.mxu0 0
        %7755 = vmatmul.mubr.bf16.gmra.mrb[0].mxu0 %v1663
        %v7756 = vpop.f32.mrb[0].mxu0
        %v7757 = vadd.f32 %v7716, %v7756
        %v7758 = vpop.f32.mrb[0].mxu0
        %v7759 = vadd.f32 %v7718, %v7758
        %v7760 = vpop.f32.mrb[0].mxu0
        %v7761 = vpop.f32.mrb[0].mxu0
        %7762 = vdwg.mxu0
        %7763 = vmatprep.subr.bf16.mxu0 %v5038
        %7764 = vmatpush1.bf16.msra.mxu0 %v5037
        %7765 = vmatprep.subr.bf16.mxu0 %v5058
        %7766 = vmatpush1.bf16.msra.mxu0 %v5057
        %7767 = vmatprep.subr.bf16.mxu0 %v5078
        %7768 = vmatpush1.bf16.msra.mxu0 %v5077
        %7769 = vmatprep.subr.bf16.mxu0 %v5098
        %7770 = vmatpush1.bf16.msra.mxu0 %v5097
        %7771 = vmatprep.subr.bf16.mxu0 %v5118
        %7772 = vmatpush1.bf16.msra.mxu0 %v5117
        %7773 = vmatprep.subr.bf16.mxu0 %v5138
        %7774 = vmatpush1.bf16.msra.mxu0 %v5137
        %7775 = vmatprep.subr.bf16.mxu0 %v5158
        %7776 = vmatpush1.bf16.msra.mxu0 %v5157
        %7777 = vmatprep.subr.bf16.mxu0 %v5178
        %7778 = vmatpush1.bf16.msra.mxu0 %v5177
        %7779 = vmatprep.subr.bf16.mxu0 %v5198
        %7780 = vmatpush1.bf16.msra.mxu0 %v5197
        %7781 = vmatprep.subr.bf16.mxu0 %v5218
        %7782 = vmatpush1.bf16.msra.mxu0 %v5217
        %7783 = vmatprep.subr.bf16.mxu0 %v5238
        %7784 = vmatpush1.bf16.msra.mxu0 %v5237
        %7785 = vmatprep.subr.bf16.mxu0 %v5258
        %7786 = vmatpush1.bf16.msra.mxu0 %v5257
        %7787 = vmatprep.subr.bf16.mxu0 %v5278
        %7788 = vmatpush1.bf16.msra.mxu0 %v5277
        %7789 = vmatprep.subr.bf16.mxu0 %v5298
        %7790 = vmatpush1.bf16.msra.mxu0 %v5297
        %7791 = vmatprep.subr.bf16.mxu0 %v5318
        %7792 = vmatpush1.bf16.msra.mxu0 %v5317
        %7793 = vmatprep.subr.bf16.mxu0 %v5338
        %7794 = vmatpush1.bf16.msra.mxu0 %v5337
        %7795 = vmatprep.mubr.bf16.mxu0 %v1658
        %7796 = vmatmul.mubr.bf16.gmra.mrb[0].mxu0 %v1657
        %v7797 = vpop.f32.mrb[0].mxu0
        %v7798 = vadd.f32 0.0, %v7797
        %v7799 = vpop.f32.mrb[0].mxu0
        %v7800 = vadd.f32 0.0, %v7799
        %v7801 = vpop.f32.mrb[0].mxu0
        %v7802 = vpop.f32.mrb[0].mxu0
        %7803 = vdwg.mxu0
        %7804 = vmatprep.subr.bf16.mxu0 %v5358
        %7805 = vmatpush1.bf16.msra.mxu0 %v5357
        %7806 = vmatprep.subr.bf16.mxu0 %v5378
        %7807 = vmatpush1.bf16.msra.mxu0 %v5377
        %7808 = vmatprep.subr.bf16.mxu0 %v5398
        %7809 = vmatpush1.bf16.msra.mxu0 %v5397
        %7810 = vmatprep.subr.bf16.mxu0 %v5418
        %7811 = vmatpush1.bf16.msra.mxu0 %v5417
        %7812 = vmatprep.subr.bf16.mxu0 %v5438
        %7813 = vmatpush1.bf16.msra.mxu0 %v5437
        %7814 = vmatprep.subr.bf16.mxu0 %v5458
        %7815 = vmatpush1.bf16.msra.mxu0 %v5457
        %7816 = vmatprep.subr.bf16.mxu0 %v5478
        %7817 = vmatpush1.bf16.msra.mxu0 %v5477
        %7818 = vmatprep.subr.bf16.mxu0 %v5498
        %7819 = vmatpush1.bf16.msra.mxu0 %v5497
        %7820 = vmatprep.subr.bf16.mxu0 %v5518
        %7821 = vmatpush1.bf16.msra.mxu0 %v5517
        %7822 = vmatprep.subr.bf16.mxu0 %v5538
        %7823 = vmatpush1.bf16.msra.mxu0 %v5537
        %7824 = vmatprep.subr.bf16.mxu0 %v5558
        %7825 = vmatpush1.bf16.msra.mxu0 %v5557
        %7826 = vmatprep.subr.bf16.mxu0 %v5578
        %7827 = vmatpush1.bf16.msra.mxu0 %v5577
        %7828 = vmatprep.subr.bf16.mxu0 %v5598
        %7829 = vmatpush1.bf16.msra.mxu0 %v5597
        %7830 = vmatprep.subr.bf16.mxu0 %v5618
        %7831 = vmatpush1.bf16.msra.mxu0 %v5617
        %7832 = vmatprep.subr.bf16.mxu0 %v5638
        %7833 = vmatpush1.bf16.msra.mxu0 %v5637
        %7834 = vmatprep.subr.bf16.mxu0 %v5658
        %7835 = vmatpush1.bf16.msra.mxu0 %v5657
        %7836 = vmatprep.mubr.bf16.mxu0 %v1660
        %7837 = vmatmul.mubr.bf16.gmra.mrb[0].mxu0 %v1659
        %v7838 = vpop.f32.mrb[0].mxu0
        %v7839 = vadd.f32 %v7798, %v7838
        %v7840 = vpop.f32.mrb[0].mxu0
        %v7841 = vadd.f32 %v7800, %v7840
        %v7842 = vpop.f32.mrb[0].mxu0
        %v7843 = vpop.f32.mrb[0].mxu0
        %7844 = vdwg.mxu0
        %7845 = vmatprep.subr.bf16.mxu0 %v5678
        %7846 = vmatpush1.bf16.msra.mxu0 %v5677
        %7847 = vmatprep.subr.bf16.mxu0 %v5698
        %7848 = vmatpush1.bf16.msra.mxu0 %v5697
        %7849 = vmatprep.subr.bf16.mxu0 %v5718
        %7850 = vmatpush1.bf16.msra.mxu0 %v5717
        %7851 = vmatprep.subr.bf16.mxu0 %v5738
        %7852 = vmatpush1.bf16.msra.mxu0 %v5737
        %7853 = vmatprep.subr.bf16.mxu0 %v5758
        %7854 = vmatpush1.bf16.msra.mxu0 %v5757
        %7855 = vmatprep.subr.bf16.mxu0 %v5778
        %7856 = vmatpush1.bf16.msra.mxu0 %v5777
        %7857 = vmatprep.subr.bf16.mxu0 %v5798
        %7858 = vmatpush1.bf16.msra.mxu0 %v5797
        %7859 = vmatprep.subr.bf16.mxu0 %v5818
        %7860 = vmatpush1.bf16.msra.mxu0 %v5817
        %7861 = vmatprep.subr.bf16.mxu0 %v5838
        %7862 = vmatpush1.bf16.msra.mxu0 %v5837
        %7863 = vmatprep.subr.bf16.mxu0 %v5858
        %7864 = vmatpush1.bf16.msra.mxu0 %v5857
        %7865 = vmatprep.subr.bf16.mxu0 %v5878
        %7866 = vmatpush1.bf16.msra.mxu0 %v5877
        %7867 = vmatprep.subr.bf16.mxu0 %v5898
        %7868 = vmatpush1.bf16.msra.mxu0 %v5897
        %7869 = vmatprep.subr.bf16.mxu0 %v5918
        %7870 = vmatpush1.bf16.msra.mxu0 %v5917
        %7871 = vmatprep.subr.bf16.mxu0 %v5938
        %7872 = vmatpush1.bf16.msra.mxu0 %v5937
        %7873 = vmatprep.subr.bf16.mxu0 %v5958
        %7874 = vmatpush1.bf16.msra.mxu0 %v5957
        %7875 = vmatprep.subr.bf16.mxu0 %v5978
        %7876 = vmatpush1.bf16.msra.mxu0 %v5977
        %7877 = vmatprep.mubr.bf16.mxu0 %v1662
        %7878 = vmatmul.mubr.bf16.gmra.mrb[0].mxu0 %v1661
        %v7879 = vpop.f32.mrb[0].mxu0
        %v7880 = vadd.f32 %v7839, %v7879
        %v7881 = vpop.f32.mrb[0].mxu0
        %v7882 = vadd.f32 %v7841, %v7881
        %v7883 = vpop.f32.mrb[0].mxu0
        %v7884 = vpop.f32.mrb[0].mxu0
        %7885 = vdwg.mxu0
        %7886 = vmatprep.subr.bf16.mxu0 %v5998
        %7887 = vmatpush1.bf16.msra.mxu0 %v5997
        %7888 = vmatprep.subr.bf16.mxu0 %v6018
        %7889 = vmatpush1.bf16.msra.mxu0 %v6017
        %7890 = vmatprep.subr.bf16.mxu0 %v6038
        %7891 = vmatpush1.bf16.msra.mxu0 %v6037
        %7892 = vmatprep.subr.bf16.mxu0 %v6058
        %7893 = vmatpush1.bf16.msra.mxu0 %v6057
        %7894 = vmatprep.subr.bf16.mxu0 %v6078
        %7895 = vmatpush1.bf16.msra.mxu0 %v6077
        %7896 = vmatprep.subr.bf16.mxu0 %v6098
        %7897 = vmatpush1.bf16.msra.mxu0 %v6097
        %7898 = vmatprep.subr.bf16.mxu0 %v6118
        %7899 = vmatpush1.bf16.msra.mxu0 %v6117
        %7900 = vmatprep.subr.bf16.mxu0 %v6138
        %7901 = vmatpush1.bf16.msra.mxu0 %v6137
        %7902 = vmatprep.subr.bf16.mxu0 0
        %7903 = vmatpush1.bf16.msra.mxu0 0
        %7904 = vmatprep.subr.bf16.mxu0 0
        %7905 = vmatpush1.bf16.msra.mxu0 0
        %7906 = vmatprep.subr.bf16.mxu0 0
        %7907 = vmatpush1.bf16.msra.mxu0 0
        %7908 = vmatprep.subr.bf16.mxu0 0
        %7909 = vmatpush1.bf16.msra.mxu0 0
        %7910 = vmatprep.subr.bf16.mxu0 0
        %7911 = vmatpush1.bf16.msra.mxu0 0
        %7912 = vmatprep.subr.bf16.mxu0 0
        %7913 = vmatpush1.bf16.msra.mxu0 0
        %7914 = vmatprep.subr.bf16.mxu0 0
        %7915 = vmatpush1.bf16.msra.mxu0 0
        %7916 = vmatprep.subr.bf16.mxu0 0
        %7917 = vmatpush1.bf16.msra.mxu0 0
        %7918 = vmatprep.mubr.bf16.mxu0 0
        %7919 = vmatmul.mubr.bf16.gmra.mrb[0].mxu0 %v1663
        %v7920 = vpop.f32.mrb[0].mxu0
        %v7921 = vadd.f32 %v7880, %v7920
        %v7922 = vpop.f32.mrb[0].mxu0
        %v7923 = vadd.f32 %v7882, %v7922
        %v7924 = vpop.f32.mrb[0].mxu0
        %v7925 = vpop.f32.mrb[0].mxu0
        %7926 = vdwg.mxu0
        %7927 = vmatprep.subr.bf16.mxu0 %v5040
        %7928 = vmatpush1.bf16.msra.mxu0 %v5039
        %7929 = vmatprep.subr.bf16.mxu0 %v5060
        %7930 = vmatpush1.bf16.msra.mxu0 %v5059
        %7931 = vmatprep.subr.bf16.mxu0 %v5080
        %7932 = vmatpush1.bf16.msra.mxu0 %v5079
        %7933 = vmatprep.subr.bf16.mxu0 %v5100
        %7934 = vmatpush1.bf16.msra.mxu0 %v5099
        %7935 = vmatprep.subr.bf16.mxu0 %v5120
        %7936 = vmatpush1.bf16.msra.mxu0 %v5119
        %7937 = vmatprep.subr.bf16.mxu0 %v5140
        %7938 = vmatpush1.bf16.msra.mxu0 %v5139
        %7939 = vmatprep.subr.bf16.mxu0 %v5160
        %7940 = vmatpush1.bf16.msra.mxu0 %v5159
        %7941 = vmatprep.subr.bf16.mxu0 %v5180
        %7942 = vmatpush1.bf16.msra.mxu0 %v5179
        %7943 = vmatprep.subr.bf16.mxu0 %v5200
        %7944 = vmatpush1.bf16.msra.mxu0 %v5199
        %7945 = vmatprep.subr.bf16.mxu0 %v5220
        %7946 = vmatpush1.bf16.msra.mxu0 %v5219
        %7947 = vmatprep.subr.bf16.mxu0 %v5240
        %7948 = vmatpush1.bf16.msra.mxu0 %v5239
        %7949 = vmatprep.subr.bf16.mxu0 %v5260
        %7950 = vmatpush1.bf16.msra.mxu0 %v5259
        %7951 = vmatprep.subr.bf16.mxu0 %v5280
        %7952 = vmatpush1.bf16.msra.mxu0 %v5279
        %7953 = vmatprep.subr.bf16.mxu0 %v5300
        %7954 = vmatpush1.bf16.msra.mxu0 %v5299
        %7955 = vmatprep.subr.bf16.mxu0 %v5320
        %7956 = vmatpush1.bf16.msra.mxu0 %v5319
        %7957 = vmatprep.subr.bf16.mxu0 %v5340
        %7958 = vmatpush1.bf16.msra.mxu0 %v5339
        %7959 = vmatprep.mubr.bf16.mxu0 %v1658
        %7960 = vmatmul.mubr.bf16.gmra.mrb[0].mxu0 %v1657
        %v7961 = vpop.f32.mrb[0].mxu0
        %v7962 = vadd.f32 0.0, %v7961
        %v7963 = vpop.f32.mrb[0].mxu0
        %v7964 = vadd.f32 0.0, %v7963
        %v7965 = vpop.f32.mrb[0].mxu0
        %v7966 = vpop.f32.mrb[0].mxu0
        %7967 = vdwg.mxu0
        %7968 = vmatprep.subr.bf16.mxu0 %v5360
        %7969 = vmatpush1.bf16.msra.mxu0 %v5359
        %7970 = vmatprep.subr.bf16.mxu0 %v5380
        %7971 = vmatpush1.bf16.msra.mxu0 %v5379
        %7972 = vmatprep.subr.bf16.mxu0 %v5400
        %7973 = vmatpush1.bf16.msra.mxu0 %v5399
        %7974 = vmatprep.subr.bf16.mxu0 %v5420
        %7975 = vmatpush1.bf16.msra.mxu0 %v5419
        %7976 = vmatprep.subr.bf16.mxu0 %v5440
        %7977 = vmatpush1.bf16.msra.mxu0 %v5439
        %7978 = vmatprep.subr.bf16.mxu0 %v5460
        %7979 = vmatpush1.bf16.msra.mxu0 %v5459
        %7980 = vmatprep.subr.bf16.mxu0 %v5480
        %7981 = vmatpush1.bf16.msra.mxu0 %v5479
        %7982 = vmatprep.subr.bf16.mxu0 %v5500
        %7983 = vmatpush1.bf16.msra.mxu0 %v5499
        %7984 = vmatprep.subr.bf16.mxu0 %v5520
        %7985 = vmatpush1.bf16.msra.mxu0 %v5519
        %7986 = vmatprep.subr.bf16.mxu0 %v5540
        %7987 = vmatpush1.bf16.msra.mxu0 %v5539
        %7988 = vmatprep.subr.bf16.mxu0 %v5560
        %7989 = vmatpush1.bf16.msra.mxu0 %v5559
        %7990 = vmatprep.subr.bf16.mxu0 %v5580
        %7991 = vmatpush1.bf16.msra.mxu0 %v5579
        %7992 = vmatprep.subr.bf16.mxu0 %v5600
        %7993 = vmatpush1.bf16.msra.mxu0 %v5599
        %7994 = vmatprep.subr.bf16.mxu0 %v5620
        %7995 = vmatpush1.bf16.msra.mxu0 %v5619
        %7996 = vmatprep.subr.bf16.mxu0 %v5640
        %7997 = vmatpush1.bf16.msra.mxu0 %v5639
        %7998 = vmatprep.subr.bf16.mxu0 %v5660
        %7999 = vmatpush1.bf16.msra.mxu0 %v5659
        %8000 = vmatprep.mubr.bf16.mxu0 %v1660
        %8001 = vmatmul.mubr.bf16.gmra.mrb[0].mxu0 %v1659
        %v8002 = vpop.f32.mrb[0].mxu0
        %v8003 = vadd.f32 %v7962, %v8002
        %v8004 = vpop.f32.mrb[0].mxu0
        %v8005 = vadd.f32 %v7964, %v8004
        %v8006 = vpop.f32.mrb[0].mxu0
        %v8007 = vpop.f32.mrb[0].mxu0
        %8008 = vdwg.mxu0
        %8009 = vmatprep.subr.bf16.mxu0 %v5680
        %8010 = vmatpush1.bf16.msra.mxu0 %v5679
        %8011 = vmatprep.subr.bf16.mxu0 %v5700
        %8012 = vmatpush1.bf16.msra.mxu0 %v5699
        %8013 = vmatprep.subr.bf16.mxu0 %v5720
        %8014 = vmatpush1.bf16.msra.mxu0 %v5719
        %8015 = vmatprep.subr.bf16.mxu0 %v5740
        %8016 = vmatpush1.bf16.msra.mxu0 %v5739
        %8017 = vmatprep.subr.bf16.mxu0 %v5760
        %8018 = vmatpush1.bf16.msra.mxu0 %v5759
        %8019 = vmatprep.subr.bf16.mxu0 %v5780
        %8020 = vmatpush1.bf16.msra.mxu0 %v5779
        %8021 = vmatprep.subr.bf16.mxu0 %v5800
        %8022 = vmatpush1.bf16.msra.mxu0 %v5799
        %8023 = vmatprep.subr.bf16.mxu0 %v5820
        %8024 = vmatpush1.bf16.msra.mxu0 %v5819
        %8025 = vmatprep.subr.bf16.mxu0 %v5840
        %8026 = vmatpush1.bf16.msra.mxu0 %v5839
        %8027 = vmatprep.subr.bf16.mxu0 %v5860
        %8028 = vmatpush1.bf16.msra.mxu0 %v5859
        %8029 = vmatprep.subr.bf16.mxu0 %v5880
        %8030 = vmatpush1.bf16.msra.mxu0 %v5879
        %8031 = vmatprep.subr.bf16.mxu0 %v5900
        %8032 = vmatpush1.bf16.msra.mxu0 %v5899
        %8033 = vmatprep.subr.bf16.mxu0 %v5920
        %8034 = vmatpush1.bf16.msra.mxu0 %v5919
        %8035 = vmatprep.subr.bf16.mxu0 %v5940
        %8036 = vmatpush1.bf16.msra.mxu0 %v5939
        %8037 = vmatprep.subr.bf16.mxu0 %v5960
        %8038 = vmatpush1.bf16.msra.mxu0 %v5959
        %8039 = vmatprep.subr.bf16.mxu0 %v5980
        %8040 = vmatpush1.bf16.msra.mxu0 %v5979
        %8041 = vmatprep.mubr.bf16.mxu0 %v1662
        %8042 = vmatmul.mubr.bf16.gmra.mrb[0].mxu0 %v1661
        %v8043 = vpop.f32.mrb[0].mxu0
        %v8044 = vadd.f32 %v8003, %v8043
        %v8045 = vpop.f32.mrb[0].mxu0
        %v8046 = vadd.f32 %v8005, %v8045
        %v8047 = vpop.f32.mrb[0].mxu0
        %v8048 = vpop.f32.mrb[0].mxu0
        %8049 = vdwg.mxu0
        %8050 = vmatprep.subr.bf16.mxu0 %v6000
        %8051 = vmatpush1.bf16.msra.mxu0 %v5999
        %8052 = vmatprep.subr.bf16.mxu0 %v6020
        %8053 = vmatpush1.bf16.msra.mxu0 %v6019
        %8054 = vmatprep.subr.bf16.mxu0 %v6040
        %8055 = vmatpush1.bf16.msra.mxu0 %v6039
        %8056 = vmatprep.subr.bf16.mxu0 %v6060
        %8057 = vmatpush1.bf16.msra.mxu0 %v6059
        %8058 = vmatprep.subr.bf16.mxu0 %v6080
        %8059 = vmatpush1.bf16.msra.mxu0 %v6079
        %8060 = vmatprep.subr.bf16.mxu0 %v6100
        %8061 = vmatpush1.bf16.msra.mxu0 %v6099
        %8062 = vmatprep.subr.bf16.mxu0 %v6120
        %8063 = vmatpush1.bf16.msra.mxu0 %v6119
        %8064 = vmatprep.subr.bf16.mxu0 %v6140
        %8065 = vmatpush1.bf16.msra.mxu0 %v6139
        %8066 = vmatprep.subr.bf16.mxu0 0
        %8067 = vmatpush1.bf16.msra.mxu0 0
        %8068 = vmatprep.subr.bf16.mxu0 0
        %8069 = vmatpush1.bf16.msra.mxu0 0
        %8070 = vmatprep.subr.bf16.mxu0 0
        %8071 = vmatpush1.bf16.msra.mxu0 0
        %8072 = vmatprep.subr.bf16.mxu0 0
        %8073 = vmatpush1.bf16.msra.mxu0 0
        %8074 = vmatprep.subr.bf16.mxu0 0
        %8075 = vmatpush1.bf16.msra.mxu0 0
        %8076 = vmatprep.subr.bf16.mxu0 0
        %8077 = vmatpush1.bf16.msra.mxu0 0
        %8078 = vmatprep.subr.bf16.mxu0 0
        %8079 = vmatpush1.bf16.msra.mxu0 0
        %8080 = vmatprep.subr.bf16.mxu0 0
        %8081 = vmatpush1.bf16.msra.mxu0 0
        %8082 = vmatprep.mubr.bf16.mxu0 0
        %8083 = vmatmul.mubr.bf16.gmra.mrb[0].mxu0 %v1663
        %v8084 = vpop.f32.mrb[0].mxu0
        %v8085 = vadd.f32 %v8044, %v8084
        %v8086 = vpop.f32.mrb[0].mxu0
        %v8087 = vadd.f32 %v8046, %v8086
        %v8088 = vpop.f32.mrb[0].mxu0
        %v8089 = vpop.f32.mrb[0].mxu0
        %8090 = vdwg.mxu0
        %8091 = vmatprep.subr.bf16.mxu0 %v5042
        %8092 = vmatpush1.bf16.msra.mxu0 %v5041
        %8093 = vmatprep.subr.bf16.mxu0 %v5062
        %8094 = vmatpush1.bf16.msra.mxu0 %v5061
        %8095 = vmatprep.subr.bf16.mxu0 %v5082
        %8096 = vmatpush1.bf16.msra.mxu0 %v5081
        %8097 = vmatprep.subr.bf16.mxu0 %v5102
        %8098 = vmatpush1.bf16.msra.mxu0 %v5101
        %8099 = vmatprep.subr.bf16.mxu0 %v5122
        %8100 = vmatpush1.bf16.msra.mxu0 %v5121
        %8101 = vmatprep.subr.bf16.mxu0 %v5142
        %8102 = vmatpush1.bf16.msra.mxu0 %v5141
        %8103 = vmatprep.subr.bf16.mxu0 %v5162
        %8104 = vmatpush1.bf16.msra.mxu0 %v5161
        %8105 = vmatprep.subr.bf16.mxu0 %v5182
        %8106 = vmatpush1.bf16.msra.mxu0 %v5181
        %8107 = vmatprep.subr.bf16.mxu0 %v5202
        %8108 = vmatpush1.bf16.msra.mxu0 %v5201
        %8109 = vmatprep.subr.bf16.mxu0 %v5222
        %8110 = vmatpush1.bf16.msra.mxu0 %v5221
        %8111 = vmatprep.subr.bf16.mxu0 %v5242
        %8112 = vmatpush1.bf16.msra.mxu0 %v5241
        %8113 = vmatprep.subr.bf16.mxu0 %v5262
        %8114 = vmatpush1.bf16.msra.mxu0 %v5261
        %8115 = vmatprep.subr.bf16.mxu0 %v5282
        %8116 = vmatpush1.bf16.msra.mxu0 %v5281
        %8117 = vmatprep.subr.bf16.mxu0 %v5302
        %8118 = vmatpush1.bf16.msra.mxu0 %v5301
        %8119 = vmatprep.subr.bf16.mxu0 %v5322
        %8120 = vmatpush1.bf16.msra.mxu0 %v5321
        %8121 = vmatprep.subr.bf16.mxu0 %v5342
        %8122 = vmatpush1.bf16.msra.mxu0 %v5341
        %8123 = vmatprep.mubr.bf16.mxu0 %v1658
        %8124 = vmatmul.mubr.bf16.gmra.mrb[0].mxu0 %v1657
        %v8125 = vpop.f32.mrb[0].mxu0
        %v8126 = vadd.f32 0.0, %v8125
        %v8127 = vpop.f32.mrb[0].mxu0
        %v8128 = vadd.f32 0.0, %v8127
        %v8129 = vpop.f32.mrb[0].mxu0
        %v8130 = vpop.f32.mrb[0].mxu0
        %8131 = vdwg.mxu0
        %8132 = vmatprep.subr.bf16.mxu0 %v5362
        %8133 = vmatpush1.bf16.msra.mxu0 %v5361
        %8134 = vmatprep.subr.bf16.mxu0 %v5382
        %8135 = vmatpush1.bf16.msra.mxu0 %v5381
        %8136 = vmatprep.subr.bf16.mxu0 %v5402
        %8137 = vmatpush1.bf16.msra.mxu0 %v5401
        %8138 = vmatprep.subr.bf16.mxu0 %v5422
        %8139 = vmatpush1.bf16.msra.mxu0 %v5421
        %8140 = vmatprep.subr.bf16.mxu0 %v5442
        %8141 = vmatpush1.bf16.msra.mxu0 %v5441
        %8142 = vmatprep.subr.bf16.mxu0 %v5462
        %8143 = vmatpush1.bf16.msra.mxu0 %v5461
        %8144 = vmatprep.subr.bf16.mxu0 %v5482
        %8145 = vmatpush1.bf16.msra.mxu0 %v5481
        %8146 = vmatprep.subr.bf16.mxu0 %v5502
        %8147 = vmatpush1.bf16.msra.mxu0 %v5501
        %8148 = vmatprep.subr.bf16.mxu0 %v5522
        %8149 = vmatpush1.bf16.msra.mxu0 %v5521
        %8150 = vmatprep.subr.bf16.mxu0 %v5542
        %8151 = vmatpush1.bf16.msra.mxu0 %v5541
        %8152 = vmatprep.subr.bf16.mxu0 %v5562
        %8153 = vmatpush1.bf16.msra.mxu0 %v5561
        %8154 = vmatprep.subr.bf16.mxu0 %v5582
        %8155 = vmatpush1.bf16.msra.mxu0 %v5581
        %8156 = vmatprep.subr.bf16.mxu0 %v5602
        %8157 = vmatpush1.bf16.msra.mxu0 %v5601
        %8158 = vmatprep.subr.bf16.mxu0 %v5622
        %8159 = vmatpush1.bf16.msra.mxu0 %v5621
        %8160 = vmatprep.subr.bf16.mxu0 %v5642
        %8161 = vmatpush1.bf16.msra.mxu0 %v5641
        %8162 = vmatprep.subr.bf16.mxu0 %v5662
        %8163 = vmatpush1.bf16.msra.mxu0 %v5661
        %8164 = vmatprep.mubr.bf16.mxu0 %v1660
        %8165 = vmatmul.mubr.bf16.gmra.mrb[0].mxu0 %v1659
        %v8166 = vpop.f32.mrb[0].mxu0
        %v8167 = vadd.f32 %v8126, %v8166
        %v8168 = vpop.f32.mrb[0].mxu0
        %v8169 = vadd.f32 %v8128, %v8168
        %v8170 = vpop.f32.mrb[0].mxu0
        %v8171 = vpop.f32.mrb[0].mxu0
        %8172 = vdwg.mxu0
        %8173 = vmatprep.subr.bf16.mxu0 %v5682
        %8174 = vmatpush1.bf16.msra.mxu0 %v5681
        %8175 = vmatprep.subr.bf16.mxu0 %v5702
        %8176 = vmatpush1.bf16.msra.mxu0 %v5701
        %8177 = vmatprep.subr.bf16.mxu0 %v5722
        %8178 = vmatpush1.bf16.msra.mxu0 %v5721
        %8179 = vmatprep.subr.bf16.mxu0 %v5742
        %8180 = vmatpush1.bf16.msra.mxu0 %v5741
        %8181 = vmatprep.subr.bf16.mxu0 %v5762
        %8182 = vmatpush1.bf16.msra.mxu0 %v5761
        %8183 = vmatprep.subr.bf16.mxu0 %v5782
        %8184 = vmatpush1.bf16.msra.mxu0 %v5781
        %8185 = vmatprep.subr.bf16.mxu0 %v5802
        %8186 = vmatpush1.bf16.msra.mxu0 %v5801
        %8187 = vmatprep.subr.bf16.mxu0 %v5822
        %8188 = vmatpush1.bf16.msra.mxu0 %v5821
        %8189 = vmatprep.subr.bf16.mxu0 %v5842
        %8190 = vmatpush1.bf16.msra.mxu0 %v5841
        %8191 = vmatprep.subr.bf16.mxu0 %v5862
        %8192 = vmatpush1.bf16.msra.mxu0 %v5861
        %8193 = vmatprep.subr.bf16.mxu0 %v5882
        %8194 = vmatpush1.bf16.msra.mxu0 %v5881
        %8195 = vmatprep.subr.bf16.mxu0 %v5902
        %8196 = vmatpush1.bf16.msra.mxu0 %v5901
        %8197 = vmatprep.subr.bf16.mxu0 %v5922
        %8198 = vmatpush1.bf16.msra.mxu0 %v5921
        %8199 = vmatprep.subr.bf16.mxu0 %v5942
        %8200 = vmatpush1.bf16.msra.mxu0 %v5941
        %8201 = vmatprep.subr.bf16.mxu0 %v5962
        %8202 = vmatpush1.bf16.msra.mxu0 %v5961
        %8203 = vmatprep.subr.bf16.mxu0 %v5982
        %8204 = vmatpush1.bf16.msra.mxu0 %v5981
        %8205 = vmatprep.mubr.bf16.mxu0 %v1662
        %8206 = vmatmul.mubr.bf16.gmra.mrb[0].mxu0 %v1661
        %v8207 = vpop.f32.mrb[0].mxu0
        %v8208 = vadd.f32 %v8167, %v8207
        %v8209 = vpop.f32.mrb[0].mxu0
        %v8210 = vadd.f32 %v8169, %v8209
        %v8211 = vpop.f32.mrb[0].mxu0
        %v8212 = vpop.f32.mrb[0].mxu0
        %8213 = vdwg.mxu0
        %8214 = vmatprep.subr.bf16.mxu0 %v6002
        %8215 = vmatpush1.bf16.msra.mxu0 %v6001
        %8216 = vmatprep.subr.bf16.mxu0 %v6022
        %8217 = vmatpush1.bf16.msra.mxu0 %v6021
        %8218 = vmatprep.subr.bf16.mxu0 %v6042
        %8219 = vmatpush1.bf16.msra.mxu0 %v6041
        %8220 = vmatprep.subr.bf16.mxu0 %v6062
        %8221 = vmatpush1.bf16.msra.mxu0 %v6061
        %8222 = vmatprep.subr.bf16.mxu0 %v6082
        %8223 = vmatpush1.bf16.msra.mxu0 %v6081
        %8224 = vmatprep.subr.bf16.mxu0 %v6102
        %8225 = vmatpush1.bf16.msra.mxu0 %v6101
        %8226 = vmatprep.subr.bf16.mxu0 %v6122
        %8227 = vmatpush1.bf16.msra.mxu0 %v6121
        %8228 = vmatprep.subr.bf16.mxu0 %v6142
        %8229 = vmatpush1.bf16.msra.mxu0 %v6141
        %8230 = vmatprep.subr.bf16.mxu0 0
        %8231 = vmatpush1.bf16.msra.mxu0 0
        %8232 = vmatprep.subr.bf16.mxu0 0
        %8233 = vmatpush1.bf16.msra.mxu0 0
        %8234 = vmatprep.subr.bf16.mxu0 0
        %8235 = vmatpush1.bf16.msra.mxu0 0
        %8236 = vmatprep.subr.bf16.mxu0 0
        %8237 = vmatpush1.bf16.msra.mxu0 0
        %8238 = vmatprep.subr.bf16.mxu0 0
        %8239 = vmatpush1.bf16.msra.mxu0 0
        %8240 = vmatprep.subr.bf16.mxu0 0
        %8241 = vmatpush1.bf16.msra.mxu0 0
        %8242 = vmatprep.subr.bf16.mxu0 0
        %8243 = vmatpush1.bf16.msra.mxu0 0
        %8244 = vmatprep.subr.bf16.mxu0 0
        %8245 = vmatpush1.bf16.msra.mxu0 0
        %8246 = vmatprep.mubr.bf16.mxu0 0
        %8247 = vmatmul.mubr.bf16.gmra.mrb[0].mxu0 %v1663
        %v8248 = vpop.f32.mrb[0].mxu0
        %v8249 = vadd.f32 %v8208, %v8248
        %v8250 = vpop.f32.mrb[0].mxu0
        %v8251 = vadd.f32 %v8210, %v8250
        %v8252 = vpop.f32.mrb[0].mxu0
        %v8253 = vpop.f32.mrb[0].mxu0
        %8254 = vdwg.mxu0
        %8255 = vmatprep.subr.bf16.mxu0 %v5044
        %8256 = vmatpush1.bf16.msra.mxu0 %v5043
        %8257 = vmatprep.subr.bf16.mxu0 %v5064
        %8258 = vmatpush1.bf16.msra.mxu0 %v5063
        %8259 = vmatprep.subr.bf16.mxu0 %v5084
        %8260 = vmatpush1.bf16.msra.mxu0 %v5083
        %8261 = vmatprep.subr.bf16.mxu0 %v5104
        %8262 = vmatpush1.bf16.msra.mxu0 %v5103
        %8263 = vmatprep.subr.bf16.mxu0 %v5124
        %8264 = vmatpush1.bf16.msra.mxu0 %v5123
        %8265 = vmatprep.subr.bf16.mxu0 %v5144
        %8266 = vmatpush1.bf16.msra.mxu0 %v5143
        %8267 = vmatprep.subr.bf16.mxu0 %v5164
        %8268 = vmatpush1.bf16.msra.mxu0 %v5163
        %8269 = vmatprep.subr.bf16.mxu0 %v5184
        %8270 = vmatpush1.bf16.msra.mxu0 %v5183
        %8271 = vmatprep.subr.bf16.mxu0 %v5204
        %8272 = vmatpush1.bf16.msra.mxu0 %v5203
        %8273 = vmatprep.subr.bf16.mxu0 %v5224
        %8274 = vmatpush1.bf16.msra.mxu0 %v5223
        %8275 = vmatprep.subr.bf16.mxu0 %v5244
        %8276 = vmatpush1.bf16.msra.mxu0 %v5243
        %8277 = vmatprep.subr.bf16.mxu0 %v5264
        %8278 = vmatpush1.bf16.msra.mxu0 %v5263
        %8279 = vmatprep.subr.bf16.mxu0 %v5284
        %8280 = vmatpush1.bf16.msra.mxu0 %v5283
        %8281 = vmatprep.subr.bf16.mxu0 %v5304
        %8282 = vmatpush1.bf16.msra.mxu0 %v5303
        %8283 = vmatprep.subr.bf16.mxu0 %v5324
        %8284 = vmatpush1.bf16.msra.mxu0 %v5323
        %8285 = vmatprep.subr.bf16.mxu0 %v5344
        %8286 = vmatpush1.bf16.msra.mxu0 %v5343
        %8287 = vmatprep.mubr.bf16.mxu0 %v1658
        %8288 = vmatmul.mubr.bf16.gmra.mrb[0].mxu0 %v1657
        %v8289 = vpop.f32.mrb[0].mxu0
        %v8290 = vadd.f32 0.0, %v8289
        %v8291 = vpop.f32.mrb[0].mxu0
        %v8292 = vadd.f32 0.0, %v8291
        %v8293 = vpop.f32.mrb[0].mxu0
        %v8294 = vpop.f32.mrb[0].mxu0
        %8295 = vdwg.mxu0
        %8296 = vmatprep.subr.bf16.mxu0 %v5364
        %8297 = vmatpush1.bf16.msra.mxu0 %v5363
        %8298 = vmatprep.subr.bf16.mxu0 %v5384
        %8299 = vmatpush1.bf16.msra.mxu0 %v5383
        %8300 = vmatprep.subr.bf16.mxu0 %v5404
        %8301 = vmatpush1.bf16.msra.mxu0 %v5403
        %8302 = vmatprep.subr.bf16.mxu0 %v5424
        %8303 = vmatpush1.bf16.msra.mxu0 %v5423
        %8304 = vmatprep.subr.bf16.mxu0 %v5444
        %8305 = vmatpush1.bf16.msra.mxu0 %v5443
        %8306 = vmatprep.subr.bf16.mxu0 %v5464
        %8307 = vmatpush1.bf16.msra.mxu0 %v5463
        %8308 = vmatprep.subr.bf16.mxu0 %v5484
        %8309 = vmatpush1.bf16.msra.mxu0 %v5483
        %8310 = vmatprep.subr.bf16.mxu0 %v5504
        %8311 = vmatpush1.bf16.msra.mxu0 %v5503
        %8312 = vmatprep.subr.bf16.mxu0 %v5524
        %8313 = vmatpush1.bf16.msra.mxu0 %v5523
        %8314 = vmatprep.subr.bf16.mxu0 %v5544
        %8315 = vmatpush1.bf16.msra.mxu0 %v5543
        %8316 = vmatprep.subr.bf16.mxu0 %v5564
        %8317 = vmatpush1.bf16.msra.mxu0 %v5563
        %8318 = vmatprep.subr.bf16.mxu0 %v5584
        %8319 = vmatpush1.bf16.msra.mxu0 %v5583
        %8320 = vmatprep.subr.bf16.mxu0 %v5604
        %8321 = vmatpush1.bf16.msra.mxu0 %v5603
        %8322 = vmatprep.subr.bf16.mxu0 %v5624
        %8323 = vmatpush1.bf16.msra.mxu0 %v5623
        %8324 = vmatprep.subr.bf16.mxu0 %v5644
        %8325 = vmatpush1.bf16.msra.mxu0 %v5643
        %8326 = vmatprep.subr.bf16.mxu0 %v5664
        %8327 = vmatpush1.bf16.msra.mxu0 %v5663
        %8328 = vmatprep.mubr.bf16.mxu0 %v1660
        %8329 = vmatmul.mubr.bf16.gmra.mrb[0].mxu0 %v1659
        %v8330 = vpop.f32.mrb[0].mxu0
        %v8331 = vadd.f32 %v8290, %v8330
        %v8332 = vpop.f32.mrb[0].mxu0
        %v8333 = vadd.f32 %v8292, %v8332
        %v8334 = vpop.f32.mrb[0].mxu0
        %v8335 = vpop.f32.mrb[0].mxu0
        %8336 = vdwg.mxu0
        %8337 = vmatprep.subr.bf16.mxu0 %v5684
        %8338 = vmatpush1.bf16.msra.mxu0 %v5683
        %8339 = vmatprep.subr.bf16.mxu0 %v5704
        %8340 = vmatpush1.bf16.msra.mxu0 %v5703
        %8341 = vmatprep.subr.bf16.mxu0 %v5724
        %8342 = vmatpush1.bf16.msra.mxu0 %v5723
        %8343 = vmatprep.subr.bf16.mxu0 %v5744
        %8344 = vmatpush1.bf16.msra.mxu0 %v5743
        %8345 = vmatprep.subr.bf16.mxu0 %v5764
        %8346 = vmatpush1.bf16.msra.mxu0 %v5763
        %8347 = vmatprep.subr.bf16.mxu0 %v5784
        %8348 = vmatpush1.bf16.msra.mxu0 %v5783
        %8349 = vmatprep.subr.bf16.mxu0 %v5804
        %8350 = vmatpush1.bf16.msra.mxu0 %v5803
        %8351 = vmatprep.subr.bf16.mxu0 %v5824
        %8352 = vmatpush1.bf16.msra.mxu0 %v5823
        %8353 = vmatprep.subr.bf16.mxu0 %v5844
        %8354 = vmatpush1.bf16.msra.mxu0 %v5843
        %8355 = vmatprep.subr.bf16.mxu0 %v5864
        %8356 = vmatpush1.bf16.msra.mxu0 %v5863
        %8357 = vmatprep.subr.bf16.mxu0 %v5884
        %8358 = vmatpush1.bf16.msra.mxu0 %v5883
        %8359 = vmatprep.subr.bf16.mxu0 %v5904
        %8360 = vmatpush1.bf16.msra.mxu0 %v5903
        %8361 = vmatprep.subr.bf16.mxu0 %v5924
        %8362 = vmatpush1.bf16.msra.mxu0 %v5923
        %8363 = vmatprep.subr.bf16.mxu0 %v5944
        %8364 = vmatpush1.bf16.msra.mxu0 %v5943
        %8365 = vmatprep.subr.bf16.mxu0 %v5964
        %8366 = vmatpush1.bf16.msra.mxu0 %v5963
        %8367 = vmatprep.subr.bf16.mxu0 %v5984
        %8368 = vmatpush1.bf16.msra.mxu0 %v5983
        %8369 = vmatprep.mubr.bf16.mxu0 %v1662
        %8370 = vmatmul.mubr.bf16.gmra.mrb[0].mxu0 %v1661
        %v8371 = vpop.f32.mrb[0].mxu0
        %v8372 = vadd.f32 %v8331, %v8371
        %v8373 = vpop.f32.mrb[0].mxu0
        %v8374 = vadd.f32 %v8333, %v8373
        %v8375 = vpop.f32.mrb[0].mxu0
        %v8376 = vpop.f32.mrb[0].mxu0
        %8377 = vdwg.mxu0
        %8378 = vmatprep.subr.bf16.mxu0 %v6004
        %8379 = vmatpush1.bf16.msra.mxu0 %v6003
        %8380 = vmatprep.subr.bf16.mxu0 %v6024
        %8381 = vmatpush1.bf16.msra.mxu0 %v6023
        %8382 = vmatprep.subr.bf16.mxu0 %v6044
        %8383 = vmatpush1.bf16.msra.mxu0 %v6043
        %8384 = vmatprep.subr.bf16.mxu0 %v6064
        %8385 = vmatpush1.bf16.msra.mxu0 %v6063
        %8386 = vmatprep.subr.bf16.mxu0 %v6084
        %8387 = vmatpush1.bf16.msra.mxu0 %v6083
        %8388 = vmatprep.subr.bf16.mxu0 %v6104
        %8389 = vmatpush1.bf16.msra.mxu0 %v6103
        %8390 = vmatprep.subr.bf16.mxu0 %v6124
        %8391 = vmatpush1.bf16.msra.mxu0 %v6123
        %8392 = vmatprep.subr.bf16.mxu0 %v6144
        %8393 = vmatpush1.bf16.msra.mxu0 %v6143
        %8394 = vmatprep.subr.bf16.mxu0 0
        %8395 = vmatpush1.bf16.msra.mxu0 0
        %8396 = vmatprep.subr.bf16.mxu0 0
        %8397 = vmatpush1.bf16.msra.mxu0 0
        %8398 = vmatprep.subr.bf16.mxu0 0
        %8399 = vmatpush1.bf16.msra.mxu0 0
        %8400 = vmatprep.subr.bf16.mxu0 0
        %8401 = vmatpush1.bf16.msra.mxu0 0
        %8402 = vmatprep.subr.bf16.mxu0 0
        %8403 = vmatpush1.bf16.msra.mxu0 0
        %8404 = vmatprep.subr.bf16.mxu0 0
        %8405 = vmatpush1.bf16.msra.mxu0 0
        %8406 = vmatprep.subr.bf16.mxu0 0
        %8407 = vmatpush1.bf16.msra.mxu0 0
        %8408 = vmatprep.subr.bf16.mxu0 0
        %8409 = vmatpush1.bf16.msra.mxu0 0
        %8410 = vmatprep.mubr.bf16.mxu0 0
        %8411 = vmatmul.mubr.bf16.gmra.mrb[0].mxu0 %v1663
        %v8412 = vpop.f32.mrb[0].mxu0
        %v8413 = vadd.f32 %v8372, %v8412
        %v8414 = vpop.f32.mrb[0].mxu0
        %v8415 = vadd.f32 %v8374, %v8414
        %v8416 = vpop.f32.mrb[0].mxu0
        %v8417 = vpop.f32.mrb[0].mxu0
        %8418 = vdwg.mxu0
        %8419 = vmatprep.subr.bf16.mxu0 %v5046
        %8420 = vmatpush1.bf16.msra.mxu0 %v5045
        %8421 = vmatprep.subr.bf16.mxu0 %v5066
        %8422 = vmatpush1.bf16.msra.mxu0 %v5065
        %8423 = vmatprep.subr.bf16.mxu0 %v5086
        %8424 = vmatpush1.bf16.msra.mxu0 %v5085
        %8425 = vmatprep.subr.bf16.mxu0 %v5106
        %8426 = vmatpush1.bf16.msra.mxu0 %v5105
        %8427 = vmatprep.subr.bf16.mxu0 %v5126
        %8428 = vmatpush1.bf16.msra.mxu0 %v5125
        %8429 = vmatprep.subr.bf16.mxu0 %v5146
        %8430 = vmatpush1.bf16.msra.mxu0 %v5145
        %8431 = vmatprep.subr.bf16.mxu0 %v5166
        %8432 = vmatpush1.bf16.msra.mxu0 %v5165
        %8433 = vmatprep.subr.bf16.mxu0 %v5186
        %8434 = vmatpush1.bf16.msra.mxu0 %v5185
        %8435 = vmatprep.subr.bf16.mxu0 %v5206
        %8436 = vmatpush1.bf16.msra.mxu0 %v5205
        %8437 = vmatprep.subr.bf16.mxu0 %v5226
        %8438 = vmatpush1.bf16.msra.mxu0 %v5225
        %8439 = vmatprep.subr.bf16.mxu0 %v5246
        %8440 = vmatpush1.bf16.msra.mxu0 %v5245
        %8441 = vmatprep.subr.bf16.mxu0 %v5266
        %8442 = vmatpush1.bf16.msra.mxu0 %v5265
        %8443 = vmatprep.subr.bf16.mxu0 %v5286
        %8444 = vmatpush1.bf16.msra.mxu0 %v5285
        %8445 = vmatprep.subr.bf16.mxu0 %v5306
        %8446 = vmatpush1.bf16.msra.mxu0 %v5305
        %8447 = vmatprep.subr.bf16.mxu0 %v5326
        %8448 = vmatpush1.bf16.msra.mxu0 %v5325
        %8449 = vmatprep.subr.bf16.mxu0 %v5346
        %8450 = vmatpush1.bf16.msra.mxu0 %v5345
        %8451 = vmatprep.mubr.bf16.mxu0 %v1658
        %8452 = vmatmul.mubr.bf16.gmra.mrb[0].mxu0 %v1657
        %v8453 = vpop.f32.mrb[0].mxu0
        %v8454 = vadd.f32 0.0, %v8453
        %v8455 = vpop.f32.mrb[0].mxu0
        %v8456 = vadd.f32 0.0, %v8455
        %v8457 = vpop.f32.mrb[0].mxu0
        %v8458 = vpop.f32.mrb[0].mxu0
        %8459 = vdwg.mxu0
        %8460 = vmatprep.subr.bf16.mxu0 %v5366
        %8461 = vmatpush1.bf16.msra.mxu0 %v5365
        %8462 = vmatprep.subr.bf16.mxu0 %v5386
        %8463 = vmatpush1.bf16.msra.mxu0 %v5385
        %8464 = vmatprep.subr.bf16.mxu0 %v5406
        %8465 = vmatpush1.bf16.msra.mxu0 %v5405
        %8466 = vmatprep.subr.bf16.mxu0 %v5426
        %8467 = vmatpush1.bf16.msra.mxu0 %v5425
        %8468 = vmatprep.subr.bf16.mxu0 %v5446
        %8469 = vmatpush1.bf16.msra.mxu0 %v5445
        %8470 = vmatprep.subr.bf16.mxu0 %v5466
        %8471 = vmatpush1.bf16.msra.mxu0 %v5465
        %8472 = vmatprep.subr.bf16.mxu0 %v5486
        %8473 = vmatpush1.bf16.msra.mxu0 %v5485
        %8474 = vmatprep.subr.bf16.mxu0 %v5506
        %8475 = vmatpush1.bf16.msra.mxu0 %v5505
        %8476 = vmatprep.subr.bf16.mxu0 %v5526
        %8477 = vmatpush1.bf16.msra.mxu0 %v5525
        %8478 = vmatprep.subr.bf16.mxu0 %v5546
        %8479 = vmatpush1.bf16.msra.mxu0 %v5545
        %8480 = vmatprep.subr.bf16.mxu0 %v5566
        %8481 = vmatpush1.bf16.msra.mxu0 %v5565
        %8482 = vmatprep.subr.bf16.mxu0 %v5586
        %8483 = vmatpush1.bf16.msra.mxu0 %v5585
        %8484 = vmatprep.subr.bf16.mxu0 %v5606
        %8485 = vmatpush1.bf16.msra.mxu0 %v5605
        %8486 = vmatprep.subr.bf16.mxu0 %v5626
        %8487 = vmatpush1.bf16.msra.mxu0 %v5625
        %8488 = vmatprep.subr.bf16.mxu0 %v5646
        %8489 = vmatpush1.bf16.msra.mxu0 %v5645
        %8490 = vmatprep.subr.bf16.mxu0 %v5666
        %8491 = vmatpush1.bf16.msra.mxu0 %v5665
        %8492 = vmatprep.mubr.bf16.mxu0 %v1660
        %8493 = vmatmul.mubr.bf16.gmra.mrb[0].mxu0 %v1659
        %v8494 = vpop.f32.mrb[0].mxu0
        %v8495 = vadd.f32 %v8454, %v8494
        %v8496 = vpop.f32.mrb[0].mxu0
        %v8497 = vadd.f32 %v8456, %v8496
        %v8498 = vpop.f32.mrb[0].mxu0
        %v8499 = vpop.f32.mrb[0].mxu0
        %8500 = vdwg.mxu0
        %8501 = vmatprep.subr.bf16.mxu0 %v5686
        %8502 = vmatpush1.bf16.msra.mxu0 %v5685
        %8503 = vmatprep.subr.bf16.mxu0 %v5706
        %8504 = vmatpush1.bf16.msra.mxu0 %v5705
        %8505 = vmatprep.subr.bf16.mxu0 %v5726
        %8506 = vmatpush1.bf16.msra.mxu0 %v5725
        %8507 = vmatprep.subr.bf16.mxu0 %v5746
        %8508 = vmatpush1.bf16.msra.mxu0 %v5745
        %8509 = vmatprep.subr.bf16.mxu0 %v5766
        %8510 = vmatpush1.bf16.msra.mxu0 %v5765
        %8511 = vmatprep.subr.bf16.mxu0 %v5786
        %8512 = vmatpush1.bf16.msra.mxu0 %v5785
        %8513 = vmatprep.subr.bf16.mxu0 %v5806
        %8514 = vmatpush1.bf16.msra.mxu0 %v5805
        %8515 = vmatprep.subr.bf16.mxu0 %v5826
        %8516 = vmatpush1.bf16.msra.mxu0 %v5825
        %8517 = vmatprep.subr.bf16.mxu0 %v5846
        %8518 = vmatpush1.bf16.msra.mxu0 %v5845
        %8519 = vmatprep.subr.bf16.mxu0 %v5866
        %8520 = vmatpush1.bf16.msra.mxu0 %v5865
        %8521 = vmatprep.subr.bf16.mxu0 %v5886
        %8522 = vmatpush1.bf16.msra.mxu0 %v5885
        %8523 = vmatprep.subr.bf16.mxu0 %v5906
        %8524 = vmatpush1.bf16.msra.mxu0 %v5905
        %8525 = vmatprep.subr.bf16.mxu0 %v5926
        %8526 = vmatpush1.bf16.msra.mxu0 %v5925
        %8527 = vmatprep.subr.bf16.mxu0 %v5946
        %8528 = vmatpush1.bf16.msra.mxu0 %v5945
        %8529 = vmatprep.subr.bf16.mxu0 %v5966
        %8530 = vmatpush1.bf16.msra.mxu0 %v5965
        %8531 = vmatprep.subr.bf16.mxu0 %v5986
        %8532 = vmatpush1.bf16.msra.mxu0 %v5985
        %8533 = vmatprep.mubr.bf16.mxu0 %v1662
        %8534 = vmatmul.mubr.bf16.gmra.mrb[0].mxu0 %v1661
        %v8535 = vpop.f32.mrb[0].mxu0
        %v8536 = vadd.f32 %v8495, %v8535
        %v8537 = vpop.f32.mrb[0].mxu0
        %v8538 = vadd.f32 %v8497, %v8537
        %v8539 = vpop.f32.mrb[0].mxu0
        %v8540 = vpop.f32.mrb[0].mxu0
        %8541 = vdwg.mxu0
        %8542 = vmatprep.subr.bf16.mxu0 %v6006
        %8543 = vmatpush1.bf16.msra.mxu0 %v6005
        %8544 = vmatprep.subr.bf16.mxu0 %v6026
        %8545 = vmatpush1.bf16.msra.mxu0 %v6025
        %8546 = vmatprep.subr.bf16.mxu0 %v6046
        %8547 = vmatpush1.bf16.msra.mxu0 %v6045
        %8548 = vmatprep.subr.bf16.mxu0 %v6066
        %8549 = vmatpush1.bf16.msra.mxu0 %v6065
        %8550 = vmatprep.subr.bf16.mxu0 %v6086
        %8551 = vmatpush1.bf16.msra.mxu0 %v6085
        %8552 = vmatprep.subr.bf16.mxu0 %v6106
        %8553 = vmatpush1.bf16.msra.mxu0 %v6105
        %8554 = vmatprep.subr.bf16.mxu0 %v6126
        %8555 = vmatpush1.bf16.msra.mxu0 %v6125
        %8556 = vmatprep.subr.bf16.mxu0 %v6146
        %8557 = vmatpush1.bf16.msra.mxu0 %v6145
        %8558 = vmatprep.subr.bf16.mxu0 0
        %8559 = vmatpush1.bf16.msra.mxu0 0
        %8560 = vmatprep.subr.bf16.mxu0 0
        %8561 = vmatpush1.bf16.msra.mxu0 0
        %8562 = vmatprep.subr.bf16.mxu0 0
        %8563 = vmatpush1.bf16.msra.mxu0 0
        %8564 = vmatprep.subr.bf16.mxu0 0
        %8565 = vmatpush1.bf16.msra.mxu0 0
        %8566 = vmatprep.subr.bf16.mxu0 0
        %8567 = vmatpush1.bf16.msra.mxu0 0
        %8568 = vmatprep.subr.bf16.mxu0 0
        %8569 = vmatpush1.bf16.msra.mxu0 0
        %8570 = vmatprep.subr.bf16.mxu0 0
        %8571 = vmatpush1.bf16.msra.mxu0 0
        %8572 = vmatprep.subr.bf16.mxu0 0
        %8573 = vmatpush1.bf16.msra.mxu0 0
        %8574 = vmatprep.mubr.bf16.mxu0 0
        %8575 = vmatmul.mubr.bf16.gmra.mrb[0].mxu0 %v1663
        %v8576 = vpop.f32.mrb[0].mxu0
        %v8577 = vadd.f32 %v8536, %v8576
        %v8578 = vpop.f32.mrb[0].mxu0
        %v8579 = vadd.f32 %v8538, %v8578
        %v8580 = vpop.f32.mrb[0].mxu0
        %v8581 = vpop.f32.mrb[0].mxu0
        %8582 = vdwg.mxu0
        %8583 = vmatprep.subr.bf16.mxu0 %v5048
        %8584 = vmatpush1.bf16.msra.mxu0 %v5047
        %8585 = vmatprep.subr.bf16.mxu0 %v5068
        %8586 = vmatpush1.bf16.msra.mxu0 %v5067
        %8587 = vmatprep.subr.bf16.mxu0 %v5088
        %8588 = vmatpush1.bf16.msra.mxu0 %v5087
        %8589 = vmatprep.subr.bf16.mxu0 %v5108
        %8590 = vmatpush1.bf16.msra.mxu0 %v5107
        %8591 = vmatprep.subr.bf16.mxu0 %v5128
        %8592 = vmatpush1.bf16.msra.mxu0 %v5127
        %8593 = vmatprep.subr.bf16.mxu0 %v5148
        %8594 = vmatpush1.bf16.msra.mxu0 %v5147
        %8595 = vmatprep.subr.bf16.mxu0 %v5168
        %8596 = vmatpush1.bf16.msra.mxu0 %v5167
        %8597 = vmatprep.subr.bf16.mxu0 %v5188
        %8598 = vmatpush1.bf16.msra.mxu0 %v5187
        %8599 = vmatprep.subr.bf16.mxu0 %v5208
        %8600 = vmatpush1.bf16.msra.mxu0 %v5207
        %8601 = vmatprep.subr.bf16.mxu0 %v5228
        %8602 = vmatpush1.bf16.msra.mxu0 %v5227
        %8603 = vmatprep.subr.bf16.mxu0 %v5248
        %8604 = vmatpush1.bf16.msra.mxu0 %v5247
        %8605 = vmatprep.subr.bf16.mxu0 %v5268
        %8606 = vmatpush1.bf16.msra.mxu0 %v5267
        %8607 = vmatprep.subr.bf16.mxu0 %v5288
        %8608 = vmatpush1.bf16.msra.mxu0 %v5287
        %8609 = vmatprep.subr.bf16.mxu0 %v5308
        %8610 = vmatpush1.bf16.msra.mxu0 %v5307
        %8611 = vmatprep.subr.bf16.mxu0 %v5328
        %8612 = vmatpush1.bf16.msra.mxu0 %v5327
        %8613 = vmatprep.subr.bf16.mxu0 %v5348
        %8614 = vmatpush1.bf16.msra.mxu0 %v5347
        %8615 = vmatprep.mubr.bf16.mxu0 %v1658
        %8616 = vmatmul.mubr.bf16.gmra.mrb[0].mxu0 %v1657
        %v8617 = vpop.f32.mrb[0].mxu0
        %v8618 = vadd.f32 0.0, %v8617
        %v8619 = vpop.f32.mrb[0].mxu0
        %v8620 = vadd.f32 0.0, %v8619
        %v8621 = vpop.f32.mrb[0].mxu0
        %v8622 = vpop.f32.mrb[0].mxu0
        %8623 = vdwg.mxu0
        %8624 = vmatprep.subr.bf16.mxu0 %v5368
        %8625 = vmatpush1.bf16.msra.mxu0 %v5367
        %8626 = vmatprep.subr.bf16.mxu0 %v5388
        %8627 = vmatpush1.bf16.msra.mxu0 %v5387
        %8628 = vmatprep.subr.bf16.mxu0 %v5408
        %8629 = vmatpush1.bf16.msra.mxu0 %v5407
        %8630 = vmatprep.subr.bf16.mxu0 %v5428
        %8631 = vmatpush1.bf16.msra.mxu0 %v5427
        %8632 = vmatprep.subr.bf16.mxu0 %v5448
        %8633 = vmatpush1.bf16.msra.mxu0 %v5447
        %8634 = vmatprep.subr.bf16.mxu0 %v5468
        %8635 = vmatpush1.bf16.msra.mxu0 %v5467
        %8636 = vmatprep.subr.bf16.mxu0 %v5488
        %8637 = vmatpush1.bf16.msra.mxu0 %v5487
        %8638 = vmatprep.subr.bf16.mxu0 %v5508
        %8639 = vmatpush1.bf16.msra.mxu0 %v5507
        %8640 = vmatprep.subr.bf16.mxu0 %v5528
        %8641 = vmatpush1.bf16.msra.mxu0 %v5527
        %8642 = vmatprep.subr.bf16.mxu0 %v5548
        %8643 = vmatpush1.bf16.msra.mxu0 %v5547
        %8644 = vmatprep.subr.bf16.mxu0 %v5568
        %8645 = vmatpush1.bf16.msra.mxu0 %v5567
        %8646 = vmatprep.subr.bf16.mxu0 %v5588
        %8647 = vmatpush1.bf16.msra.mxu0 %v5587
        %8648 = vmatprep.subr.bf16.mxu0 %v5608
        %8649 = vmatpush1.bf16.msra.mxu0 %v5607
        %8650 = vmatprep.subr.bf16.mxu0 %v5628
        %8651 = vmatpush1.bf16.msra.mxu0 %v5627
        %8652 = vmatprep.subr.bf16.mxu0 %v5648
        %8653 = vmatpush1.bf16.msra.mxu0 %v5647
        %8654 = vmatprep.subr.bf16.mxu0 %v5668
        %8655 = vmatpush1.bf16.msra.mxu0 %v5667
        %8656 = vmatprep.mubr.bf16.mxu0 %v1660
        %8657 = vmatmul.mubr.bf16.gmra.mrb[0].mxu0 %v1659
        %v8658 = vpop.f32.mrb[0].mxu0
        %v8659 = vadd.f32 %v8618, %v8658
        %v8660 = vpop.f32.mrb[0].mxu0
        %v8661 = vadd.f32 %v8620, %v8660
        %v8662 = vpop.f32.mrb[0].mxu0
        %v8663 = vpop.f32.mrb[0].mxu0
        %8664 = vdwg.mxu0
        %8665 = vmatprep.subr.bf16.mxu0 %v5688
        %8666 = vmatpush1.bf16.msra.mxu0 %v5687
        %8667 = vmatprep.subr.bf16.mxu0 %v5708
        %8668 = vmatpush1.bf16.msra.mxu0 %v5707
        %8669 = vmatprep.subr.bf16.mxu0 %v5728
        %8670 = vmatpush1.bf16.msra.mxu0 %v5727
        %8671 = vmatprep.subr.bf16.mxu0 %v5748
        %8672 = vmatpush1.bf16.msra.mxu0 %v5747
        %8673 = vmatprep.subr.bf16.mxu0 %v5768
        %8674 = vmatpush1.bf16.msra.mxu0 %v5767
        %8675 = vmatprep.subr.bf16.mxu0 %v5788
        %8676 = vmatpush1.bf16.msra.mxu0 %v5787
        %8677 = vmatprep.subr.bf16.mxu0 %v5808
        %8678 = vmatpush1.bf16.msra.mxu0 %v5807
        %8679 = vmatprep.subr.bf16.mxu0 %v5828
        %8680 = vmatpush1.bf16.msra.mxu0 %v5827
        %8681 = vmatprep.subr.bf16.mxu0 %v5848
        %8682 = vmatpush1.bf16.msra.mxu0 %v5847
        %8683 = vmatprep.subr.bf16.mxu0 %v5868
        %8684 = vmatpush1.bf16.msra.mxu0 %v5867
        %8685 = vmatprep.subr.bf16.mxu0 %v5888
        %8686 = vmatpush1.bf16.msra.mxu0 %v5887
        %8687 = vmatprep.subr.bf16.mxu0 %v5908
        %8688 = vmatpush1.bf16.msra.mxu0 %v5907
        %8689 = vmatprep.subr.bf16.mxu0 %v5928
        %8690 = vmatpush1.bf16.msra.mxu0 %v5927
        %8691 = vmatprep.subr.bf16.mxu0 %v5948
        %8692 = vmatpush1.bf16.msra.mxu0 %v5947
        %8693 = vmatprep.subr.bf16.mxu0 %v5968
        %8694 = vmatpush1.bf16.msra.mxu0 %v5967
        %8695 = vmatprep.subr.bf16.mxu0 %v5988
        %8696 = vmatpush1.bf16.msra.mxu0 %v5987
        %8697 = vmatprep.mubr.bf16.mxu0 %v1662
        %8698 = vmatmul.mubr.bf16.gmra.mrb[0].mxu0 %v1661
        %v8699 = vpop.f32.mrb[0].mxu0
        %v8700 = vadd.f32 %v8659, %v8699
        %v8701 = vpop.f32.mrb[0].mxu0
        %v8702 = vadd.f32 %v8661, %v8701
        %v8703 = vpop.f32.mrb[0].mxu0
        %v8704 = vpop.f32.mrb[0].mxu0
        %8705 = vdwg.mxu0
        %8706 = vmatprep.subr.bf16.mxu0 %v6008
        %8707 = vmatpush1.bf16.msra.mxu0 %v6007
        %8708 = vmatprep.subr.bf16.mxu0 %v6028
        %8709 = vmatpush1.bf16.msra.mxu0 %v6027
        %8710 = vmatprep.subr.bf16.mxu0 %v6048
        %8711 = vmatpush1.bf16.msra.mxu0 %v6047
        %8712 = vmatprep.subr.bf16.mxu0 %v6068
        %8713 = vmatpush1.bf16.msra.mxu0 %v6067
        %8714 = vmatprep.subr.bf16.mxu0 %v6088
        %8715 = vmatpush1.bf16.msra.mxu0 %v6087
        %8716 = vmatprep.subr.bf16.mxu0 %v6108
        %8717 = vmatpush1.bf16.msra.mxu0 %v6107
        %8718 = vmatprep.subr.bf16.mxu0 %v6128
        %8719 = vmatpush1.bf16.msra.mxu0 %v6127
        %8720 = vmatprep.subr.bf16.mxu0 %v6148
        %8721 = vmatpush1.bf16.msra.mxu0 %v6147
        %8722 = vmatprep.subr.bf16.mxu0 0
        %8723 = vmatpush1.bf16.msra.mxu0 0
        %8724 = vmatprep.subr.bf16.mxu0 0
        %8725 = vmatpush1.bf16.msra.mxu0 0
        %8726 = vmatprep.subr.bf16.mxu0 0
        %8727 = vmatpush1.bf16.msra.mxu0 0
        %8728 = vmatprep.subr.bf16.mxu0 0
        %8729 = vmatpush1.bf16.msra.mxu0 0
        %8730 = vmatprep.subr.bf16.mxu0 0
        %8731 = vmatpush1.bf16.msra.mxu0 0
        %8732 = vmatprep.subr.bf16.mxu0 0
        %8733 = vmatpush1.bf16.msra.mxu0 0
        %8734 = vmatprep.subr.bf16.mxu0 0
        %8735 = vmatpush1.bf16.msra.mxu0 0
        %8736 = vmatprep.subr.bf16.mxu0 0
        %8737 = vmatpush1.bf16.msra.mxu0 0
        %8738 = vmatprep.mubr.bf16.mxu0 0
        %8739 = vmatmul.mubr.bf16.gmra.mrb[0].mxu0 %v1663
        %v8740 = vpop.f32.mrb[0].mxu0
        %v8741 = vadd.f32 %v8700, %v8740
        %v8742 = vpop.f32.mrb[0].mxu0
        %v8743 = vadd.f32 %v8702, %v8742
        %v8744 = vpop.f32.mrb[0].mxu0
        %v8745 = vpop.f32.mrb[0].mxu0
        %8746 = vdwg.mxu0
        %8747 = vmatprep.subr.bf16.mxu0 %v5050
        %8748 = vmatpush1.bf16.msra.mxu0 %v5049
        %8749 = vmatprep.subr.bf16.mxu0 %v5070
        %8750 = vmatpush1.bf16.msra.mxu0 %v5069
        %8751 = vmatprep.subr.bf16.mxu0 %v5090
        %8752 = vmatpush1.bf16.msra.mxu0 %v5089
        %8753 = vmatprep.subr.bf16.mxu0 %v5110
        %8754 = vmatpush1.bf16.msra.mxu0 %v5109
        %8755 = vmatprep.subr.bf16.mxu0 %v5130
        %8756 = vmatpush1.bf16.msra.mxu0 %v5129
        %8757 = vmatprep.subr.bf16.mxu0 %v5150
        %8758 = vmatpush1.bf16.msra.mxu0 %v5149
        %8759 = vmatprep.subr.bf16.mxu0 %v5170
        %8760 = vmatpush1.bf16.msra.mxu0 %v5169
        %8761 = vmatprep.subr.bf16.mxu0 %v5190
        %8762 = vmatpush1.bf16.msra.mxu0 %v5189
        %8763 = vmatprep.subr.bf16.mxu0 %v5210
        %8764 = vmatpush1.bf16.msra.mxu0 %v5209
        %8765 = vmatprep.subr.bf16.mxu0 %v5230
        %8766 = vmatpush1.bf16.msra.mxu0 %v5229
        %8767 = vmatprep.subr.bf16.mxu0 %v5250
        %8768 = vmatpush1.bf16.msra.mxu0 %v5249
        %8769 = vmatprep.subr.bf16.mxu0 %v5270
        %8770 = vmatpush1.bf16.msra.mxu0 %v5269
        %8771 = vmatprep.subr.bf16.mxu0 %v5290
        %8772 = vmatpush1.bf16.msra.mxu0 %v5289
        %8773 = vmatprep.subr.bf16.mxu0 %v5310
        %8774 = vmatpush1.bf16.msra.mxu0 %v5309
        %8775 = vmatprep.subr.bf16.mxu0 %v5330
        %8776 = vmatpush1.bf16.msra.mxu0 %v5329
        %8777 = vmatprep.subr.bf16.mxu0 %v5350
        %8778 = vmatpush1.bf16.msra.mxu0 %v5349
        %8779 = vmatprep.mubr.bf16.mxu0 %v1658
        %8780 = vmatmul.mubr.bf16.gmra.mrb[0].mxu0 %v1657
        %v8781 = vpop.f32.mrb[0].mxu0
        %v8782 = vadd.f32 0.0, %v8781
        %v8783 = vpop.f32.mrb[0].mxu0
        %v8784 = vadd.f32 0.0, %v8783
        %v8785 = vpop.f32.mrb[0].mxu0
        %v8786 = vpop.f32.mrb[0].mxu0
        %8787 = vdwg.mxu0
        %8788 = vmatprep.subr.bf16.mxu0 %v5370
        %8789 = vmatpush1.bf16.msra.mxu0 %v5369
        %8790 = vmatprep.subr.bf16.mxu0 %v5390
        %8791 = vmatpush1.bf16.msra.mxu0 %v5389
        %8792 = vmatprep.subr.bf16.mxu0 %v5410
        %8793 = vmatpush1.bf16.msra.mxu0 %v5409
        %8794 = vmatprep.subr.bf16.mxu0 %v5430
        %8795 = vmatpush1.bf16.msra.mxu0 %v5429
        %8796 = vmatprep.subr.bf16.mxu0 %v5450
        %8797 = vmatpush1.bf16.msra.mxu0 %v5449
        %8798 = vmatprep.subr.bf16.mxu0 %v5470
        %8799 = vmatpush1.bf16.msra.mxu0 %v5469
        %8800 = vmatprep.subr.bf16.mxu0 %v5490
        %8801 = vmatpush1.bf16.msra.mxu0 %v5489
        %8802 = vmatprep.subr.bf16.mxu0 %v5510
        %8803 = vmatpush1.bf16.msra.mxu0 %v5509
        %8804 = vmatprep.subr.bf16.mxu0 %v5530
        %8805 = vmatpush1.bf16.msra.mxu0 %v5529
        %8806 = vmatprep.subr.bf16.mxu0 %v5550
        %8807 = vmatpush1.bf16.msra.mxu0 %v5549
        %8808 = vmatprep.subr.bf16.mxu0 %v5570
        %8809 = vmatpush1.bf16.msra.mxu0 %v5569
        %8810 = vmatprep.subr.bf16.mxu0 %v5590
        %8811 = vmatpush1.bf16.msra.mxu0 %v5589
        %8812 = vmatprep.subr.bf16.mxu0 %v5610
        %8813 = vmatpush1.bf16.msra.mxu0 %v5609
        %8814 = vmatprep.subr.bf16.mxu0 %v5630
        %8815 = vmatpush1.bf16.msra.mxu0 %v5629
        %8816 = vmatprep.subr.bf16.mxu0 %v5650
        %8817 = vmatpush1.bf16.msra.mxu0 %v5649
        %8818 = vmatprep.subr.bf16.mxu0 %v5670
        %8819 = vmatpush1.bf16.msra.mxu0 %v5669
        %8820 = vmatprep.mubr.bf16.mxu0 %v1660
        %8821 = vmatmul.mubr.bf16.gmra.mrb[0].mxu0 %v1659
        %v8822 = vpop.f32.mrb[0].mxu0
        %v8823 = vadd.f32 %v8782, %v8822
        %v8824 = vpop.f32.mrb[0].mxu0
        %v8825 = vadd.f32 %v8784, %v8824
        %v8826 = vpop.f32.mrb[0].mxu0
        %v8827 = vpop.f32.mrb[0].mxu0
        %8828 = vdwg.mxu0
        %8829 = vmatprep.subr.bf16.mxu0 %v5690
        %8830 = vmatpush1.bf16.msra.mxu0 %v5689
        %8831 = vmatprep.subr.bf16.mxu0 %v5710
        %8832 = vmatpush1.bf16.msra.mxu0 %v5709
        %8833 = vmatprep.subr.bf16.mxu0 %v5730
        %8834 = vmatpush1.bf16.msra.mxu0 %v5729
        %8835 = vmatprep.subr.bf16.mxu0 %v5750
        %8836 = vmatpush1.bf16.msra.mxu0 %v5749
        %8837 = vmatprep.subr.bf16.mxu0 %v5770
        %8838 = vmatpush1.bf16.msra.mxu0 %v5769
        %8839 = vmatprep.subr.bf16.mxu0 %v5790
        %8840 = vmatpush1.bf16.msra.mxu0 %v5789
        %8841 = vmatprep.subr.bf16.mxu0 %v5810
        %8842 = vmatpush1.bf16.msra.mxu0 %v5809
        %8843 = vmatprep.subr.bf16.mxu0 %v5830
        %8844 = vmatpush1.bf16.msra.mxu0 %v5829
        %8845 = vmatprep.subr.bf16.mxu0 %v5850
        %8846 = vmatpush1.bf16.msra.mxu0 %v5849
        %8847 = vmatprep.subr.bf16.mxu0 %v5870
        %8848 = vmatpush1.bf16.msra.mxu0 %v5869
        %8849 = vmatprep.subr.bf16.mxu0 %v5890
        %8850 = vmatpush1.bf16.msra.mxu0 %v5889
        %8851 = vmatprep.subr.bf16.mxu0 %v5910
        %8852 = vmatpush1.bf16.msra.mxu0 %v5909
        %8853 = vmatprep.subr.bf16.mxu0 %v5930
        %8854 = vmatpush1.bf16.msra.mxu0 %v5929
        %8855 = vmatprep.subr.bf16.mxu0 %v5950
        %8856 = vmatpush1.bf16.msra.mxu0 %v5949
        %8857 = vmatprep.subr.bf16.mxu0 %v5970
        %8858 = vmatpush1.bf16.msra.mxu0 %v5969
        %8859 = vmatprep.subr.bf16.mxu0 %v5990
        %8860 = vmatpush1.bf16.msra.mxu0 %v5989
        %8861 = vmatprep.mubr.bf16.mxu0 %v1662
        %8862 = vmatmul.mubr.bf16.gmra.mrb[0].mxu0 %v1661
        %v8863 = vpop.f32.mrb[0].mxu0
        %v8864 = vadd.f32 %v8823, %v8863
        %v8865 = vpop.f32.mrb[0].mxu0
        %v8866 = vadd.f32 %v8825, %v8865
        %v8867 = vpop.f32.mrb[0].mxu0
        %v8868 = vpop.f32.mrb[0].mxu0
        %8869 = vdwg.mxu0
        %8870 = vmatprep.subr.bf16.mxu0 %v6010
        %8871 = vmatpush1.bf16.msra.mxu0 %v6009
        %8872 = vmatprep.subr.bf16.mxu0 %v6030
        %8873 = vmatpush1.bf16.msra.mxu0 %v6029
        %8874 = vmatprep.subr.bf16.mxu0 %v6050
        %8875 = vmatpush1.bf16.msra.mxu0 %v6049
        %8876 = vmatprep.subr.bf16.mxu0 %v6070
        %8877 = vmatpush1.bf16.msra.mxu0 %v6069
        %8878 = vmatprep.subr.bf16.mxu0 %v6090
        %8879 = vmatpush1.bf16.msra.mxu0 %v6089
        %8880 = vmatprep.subr.bf16.mxu0 %v6110
        %8881 = vmatpush1.bf16.msra.mxu0 %v6109
        %8882 = vmatprep.subr.bf16.mxu0 %v6130
        %8883 = vmatpush1.bf16.msra.mxu0 %v6129
        %8884 = vmatprep.subr.bf16.mxu0 %v6150
        %8885 = vmatpush1.bf16.msra.mxu0 %v6149
        %8886 = vmatprep.subr.bf16.mxu0 0
        %8887 = vmatpush1.bf16.msra.mxu0 0
        %8888 = vmatprep.subr.bf16.mxu0 0
        %8889 = vmatpush1.bf16.msra.mxu0 0
        %8890 = vmatprep.subr.bf16.mxu0 0
        %8891 = vmatpush1.bf16.msra.mxu0 0
        %8892 = vmatprep.subr.bf16.mxu0 0
        %8893 = vmatpush1.bf16.msra.mxu0 0
        %8894 = vmatprep.subr.bf16.mxu0 0
        %8895 = vmatpush1.bf16.msra.mxu0 0
        %8896 = vmatprep.subr.bf16.mxu0 0
        %8897 = vmatpush1.bf16.msra.mxu0 0
        %8898 = vmatprep.subr.bf16.mxu0 0
        %8899 = vmatpush1.bf16.msra.mxu0 0
        %8900 = vmatprep.subr.bf16.mxu0 0
        %8901 = vmatpush1.bf16.msra.mxu0 0
        %8902 = vmatprep.mubr.bf16.mxu0 0
        %8903 = vmatmul.mubr.bf16.gmra.mrb[0].mxu0 %v1663
        %v8904 = vpop.f32.mrb[0].mxu0
        %v8905 = vadd.f32 %v8864, %v8904
        %v8906 = vpop.f32.mrb[0].mxu0
        %v8907 = vadd.f32 %v8866, %v8906
        %v8908 = vpop.f32.mrb[0].mxu0
        %v8909 = vpop.f32.mrb[0].mxu0
        %8910 = vdwg.mxu0
        %v8911 = vmax.f32 %v7429, %v7759
        %v8912 = vmax.f32 %v7431, %v7921
        %v8913 = vmax.f32 %v7593, %v7923
        %v8914 = vmax.f32 %v7595, %v8085
        %v8915 = vmax.f32 %v7757, %v8087
        %v8916 = vmax.f32 %v8249, %v8579
        %v8917 = vmax.f32 %v8251, %v8741
        %v8918 = vmax.f32 %v8413, %v8743
        %v8919 = vmax.f32 %v8415, %v8905
        %v8920 = vmax.f32 %v8577, %v8907
        %v8921 = vmax.f32 %v8911, %v8916
        %v8922 = vmax.f32 %v8912, %v8917
        %v8923 = vmax.f32 %v8913, %v8918
        %v8924 = vmax.f32 %v8914, %v8919
        %v8925 = vmax.f32 %v8915, %v8920
        %v8926 = vld [vmem:[#allocation5] sm:$0x1f]
        %v8928 = vlaneseq
        %v8929 = vshrl.u32 %v8928, 7
        %v8930 = vsub.s32 0, %v8929
        %v8931 = vrot.slane %v8926, %v8930
        %v8932 = vlaneseq
        %v8933 = vshrl.u32 %v8932, 7
        %v8934 = vsub.s32 1, %v8933
        %v8935 = vrot.slane %v8926, %v8934
        %v8936 = vlaneseq
        %v8937 = vshrl.u32 %v8936, 7
        %v8938 = vsub.s32 2, %v8937
        %v8939 = vrot.slane %v8926, %v8938
        %v8940 = vlaneseq
        %v8941 = vshrl.u32 %v8940, 7
        %v8942 = vsub.s32 3, %v8941
        %v8943 = vrot.slane %v8926, %v8942
        %v8944 = vlaneseq
        %v8945 = vshrl.u32 %v8944, 7
        %v8946 = vsub.s32 4, %v8945
        %v8947 = vrot.slane %v8926, %v8946
        %v8953 = vadd.f32 %v8921, %v8931
        %v8954 = vadd.f32 %v8922, %v8935
        %v8955 = vadd.f32 %v8923, %v8939
        %v8956 = vadd.f32 %v8924, %v8943
        %v8957 = vadd.f32 %v8925, %v8947
        %v8958 = vmax.f32 %v8953, 0.0
        %v8959 = vmax.f32 %v8954, 0.0
        %v8960 = vmax.f32 %v8955, 0.0
        %v8961 = vmax.f32 %v8956, 0.0
        %v8962 = vmax.f32 %v8957, 0.0
        %v8963 = vpack.c.bf16 %v8958, %v8958
        %v8964 = vpack.c.bf16 %v8959, %v8959
        %v8965 = vpack.c.bf16 %v8960, %v8960
        %v8966 = vpack.c.bf16 %v8961, %v8961
        %v8967 = vpack.c.bf16 %v8962, %v8962
        %v8968 = vld [vmem:[#allocation7] sm:$0xff]
        %v8969 = vld [vmem:[#allocation7 + $0x8] sm:$0xff]
        %v8970 = vld [vmem:[#allocation7 + $0x10] sm:$0xff]
        %v8971 = vld [vmem:[#allocation7 + $0x18] sm:$0xff]
        %v8972 = vld [vmem:[#allocation7 + $0x20] sm:$0xff]
        %v8973 = vld [vmem:[#allocation7 + $0x28] sm:$0xff]
        %v8974 = vld [vmem:[#allocation7 + $0x30] sm:$0xff]
        %v8975 = vld [vmem:[#allocation7 + $0x38] sm:$0xff]
        %v8976 = vld [vmem:[#allocation7 + $0x40] sm:$0xff]
        %v8977 = vld [vmem:[#allocation7 + $0x48] sm:$0xff]
        %v8978 = vld [vmem:[#allocation7 + $0x50] sm:$0xff]
        %v8979 = vld [vmem:[#allocation7 + $0x58] sm:$0xff]
        %v8980 = vld [vmem:[#allocation7 + $0x60] sm:$0xff]
        %v8981 = vld [vmem:[#allocation7 + $0x68] sm:$0xff]
        %v8982 = vld [vmem:[#allocation7 + $0x70] sm:$0xff]
        %v8983 = vld [vmem:[#allocation7 + $0x78] sm:$0xff]
        %v8984 = vld [vmem:[#allocation7 + $0x80] sm:$0xff]
        %v8985 = vld [vmem:[#allocation7 + $0x88] sm:$0xff]
        %v8986 = vld [vmem:[#allocation7 + $0x90] sm:$0xff]
        %v8987 = vld [vmem:[#allocation7 + $0x98] sm:$0xff]
        %v8988 = vld [vmem:[#allocation7 + $0xa0] sm:$0xff]
        %v8989 = vld [vmem:[#allocation7 + $0xa8] sm:$0xff]
        %v8990 = vld [vmem:[#allocation7 + $0xb0] sm:$0xff]
        %v8991 = vld [vmem:[#allocation7 + $0xb8] sm:$0xff]
        %v8992 = vld [vmem:[#allocation7 + $0xc0] sm:$0xff]
        %v8993 = vld [vmem:[#allocation7 + $0xc8] sm:$0xff]
        %v8994 = vld [vmem:[#allocation7 + $0xd0] sm:$0xff]
        %v8995 = vld [vmem:[#allocation7 + $0xd8] sm:$0xff]
        %v8996 = vld [vmem:[#allocation7 + $0xe0] sm:$0xff]
        %v8997 = vld [vmem:[#allocation7 + $0xe8] sm:$0xff]
        %v8998 = vld [vmem:[#allocation7 + $0xf0] sm:$0xff]
        %v8999 = vld [vmem:[#allocation7 + $0xf8] sm:$0xff]
        %v9000 = vld [vmem:[#allocation7 + $0x100] sm:$0xff]
        %v9001 = vld [vmem:[#allocation7 + $0x108] sm:$0xff]
        %v9002 = vld [vmem:[#allocation7 + $0x110] sm:$0xff]
        %v9003 = vld [vmem:[#allocation7 + $0x118] sm:$0xff]
        %v9004 = vld [vmem:[#allocation7 + $0x120] sm:$0xff]
        %v9005 = vld [vmem:[#allocation7 + $0x128] sm:$0xff]
        %v9006 = vld [vmem:[#allocation7 + $0x130] sm:$0xff]
        %v9007 = vld [vmem:[#allocation7 + $0x138] sm:$0xff]
        %v9008 = vld [vmem:[#allocation7 + $0x140] sm:$0xff]
        %v9009 = vld [vmem:[#allocation7 + $0x148] sm:$0xff]
        %v9010 = vld [vmem:[#allocation7 + $0x150] sm:$0xff]
        %v9011 = vld [vmem:[#allocation7 + $0x158] sm:$0xff]
        %v9012 = vld [vmem:[#allocation7 + $0x160] sm:$0xff]
        %v9013 = vld [vmem:[#allocation7 + $0x168] sm:$0xff]
        %v9014 = vld [vmem:[#allocation7 + $0x170] sm:$0xff]
        %v9015 = vld [vmem:[#allocation7 + $0x178] sm:$0xff]
        %v9016 = vld [vmem:[#allocation7 + $0x180] sm:$0xff]
        %v9017 = vld [vmem:[#allocation7 + $0x188] sm:$0xff]
        %v9018 = vld [vmem:[#allocation7 + $0x190] sm:$0xff]
        %v9019 = vld [vmem:[#allocation7 + $0x198] sm:$0xff]
        %v9020 = vld [vmem:[#allocation7 + $0x1a0] sm:$0xff]
        %v9021 = vld [vmem:[#allocation7 + $0x1a8] sm:$0xff]
        %v9022 = vld [vmem:[#allocation7 + $0x1b0] sm:$0xff]
        %v9023 = vld [vmem:[#allocation7 + $0x1b8] sm:$0xff]
        %v9024 = vld [vmem:[#allocation7 + $0x1c0] sm:$0xff]
        %v9025 = vld [vmem:[#allocation7 + $0x1c8] sm:$0xff]
        %v9026 = vld [vmem:[#allocation7 + $0x1d0] sm:$0xff]
        %v9027 = vld [vmem:[#allocation7 + $0x1d8] sm:$0xff]
        %v9028 = vld [vmem:[#allocation7 + $0x1e0] sm:$0xff]
        %v9029 = vld [vmem:[#allocation7 + $0x1e8] sm:$0xff]
        %v9030 = vld [vmem:[#allocation7 + $0x1f0] sm:$0xff]
        %v9031 = vld [vmem:[#allocation7 + $0x1f8] sm:$0xff]
        %v9032 = vld [vmem:[#allocation7 + $0x200] sm:$0xff]
        %v9033 = vld [vmem:[#allocation7 + $0x208] sm:$0xff]
        %v9034 = vld [vmem:[#allocation7 + $0x210] sm:$0xff]
        %v9035 = vld [vmem:[#allocation7 + $0x218] sm:$0xff]
        %v9036 = vld [vmem:[#allocation7 + $0x220] sm:$0xff]
        %v9037 = vld [vmem:[#allocation7 + $0x228] sm:$0xff]
        %v9038 = vld [vmem:[#allocation7 + $0x230] sm:$0xff]
        %v9039 = vld [vmem:[#allocation7 + $0x238] sm:$0xff]
        %v9040 = vld [vmem:[#allocation7 + $0x240] sm:$0xff]
        %v9041 = vld [vmem:[#allocation7 + $0x248] sm:$0xff]
        %v9042 = vld [vmem:[#allocation7 + $0x250] sm:$0xff]
        %v9043 = vld [vmem:[#allocation7 + $0x258] sm:$0xff]
        %v9044 = vld [vmem:[#allocation7 + $0x260] sm:$0xff]
        %v9045 = vld [vmem:[#allocation7 + $0x268] sm:$0xff]
        %v9046 = vld [vmem:[#allocation7 + $0x270] sm:$0xff]
        %v9047 = vld [vmem:[#allocation7 + $0x278] sm:$0xff]
        %v9048 = vld [vmem:[#allocation7 + $0x280] sm:$0xff]
        %v9049 = vld [vmem:[#allocation7 + $0x288] sm:$0xff]
        %v9050 = vld [vmem:[#allocation7 + $0x290] sm:$0xff]
        %v9051 = vld [vmem:[#allocation7 + $0x298] sm:$0xff]
        %v9052 = vld [vmem:[#allocation7 + $0x2a0] sm:$0xff]
        %v9053 = vld [vmem:[#allocation7 + $0x2a8] sm:$0xff]
        %v9054 = vld [vmem:[#allocation7 + $0x2b0] sm:$0xff]
        %v9055 = vld [vmem:[#allocation7 + $0x2b8] sm:$0xff]
        %v9056 = vld [vmem:[#allocation7 + $0x2c0] sm:$0xff]
        %v9057 = vld [vmem:[#allocation7 + $0x2c8] sm:$0xff]
        %v9058 = vld [vmem:[#allocation7 + $0x2d0] sm:$0xff]
        %v9059 = vld [vmem:[#allocation7 + $0x2d8] sm:$0xff]
        %v9060 = vld [vmem:[#allocation7 + $0x2e0] sm:$0xff]
        %v9061 = vld [vmem:[#allocation7 + $0x2e8] sm:$0xff]
        %v9062 = vld [vmem:[#allocation7 + $0x2f0] sm:$0xff]
        %v9063 = vld [vmem:[#allocation7 + $0x2f8] sm:$0xff]
        %v9064 = vld [vmem:[#allocation7 + $0x300] sm:$0xff]
        %v9065 = vld [vmem:[#allocation7 + $0x308] sm:$0xff]
        %v9066 = vld [vmem:[#allocation7 + $0x310] sm:$0xff]
        %v9067 = vld [vmem:[#allocation7 + $0x318] sm:$0xff]
        %v9068 = vld [vmem:[#allocation7 + $0x320] sm:$0xff]
        %v9069 = vld [vmem:[#allocation7 + $0x328] sm:$0xff]
        %v9070 = vld [vmem:[#allocation7 + $0x330] sm:$0xff]
        %v9071 = vld [vmem:[#allocation7 + $0x338] sm:$0xff]
        %v9072 = vld [vmem:[#allocation7 + $0x340] sm:$0xff]
        %v9073 = vld [vmem:[#allocation7 + $0x348] sm:$0xff]
        %v9074 = vld [vmem:[#allocation7 + $0x350] sm:$0xff]
        %v9075 = vld [vmem:[#allocation7 + $0x358] sm:$0xff]
        %v9076 = vld [vmem:[#allocation7 + $0x360] sm:$0xff]
        %v9077 = vld [vmem:[#allocation7 + $0x368] sm:$0xff]
        %v9078 = vld [vmem:[#allocation7 + $0x370] sm:$0xff]
        %v9079 = vld [vmem:[#allocation7 + $0x378] sm:$0xff]
        %v9080 = vld [vmem:[#allocation7 + $0x380] sm:$0xff]
        %v9081 = vld [vmem:[#allocation7 + $0x388] sm:$0xff]
        %v9082 = vld [vmem:[#allocation7 + $0x390] sm:$0xff]
        %v9083 = vld [vmem:[#allocation7 + $0x398] sm:$0xff]
        %v9084 = vld [vmem:[#allocation7 + $0x3a0] sm:$0xff]
        %v9085 = vld [vmem:[#allocation7 + $0x3a8] sm:$0xff]
        %v9086 = vld [vmem:[#allocation7 + $0x3b0] sm:$0xff]
        %v9087 = vld [vmem:[#allocation7 + $0x3b8] sm:$0xff]
        %v9088 = vld [vmem:[#allocation7 + $0x3c0] sm:$0xff]
        %v9089 = vld [vmem:[#allocation7 + $0x3c8] sm:$0xff]
        %v9090 = vld [vmem:[#allocation7 + $0x3d0] sm:$0xff]
        %v9091 = vld [vmem:[#allocation7 + $0x3d8] sm:$0xff]
        %v9092 = vld [vmem:[#allocation7 + $0x3e0] sm:$0xff]
        %v9093 = vld [vmem:[#allocation7 + $0x3e8] sm:$0xff]
        %v9094 = vld [vmem:[#allocation7 + $0x3f0] sm:$0xff]
        %v9095 = vld [vmem:[#allocation7 + $0x3f8] sm:$0xff]
        %v9096 = vld [vmem:[#allocation7 + $0x400] sm:$0xff]
        %v9097 = vld [vmem:[#allocation7 + $0x408] sm:$0xff]
        %v9098 = vld [vmem:[#allocation7 + $0x410] sm:$0xff]
        %v9099 = vld [vmem:[#allocation7 + $0x418] sm:$0xff]
        %v9100 = vld [vmem:[#allocation7 + $0x420] sm:$0xff]
        %v9101 = vld [vmem:[#allocation7 + $0x428] sm:$0xff]
        %v9102 = vld [vmem:[#allocation7 + $0x430] sm:$0xff]
        %v9103 = vld [vmem:[#allocation7 + $0x438] sm:$0xff]
        %v9104 = vld [vmem:[#allocation7 + $0x440] sm:$0xff]
        %v9105 = vld [vmem:[#allocation7 + $0x448] sm:$0xff]
        %v9106 = vld [vmem:[#allocation7 + $0x450] sm:$0xff]
        %v9107 = vld [vmem:[#allocation7 + $0x458] sm:$0xff]
        %v9108 = vld [vmem:[#allocation7 + $0x460] sm:$0xff]
        %v9109 = vld [vmem:[#allocation7 + $0x468] sm:$0xff]
        %v9110 = vld [vmem:[#allocation7 + $0x470] sm:$0xff]
        %v9111 = vld [vmem:[#allocation7 + $0x478] sm:$0xff]
        %v9112 = vld [vmem:[#allocation7 + $0x480] sm:$0xff]
        %v9113 = vld [vmem:[#allocation7 + $0x488] sm:$0xff]
        %v9114 = vld [vmem:[#allocation7 + $0x490] sm:$0xff]
        %v9115 = vld [vmem:[#allocation7 + $0x498] sm:$0xff]
        %v9116 = vld [vmem:[#allocation7 + $0x4a0] sm:$0xff]
        %v9117 = vld [vmem:[#allocation7 + $0x4a8] sm:$0xff]
        %v9118 = vld [vmem:[#allocation7 + $0x4b0] sm:$0xff]
        %v9119 = vld [vmem:[#allocation7 + $0x4b8] sm:$0xff]
        %v9120 = vld [vmem:[#allocation7 + $0x4c0] sm:$0xff]
        %v9121 = vld [vmem:[#allocation7 + $0x4c8] sm:$0xff]
        %v9122 = vld [vmem:[#allocation7 + $0x4d0] sm:$0xff]
        %v9123 = vld [vmem:[#allocation7 + $0x4d8] sm:$0xff]
        %v9124 = vld [vmem:[#allocation7 + $0x4e0] sm:$0xff]
        %v9125 = vld [vmem:[#allocation7 + $0x4e8] sm:$0xff]
        %v9126 = vld [vmem:[#allocation7 + $0x4f0] sm:$0xff]
        %v9127 = vld [vmem:[#allocation7 + $0x4f8] sm:$0xff]
        %v9288 = vunpack.c.l.b16 %v8968
        %v9289 = vunpack.c.h.b16 %v8968
        %v9290 = vunpack.c.l.b16 %v8969
        %v9291 = vunpack.c.h.b16 %v8969
        %v9292 = vunpack.c.l.b16 %v8970
        %v9293 = vunpack.c.h.b16 %v8970
        %v9294 = vunpack.c.l.b16 %v8971
        %v9295 = vunpack.c.h.b16 %v8971
        %v9296 = vunpack.c.l.b16 %v8972
        %v9297 = vunpack.c.h.b16 %v8972
        %v9298 = vunpack.c.l.b16 %v8973
        %v9299 = vunpack.c.h.b16 %v8973
        %v9300 = vunpack.c.l.b16 %v8974
        %v9301 = vunpack.c.h.b16 %v8974
        %v9302 = vunpack.c.l.b16 %v8975
        %v9303 = vunpack.c.h.b16 %v8975
        %v9304 = vunpack.c.l.b16 %v8976
        %v9305 = vunpack.c.h.b16 %v8976
        %v9306 = vunpack.c.l.b16 %v8977
        %v9307 = vunpack.c.h.b16 %v8977
        %v9308 = vunpack.c.l.b16 %v8978
        %v9309 = vunpack.c.h.b16 %v8978
        %v9310 = vunpack.c.l.b16 %v8979
        %v9311 = vunpack.c.h.b16 %v8979
        %v9312 = vunpack.c.l.b16 %v8980
        %v9313 = vunpack.c.h.b16 %v8980
        %v9314 = vunpack.c.l.b16 %v8981
        %v9315 = vunpack.c.h.b16 %v8981
        %v9316 = vunpack.c.l.b16 %v8982
        %v9317 = vunpack.c.h.b16 %v8982
        %v9318 = vunpack.c.l.b16 %v8983
        %v9319 = vunpack.c.h.b16 %v8983
        %v9320 = vunpack.c.l.b16 %v8984
        %v9321 = vunpack.c.h.b16 %v8984
        %v9322 = vunpack.c.l.b16 %v8985
        %v9323 = vunpack.c.h.b16 %v8985
        %v9324 = vunpack.c.l.b16 %v8986
        %v9325 = vunpack.c.h.b16 %v8986
        %v9326 = vunpack.c.l.b16 %v8987
        %v9327 = vunpack.c.h.b16 %v8987
        %v9328 = vunpack.c.l.b16 %v8988
        %v9329 = vunpack.c.h.b16 %v8988
        %v9330 = vunpack.c.l.b16 %v8989
        %v9331 = vunpack.c.h.b16 %v8989
        %v9332 = vunpack.c.l.b16 %v8990
        %v9333 = vunpack.c.h.b16 %v8990
        %v9334 = vunpack.c.l.b16 %v8991
        %v9335 = vunpack.c.h.b16 %v8991
        %v9336 = vunpack.c.l.b16 %v8992
        %v9337 = vunpack.c.h.b16 %v8992
        %v9338 = vunpack.c.l.b16 %v8993
        %v9339 = vunpack.c.h.b16 %v8993
        %v9340 = vunpack.c.l.b16 %v8994
        %v9341 = vunpack.c.h.b16 %v8994
        %v9342 = vunpack.c.l.b16 %v8995
        %v9343 = vunpack.c.h.b16 %v8995
        %v9344 = vunpack.c.l.b16 %v8996
        %v9345 = vunpack.c.h.b16 %v8996
        %v9346 = vunpack.c.l.b16 %v8997
        %v9347 = vunpack.c.h.b16 %v8997
        %v9348 = vunpack.c.l.b16 %v8998
        %v9349 = vunpack.c.h.b16 %v8998
        %v9350 = vunpack.c.l.b16 %v8999
        %v9351 = vunpack.c.h.b16 %v8999
        %v9352 = vunpack.c.l.b16 %v9000
        %v9353 = vunpack.c.h.b16 %v9000
        %v9354 = vunpack.c.l.b16 %v9001
        %v9355 = vunpack.c.h.b16 %v9001
        %v9356 = vunpack.c.l.b16 %v9002
        %v9357 = vunpack.c.h.b16 %v9002
        %v9358 = vunpack.c.l.b16 %v9003
        %v9359 = vunpack.c.h.b16 %v9003
        %v9360 = vunpack.c.l.b16 %v9004
        %v9361 = vunpack.c.h.b16 %v9004
        %v9362 = vunpack.c.l.b16 %v9005
        %v9363 = vunpack.c.h.b16 %v9005
        %v9364 = vunpack.c.l.b16 %v9006
        %v9365 = vunpack.c.h.b16 %v9006
        %v9366 = vunpack.c.l.b16 %v9007
        %v9367 = vunpack.c.h.b16 %v9007
        %v9368 = vunpack.c.l.b16 %v9008
        %v9369 = vunpack.c.h.b16 %v9008
        %v9370 = vunpack.c.l.b16 %v9009
        %v9371 = vunpack.c.h.b16 %v9009
        %v9372 = vunpack.c.l.b16 %v9010
        %v9373 = vunpack.c.h.b16 %v9010
        %v9374 = vunpack.c.l.b16 %v9011
        %v9375 = vunpack.c.h.b16 %v9011
        %v9376 = vunpack.c.l.b16 %v9012
        %v9377 = vunpack.c.h.b16 %v9012
        %v9378 = vunpack.c.l.b16 %v9013
        %v9379 = vunpack.c.h.b16 %v9013
        %v9380 = vunpack.c.l.b16 %v9014
        %v9381 = vunpack.c.h.b16 %v9014
        %v9382 = vunpack.c.l.b16 %v9015
        %v9383 = vunpack.c.h.b16 %v9015
        %v9384 = vunpack.c.l.b16 %v9016
        %v9385 = vunpack.c.h.b16 %v9016
        %v9386 = vunpack.c.l.b16 %v9017
        %v9387 = vunpack.c.h.b16 %v9017
        %v9388 = vunpack.c.l.b16 %v9018
        %v9389 = vunpack.c.h.b16 %v9018
        %v9390 = vunpack.c.l.b16 %v9019
        %v9391 = vunpack.c.h.b16 %v9019
        %v9392 = vunpack.c.l.b16 %v9020
        %v9393 = vunpack.c.h.b16 %v9020
        %v9394 = vunpack.c.l.b16 %v9021
        %v9395 = vunpack.c.h.b16 %v9021
        %v9396 = vunpack.c.l.b16 %v9022
        %v9397 = vunpack.c.h.b16 %v9022
        %v9398 = vunpack.c.l.b16 %v9023
        %v9399 = vunpack.c.h.b16 %v9023
        %v9400 = vunpack.c.l.b16 %v9024
        %v9401 = vunpack.c.h.b16 %v9024
        %v9402 = vunpack.c.l.b16 %v9025
        %v9403 = vunpack.c.h.b16 %v9025
        %v9404 = vunpack.c.l.b16 %v9026
        %v9405 = vunpack.c.h.b16 %v9026
        %v9406 = vunpack.c.l.b16 %v9027
        %v9407 = vunpack.c.h.b16 %v9027
        %v9408 = vunpack.c.l.b16 %v9028
        %v9409 = vunpack.c.h.b16 %v9028
        %v9410 = vunpack.c.l.b16 %v9029
        %v9411 = vunpack.c.h.b16 %v9029
        %v9412 = vunpack.c.l.b16 %v9030
        %v9413 = vunpack.c.h.b16 %v9030
        %v9414 = vunpack.c.l.b16 %v9031
        %v9415 = vunpack.c.h.b16 %v9031
        %v9416 = vunpack.c.l.b16 %v9032
        %v9417 = vunpack.c.h.b16 %v9032
        %v9418 = vunpack.c.l.b16 %v9033
        %v9419 = vunpack.c.h.b16 %v9033
        %v9420 = vunpack.c.l.b16 %v9034
        %v9421 = vunpack.c.h.b16 %v9034
        %v9422 = vunpack.c.l.b16 %v9035
        %v9423 = vunpack.c.h.b16 %v9035
        %v9424 = vunpack.c.l.b16 %v9036
        %v9425 = vunpack.c.h.b16 %v9036
        %v9426 = vunpack.c.l.b16 %v9037
        %v9427 = vunpack.c.h.b16 %v9037
        %v9428 = vunpack.c.l.b16 %v9038
        %v9429 = vunpack.c.h.b16 %v9038
        %v9430 = vunpack.c.l.b16 %v9039
        %v9431 = vunpack.c.h.b16 %v9039
        %v9432 = vunpack.c.l.b16 %v9040
        %v9433 = vunpack.c.h.b16 %v9040
        %v9434 = vunpack.c.l.b16 %v9041
        %v9435 = vunpack.c.h.b16 %v9041
        %v9436 = vunpack.c.l.b16 %v9042
        %v9437 = vunpack.c.h.b16 %v9042
        %v9438 = vunpack.c.l.b16 %v9043
        %v9439 = vunpack.c.h.b16 %v9043
        %v9440 = vunpack.c.l.b16 %v9044
        %v9441 = vunpack.c.h.b16 %v9044
        %v9442 = vunpack.c.l.b16 %v9045
        %v9443 = vunpack.c.h.b16 %v9045
        %v9444 = vunpack.c.l.b16 %v9046
        %v9445 = vunpack.c.h.b16 %v9046
        %v9446 = vunpack.c.l.b16 %v9047
        %v9447 = vunpack.c.h.b16 %v9047
        %v9448 = vunpack.c.l.b16 %v9048
        %v9449 = vunpack.c.h.b16 %v9048
        %v9450 = vunpack.c.l.b16 %v9049
        %v9451 = vunpack.c.h.b16 %v9049
        %v9452 = vunpack.c.l.b16 %v9050
        %v9453 = vunpack.c.h.b16 %v9050
        %v9454 = vunpack.c.l.b16 %v9051
        %v9455 = vunpack.c.h.b16 %v9051
        %v9456 = vunpack.c.l.b16 %v9052
        %v9457 = vunpack.c.h.b16 %v9052
        %v9458 = vunpack.c.l.b16 %v9053
        %v9459 = vunpack.c.h.b16 %v9053
        %v9460 = vunpack.c.l.b16 %v9054
        %v9461 = vunpack.c.h.b16 %v9054
        %v9462 = vunpack.c.l.b16 %v9055
        %v9463 = vunpack.c.h.b16 %v9055
        %v9464 = vunpack.c.l.b16 %v9056
        %v9465 = vunpack.c.h.b16 %v9056
        %v9466 = vunpack.c.l.b16 %v9057
        %v9467 = vunpack.c.h.b16 %v9057
        %v9468 = vunpack.c.l.b16 %v9058
        %v9469 = vunpack.c.h.b16 %v9058
        %v9470 = vunpack.c.l.b16 %v9059
        %v9471 = vunpack.c.h.b16 %v9059
        %v9472 = vunpack.c.l.b16 %v9060
        %v9473 = vunpack.c.h.b16 %v9060
        %v9474 = vunpack.c.l.b16 %v9061
        %v9475 = vunpack.c.h.b16 %v9061
        %v9476 = vunpack.c.l.b16 %v9062
        %v9477 = vunpack.c.h.b16 %v9062
        %v9478 = vunpack.c.l.b16 %v9063
        %v9479 = vunpack.c.h.b16 %v9063
        %v9480 = vunpack.c.l.b16 %v9064
        %v9481 = vunpack.c.h.b16 %v9064
        %v9482 = vunpack.c.l.b16 %v9065
        %v9483 = vunpack.c.h.b16 %v9065
        %v9484 = vunpack.c.l.b16 %v9066
        %v9485 = vunpack.c.h.b16 %v9066
        %v9486 = vunpack.c.l.b16 %v9067
        %v9487 = vunpack.c.h.b16 %v9067
        %v9488 = vunpack.c.l.b16 %v9068
        %v9489 = vunpack.c.h.b16 %v9068
        %v9490 = vunpack.c.l.b16 %v9069
        %v9491 = vunpack.c.h.b16 %v9069
        %v9492 = vunpack.c.l.b16 %v9070
        %v9493 = vunpack.c.h.b16 %v9070
        %v9494 = vunpack.c.l.b16 %v9071
        %v9495 = vunpack.c.h.b16 %v9071
        %v9496 = vunpack.c.l.b16 %v9072
        %v9497 = vunpack.c.h.b16 %v9072
        %v9498 = vunpack.c.l.b16 %v9073
        %v9499 = vunpack.c.h.b16 %v9073
        %v9500 = vunpack.c.l.b16 %v9074
        %v9501 = vunpack.c.h.b16 %v9074
        %v9502 = vunpack.c.l.b16 %v9075
        %v9503 = vunpack.c.h.b16 %v9075
        %v9504 = vunpack.c.l.b16 %v9076
        %v9505 = vunpack.c.h.b16 %v9076
        %v9506 = vunpack.c.l.b16 %v9077
        %v9507 = vunpack.c.h.b16 %v9077
        %v9508 = vunpack.c.l.b16 %v9078
        %v9509 = vunpack.c.h.b16 %v9078
        %v9510 = vunpack.c.l.b16 %v9079
        %v9511 = vunpack.c.h.b16 %v9079
        %v9512 = vunpack.c.l.b16 %v9080
        %v9513 = vunpack.c.h.b16 %v9080
        %v9514 = vunpack.c.l.b16 %v9081
        %v9515 = vunpack.c.h.b16 %v9081
        %v9516 = vunpack.c.l.b16 %v9082
        %v9517 = vunpack.c.h.b16 %v9082
        %v9518 = vunpack.c.l.b16 %v9083
        %v9519 = vunpack.c.h.b16 %v9083
        %v9520 = vunpack.c.l.b16 %v9084
        %v9521 = vunpack.c.h.b16 %v9084
        %v9522 = vunpack.c.l.b16 %v9085
        %v9523 = vunpack.c.h.b16 %v9085
        %v9524 = vunpack.c.l.b16 %v9086
        %v9525 = vunpack.c.h.b16 %v9086
        %v9526 = vunpack.c.l.b16 %v9087
        %v9527 = vunpack.c.h.b16 %v9087
        %v9528 = vunpack.c.l.b16 %v9088
        %v9529 = vunpack.c.h.b16 %v9088
        %v9530 = vunpack.c.l.b16 %v9089
        %v9531 = vunpack.c.h.b16 %v9089
        %v9532 = vunpack.c.l.b16 %v9090
        %v9533 = vunpack.c.h.b16 %v9090
        %v9534 = vunpack.c.l.b16 %v9091
        %v9535 = vunpack.c.h.b16 %v9091
        %v9536 = vunpack.c.l.b16 %v9092
        %v9537 = vunpack.c.h.b16 %v9092
        %v9538 = vunpack.c.l.b16 %v9093
        %v9539 = vunpack.c.h.b16 %v9093
        %v9540 = vunpack.c.l.b16 %v9094
        %v9541 = vunpack.c.h.b16 %v9094
        %v9542 = vunpack.c.l.b16 %v9095
        %v9543 = vunpack.c.h.b16 %v9095
        %v9544 = vunpack.c.l.b16 %v9096
        %v9545 = vunpack.c.h.b16 %v9096
        %v9546 = vunpack.c.l.b16 %v9097
        %v9547 = vunpack.c.h.b16 %v9097
        %v9548 = vunpack.c.l.b16 %v9098
        %v9549 = vunpack.c.h.b16 %v9098
        %v9550 = vunpack.c.l.b16 %v9099
        %v9551 = vunpack.c.h.b16 %v9099
        %v9552 = vunpack.c.l.b16 %v9100
        %v9553 = vunpack.c.h.b16 %v9100
        %v9554 = vunpack.c.l.b16 %v9101
        %v9555 = vunpack.c.h.b16 %v9101
        %v9556 = vunpack.c.l.b16 %v9102
        %v9557 = vunpack.c.h.b16 %v9102
        %v9558 = vunpack.c.l.b16 %v9103
        %v9559 = vunpack.c.h.b16 %v9103
        %v9560 = vunpack.c.l.b16 %v9104
        %v9561 = vunpack.c.h.b16 %v9104
        %v9562 = vunpack.c.l.b16 %v9105
        %v9563 = vunpack.c.h.b16 %v9105
        %v9564 = vunpack.c.l.b16 %v9106
        %v9565 = vunpack.c.h.b16 %v9106
        %v9566 = vunpack.c.l.b16 %v9107
        %v9567 = vunpack.c.h.b16 %v9107
        %v9568 = vunpack.c.l.b16 %v9108
        %v9569 = vunpack.c.h.b16 %v9108
        %v9570 = vunpack.c.l.b16 %v9109
        %v9571 = vunpack.c.h.b16 %v9109
        %v9572 = vunpack.c.l.b16 %v9110
        %v9573 = vunpack.c.h.b16 %v9110
        %v9574 = vunpack.c.l.b16 %v9111
        %v9575 = vunpack.c.h.b16 %v9111
        %v9576 = vunpack.c.l.b16 %v9112
        %v9577 = vunpack.c.h.b16 %v9112
        %v9578 = vunpack.c.l.b16 %v9113
        %v9579 = vunpack.c.h.b16 %v9113
        %v9580 = vunpack.c.l.b16 %v9114
        %v9581 = vunpack.c.h.b16 %v9114
        %v9582 = vunpack.c.l.b16 %v9115
        %v9583 = vunpack.c.h.b16 %v9115
        %v9584 = vunpack.c.l.b16 %v9116
        %v9585 = vunpack.c.h.b16 %v9116
        %v9586 = vunpack.c.l.b16 %v9117
        %v9587 = vunpack.c.h.b16 %v9117
        %v9588 = vunpack.c.l.b16 %v9118
        %v9589 = vunpack.c.h.b16 %v9118
        %v9590 = vunpack.c.l.b16 %v9119
        %v9591 = vunpack.c.h.b16 %v9119
        %v9592 = vunpack.c.l.b16 %v9120
        %v9593 = vunpack.c.h.b16 %v9120
        %v9594 = vunpack.c.l.b16 %v9121
        %v9595 = vunpack.c.h.b16 %v9121
        %v9596 = vunpack.c.l.b16 %v9122
        %v9597 = vunpack.c.h.b16 %v9122
        %v9598 = vunpack.c.l.b16 %v9123
        %v9599 = vunpack.c.h.b16 %v9123
        %v9600 = vunpack.c.l.b16 %v9124
        %v9601 = vunpack.c.h.b16 %v9124
        %v9602 = vunpack.c.l.b16 %v9125
        %v9603 = vunpack.c.h.b16 %v9125
        %v9604 = vunpack.c.l.b16 %v9126
        %v9605 = vunpack.c.h.b16 %v9126
        %v9606 = vunpack.c.l.b16 %v9127
        %v9607 = vunpack.c.h.b16 %v9127
        %v9608 = vpack.c.b16 %v9292, %v9288
        %v9609 = vpack.c.b16 %v9293, %v9289
        %v9610 = vpack.c.b16 %v9294, %v9290
        %v9611 = vpack.c.b16 %v9295, %v9291
        %v9612 = vpack.c.b16 %v9300, %v9296
        %v9613 = vpack.c.b16 %v9301, %v9297
        %v9614 = vpack.c.b16 %v9302, %v9298
        %v9615 = vpack.c.b16 %v9303, %v9299
        %v9616 = vpack.c.b16 %v9308, %v9304
        %v9617 = vpack.c.b16 %v9309, %v9305
        %v9618 = vpack.c.b16 %v9310, %v9306
        %v9619 = vpack.c.b16 %v9311, %v9307
        %v9620 = vpack.c.b16 %v9316, %v9312
        %v9621 = vpack.c.b16 %v9317, %v9313
        %v9622 = vpack.c.b16 %v9318, %v9314
        %v9623 = vpack.c.b16 %v9319, %v9315
        %v9624 = vpack.c.b16 %v9324, %v9320
        %v9625 = vpack.c.b16 %v9325, %v9321
        %v9626 = vpack.c.b16 %v9326, %v9322
        %v9627 = vpack.c.b16 %v9327, %v9323
        %v9628 = vpack.c.b16 %v9332, %v9328
        %v9629 = vpack.c.b16 %v9333, %v9329
        %v9630 = vpack.c.b16 %v9334, %v9330
        %v9631 = vpack.c.b16 %v9335, %v9331
        %v9632 = vpack.c.b16 %v9340, %v9336
        %v9633 = vpack.c.b16 %v9341, %v9337
        %v9634 = vpack.c.b16 %v9342, %v9338
        %v9635 = vpack.c.b16 %v9343, %v9339
        %v9636 = vpack.c.b16 %v9348, %v9344
        %v9637 = vpack.c.b16 %v9349, %v9345
        %v9638 = vpack.c.b16 %v9350, %v9346
        %v9639 = vpack.c.b16 %v9351, %v9347
        %v9640 = vpack.c.b16 %v9356, %v9352
        %v9641 = vpack.c.b16 %v9357, %v9353
        %v9642 = vpack.c.b16 %v9358, %v9354
        %v9643 = vpack.c.b16 %v9359, %v9355
        %v9644 = vpack.c.b16 %v9364, %v9360
        %v9645 = vpack.c.b16 %v9365, %v9361
        %v9646 = vpack.c.b16 %v9366, %v9362
        %v9647 = vpack.c.b16 %v9367, %v9363
        %v9648 = vpack.c.b16 %v9372, %v9368
        %v9649 = vpack.c.b16 %v9373, %v9369
        %v9650 = vpack.c.b16 %v9374, %v9370
        %v9651 = vpack.c.b16 %v9375, %v9371
        %v9652 = vpack.c.b16 %v9380, %v9376
        %v9653 = vpack.c.b16 %v9381, %v9377
        %v9654 = vpack.c.b16 %v9382, %v9378
        %v9655 = vpack.c.b16 %v9383, %v9379
        %v9656 = vpack.c.b16 %v9388, %v9384
        %v9657 = vpack.c.b16 %v9389, %v9385
        %v9658 = vpack.c.b16 %v9390, %v9386
        %v9659 = vpack.c.b16 %v9391, %v9387
        %v9660 = vpack.c.b16 %v9396, %v9392
        %v9661 = vpack.c.b16 %v9397, %v9393
        %v9662 = vpack.c.b16 %v9398, %v9394
        %v9663 = vpack.c.b16 %v9399, %v9395
        %v9664 = vpack.c.b16 %v9404, %v9400
        %v9665 = vpack.c.b16 %v9405, %v9401
        %v9666 = vpack.c.b16 %v9406, %v9402
        %v9667 = vpack.c.b16 %v9407, %v9403
        %v9668 = vpack.c.b16 %v9412, %v9408
        %v9669 = vpack.c.b16 %v9413, %v9409
        %v9670 = vpack.c.b16 %v9414, %v9410
        %v9671 = vpack.c.b16 %v9415, %v9411
        %v9672 = vpack.c.b16 %v9420, %v9416
        %v9673 = vpack.c.b16 %v9421, %v9417
        %v9674 = vpack.c.b16 %v9422, %v9418
        %v9675 = vpack.c.b16 %v9423, %v9419
        %v9676 = vpack.c.b16 %v9428, %v9424
        %v9677 = vpack.c.b16 %v9429, %v9425
        %v9678 = vpack.c.b16 %v9430, %v9426
        %v9679 = vpack.c.b16 %v9431, %v9427
        %v9680 = vpack.c.b16 %v9436, %v9432
        %v9681 = vpack.c.b16 %v9437, %v9433
        %v9682 = vpack.c.b16 %v9438, %v9434
        %v9683 = vpack.c.b16 %v9439, %v9435
        %v9684 = vpack.c.b16 %v9444, %v9440
        %v9685 = vpack.c.b16 %v9445, %v9441
        %v9686 = vpack.c.b16 %v9446, %v9442
        %v9687 = vpack.c.b16 %v9447, %v9443
        %v9688 = vpack.c.b16 %v9452, %v9448
        %v9689 = vpack.c.b16 %v9453, %v9449
        %v9690 = vpack.c.b16 %v9454, %v9450
        %v9691 = vpack.c.b16 %v9455, %v9451
        %v9692 = vpack.c.b16 %v9460, %v9456
        %v9693 = vpack.c.b16 %v9461, %v9457
        %v9694 = vpack.c.b16 %v9462, %v9458
        %v9695 = vpack.c.b16 %v9463, %v9459
        %v9696 = vpack.c.b16 %v9468, %v9464
        %v9697 = vpack.c.b16 %v9469, %v9465
        %v9698 = vpack.c.b16 %v9470, %v9466
        %v9699 = vpack.c.b16 %v9471, %v9467
        %v9700 = vpack.c.b16 %v9476, %v9472
        %v9701 = vpack.c.b16 %v9477, %v9473
        %v9702 = vpack.c.b16 %v9478, %v9474
        %v9703 = vpack.c.b16 %v9479, %v9475
        %v9704 = vpack.c.b16 %v9484, %v9480
        %v9705 = vpack.c.b16 %v9485, %v9481
        %v9706 = vpack.c.b16 %v9486, %v9482
        %v9707 = vpack.c.b16 %v9487, %v9483
        %v9708 = vpack.c.b16 %v9492, %v9488
        %v9709 = vpack.c.b16 %v9493, %v9489
        %v9710 = vpack.c.b16 %v9494, %v9490
        %v9711 = vpack.c.b16 %v9495, %v9491
        %v9712 = vpack.c.b16 %v9500, %v9496
        %v9713 = vpack.c.b16 %v9501, %v9497
        %v9714 = vpack.c.b16 %v9502, %v9498
        %v9715 = vpack.c.b16 %v9503, %v9499
        %v9716 = vpack.c.b16 %v9508, %v9504
        %v9717 = vpack.c.b16 %v9509, %v9505
        %v9718 = vpack.c.b16 %v9510, %v9506
        %v9719 = vpack.c.b16 %v9511, %v9507
        %v9720 = vpack.c.b16 %v9516, %v9512
        %v9721 = vpack.c.b16 %v9517, %v9513
        %v9722 = vpack.c.b16 %v9518, %v9514
        %v9723 = vpack.c.b16 %v9519, %v9515
        %v9724 = vpack.c.b16 %v9524, %v9520
        %v9725 = vpack.c.b16 %v9525, %v9521
        %v9726 = vpack.c.b16 %v9526, %v9522
        %v9727 = vpack.c.b16 %v9527, %v9523
        %v9728 = vpack.c.b16 %v9532, %v9528
        %v9729 = vpack.c.b16 %v9533, %v9529
        %v9730 = vpack.c.b16 %v9534, %v9530
        %v9731 = vpack.c.b16 %v9535, %v9531
        %v9732 = vpack.c.b16 %v9540, %v9536
        %v9733 = vpack.c.b16 %v9541, %v9537
        %v9734 = vpack.c.b16 %v9542, %v9538
        %v9735 = vpack.c.b16 %v9543, %v9539
        %v9736 = vpack.c.b16 %v9548, %v9544
        %v9737 = vpack.c.b16 %v9549, %v9545
        %v9738 = vpack.c.b16 %v9550, %v9546
        %v9739 = vpack.c.b16 %v9551, %v9547
        %v9740 = vpack.c.b16 %v9556, %v9552
        %v9741 = vpack.c.b16 %v9557, %v9553
        %v9742 = vpack.c.b16 %v9558, %v9554
        %v9743 = vpack.c.b16 %v9559, %v9555
        %v9744 = vpack.c.b16 %v9564, %v9560
        %v9745 = vpack.c.b16 %v9565, %v9561
        %v9746 = vpack.c.b16 %v9566, %v9562
        %v9747 = vpack.c.b16 %v9567, %v9563
        %v9748 = vpack.c.b16 %v9572, %v9568
        %v9749 = vpack.c.b16 %v9573, %v9569
        %v9750 = vpack.c.b16 %v9574, %v9570
        %v9751 = vpack.c.b16 %v9575, %v9571
        %v9752 = vpack.c.b16 %v9580, %v9576
        %v9753 = vpack.c.b16 %v9581, %v9577
        %v9754 = vpack.c.b16 %v9582, %v9578
        %v9755 = vpack.c.b16 %v9583, %v9579
        %v9756 = vpack.c.b16 %v9588, %v9584
        %v9757 = vpack.c.b16 %v9589, %v9585
        %v9758 = vpack.c.b16 %v9590, %v9586
        %v9759 = vpack.c.b16 %v9591, %v9587
        %v9760 = vpack.c.b16 %v9596, %v9592
        %v9761 = vpack.c.b16 %v9597, %v9593
        %v9762 = vpack.c.b16 %v9598, %v9594
        %v9763 = vpack.c.b16 %v9599, %v9595
        %v9764 = vpack.c.b16 %v9604, %v9600
        %v9765 = vpack.c.b16 %v9605, %v9601
        %v9766 = vpack.c.b16 %v9606, %v9602
        %v9767 = vpack.c.b16 %v9607, %v9603
        %9928 = vmatprep.subr.bf16.mxu0 %v9609
        %9929 = vmatpush1.bf16.msra.mxu0 %v9608
        %9930 = vmatprep.subr.bf16.mxu0 %v9613
        %9931 = vmatpush1.bf16.msra.mxu0 %v9612
        %9932 = vmatprep.subr.bf16.mxu0 %v9617
        %9933 = vmatpush1.bf16.msra.mxu0 %v9616
        %9934 = vmatprep.subr.bf16.mxu0 %v9621
        %9935 = vmatpush1.bf16.msra.mxu0 %v9620
        %9936 = vmatprep.subr.bf16.mxu0 %v9625
        %9937 = vmatpush1.bf16.msra.mxu0 %v9624
        %9938 = vmatprep.subr.bf16.mxu0 %v9629
        %9939 = vmatpush1.bf16.msra.mxu0 %v9628
        %9940 = vmatprep.subr.bf16.mxu0 %v9633
        %9941 = vmatpush1.bf16.msra.mxu0 %v9632
        %9942 = vmatprep.subr.bf16.mxu0 %v9637
        %9943 = vmatpush1.bf16.msra.mxu0 %v9636
        %9944 = vmatprep.subr.bf16.mxu0 %v9641
        %9945 = vmatpush1.bf16.msra.mxu0 %v9640
        %9946 = vmatprep.subr.bf16.mxu0 %v9645
        %9947 = vmatpush1.bf16.msra.mxu0 %v9644
        %9948 = vmatprep.subr.bf16.mxu0 %v9649
        %9949 = vmatpush1.bf16.msra.mxu0 %v9648
        %9950 = vmatprep.subr.bf16.mxu0 %v9653
        %9951 = vmatpush1.bf16.msra.mxu0 %v9652
        %9952 = vmatprep.subr.bf16.mxu0 %v9657
        %9953 = vmatpush1.bf16.msra.mxu0 %v9656
        %9954 = vmatprep.subr.bf16.mxu0 %v9661
        %9955 = vmatpush1.bf16.msra.mxu0 %v9660
        %9956 = vmatprep.subr.bf16.mxu0 %v9665
        %9957 = vmatpush1.bf16.msra.mxu0 %v9664
        %9958 = vmatprep.subr.bf16.mxu0 %v9669
        %9959 = vmatpush1.bf16.msra.mxu0 %v9668
        %9960 = vmatprep.mubr.bf16.mxu0 %v8964
        %9961 = vmatmul.mubr.bf16.gmra.mrb[0].mxu0 %v8963
        %v9962 = vpop.f32.mrb[0].mxu0
        %v9963 = vadd.f32 0.0, %v9962
        %v9964 = vpop.f32.mrb[0].mxu0
        %v9965 = vadd.f32 0.0, %v9964
        %v9966 = vpop.f32.mrb[0].mxu0
        %v9967 = vpop.f32.mrb[0].mxu0
        %9968 = vdwg.mxu0
        %9969 = vmatprep.subr.bf16.mxu0 %v9673
        %9970 = vmatpush1.bf16.msra.mxu0 %v9672
        %9971 = vmatprep.subr.bf16.mxu0 %v9677
        %9972 = vmatpush1.bf16.msra.mxu0 %v9676
        %9973 = vmatprep.subr.bf16.mxu0 %v9681
        %9974 = vmatpush1.bf16.msra.mxu0 %v9680
        %9975 = vmatprep.subr.bf16.mxu0 %v9685
        %9976 = vmatpush1.bf16.msra.mxu0 %v9684
        %9977 = vmatprep.subr.bf16.mxu0 %v9689
        %9978 = vmatpush1.bf16.msra.mxu0 %v9688
        %9979 = vmatprep.subr.bf16.mxu0 %v9693
        %9980 = vmatpush1.bf16.msra.mxu0 %v9692
        %9981 = vmatprep.subr.bf16.mxu0 %v9697
        %9982 = vmatpush1.bf16.msra.mxu0 %v9696
        %9983 = vmatprep.subr.bf16.mxu0 %v9701
        %9984 = vmatpush1.bf16.msra.mxu0 %v9700
        %9985 = vmatprep.subr.bf16.mxu0 %v9705
        %9986 = vmatpush1.bf16.msra.mxu0 %v9704
        %9987 = vmatprep.subr.bf16.mxu0 %v9709
        %9988 = vmatpush1.bf16.msra.mxu0 %v9708
        %9989 = vmatprep.subr.bf16.mxu0 %v9713
        %9990 = vmatpush1.bf16.msra.mxu0 %v9712
        %9991 = vmatprep.subr.bf16.mxu0 %v9717
        %9992 = vmatpush1.bf16.msra.mxu0 %v9716
        %9993 = vmatprep.subr.bf16.mxu0 %v9721
        %9994 = vmatpush1.bf16.msra.mxu0 %v9720
        %9995 = vmatprep.subr.bf16.mxu0 %v9725
        %9996 = vmatpush1.bf16.msra.mxu0 %v9724
        %9997 = vmatprep.subr.bf16.mxu0 %v9729
        %9998 = vmatpush1.bf16.msra.mxu0 %v9728
        %9999 = vmatprep.subr.bf16.mxu0 %v9733
        %10000 = vmatpush1.bf16.msra.mxu0 %v9732
        %10001 = vmatprep.mubr.bf16.mxu0 %v8966
        %10002 = vmatmul.mubr.bf16.gmra.mrb[0].mxu0 %v8965
        %v10003 = vpop.f32.mrb[0].mxu0
        %v10004 = vadd.f32 %v9963, %v10003
        %v10005 = vpop.f32.mrb[0].mxu0
        %v10006 = vadd.f32 %v9965, %v10005
        %v10007 = vpop.f32.mrb[0].mxu0
        %v10008 = vpop.f32.mrb[0].mxu0
        %10009 = vdwg.mxu0
        %10010 = vmatprep.subr.bf16.mxu0 %v9737
        %10011 = vmatpush1.bf16.msra.mxu0 %v9736
        %10012 = vmatprep.subr.bf16.mxu0 %v9741
        %10013 = vmatpush1.bf16.msra.mxu0 %v9740
        %10014 = vmatprep.subr.bf16.mxu0 %v9745
        %10015 = vmatpush1.bf16.msra.mxu0 %v9744
        %10016 = vmatprep.subr.bf16.mxu0 %v9749
        %10017 = vmatpush1.bf16.msra.mxu0 %v9748
        %10018 = vmatprep.subr.bf16.mxu0 %v9753
        %10019 = vmatpush1.bf16.msra.mxu0 %v9752
        %10020 = vmatprep.subr.bf16.mxu0 %v9757
        %10021 = vmatpush1.bf16.msra.mxu0 %v9756
        %10022 = vmatprep.subr.bf16.mxu0 %v9761
        %10023 = vmatpush1.bf16.msra.mxu0 %v9760
        %10024 = vmatprep.subr.bf16.mxu0 %v9765
        %10025 = vmatpush1.bf16.msra.mxu0 %v9764
        %10026 = vmatprep.subr.bf16.mxu0 0
        %10027 = vmatpush1.bf16.msra.mxu0 0
        %10028 = vmatprep.subr.bf16.mxu0 0
        %10029 = vmatpush1.bf16.msra.mxu0 0
        %10030 = vmatprep.subr.bf16.mxu0 0
        %10031 = vmatpush1.bf16.msra.mxu0 0
        %10032 = vmatprep.subr.bf16.mxu0 0
        %10033 = vmatpush1.bf16.msra.mxu0 0
        %10034 = vmatprep.subr.bf16.mxu0 0
        %10035 = vmatpush1.bf16.msra.mxu0 0
        %10036 = vmatprep.subr.bf16.mxu0 0
        %10037 = vmatpush1.bf16.msra.mxu0 0
        %10038 = vmatprep.subr.bf16.mxu0 0
        %10039 = vmatpush1.bf16.msra.mxu0 0
        %10040 = vmatprep.subr.bf16.mxu0 0
        %10041 = vmatpush1.bf16.msra.mxu0 0
        %10042 = vmatprep.mubr.bf16.mxu0 0
        %10043 = vmatmul.mubr.bf16.gmra.mrb[0].mxu0 %v8967
        %v10044 = vpop.f32.mrb[0].mxu0
        %v10045 = vadd.f32 %v10004, %v10044
        %v10046 = vpop.f32.mrb[0].mxu0
        %v10047 = vadd.f32 %v10006, %v10046
        %v10048 = vpop.f32.mrb[0].mxu0
        %v10049 = vpop.f32.mrb[0].mxu0
        %10050 = vdwg.mxu0
        %10051 = vmatprep.subr.bf16.mxu0 %v9611
        %10052 = vmatpush1.bf16.msra.mxu0 %v9610
        %10053 = vmatprep.subr.bf16.mxu0 %v9615
        %10054 = vmatpush1.bf16.msra.mxu0 %v9614
        %10055 = vmatprep.subr.bf16.mxu0 %v9619
        %10056 = vmatpush1.bf16.msra.mxu0 %v9618
        %10057 = vmatprep.subr.bf16.mxu0 %v9623
        %10058 = vmatpush1.bf16.msra.mxu0 %v9622
        %10059 = vmatprep.subr.bf16.mxu0 %v9627
        %10060 = vmatpush1.bf16.msra.mxu0 %v9626
        %10061 = vmatprep.subr.bf16.mxu0 %v9631
        %10062 = vmatpush1.bf16.msra.mxu0 %v9630
        %10063 = vmatprep.subr.bf16.mxu0 %v9635
        %10064 = vmatpush1.bf16.msra.mxu0 %v9634
        %10065 = vmatprep.subr.bf16.mxu0 %v9639
        %10066 = vmatpush1.bf16.msra.mxu0 %v9638
        %10067 = vmatprep.subr.bf16.mxu0 %v9643
        %10068 = vmatpush1.bf16.msra.mxu0 %v9642
        %10069 = vmatprep.subr.bf16.mxu0 %v9647
        %10070 = vmatpush1.bf16.msra.mxu0 %v9646
        %10071 = vmatprep.subr.bf16.mxu0 %v9651
        %10072 = vmatpush1.bf16.msra.mxu0 %v9650
        %10073 = vmatprep.subr.bf16.mxu0 %v9655
        %10074 = vmatpush1.bf16.msra.mxu0 %v9654
        %10075 = vmatprep.subr.bf16.mxu0 %v9659
        %10076 = vmatpush1.bf16.msra.mxu0 %v9658
        %10077 = vmatprep.subr.bf16.mxu0 %v9663
        %10078 = vmatpush1.bf16.msra.mxu0 %v9662
        %10079 = vmatprep.subr.bf16.mxu0 %v9667
        %10080 = vmatpush1.bf16.msra.mxu0 %v9666
        %10081 = vmatprep.subr.bf16.mxu0 %v9671
        %10082 = vmatpush1.bf16.msra.mxu0 %v9670
        %10083 = vmatprep.mubr.bf16.mxu0 %v8964
        %10084 = vmatmul.mubr.bf16.gmra.mrb[0].mxu0 %v8963
        %v10085 = vpop.f32.mrb[0].mxu0
        %v10086 = vadd.f32 0.0, %v10085
        %v10087 = vpop.f32.mrb[0].mxu0
        %v10088 = vadd.f32 0.0, %v10087
        %v10089 = vpop.f32.mrb[0].mxu0
        %v10090 = vpop.f32.mrb[0].mxu0
        %10091 = vdwg.mxu0
        %10092 = vmatprep.subr.bf16.mxu0 %v9675
        %10093 = vmatpush1.bf16.msra.mxu0 %v9674
        %10094 = vmatprep.subr.bf16.mxu0 %v9679
        %10095 = vmatpush1.bf16.msra.mxu0 %v9678
        %10096 = vmatprep.subr.bf16.mxu0 %v9683
        %10097 = vmatpush1.bf16.msra.mxu0 %v9682
        %10098 = vmatprep.subr.bf16.mxu0 %v9687
        %10099 = vmatpush1.bf16.msra.mxu0 %v9686
        %10100 = vmatprep.subr.bf16.mxu0 %v9691
        %10101 = vmatpush1.bf16.msra.mxu0 %v9690
        %10102 = vmatprep.subr.bf16.mxu0 %v9695
        %10103 = vmatpush1.bf16.msra.mxu0 %v9694
        %10104 = vmatprep.subr.bf16.mxu0 %v9699
        %10105 = vmatpush1.bf16.msra.mxu0 %v9698
        %10106 = vmatprep.subr.bf16.mxu0 %v9703
        %10107 = vmatpush1.bf16.msra.mxu0 %v9702
        %10108 = vmatprep.subr.bf16.mxu0 %v9707
        %10109 = vmatpush1.bf16.msra.mxu0 %v9706
        %10110 = vmatprep.subr.bf16.mxu0 %v9711
        %10111 = vmatpush1.bf16.msra.mxu0 %v9710
        %10112 = vmatprep.subr.bf16.mxu0 %v9715
        %10113 = vmatpush1.bf16.msra.mxu0 %v9714
        %10114 = vmatprep.subr.bf16.mxu0 %v9719
        %10115 = vmatpush1.bf16.msra.mxu0 %v9718
        %10116 = vmatprep.subr.bf16.mxu0 %v9723
        %10117 = vmatpush1.bf16.msra.mxu0 %v9722
        %10118 = vmatprep.subr.bf16.mxu0 %v9727
        %10119 = vmatpush1.bf16.msra.mxu0 %v9726
        %10120 = vmatprep.subr.bf16.mxu0 %v9731
        %10121 = vmatpush1.bf16.msra.mxu0 %v9730
        %10122 = vmatprep.subr.bf16.mxu0 %v9735
        %10123 = vmatpush1.bf16.msra.mxu0 %v9734
        %10124 = vmatprep.mubr.bf16.mxu0 %v8966
        %10125 = vmatmul.mubr.bf16.gmra.mrb[0].mxu0 %v8965
        %v10126 = vpop.f32.mrb[0].mxu0
        %v10127 = vadd.f32 %v10086, %v10126
        %v10128 = vpop.f32.mrb[0].mxu0
        %v10129 = vadd.f32 %v10088, %v10128
        %v10130 = vpop.f32.mrb[0].mxu0
        %v10131 = vpop.f32.mrb[0].mxu0
        %10132 = vdwg.mxu0
        %10133 = vmatprep.subr.bf16.mxu0 %v9739
        %10134 = vmatpush1.bf16.msra.mxu0 %v9738
        %10135 = vmatprep.subr.bf16.mxu0 %v9743
        %10136 = vmatpush1.bf16.msra.mxu0 %v9742
        %10137 = vmatprep.subr.bf16.mxu0 %v9747
        %10138 = vmatpush1.bf16.msra.mxu0 %v9746
        %10139 = vmatprep.subr.bf16.mxu0 %v9751
        %10140 = vmatpush1.bf16.msra.mxu0 %v9750
        %10141 = vmatprep.subr.bf16.mxu0 %v9755
        %10142 = vmatpush1.bf16.msra.mxu0 %v9754
        %10143 = vmatprep.subr.bf16.mxu0 %v9759
        %10144 = vmatpush1.bf16.msra.mxu0 %v9758
        %10145 = vmatprep.subr.bf16.mxu0 %v9763
        %10146 = vmatpush1.bf16.msra.mxu0 %v9762
        %10147 = vmatprep.subr.bf16.mxu0 %v9767
        %10148 = vmatpush1.bf16.msra.mxu0 %v9766
        %10149 = vmatprep.subr.bf16.mxu0 0
        %10150 = vmatpush1.bf16.msra.mxu0 0
        %10151 = vmatprep.subr.bf16.mxu0 0
        %10152 = vmatpush1.bf16.msra.mxu0 0
        %10153 = vmatprep.subr.bf16.mxu0 0
        %10154 = vmatpush1.bf16.msra.mxu0 0
        %10155 = vmatprep.subr.bf16.mxu0 0
        %10156 = vmatpush1.bf16.msra.mxu0 0
        %10157 = vmatprep.subr.bf16.mxu0 0
        %10158 = vmatpush1.bf16.msra.mxu0 0
        %10159 = vmatprep.subr.bf16.mxu0 0
        %10160 = vmatpush1.bf16.msra.mxu0 0
        %10161 = vmatprep.subr.bf16.mxu0 0
        %10162 = vmatpush1.bf16.msra.mxu0 0
        %10163 = vmatprep.subr.bf16.mxu0 0
        %10164 = vmatpush1.bf16.msra.mxu0 0
        %10165 = vmatprep.mubr.bf16.mxu0 0
        %10166 = vmatmul.mubr.bf16.gmra.mrb[0].mxu0 %v8967
        %v10167 = vpop.f32.mrb[0].mxu0
        %v10168 = vadd.f32 %v10127, %v10167
        %v10169 = vpop.f32.mrb[0].mxu0
        %v10170 = vadd.f32 %v10129, %v10169
        %v10171 = vpop.f32.mrb[0].mxu0
        %v10172 = vpop.f32.mrb[0].mxu0
        %10173 = vdwg.mxu0
        %v10174 = vmax.f32 %v10045, %v10047
        %v10175 = vmax.f32 %v10168, %v10170
        %v10176 = vmax.f32 %v10174, %v10175
        %v10177 = vld [vmem:[#allocation8] sm:$0x1]
        %v10179 = vlaneseq
        %v10180 = vshrl.u32 %v10179, 7
        %v10181 = vsub.s32 0, %v10180
        %v10182 = vrot.slane %v10177, %v10181
        %v10184 = vadd.f32 %v10176, %v10182
        %v10185 = vmax.f32 %v10184, 0.0
        %v10186 = vpack.c.bf16 %v10185, %v10185
        %v10187 = vld [vmem:[#allocation10] sm:$0xf]
        %v10188 = vld [vmem:[#allocation10 + $0x4] sm:$0xf]
        %v10189 = vld [vmem:[#allocation10 + $0x8] sm:$0xf]
        %v10190 = vld [vmem:[#allocation10 + $0xc] sm:$0xf]
        %v10191 = vld [vmem:[#allocation10 + $0x10] sm:$0xf]
        %v10192 = vld [vmem:[#allocation10 + $0x14] sm:$0xf]
        %v10193 = vld [vmem:[#allocation10 + $0x18] sm:$0xf]
        %v10194 = vld [vmem:[#allocation10 + $0x1c] sm:$0xf]
        %v10195 = vld [vmem:[#allocation10 + $0x20] sm:$0xf]
        %v10196 = vld [vmem:[#allocation10 + $0x24] sm:$0xf]
        %v10197 = vld [vmem:[#allocation10 + $0x28] sm:$0xf]
        %v10198 = vld [vmem:[#allocation10 + $0x2c] sm:$0xf]
        %v10199 = vld [vmem:[#allocation10 + $0x30] sm:$0xf]
        %v10200 = vld [vmem:[#allocation10 + $0x34] sm:$0xf]
        %v10201 = vld [vmem:[#allocation10 + $0x38] sm:$0xf]
        %v10202 = vld [vmem:[#allocation10 + $0x3c] sm:$0xf]
        %v10203 = vld [vmem:[#allocation11] sm:$0x1]
        %v10205 = vlaneseq
        %v10206 = vshrl.u32 %v10205, 7
        %v10207 = vsub.s32 0, %v10206
        %v10208 = vrot.slane %v10203, %v10207
        %v10226 = vunpack.c.l.b16 %v10187
        %v10227 = vunpack.c.l.b16 %v10188
        %v10228 = vunpack.c.l.b16 %v10189
        %v10229 = vunpack.c.l.b16 %v10190
        %v10230 = vunpack.c.l.b16 %v10191
        %v10231 = vunpack.c.l.b16 %v10192
        %v10232 = vunpack.c.l.b16 %v10193
        %v10233 = vunpack.c.l.b16 %v10194
        %v10234 = vunpack.c.l.b16 %v10195
        %v10235 = vunpack.c.l.b16 %v10196
        %v10236 = vunpack.c.l.b16 %v10197
        %v10237 = vunpack.c.l.b16 %v10198
        %v10238 = vunpack.c.l.b16 %v10199
        %v10239 = vunpack.c.l.b16 %v10200
        %v10240 = vunpack.c.l.b16 %v10201
        %v10241 = vunpack.c.l.b16 %v10202
        %v10242 = vpack.c.b16 %v10227, %v10226
        %v10243 = vpack.c.b16 %v10229, %v10228
        %v10244 = vpack.c.b16 %v10231, %v10230
        %v10245 = vpack.c.b16 %v10233, %v10232
        %v10246 = vpack.c.b16 %v10235, %v10234
        %v10247 = vpack.c.b16 %v10237, %v10236
        %v10248 = vpack.c.b16 %v10239, %v10238
        %v10249 = vpack.c.b16 %v10241, %v10240
        %10258 = vmatprep.subr.bf16.mxu0 0
        %10259 = vmatpush1.bf16.msra.mxu0 %v10242
        %10260 = vmatprep.subr.bf16.mxu0 0
        %10261 = vmatpush1.bf16.msra.mxu0 %v10243
        %10262 = vmatprep.subr.bf16.mxu0 0
        %10263 = vmatpush1.bf16.msra.mxu0 %v10244
        %10264 = vmatprep.subr.bf16.mxu0 0
        %10265 = vmatpush1.bf16.msra.mxu0 %v10245
        %10266 = vmatprep.subr.bf16.mxu0 0
        %10267 = vmatpush1.bf16.msra.mxu0 %v10246
        %10268 = vmatprep.subr.bf16.mxu0 0
        %10269 = vmatpush1.bf16.msra.mxu0 %v10247
        %10270 = vmatprep.subr.bf16.mxu0 0
        %10271 = vmatpush1.bf16.msra.mxu0 %v10248
        %10272 = vmatprep.subr.bf16.mxu0 0
        %10273 = vmatpush1.bf16.msra.mxu0 %v10249
        %10274 = vmatprep.subr.bf16.mxu0 0
        %10275 = vmatpush1.bf16.msra.mxu0 0
        %10276 = vmatprep.subr.bf16.mxu0 0
        %10277 = vmatpush1.bf16.msra.mxu0 0
        %10278 = vmatprep.subr.bf16.mxu0 0
        %10279 = vmatpush1.bf16.msra.mxu0 0
        %10280 = vmatprep.subr.bf16.mxu0 0
        %10281 = vmatpush1.bf16.msra.mxu0 0
        %10282 = vmatprep.subr.bf16.mxu0 0
        %10283 = vmatpush1.bf16.msra.mxu0 0
        %10284 = vmatprep.subr.bf16.mxu0 0
        %10285 = vmatpush1.bf16.msra.mxu0 0
        %10286 = vmatprep.subr.bf16.mxu0 0
        %10287 = vmatpush1.bf16.msra.mxu0 0
        %10288 = vmatprep.subr.bf16.mxu0 0
        %10289 = vmatpush1.bf16.msra.mxu0 0
        %10290 = vmatprep.mubr.bf16.mxu0 0
        %10291 = vmatmul.mubr.bf16.gmra.mrb[0].mxu0 %v10186
        %v10292 = vpop.f32.mrb[0].mxu0
        %v10293 = vadd.f32 %v10208, %v10292
        %v10294 = vpop.f32.mrb[0].mxu0
        %v10295 = vpop.f32.mrb[0].mxu0
        %v10296 = vpop.f32.mrb[0].mxu0
        %10297 = vdwg.mxu0
        %v10298 = vmax.f32 %v10293, 0.0
        %v10299 = vpack.c.bf16 %v10298, %v10298
        %v10300 = vld [vmem:[#allocation13] sm:$0xf]
        %v10301 = vld [vmem:[#allocation13 + $0x4] sm:$0xf]
        %v10302 = vld [vmem:[#allocation13 + $0x8] sm:$0xf]
        %v10303 = vld [vmem:[#allocation13 + $0xc] sm:$0xf]
        %v10304 = vld [vmem:[#allocation13 + $0x10] sm:$0xf]
        %v10305 = vld [vmem:[#allocation13 + $0x14] sm:$0xf]
        %v10306 = vld [vmem:[#allocation13 + $0x18] sm:$0xf]
        %v10307 = vld [vmem:[#allocation13 + $0x1c] sm:$0xf]
        %v10308 = vld [vmem:[#allocation13 + $0x20] sm:$0xf]
        %v10309 = vld [vmem:[#allocation13 + $0x24] sm:$0xf]
        %v10310 = vld [vmem:[#allocation13 + $0x28] sm:$0xf]
        %v10311 = vld [vmem:[#allocation13 + $0x2c] sm:$0xf]
        %v10312 = vld [vmem:[#allocation13 + $0x30] sm:$0xf]
        %v10313 = vld [vmem:[#allocation13 + $0x34] sm:$0xf]
        %v10314 = vld [vmem:[#allocation13 + $0x38] sm:$0xf]
        %v10315 = vld [vmem:[#allocation13 + $0x3c] sm:$0xf]
        %v10316 = vld [vmem:[#allocation14] sm:$0x1]
        %v10318 = vlaneseq
        %v10319 = vshrl.u32 %v10318, 7
        %v10320 = vsub.s32 0, %v10319
        %v10321 = vrot.slane %v10316, %v10320
        %v10339 = vunpack.c.l.b16 %v10300
        %v10340 = vunpack.c.l.b16 %v10301
        %v10341 = vunpack.c.l.b16 %v10302
        %v10342 = vunpack.c.l.b16 %v10303
        %v10343 = vunpack.c.l.b16 %v10304
        %v10344 = vunpack.c.l.b16 %v10305
        %v10345 = vunpack.c.l.b16 %v10306
        %v10346 = vunpack.c.l.b16 %v10307
        %v10347 = vunpack.c.l.b16 %v10308
        %v10348 = vunpack.c.l.b16 %v10309
        %v10349 = vunpack.c.l.b16 %v10310
        %v10350 = vunpack.c.l.b16 %v10311
        %v10351 = vunpack.c.l.b16 %v10312
        %v10352 = vunpack.c.l.b16 %v10313
        %v10353 = vunpack.c.l.b16 %v10314
        %v10354 = vunpack.c.l.b16 %v10315
        %v10355 = vpack.c.b16 %v10340, %v10339
        %v10356 = vpack.c.b16 %v10342, %v10341
        %v10357 = vpack.c.b16 %v10344, %v10343
        %v10358 = vpack.c.b16 %v10346, %v10345
        %v10359 = vpack.c.b16 %v10348, %v10347
        %v10360 = vpack.c.b16 %v10350, %v10349
        %v10361 = vpack.c.b16 %v10352, %v10351
        %v10362 = vpack.c.b16 %v10354, %v10353
        %10371 = vmatprep.subr.bf16.mxu0 0
        %10372 = vmatpush1.bf16.msra.mxu0 %v10355
        %10373 = vmatprep.subr.bf16.mxu0 0
        %10374 = vmatpush1.bf16.msra.mxu0 %v10356
        %10375 = vmatprep.subr.bf16.mxu0 0
        %10376 = vmatpush1.bf16.msra.mxu0 %v10357
        %10377 = vmatprep.subr.bf16.mxu0 0
        %10378 = vmatpush1.bf16.msra.mxu0 %v10358
        %10379 = vmatprep.subr.bf16.mxu0 0
        %10380 = vmatpush1.bf16.msra.mxu0 %v10359
        %10381 = vmatprep.subr.bf16.mxu0 0
        %10382 = vmatpush1.bf16.msra.mxu0 %v10360
        %10383 = vmatprep.subr.bf16.mxu0 0
        %10384 = vmatpush1.bf16.msra.mxu0 %v10361
        %10385 = vmatprep.subr.bf16.mxu0 0
        %10386 = vmatpush1.bf16.msra.mxu0 %v10362
        %10387 = vmatprep.subr.bf16.mxu0 0
        %10388 = vmatpush1.bf16.msra.mxu0 0
        %10389 = vmatprep.subr.bf16.mxu0 0
        %10390 = vmatpush1.bf16.msra.mxu0 0
        %10391 = vmatprep.subr.bf16.mxu0 0
        %10392 = vmatpush1.bf16.msra.mxu0 0
        %10393 = vmatprep.subr.bf16.mxu0 0
        %10394 = vmatpush1.bf16.msra.mxu0 0
        %10395 = vmatprep.subr.bf16.mxu0 0
        %10396 = vmatpush1.bf16.msra.mxu0 0
        %10397 = vmatprep.subr.bf16.mxu0 0
        %10398 = vmatpush1.bf16.msra.mxu0 0
        %10399 = vmatprep.subr.bf16.mxu0 0
        %10400 = vmatpush1.bf16.msra.mxu0 0
        %10401 = vmatprep.subr.bf16.mxu0 0
        %10402 = vmatpush1.bf16.msra.mxu0 0
        %10403 = vmatprep.mubr.bf16.mxu0 0
        %10404 = vmatmul.mubr.bf16.gmra.mrb[0].mxu0 %v10299
        %v10405 = vpop.f32.mrb[0].mxu0
        %v10406 = vadd.f32 %v10321, %v10405
        %v10407 = vpop.f32.mrb[0].mxu0
        %v10408 = vpop.f32.mrb[0].mxu0
        %v10409 = vpop.f32.mrb[0].mxu0
        %10410 = vdwg.mxu0
        %v10411 = vmax.f32 %v10406, 0.0
        %v10412 = vpack.c.bf16 %v10411, %v10411
        %v10413 = vld [vmem:[#allocation16] sm:$0xf]
        %v10414 = vld [vmem:[#allocation16 + $0x4] sm:$0xf]
        %v10415 = vld [vmem:[#allocation16 + $0x8] sm:$0xf]
        %v10416 = vld [vmem:[#allocation16 + $0xc] sm:$0xf]
        %v10417 = vld [vmem:[#allocation16 + $0x10] sm:$0xf]
        %v10418 = vld [vmem:[#allocation16 + $0x14] sm:$0xf]
        %v10419 = vld [vmem:[#allocation16 + $0x18] sm:$0xf]
        %v10420 = vld [vmem:[#allocation16 + $0x1c] sm:$0xf]
        %v10421 = vld [vmem:[#allocation16 + $0x20] sm:$0xf]
        %v10422 = vld [vmem:[#allocation16 + $0x24] sm:$0xf]
        %v10423 = vld [vmem:[#allocation16 + $0x28] sm:$0xf]
        %v10424 = vld [vmem:[#allocation16 + $0x2c] sm:$0xf]
        %v10425 = vld [vmem:[#allocation16 + $0x30] sm:$0xf]
        %v10426 = vld [vmem:[#allocation16 + $0x34] sm:$0xf]
        %v10427 = vld [vmem:[#allocation16 + $0x38] sm:$0xf]
        %v10428 = vld [vmem:[#allocation16 + $0x3c] sm:$0xf]
        %v10429 = vld [vmem:[#allocation17] sm:$0x1]
        %v10431 = vlaneseq
        %v10432 = vshrl.u32 %v10431, 7
        %v10433 = vsub.s32 0, %v10432
        %v10434 = vrot.slane %v10429, %v10433
        %v10452 = vunpack.c.l.b16 %v10413
        %v10453 = vunpack.c.l.b16 %v10414
        %v10454 = vunpack.c.l.b16 %v10415
        %v10455 = vunpack.c.l.b16 %v10416
        %v10456 = vunpack.c.l.b16 %v10417
        %v10457 = vunpack.c.l.b16 %v10418
        %v10458 = vunpack.c.l.b16 %v10419
        %v10459 = vunpack.c.l.b16 %v10420
        %v10460 = vunpack.c.l.b16 %v10421
        %v10461 = vunpack.c.l.b16 %v10422
        %v10462 = vunpack.c.l.b16 %v10423
        %v10463 = vunpack.c.l.b16 %v10424
        %v10464 = vunpack.c.l.b16 %v10425
        %v10465 = vunpack.c.l.b16 %v10426
        %v10466 = vunpack.c.l.b16 %v10427
        %v10467 = vunpack.c.l.b16 %v10428
        %v10468 = vpack.c.b16 %v10453, %v10452
        %v10469 = vpack.c.b16 %v10455, %v10454
        %v10470 = vpack.c.b16 %v10457, %v10456
        %v10471 = vpack.c.b16 %v10459, %v10458
        %v10472 = vpack.c.b16 %v10461, %v10460
        %v10473 = vpack.c.b16 %v10463, %v10462
        %v10474 = vpack.c.b16 %v10465, %v10464
        %v10475 = vpack.c.b16 %v10467, %v10466
        %10484 = vmatprep.subr.bf16.mxu0 0
        %10485 = vmatpush1.bf16.msra.mxu0 %v10468
        %10486 = vmatprep.subr.bf16.mxu0 0
        %10487 = vmatpush1.bf16.msra.mxu0 %v10469
        %10488 = vmatprep.subr.bf16.mxu0 0
        %10489 = vmatpush1.bf16.msra.mxu0 %v10470
        %10490 = vmatprep.subr.bf16.mxu0 0
        %10491 = vmatpush1.bf16.msra.mxu0 %v10471
        %10492 = vmatprep.subr.bf16.mxu0 0
        %10493 = vmatpush1.bf16.msra.mxu0 %v10472
        %10494 = vmatprep.subr.bf16.mxu0 0
        %10495 = vmatpush1.bf16.msra.mxu0 %v10473
        %10496 = vmatprep.subr.bf16.mxu0 0
        %10497 = vmatpush1.bf16.msra.mxu0 %v10474
        %10498 = vmatprep.subr.bf16.mxu0 0
        %10499 = vmatpush1.bf16.msra.mxu0 %v10475
        %10500 = vmatprep.subr.bf16.mxu0 0
        %10501 = vmatpush1.bf16.msra.mxu0 0
        %10502 = vmatprep.subr.bf16.mxu0 0
        %10503 = vmatpush1.bf16.msra.mxu0 0
        %10504 = vmatprep.subr.bf16.mxu0 0
        %10505 = vmatpush1.bf16.msra.mxu0 0
        %10506 = vmatprep.subr.bf16.mxu0 0
        %10507 = vmatpush1.bf16.msra.mxu0 0
        %10508 = vmatprep.subr.bf16.mxu0 0
        %10509 = vmatpush1.bf16.msra.mxu0 0
        %10510 = vmatprep.subr.bf16.mxu0 0
        %10511 = vmatpush1.bf16.msra.mxu0 0
        %10512 = vmatprep.subr.bf16.mxu0 0
        %10513 = vmatpush1.bf16.msra.mxu0 0
        %10514 = vmatprep.subr.bf16.mxu0 0
        %10515 = vmatpush1.bf16.msra.mxu0 0
        %10516 = vmatprep.mubr.bf16.mxu0 0
        %10517 = vmatmul.mubr.bf16.gmra.mrb[0].mxu0 %v10412
        %v10518 = vpop.f32.mrb[0].mxu0
        %v10519 = vadd.f32 %v10434, %v10518
        %v10520 = vpop.f32.mrb[0].mxu0
        %v10521 = vpop.f32.mrb[0].mxu0
        %v10522 = vpop.f32.mrb[0].mxu0
        %10523 = vdwg.mxu0
        %10524 = vst [vmem:[%s515] sm:$0xff] %v10519
        %s10525 = sand.u32 %s275, 1
        %s10526 = scalar_lea.sflag [#allocation4], %s10525
        %s10527 = sand.u32 %s275, 1
        %s10528 = smul.addr %s10527, 8
        %s10529 = scalar_lea.vmem [#allocation19], %s10528
        // Predicated region
        $region105: #{_lambda_.1} parent=63 // pred_check
          %p10530 = pneg %p285
        $region106: #{_lambda_.1} parent=63 // pred_check_branch
          %10532 = sbr.rel (%p10530) target = $region108
        $region107: #{_lambda_.1} parent=63 // pred_region
          %s10534 = ssub.s32 128, 128
          %10535 = vsyncadd %s10526, %s10534
          %s10536 = smul.addr %s31, 128
          %s10537 = scalar_lea.hbm %s11, %s10536
          %s10539 = sshll.u32 %s10529, 4
          %s10540 = int_to_ptr.vmem [resolvable:$true] %s10539
          %10542 = dma.vmem_to_hbm [thread:$0]  %s10540, 128, %s10537, %s10526
        $region108: #{_lambda_.1} parent=63 // pred_fallthru
          _
      $region64: #{_lambda_.1} parent=5 // pred_fallthru
        _
      %p10543 = scmp.le.s32.totalorder 2, %s26
      // Predicated region
      $region109: #{_lambda_.1} parent=5 // pred_check
        %p10544 = pneg %p10543
      $region110: #{_lambda_.1} parent=5 // pred_check_branch
        %10546 = sbr.rel (%p10544) target = $region112
      $region111: #{_lambda_.1} parent=5 // pred_region
        %s10547 = ssub.s32 %s26, 2
        // Predicated region
        $region113: #{_lambda_.1} parent=111 // pred_check
          %p10548 = pneg %p291
        $region114: #{_lambda_.1} parent=111 // pred_check_branch
          %10550 = sbr.rel (%p10548) target = $region116
        $region115: #{_lambda_.1} parent=111 // pred_region
          %s10551 = sand.u32 %s276, 1
          %s10552 = scalar_lea.sflag [#allocation4], %s10551
          %s10553 = sand.u32 %s276, 1
          %s10554 = smul.addr %s10553, 8
          %s10555 = scalar_lea.vmem [#allocation19], %s10554
          %10556 = dma.done %s10552, 128
        $region116: #{_lambda_.1} parent=111 // pred_fallthru
          _
      $region112: #{_lambda_.1} parent=5 // pred_fallthru
        _
    $region6: #{_lambda_.1} parent=1 // loop_footer
      %s30 = sadd.s32 1, %s26
    $region7: #{_lambda_.1} parent=1 // loop_footer_branch
      %25 = sbr.rel target = $region3
    $region8: #{_lambda_.1} parent=1 // loop_exit
      _
    %10557 = vsyncpa [#allocation3], 1
    %s10558 = scalar_lea.sflag [#allocation3], 1
    %10559 = vsyncpa %s10558, 1
    %10560 = vsyncpa [#allocation6], 1
    %10561 = vsyncpa [#allocation9], 1
    %10562 = vsyncpa [#allocation12], 1
    %10563 = vsyncpa [#allocation15], 1
    %10564 = vsyncpa [#allocation18], 1
    %10565 = vsyncpa [#allocation4], 1
    %s10566 = scalar_lea.sflag [#allocation4], 1
    %10567 = vsyncpa %s10566, 1

</llo_original>
